<compile_context>
chip_gen: v7x
topology: tpu7x:2x2x1
jax: 0.10.0
libtpu: 0.0.40
codegen_flags: <defaults>
</compile_context>

<pallas_src>
import jax
import jax.numpy as jnp
from jax import lax
from jax.experimental import pallas as pl
from jax.experimental.pallas import tpu as pltpu

LANE = 128


def _rup(n, m):
    return ((n + m - 1) // m) * m


def _pad_last(x, target):
    pad = target - x.shape[-1]
    if pad == 0:
        return x
    return jnp.pad(x, [(0, 0)] * (x.ndim - 1) + [(0, pad)])


def _vmem_limit_bytes():
    """Chip-aware scoped-VMEM limit (~3/4 of physical: 96 MiB v5e/v6e, 48 MiB v7x)."""
    cap = 64 << 20
    try:
        info = pltpu.get_tpu_info()
        cap = int(getattr(info, "vmem_capacity_bytes", cap)) or cap
    except Exception:
        pass
    return max(32 << 20, min(int(cap * 3 // 4), 100 << 20))


def _largest_divisor_at_most(n, cap):
    # TODO(synk): masked remainder tiles -- a large prime H still degrades to a
    # small divisor here instead of a near-`cap` tile with a ragged last block.
    cap = max(1, min(int(cap), n))
    for d in range(cap, 0, -1):
        if n % d == 0:
            return d
    return 1


# ---------------------------------------------------------------------------
# Kernel 1: ConvTranspose2d(k=2, s=2) with the pixel shuffle done in-kernel.
# ---------------------------------------------------------------------------
def _make_deconv_kernel(th, Win, cin, cu, Wpp, rpad):
    def kernel(x_ref, w_ref, b_ref, o_ref):
        x = x_ref[0].reshape(th * Win, cin)
        y = jnp.dot(x, w_ref[...], preferred_element_type=jnp.float32) + b_ref[...]
        y = y.astype(o_ref.dtype)                 # (th*Win, 4*cu), cols = (kh, kw, co)
        zl = jnp.zeros((th, cu), y.dtype)         # left spatial-pad column
        zr = jnp.zeros((th, rpad * cu), y.dtype)  # right pad up to sublane-aligned Wpp
        halves = []
        for kh in range(2):
            # lane slice (free): this kh's columns are (kw, co) -> already 2w+kw order
            r = y[:, 2 * kh * cu:(2 * kh + 2) * cu].reshape(th, 2 * Win * cu)
            halves.append(jnp.concatenate([zl, r, zr], axis=-1))   # (th, Wpp*cu)
        tile = jnp.concatenate(halves, axis=-1)                    # (th, 2*Wpp*cu)
        o_ref[0] = tile.reshape(2 * th, Wpp, cu)                   # rows = 2h+kh
    return kernel


def conv_transpose_2x2(x, w2, b4, Wpp, *, row_tile=None):
    """x: [B,Hin,Win,cin_p] bf16; w2: [cin_p, 4*cu_p] bf16 (cols kh,kw,co);
    b4: [1, 4*cu_p] f32.  Returns [B, 2*Hin, Wpp, cu_p] bf16 in W-padded layout
    (data at columns [1, 1+2*Win), zeros elsewhere)."""
    B, Hin, Win, cin = x.shape
    c4 = w2.shape[1]
    cu = c4 // 4
    rpad = Wpp - 2 * Win - 1
    assert rpad >= 1
    limit = _vmem_limit_bytes()
    # per input row: double-buffered in/out blocks + f32 matmul result + bf16 temps
    per_row = 4 * Win * cin + 24 * Win * cu + 8 * Wpp * cu
    fixed = 4 * cin * c4 + (1 << 20)
    cap = max(1, int((limit - fixed) / 1.25) // per_row)
    th = row_tile if row_tile is not None else _largest_divisor_at_most(Hin, cap)
    assert Hin % th == 0
    T = Hin // th
    return pl.pallas_call(
        _make_deconv_kernel(th, Win, cin, cu, Wpp, rpad),
        out_shape=jax.ShapeDtypeStruct((B, 2 * Hin, Wpp, cu), jnp.bfloat16),
        grid=(B, T),
        in_specs=[
            pl.BlockSpec((1, th, Win, cin), lambda b, t: (b, t, 0, 0)),
            pl.BlockSpec((cin, c4), lambda b, t: (0, 0)),
            pl.BlockSpec((1, c4), lambda b, t: (0, 0)),
        ],
        out_specs=pl.BlockSpec((1, 2 * th, Wpp, cu), lambda b, t: (b, t, 0, 0)),
        compiler_params=pltpu.CompilerParams(
            dimension_semantics=("parallel", "parallel"),
            vmem_limit_bytes=limit),
    )(x, w2, b4)


# ---------------------------------------------------------------------------
# Kernel 2: [optional fused attention gate] + 3x3 conv (pad=1) + folded BN + ReLU
# ---------------------------------------------------------------------------
def _build_halos(x, th):
    """Per-tile 1-row top/bottom halos: (B, T, 2, Wpp, C), zeros at image edges."""
    B, H, Wpp, C = x.shape
    T = H // th
    zero = jnp.zeros((B, 1, Wpp, C), x.dtype)
    if T == 1:
        tops, bots = zero, zero
    else:
        tops = jnp.concatenate([zero, x[:, th - 1:H - 1:th]], axis=1)
        bots = jnp.concatenate([x[:, th:H:th], zero], axis=1)
    return jnp.stack([tops, bots], axis=2)


def _make_conv_kernel(cins, th, W, Wpp, cout, with_gate, pad_out):
    n_in = len(cins)
    K3 = 3 * sum(cins)
    n_pix = th * Wpp

    def kernel(*refs):
        main_refs = refs[:n_in]
        halo_refs = refs[n_in:2 * n_in]
        i = 2 * n_in
        w_ref, sc_ref, sh_ref = refs[i:i + 3]
        i += 3
        if with_gate:
            wg, bg, wx, bx, wp, bp = refs[i:i + 6]
            i += 6
        o_ref = refs[i]

        # halo-extended row slabs: (th+2, Wpp, C) per input
        slabs = []
        for xr, hr in zip(main_refs, halo_refs):
            h = hr[0, 0]
            slabs.append(jnp.concatenate([h[0:1], xr[0], h[1:2]], axis=0))

        if with_gate:
            # Fused attention gate on the same halo-extended pixels the conv reads.
            P = (th + 2) * Wpp
            upf = slabs[0].reshape(P, cins[0])
            skf = slabs[1].reshape(P, cins[1])
            g1 = jnp.dot(upf, wg[...], preferred_element_type=jnp.float32) + bg[...]
            x1 = jnp.dot(skf, wx[...], preferred_element_type=jnp.float32) + bx[...]
            a = jnp.maximum(g1 + x1, 0.0)
            psi = jnp.sum(a * wp[...], axis=-1, keepdims=True) + bp[...]
            alpha = jax.nn.sigmoid(psi)
            att = (skf.astype(jnp.float32) * alpha).astype(jnp.bfloat16)
            conv_slabs = [slabs[0], att.reshape(th + 2, Wpp, cins[1])]
        else:
            conv_slabs = slabs

        # im2col over the 3 row taps only (contiguous row slabs + lane-axis concat);
        # the (th, Wpp, K3) -> (th*Wpp, K3) flatten is sublane-aligned (Wpp % 8 == 0).
        parts = []
        for s in conv_slabs:
            parts.extend([s[0:th], s[1:th + 1], s[2:th + 2]])
        m = jnp.concatenate(parts, axis=-1).reshape(n_pix, K3)

        # 3 MXU matmuls (one per column tap); column alignment via XLU rotates,
        # accumulation stays in registers (no VMEM scratch round-trips).
        acc = None
        for kw in range(3):
            z = jnp.dot(m, w_ref[kw * K3:(kw + 1) * K3, :],
                        preferred_element_type=jnp.float32)
            shift = (1 - kw) % n_pix
            if shift:
                z = pltpu.roll(z, shift, 0)
            acc = z if acc is None else acc + z

        y = acc * sc_ref[...] + sh_ref[...]          # folded eval-BN, conv bias folded in
        y = jnp.maximum(y, 0.0).reshape(th, Wpp, cout)
        if pad_out:
            col = lax.broadcasted_iota(jnp.int32, (1, Wpp, 1), 1)
            y = jnp.where((col >= 1) & (col <= W), y, 0.0)   # keep pad columns zero
            o_ref[0] = y.astype(o_ref.dtype)
        else:
            o_ref[0] = y[:, 1:W + 1, :].astype(o_ref.dtype)

    return kernel


def fused_conv3x3(inputs, w_slab, scale, shift, W, *, gate=None,
                  out_dtype=jnp.bfloat16, pad_out=True, row_tile=None):
    """3x3 conv (pad=1) + folded eval-BatchNorm(+bias) + ReLU, grid (B, row tiles).

    inputs: list of [B, H, Wpp, C_i] bf16, W-padded layout (data at cols [1, 1+W)).
    w_slab: [9*sum(C_i), cout] bf16, row order (kw, [per input: (kh, ci)]).
    scale/shift: [1, cout] f32 (conv bias already folded into shift).
    gate:   None, or packed-param dict -> fuse the attention gate; inputs must then
            be [upsampled, skip] and the conv consumes [upsampled, attended].
    pad_out: True -> output stays W-padded for the next conv; False -> [B,H,W,cout].
    """
    B, H, Wpp, _ = inputs[0].shape
    cins = [int(t.shape[-1]) for t in inputs]
    cout = int(w_slab.shape[-1])
    K3 = 3 * sum(cins)
    assert w_slab.shape[0] == 3 * K3 and Wpp % 8 == 0 and Wpp >= W + 2

    limit = _vmem_limit_bytes()
    out_b = jnp.dtype(out_dtype).itemsize
    c_tot = sum(cins)
    # per output row: double-buffered in/out blocks + slabs + im2col + f32 accumulators
    per_row = Wpp * (4 * c_tot + 2 * out_b * cout + 2 * c_tot + 6 * c_tot + 12 * cout)
    if gate is not None:
        ci = int(gate["ag_wg"].shape[-1])
        per_row += Wpp * (12 * ci + 4 * cins[1])
    fixed = 4 * (3 * K3) * cout + (1 << 20)          # resident weight slab (x2) + slack
    cap = max(1, int((limit - fixed) / 1.25) // per_row)
    th = row_tile if row_tile is not None else _largest_divisor_at_most(H, cap)
    assert H % th == 0
    T = H // th

    halos = [_build_halos(t, th) for t in inputs]

    in_specs = [pl.BlockSpec((1, th, Wpp, c), lambda b, t: (b, t, 0, 0)) for c in cins]
    in_specs += [pl.BlockSpec((1, 1, 2, Wpp, c), lambda b, t: (b, t, 0, 0, 0)) for c in cins]
    in_specs += [
        pl.BlockSpec((3 * K3, cout), lambda b, t: (0, 0)),
        pl.BlockSpec((1, cout), lambda b, t: (0, 0)),
        pl.BlockSpec((1, cout), lambda b, t: (0, 0)),
    ]
    args = list(inputs) + halos + [w_slab, scale, shift]
    if gate is not None:
        gargs = [gate["ag_wg"], gate["ag_bg"], gate["ag_wx"], gate["ag_bx"],
                 gate["ag_wp"], gate["ag_bp"]]
        in_specs += [pl.BlockSpec(g.shape, lambda b, t: (0, 0)) for g in gargs]
        args += gargs

    Wout = Wpp if pad_out else W
    return pl.pallas_call(
        _make_conv_kernel(cins, th, W, Wpp, cout, gate is not None, pad_out),
        out_shape=jax.ShapeDtypeStruct((B, H, Wout, cout), out_dtype),
        grid=(B, T),
        in_specs=in_specs,
        out_specs=pl.BlockSpec((1, th, Wout, cout), lambda b, t: (b, t, 0, 0)),
        compiler_params=pltpu.CompilerParams(
            dimension_semantics=("parallel", "parallel"),
            vmem_limit_bytes=limit),
    )(*args)


# ---------------------------------------------------------------------------
# Parameters: raw (PyTorch-equivalent) init + packing into kernel layouts.
# ---------------------------------------------------------------------------
def init_params(key, in_ch, skip_ch, out_ch):
    inter = max(skip_ch // 2, 1)
    cat_ch = in_ch + skip_ch
    ks = jax.random.split(key, 24)

    def w(k, shape, s=0.1):
        return s * jax.random.normal(k, shape, jnp.float32)

    def bn(k, ch):
        k1, k2, k3, k4 = jax.random.split(k, 4)
        return dict(gamma=1.0 + 0.1 * jax.random.normal(k1, (ch,), jnp.float32),
                    beta=0.1 * jax.random.normal(k2, (ch,), jnp.float32),
                    mean=0.1 * jax.random.normal(k3, (ch,), jnp.float32),
                    var=1.0 + 0.2 * jax.random.uniform(k4, (ch,), jnp.float32))

    bn1, bn2 = bn(ks[20], out_ch), bn(ks[21], out_ch)
    return dict(
        in_ch=in_ch, skip_ch=skip_ch, out_ch=out_ch, inter=inter,
        up_w=w(ks[0], (in_ch, in_ch, 2, 2)), up_b=w(ks[1], (in_ch,)),
        ag_wg=w(ks[2], (in_ch, inter)), ag_bg=w(ks[3], (inter,)),
        ag_wx=w(ks[4], (skip_ch, inter)), ag_bx=w(ks[5], (inter,)),
        ag_wp=w(ks[6], (inter, 1)), ag_bp=w(ks[7], (1,)),
        c1_w=w(ks[8], (3, 3, cat_ch, out_ch)), c1_b=w(ks[9], (out_ch,)),
        c1_gamma=bn1["gamma"], c1_beta=bn1["beta"], c1_mean=bn1["mean"], c1_var=bn1["var"],
        c2_w=w(ks[12], (3, 3, out_ch, out_ch)), c2_b=w(ks[13], (out_ch,)),
        c2_gamma=bn2["gamma"], c2_beta=bn2["beta"], c2_mean=bn2["mean"], c2_var=bn2["var"],
    )


def pack_params(p):
    eps = 1e-5
    in_ch, skip_ch, out_ch, inter = p["in_ch"], p["skip_ch"], p["out_ch"], p["inter"]
    cin_p = _rup(in_ch, LANE)
    cu_p = cin_p                                  # transposed conv keeps in_ch channels
    cs_p = _rup(skip_ch, LANE)
    ci_p = _rup(inter, LANE)
    co_p = _rup(out_ch, LANE)

    def padmat(m, r, c):
        return jnp.pad(m, ((0, r - m.shape[0]), (0, c - m.shape[1])))

    def padv(v, n):
        return jnp.pad(v, (0, n - v.shape[0])).reshape(1, n)

    # ConvTranspose2d weight [Cin, Cout, 2, 2] -> [cin_p, 4*cu_p], columns (kh, kw, co)
    wt = jnp.transpose(p["up_w"], (0, 2, 3, 1))
    wt = jnp.pad(wt, ((0, cin_p - in_ch), (0, 0), (0, 0), (0, cu_p - in_ch)))
    up_w = wt.reshape(cin_p, 4 * cu_p).astype(jnp.bfloat16)
    up_b = jnp.tile(jnp.pad(p["up_b"], (0, cu_p - in_ch)), 4).reshape(1, 4 * cu_p)

    def conv_slab(w_list, cps):
        blocks = []
        for wi, cp_i in zip(w_list, cps):          # wi: (kh, kw, ci, co)
            wi = jnp.pad(wi, ((0, 0), (0, 0),
                              (0, cp_i - wi.shape[2]), (0, co_p - wi.shape[3])))
            blocks.append(jnp.transpose(wi, (1, 0, 2, 3)).reshape(3, 3 * cp_i, co_p))
        slab = jnp.concatenate(blocks, axis=1)     # (kw, K3, co)
        return slab.reshape(-1, co_p).astype(jnp.bfloat16)

    def bn_fold(prefix):                           # fold conv bias into the BN shift
        scale = p[prefix + "_gamma"] / jnp.sqrt(p[prefix + "_var"] + eps)
        shift = p[prefix + "_beta"] + (p[prefix + "_b"] - p[prefix + "_mean"]) * scale
        return padv(scale, co_p), padv(shift, co_p)

    c1_scale, c1_shift = bn_fold("c1")
    c2_scale, c2_shift = bn_fold("c2")
    # first conv consumes concat([upsampled(in_ch), attended(skip_ch)]) -> split slab
    c1_w = conv_slab([p["c1_w"][:, :, :in_ch, :], p["c1_w"][:, :, in_ch:, :]],
                     [cu_p, cs_p])
    c2_w = conv_slab([p["c2_w"]], [co_p])

    return dict(
        out_ch=out_ch, cin_p=cin_p, cu_p=cu_p, cs_p=cs_p, co_p=co_p,
        up_w=up_w, up_b=up_b,
        ag_wg=padmat(p["ag_wg"], cu_p, ci_p).astype(jnp.bfloat16),
        ag_bg=padv(p["ag_bg"], ci_p),
        ag_wx=padmat(p["ag_wx"], cs_p, ci_p).astype(jnp.bfloat16),
        ag_bx=padv(p["ag_bx"], ci_p),
        ag_wp=jnp.pad(p["ag_wp"][:, 0], (0, ci_p - inter)).reshape(1, ci_p),
        ag_bp=p["ag_bp"].reshape(1, 1),
        c1_w=c1_w, c1_scale=c1_scale, c1_shift=c1_shift,
        c2_w=c2_w, c2_scale=c2_scale, c2_shift=c2_shift,
    )


# ---------------------------------------------------------------------------
# Full forward pass (NCHW in / NCHW out, like the PyTorch module)
# ---------------------------------------------------------------------------
def attention_decoder_block(kp, x_nchw, skip_nchw, *, conv_row_tile=None, up_row_tile=None):
    B = x_nchw.shape[0]
    Hin, Win = x_nchw.shape[2], x_nchw.shape[3]
    Hs, Ws = skip_nchw.shape[2], skip_nchw.shape[3]
    # TODO(synk): F.interpolate bilinear fallback for 2*Hin != Hs is not implemented.
    assert (2 * Hin, 2 * Win) == (Hs, Ws)
    Wpp = _rup(Ws + 2, 8)                         # 1 + Ws + right zero-pad, sublane aligned

    x = jnp.transpose(x_nchw, (0, 2, 3, 1))
    x = _pad_last(x, kp["cin_p"]).astype(jnp.bfloat16)

    skip = jnp.transpose(skip_nchw, (0, 2, 3, 1))
    skip = jnp.pad(skip, ((0, 0), (0, 0), (1, Wpp - Ws - 1),
                          (0, kp["cs_p"] - skip.shape[-1]))).astype(jnp.bfloat16)

    # upsample; pixel shuffle + W-padded layout are produced inside the kernel
    up = conv_transpose_2x2(x, kp["up_w"], kp["up_b"], Wpp, row_tile=up_row_tile)

    # attention gate + channel concat + conv3x3 + BN + ReLU, all fused
    h = fused_conv3x3([up, skip], kp["c1_w"], kp["c1_scale"], kp["c1_shift"], Ws,
                      gate=kp, out_dtype=jnp.bfloat16, pad_out=True,
                      row_tile=conv_row_tile)
    h = fused_conv3x3([h], kp["c2_w"], kp["c2_scale"], kp["c2_shift"], Ws,
                      gate=None, out_dtype=jnp.float32, pad_out=False,
                      row_tile=conv_row_tile)

    # feature_attention is None (attention_type=None); dropout=0.0 is a no-op.
    h = h[..., :kp["out_ch"]]
    return jnp.transpose(h, (0, 3, 1, 2))


# ---------------------------------------------------------------------------
# Pure-JAX f32 reference (mirrors the PyTorch module in eval mode)
# ---------------------------------------------------------------------------
def reference_forward(p, x, skip):
    eps = 1e-5
    B, cin, Hin, Win = x.shape
    up = jnp.einsum("nchw,cokl->nohkwl", x, p["up_w"]).reshape(B, cin, 2 * Hin, 2 * Win)
    up = up + p["up_b"][None, :, None, None]

    def c1x1(t, wmat, b):
        return jnp.einsum("nchw,cd->ndhw", t, wmat) + b[None, :, None, None]

    a = jnp.maximum(c1x1(up, p["ag_wg"], p["ag_bg"]) + c1x1(skip, p["ag_wx"], p["ag_bx"]), 0.0)
    alpha = jax.nn.sigmoid(c1x1(a, p["ag_wp"], p["ag_bp"]))
    h = jnp.concatenate([up, skip * alpha], axis=1)

    def conv_bn_relu(t, w_hwio, b, gamma, beta, mean, var):
        y = lax.conv_general_dilated(t, w_hwio, window_strides=(1, 1),
                                     padding=((1, 1), (1, 1)),
                                     dimension_numbers=("NCHW", "HWIO", "NCHW"))
        y = y + b[None, :, None, None]
        y = (y - mean[None, :, None, None]) / jnp.sqrt(var + eps)[None, :, None, None]
        y = y * gamma[None, :, None, None] + beta[None, :, None, None]
        return jnp.maximum(y, 0.0)

    h = conv_bn_relu(h, p["c1_w"], p["c1_b"], p["c1_gamma"], p["c1_beta"],
                     p["c1_mean"], p["c1_var"])
    h = conv_bn_relu(h, p["c2_w"], p["c2_b"], p["c2_gamma"], p["c2_beta"],
                     p["c2_mean"], p["c2_var"])
    return h


if __name__ == "__main__":
    B, in_ch, skip_ch, out_ch = 2, 4, 4, 8
    Hin = Win = 8            # previous decoder level
    Hs = Ws = 16             # skip connection (2x spatial)

    key = jax.random.PRNGKey(0)
    kx, ksk, kparam = jax.random.split(key, 3)
    x = jax.random.normal(kx, (B, in_ch, Hin, Win), jnp.float32)       # NCHW
    skip = jax.random.normal(ksk, (B, skip_ch, Hs, Ws), jnp.float32)   # NCHW

    raw = init_params(kparam, in_ch, skip_ch, out_ch)
    kp = pack_params(raw)

    ref = reference_forward(raw, x, skip)
    tol = 5e-2 * (float(jnp.max(jnp.abs(ref))) + 1e-6) + 1e-3

    # default (single-tile) configuration
    out = jax.block_until_ready(jax.jit(lambda a, b: attention_decoder_block(kp, a, b))(x, skip))
    assert out.shape == (B, out_ch, Hs, Ws), out.shape
    assert bool(jnp.all(jnp.isfinite(out)))
    err = float(jnp.max(jnp.abs(out - ref)))
    assert err <= tol, (err, tol)

    # forced multi-tile configuration: exercises the halo rows / row-tiled path
    out2 = jax.block_until_ready(jax.jit(
        lambda a, b: attention_decoder_block(kp, a, b, conv_row_tile=4, up_row_tile=2))(x, skip))
    err2 = float(jnp.max(jnp.abs(out2 - ref)))
    assert err2 <= tol, (err2, tol)

    print("KERNEL_OK")
</pallas_src>

<mosaic_0001>
module attributes {stable_mosaic.version = 11 : i64} {
  func.func @kernel(%arg0: i32, %arg1: i32, %arg2: memref<1x8x8x128xbf16, #tpu.memory_space<vmem>>, %arg3: memref<128x512xbf16, #tpu.memory_space<vmem>>, %arg4: memref<1x512xf32, #tpu.memory_space<vmem>>, %arg5: memref<1x16x24x128xbf16, #tpu.memory_space<vmem>>) attributes {dimension_semantics = [#tpu.dimension_semantics<parallel>, #tpu.dimension_semantics<parallel>], iteration_bounds = array<i64: 2, 1>, scalar_prefetch = 0 : i64, scratch_operands = 0 : i64, tpu.core_type = #tpu.core_type<tc>, window_params = [{transform_indices = @transform_0, window_bounds = array<i64: 1, 8, 8, 128>}, {pipeline_mode = #tpu.pipeline_mode<synchronous>, transform_indices = @transform_1, window_bounds = array<i64: 128, 512>}, {pipeline_mode = #tpu.pipeline_mode<synchronous>, transform_indices = @transform_2, window_bounds = array<i64: 1, 512>}, {transform_indices = @transform_3, window_bounds = array<i64: 1, 16, 24, 128>}]} {
    %c0 = arith.constant 0 : index
    %c0_0 = arith.constant 0 : index
    %c0_1 = arith.constant 0 : index
    %c0_2 = arith.constant 0 : index
    %0 = vector.load %arg2[%c0, %c0_0, %c0_1, %c0_2] : memref<1x8x8x128xbf16, #tpu.memory_space<vmem>>, vector<1x8x8x128xbf16>
    %1 = vector.shape_cast %0 : vector<1x8x8x128xbf16> to vector<8x8x128xbf16>
    %2 = vector.shape_cast %1 : vector<8x8x128xbf16> to vector<64x128xbf16>
    %c0_3 = arith.constant 0 : index
    %c0_4 = arith.constant 0 : index
    %3 = vector.load %arg3[%c0_3, %c0_4] : memref<128x512xbf16, #tpu.memory_space<vmem>>, vector<128x512xbf16>
    %cst = arith.constant dense<0.000000e+00> : vector<64x512xf32>
    %4 = tpu.matmul %2, %3, %cst {dimension_numbers = #tpu.dot_dimension_numbers<[1], [0], [0], [1], [0, 0, 1, 1], [], []>} : vector<64x128xbf16>, vector<128x512xbf16>, vector<64x512xf32> -> vector<64x512xf32>
    %c0_5 = arith.constant 0 : index
    %c0_6 = arith.constant 0 : index
    %5 = vector.load %arg4[%c0_5, %c0_6] : memref<1x512xf32, #tpu.memory_space<vmem>>, vector<1x512xf32>
    %6 = vector.broadcast %5 : vector<1x512xf32> to vector<64x512xf32>
    %7 = arith.addf %4, %6 : vector<64x512xf32>
    %8 = arith.truncf %7 : vector<64x512xf32> to vector<64x512xbf16>
    %cst_7 = arith.constant 0.000000e+00 : bf16
    %9 = vector.broadcast %cst_7 : bf16 to vector<8x128xbf16>
    %cst_8 = arith.constant 0.000000e+00 : bf16
    %10 = vector.broadcast %cst_8 : bf16 to vector<8x896xbf16>
    %11 = vector.extract_strided_slice %8 {offsets = [0, 0], sizes = [64, 256], strides = [1, 1]} : vector<64x512xbf16> to vector<64x256xbf16>
    %12 = vector.shape_cast %11 : vector<64x256xbf16> to vector<8x2048xbf16>
    %13 = tpu.concatenate %9, %12, %10 in 1 : vector<8x128xbf16>, vector<8x2048xbf16>, vector<8x896xbf16> -> vector<8x3072xbf16>
    %14 = vector.extract_strided_slice %8 {offsets = [0, 256], sizes = [64, 256], strides = [1, 1]} : vector<64x512xbf16> to vector<64x256xbf16>
    %15 = vector.shape_cast %14 : vector<64x256xbf16> to vector<8x2048xbf16>
    %16 = tpu.concatenate %9, %15, %10 in 1 : vector<8x128xbf16>, vector<8x2048xbf16>, vector<8x896xbf16> -> vector<8x3072xbf16>
    %17 = tpu.concatenate %13, %16 in 1 : vector<8x3072xbf16>, vector<8x3072xbf16> -> vector<8x6144xbf16>
    %18 = vector.shape_cast %17 : vector<8x6144xbf16> to vector<16x24x128xbf16>
    %c0_9 = arith.constant 0 : index
    %c0_10 = arith.constant 0 : index
    %c0_11 = arith.constant 0 : index
    %c0_12 = arith.constant 0 : index
    %19 = vector.load %arg5[%c0_9, %c0_10, %c0_11, %c0_12] : memref<1x16x24x128xbf16, #tpu.memory_space<vmem>>, vector<1x16x24x128xbf16>
    %20 = vector.shape_cast %19 : vector<1x16x24x128xbf16> to vector<16x24x128xbf16>
    %21 = vector.shape_cast %18 : vector<16x24x128xbf16> to vector<1x16x24x128xbf16>
    tpu.vector_store %arg5[%c0_9, %c0_10, %c0_11, %c0_12], %21 {strides = array<i32>} : memref<1x16x24x128xbf16, #tpu.memory_space<vmem>>, vector<1x16x24x128xbf16>,
    return
  }
  func.func @transform_0(%arg0: i32, %arg1: i32) -> (i32, i32, i32, i32) {
    %c0_i32 = arith.constant 0 : i32
    %c0_i32_0 = arith.constant 0 : i32
    %c0_i32_1 = arith.constant 0 : i32
    return %arg0, %arg1, %c0_i32, %c0_i32_0 : i32, i32, i32, i32
  }
  func.func @transform_1(%arg0: i32, %arg1: i32) -> (i32, i32) {
    %c0_i32 = arith.constant 0 : i32
    %c0_i32_0 = arith.constant 0 : i32
    %c0_i32_1 = arith.constant 0 : i32
    return %c0_i32, %c0_i32_0 : i32, i32
  }
  func.func @transform_2(%arg0: i32, %arg1: i32) -> (i32, i32) {
    %c0_i32 = arith.constant 0 : i32
    %c0_i32_0 = arith.constant 0 : i32
    %c0_i32_1 = arith.constant 0 : i32
    return %c0_i32, %c0_i32_0 : i32, i32
  }
  func.func @transform_3(%arg0: i32, %arg1: i32) -> (i32, i32, i32, i32) {
    %c0_i32 = arith.constant 0 : i32
    %c0_i32_0 = arith.constant 0 : i32
    %c0_i32_1 = arith.constant 0 : i32
    return %arg0, %arg1, %c0_i32, %c0_i32_0 : i32, i32, i32, i32
  }
}

module attributes {stable_mosaic.version = 11 : i64} {
  func.func @kernel(%arg0: i32, %arg1: i32, %arg2: memref<1x16x24x128xbf16, #tpu.memory_space<vmem>>, %arg3: memref<1x16x24x128xbf16, #tpu.memory_space<vmem>>, %arg4: memref<1x1x2x24x128xbf16, #tpu.memory_space<vmem>>, %arg5: memref<1x1x2x24x128xbf16, #tpu.memory_space<vmem>>, %arg6: memref<2304x128xbf16, #tpu.memory_space<vmem>>, %arg7: memref<1x128xf32, #tpu.memory_space<vmem>>, %arg8: memref<1x128xf32, #tpu.memory_space<vmem>>, %arg9: memref<128x128xbf16, #tpu.memory_space<vmem>>, %arg10: memref<1x128xf32, #tpu.memory_space<vmem>>, %arg11: memref<128x128xbf16, #tpu.memory_space<vmem>>, %arg12: memref<1x128xf32, #tpu.memory_space<vmem>>, %arg13: memref<1x128xf32, #tpu.memory_space<vmem>>, %arg14: memref<1x1xf32, #tpu.memory_space<vmem>>, %arg15: memref<1x16x24x128xbf16, #tpu.memory_space<vmem>>) attributes {dimension_semantics = [#tpu.dimension_semantics<parallel>, #tpu.dimension_semantics<parallel>], iteration_bounds = array<i64: 2, 1>, scalar_prefetch = 0 : i64, scratch_operands = 0 : i64, tpu.core_type = #tpu.core_type<tc>, window_params = [{transform_indices = @transform_0, window_bounds = array<i64: 1, 16, 24, 128>}, {transform_indices = @transform_1, window_bounds = array<i64: 1, 16, 24, 128>}, {transform_indices = @transform_2, window_bounds = array<i64: 1, 1, 2, 24, 128>}, {transform_indices = @transform_3, window_bounds = array<i64: 1, 1, 2, 24, 128>}, {pipeline_mode = #tpu.pipeline_mode<synchronous>, transform_indices = @transform_4, window_bounds = array<i64: 2304, 128>}, {pipeline_mode = #tpu.pipeline_mode<synchronous>, transform_indices = @transform_5, window_bounds = array<i64: 1, 128>}, {pipeline_mode = #tpu.pipeline_mode<synchronous>, transform_indices = @transform_6, window_bounds = array<i64: 1, 128>}, {pipeline_mode = #tpu.pipeline_mode<synchronous>, transform_indices = @transform_7, window_bounds = array<i64: 128, 128>}, {pipeline_mode = #tpu.pipeline_mode<synchronous>, transform_indices = @transform_8, window_bounds = array<i64: 1, 128>}, {pipeline_mode = #tpu.pipeline_mode<synchronous>, transform_indices = @transform_9, window_bounds = array<i64: 128, 128>}, {pipeline_mode = #tpu.pipeline_mode<synchronous>, transform_indices = @transform_10, window_bounds = array<i64: 1, 128>}, {pipeline_mode = #tpu.pipeline_mode<synchronous>, transform_indices = @transform_11, window_bounds = array<i64: 1, 128>}, {pipeline_mode = #tpu.pipeline_mode<synchronous>, transform_indices = @transform_12, window_bounds = array<i64: 1, 1>}, {transform_indices = @transform_13, window_bounds = array<i64: 1, 16, 24, 128>}]} {
    %c0 = arith.constant 0 : index
    %c0_0 = arith.constant 0 : index
    %c0_1 = arith.constant 0 : index
    %c0_2 = arith.constant 0 : index
    %c0_3 = arith.constant 0 : index
    %0 = vector.load %arg4[%c0, %c0_0, %c0_1, %c0_2, %c0_3] : memref<1x1x2x24x128xbf16, #tpu.memory_space<vmem>>, vector<1x1x2x24x128xbf16>
    %1 = vector.shape_cast %0 : vector<1x1x2x24x128xbf16> to vector<2x24x128xbf16>
    %2 = vector.extract_strided_slice %1 {offsets = [0, 0, 0], sizes = [1, 24, 128], strides = [1, 1, 1]} : vector<2x24x128xbf16> to vector<1x24x128xbf16>
    %c0_4 = arith.constant 0 : index
    %c0_5 = arith.constant 0 : index
    %c0_6 = arith.constant 0 : index
    %c0_7 = arith.constant 0 : index
    %3 = vector.load %arg2[%c0_4, %c0_5, %c0_6, %c0_7] : memref<1x16x24x128xbf16, #tpu.memory_space<vmem>>, vector<1x16x24x128xbf16>
    %4 = vector.shape_cast %3 : vector<1x16x24x128xbf16> to vector<16x24x128xbf16>
    %5 = vector.extract_strided_slice %1 {offsets = [1, 0, 0], sizes = [1, 24, 128], strides = [1, 1, 1]} : vector<2x24x128xbf16> to vector<1x24x128xbf16>
    %6 = tpu.concatenate %2, %4, %5 in 0 : vector<1x24x128xbf16>, vector<16x24x128xbf16>, vector<1x24x128xbf16> -> vector<18x24x128xbf16>
    %c0_8 = arith.constant 0 : index
    %c0_9 = arith.constant 0 : index
    %c0_10 = arith.constant 0 : index
    %c0_11 = arith.constant 0 : index
    %c0_12 = arith.constant 0 : index
    %7 = vector.load %arg5[%c0_8, %c0_9, %c0_10, %c0_11, %c0_12] : memref<1x1x2x24x128xbf16, #tpu.memory_space<vmem>>, vector<1x1x2x24x128xbf16>
    %8 = vector.shape_cast %7 : vector<1x1x2x24x128xbf16> to vector<2x24x128xbf16>
    %9 = vector.extract_strided_slice %8 {offsets = [0, 0, 0], sizes = [1, 24, 128], strides = [1, 1, 1]} : vector<2x24x128xbf16> to vector<1x24x128xbf16>
    %c0_13 = arith.constant 0 : index
    %c0_14 = arith.constant 0 : index
    %c0_15 = arith.constant 0 : index
    %c0_16 = arith.constant 0 : index
    %10 = vector.load %arg3[%c0_13, %c0_14, %c0_15, %c0_16] : memref<1x16x24x128xbf16, #tpu.memory_space<vmem>>, vector<1x16x24x128xbf16>
    %11 = vector.shape_cast %10 : vector<1x16x24x128xbf16> to vector<16x24x128xbf16>
    %12 = vector.extract_strided_slice %8 {offsets = [1, 0, 0], sizes = [1, 24, 128], strides = [1, 1, 1]} : vector<2x24x128xbf16> to vector<1x24x128xbf16>
    %13 = tpu.concatenate %9, %11, %12 in 0 : vector<1x24x128xbf16>, vector<16x24x128xbf16>, vector<1x24x128xbf16> -> vector<18x24x128xbf16>
    %14 = vector.shape_cast %6 : vector<18x24x128xbf16> to vector<432x128xbf16>
    %15 = vector.shape_cast %13 : vector<18x24x128xbf16> to vector<432x128xbf16>
    %c0_17 = arith.constant 0 : index
    %c0_18 = arith.constant 0 : index
    %16 = vector.load %arg9[%c0_17, %c0_18] : memref<128x128xbf16, #tpu.memory_space<vmem>>, vector<128x128xbf16>
    %cst = arith.constant dense<0.000000e+00> : vector<432x128xf32>
    %17 = tpu.matmul %14, %16, %cst {dimension_numbers = #tpu.dot_dimension_numbers<[1], [0], [0], [1], [0, 0, 1, 1], [], []>} : vector<432x128xbf16>, vector<128x128xbf16>, vector<432x128xf32> -> vector<432x128xf32>
    %c0_19 = arith.constant 0 : index
    %c0_20 = arith.constant 0 : index
    %18 = vector.load %arg10[%c0_19, %c0_20] : memref<1x128xf32, #tpu.memory_space<vmem>>, vector<1x128xf32>
    %19 = vector.broadcast %18 : vector<1x128xf32> to vector<432x128xf32>
    %20 = arith.addf %17, %19 : vector<432x128xf32>
    %c0_21 = arith.constant 0 : index
    %c0_22 = arith.constant 0 : index
    %21 = vector.load %arg11[%c0_21, %c0_22] : memref<128x128xbf16, #tpu.memory_space<vmem>>, vector<128x128xbf16>
    %cst_23 = arith.constant dense<0.000000e+00> : vector<432x128xf32>
    %22 = tpu.matmul %15, %21, %cst_23 {dimension_numbers = #tpu.dot_dimension_numbers<[1], [0], [0], [1], [0, 0, 1, 1], [], []>} : vector<432x128xbf16>, vector<128x128xbf16>, vector<432x128xf32> -> vector<432x128xf32>
    %c0_24 = arith.constant 0 : index
    %c0_25 = arith.constant 0 : index
    %23 = vector.load %arg12[%c0_24, %c0_25] : memref<1x128xf32, #tpu.memory_space<vmem>>, vector<1x128xf32>
    %24 = vector.broadcast %23 : vector<1x128xf32> to vector<432x128xf32>
    %25 = arith.addf %22, %24 : vector<432x128xf32>
    %26 = arith.addf %20, %25 : vector<432x128xf32>
    %cst_26 = arith.constant 0.000000e+00 : f32
    %27 = vector.broadcast %cst_26 : f32 to vector<432x128xf32>
    %28 = arith.maximumf %26, %27 : vector<432x128xf32>
    %c0_27 = arith.constant 0 : index
    %c0_28 = arith.constant 0 : index
    %29 = vector.load %arg13[%c0_27, %c0_28] : memref<1x128xf32, #tpu.memory_space<vmem>>, vector<1x128xf32>
    %30 = vector.broadcast %29 : vector<1x128xf32> to vector<432x128xf32>
    %31 = arith.mulf %28, %30 : vector<432x128xf32>
    %cst_29 = arith.constant dense<0.000000e+00> : vector<432xf32>
    %32 = vector.multi_reduction <add>, %31, %cst_29 [1] : vector<432x128xf32> to vector<432xf32>
    %33 = vector.shape_cast %32 : vector<432xf32> to vector<432x1xf32>
    %c0_30 = arith.constant 0 : index
    %c0_31 = arith.constant 0 : index
    %34 = vector.load %arg14[%c0_30, %c0_31] : memref<1x1xf32, #tpu.memory_space<vmem>>, vector<1x1xf32>
    %35 = vector.broadcast %34 : vector<1x1xf32> to vector<432x1xf32>
    %36 = arith.addf %33, %35 : vector<432x1xf32>
    %37 = arith.negf %36 : vector<432x1xf32>
    %38 = math.exp %37 : vector<432x1xf32>
    %cst_32 = arith.constant 1.000000e+00 : f32
    %39 = vector.broadcast %cst_32 : f32 to vector<432x1xf32>
    %40 = arith.addf %39, %38 : vector<432x1xf32>
    %41 = arith.divf %39, %40 : vector<432x1xf32>
    %42 = arith.extf %15 : vector<432x128xbf16> to vector<432x128xf32>
    %43 = vector.broadcast %41 : vector<432x1xf32> to vector<432x128xf32>
    %44 = arith.mulf %42, %43 : vector<432x128xf32>
    %45 = arith.truncf %44 : vector<432x128xf32> to vector<432x128xbf16>
    %46 = vector.shape_cast %45 : vector<432x128xbf16> to vector<18x24x128xbf16>
    %47 = vector.extract_strided_slice %6 {offsets = [0, 0, 0], sizes = [16, 24, 128], strides = [1, 1, 1]} : vector<18x24x128xbf16> to vector<16x24x128xbf16>
    %48 = vector.extract_strided_slice %6 {offsets = [1, 0, 0], sizes = [16, 24, 128], strides = [1, 1, 1]} : vector<18x24x128xbf16> to vector<16x24x128xbf16>
    %49 = vector.extract_strided_slice %6 {offsets = [2, 0, 0], sizes = [16, 24, 128], strides = [1, 1, 1]} : vector<18x24x128xbf16> to vector<16x24x128xbf16>
    %50 = vector.extract_strided_slice %46 {offsets = [0, 0, 0], sizes = [16, 24, 128], strides = [1, 1, 1]} : vector<18x24x128xbf16> to vector<16x24x128xbf16>
    %51 = vector.extract_strided_slice %46 {offsets = [1, 0, 0], sizes = [16, 24, 128], strides = [1, 1, 1]} : vector<18x24x128xbf16> to vector<16x24x128xbf16>
    %52 = vector.extract_strided_slice %46 {offsets = [2, 0, 0], sizes = [16, 24, 128], strides = [1, 1, 1]} : vector<18x24x128xbf16> to vector<16x24x128xbf16>
    %53 = tpu.concatenate %47, %48, %49, %50, %51, %52 in 2 : vector<16x24x128xbf16>, vector<16x24x128xbf16>, vector<16x24x128xbf16>, vector<16x24x128xbf16>, vector<16x24x128xbf16>, vector<16x24x128xbf16> -> vector<16x24x768xbf16>
    %54 = vector.shape_cast %53 : vector<16x24x768xbf16> to vector<384x768xbf16>
    %c0_33 = arith.constant 0 : index
    %c0_34 = arith.constant 0 : index
    %55 = vector.load %arg6[%c0_33, %c0_34] : memref<2304x128xbf16, #tpu.memory_space<vmem>>, vector<768x128xbf16>
    %cst_35 = arith.constant dense<0.000000e+00> : vector<384x128xf32>
    %56 = tpu.matmul %54, %55, %cst_35 {dimension_numbers = #tpu.dot_dimension_numbers<[1], [0], [0], [1], [0, 0, 1, 1], [], []>} : vector<384x768xbf16>, vector<768x128xbf16>, vector<384x128xf32> -> vector<384x128xf32>
    %c1_i32 = arith.constant 1 : i32
    %57 = tpu.dynamic_rotate %56 by %c1_i32 dim 0 : vector<384x128xf32>, i32 -> vector<384x128xf32>
    %c768 = arith.constant 768 : index
    %c0_36 = arith.constant 0 : index
    %58 = vector.load %arg6[%c768, %c0_36] : memref<2304x128xbf16, #tpu.memory_space<vmem>>, vector<768x128xbf16>
    %cst_37 = arith.constant dense<0.000000e+00> : vector<384x128xf32>
    %59 = tpu.matmul %54, %58, %cst_37 {dimension_numbers = #tpu.dot_dimension_numbers<[1], [0], [0], [1], [0, 0, 1, 1], [], []>} : vector<384x768xbf16>, vector<768x128xbf16>, vector<384x128xf32> -> vector<384x128xf32>
    %60 = arith.addf %57, %59 : vector<384x128xf32>
    %c1536 = arith.constant 1536 : index
    %c0_38 = arith.constant 0 : index
    %61 = vector.load %arg6[%c1536, %c0_38] : memref<2304x128xbf16, #tpu.memory_space<vmem>>, vector<768x128xbf16>
    %cst_39 = arith.constant dense<0.000000e+00> : vector<384x128xf32>
    %62 = tpu.matmul %54, %61, %cst_39 {dimension_numbers = #tpu.dot_dimension_numbers<[1], [0], [0], [1], [0, 0, 1, 1], [], []>} : vector<384x768xbf16>, vector<768x128xbf16>, vector<384x128xf32> -> vector<384x128xf32>
    %c383_i32 = arith.constant 383 : i32
    %63 = tpu.dynamic_rotate %62 by %c383_i32 dim 0 : vector<384x128xf32>, i32 -> vector<384x128xf32>
    %64 = arith.addf %60, %63 : vector<384x128xf32>
    %c0_40 = arith.constant 0 : index
    %c0_41 = arith.constant 0 : index
    %65 = vector.load %arg7[%c0_40, %c0_41] : memref<1x128xf32, #tpu.memory_space<vmem>>, vector<1x128xf32>
    %66 = vector.broadcast %65 : vector<1x128xf32> to vector<384x128xf32>
    %67 = arith.mulf %64, %66 : vector<384x128xf32>
    %c0_42 = arith.constant 0 : index
    %c0_43 = arith.constant 0 : index
    %68 = vector.load %arg8[%c0_42, %c0_43] : memref<1x128xf32, #tpu.memory_space<vmem>>, vector<1x128xf32>
    %69 = vector.broadcast %68 : vector<1x128xf32> to vector<384x128xf32>
    %70 = arith.addf %67, %69 : vector<384x128xf32>
    %cst_44 = arith.constant 0.000000e+00 : f32
    %71 = vector.broadcast %cst_44 : f32 to vector<384x128xf32>
    %72 = arith.maximumf %70, %71 : vector<384x128xf32>
    %73 = vector.shape_cast %72 : vector<384x128xf32> to vector<16x24x128xf32>
    %74 = tpu.iota {dimensions = array<i32: 1>} : vector<1x24x1xi32>
    %c1_i32_45 = arith.constant 1 : i32
    %75 = vector.broadcast %c1_i32_45 : i32 to vector<1x24x1xi32>
    %76 = arith.cmpi sge, %74, %75 : vector<1x24x1xi32>
    %c16_i32 = arith.constant 16 : i32
    %77 = vector.broadcast %c16_i32 : i32 to vector<1x24x1xi32>
    %78 = arith.cmpi sle, %74, %77 : vector<1x24x1xi32>
    %79 = arith.andi %76, %78 : vector<1x24x1xi1>
    %cst_46 = arith.constant 0.000000e+00 : f32
    %80 = vector.shape_cast %79 : vector<1x24x1xi1> to vector<1x24x1xi1>
    %81 = vector.broadcast %80 : vector<1x24x1xi1> to vector<16x24x128xi1>
    %82 = vector.broadcast %cst_46 : f32 to vector<16x24x128xf32>
    %83 = arith.select %81, %73, %82 : vector<16x24x128xi1>, vector<16x24x128xf32>
    %84 = arith.truncf %83 : vector<16x24x128xf32> to vector<16x24x128xbf16>
    %c0_47 = arith.constant 0 : index
    %c0_48 = arith.constant 0 : index
    %c0_49 = arith.constant 0 : index
    %c0_50 = arith.constant 0 : index
    %85 = vector.load %arg15[%c0_47, %c0_48, %c0_49, %c0_50] : memref<1x16x24x128xbf16, #tpu.memory_space<vmem>>, vector<1x16x24x128xbf16>
    %86 = vector.shape_cast %85 : vector<1x16x24x128xbf16> to vector<16x24x128xbf16>
    %87 = vector.shape_cast %84 : vector<16x24x128xbf16> to vector<1x16x24x128xbf16>
    tpu.vector_store %arg15[%c0_47, %c0_48, %c0_49, %c0_50], %87 {strides = array<i32>} : memref<1x16x24x128xbf16, #tpu.memory_space<vmem>>, vector<1x16x24x128xbf16>,
    return
  }
  func.func @transform_0(%arg0: i32, %arg1: i32) -> (i32, i32, i32, i32) {
    %c0_i32 = arith.constant 0 : i32
    %c0_i32_0 = arith.constant 0 : i32
    %c0_i32_1 = arith.constant 0 : i32
    return %arg0, %arg1, %c0_i32, %c0_i32_0 : i32, i32, i32, i32
  }
  func.func @transform_1(%arg0: i32, %arg1: i32) -> (i32, i32, i32, i32) {
    %c0_i32 = arith.constant 0 : i32
    %c0_i32_0 = arith.constant 0 : i32
    %c0_i32_1 = arith.constant 0 : i32
    return %arg0, %arg1, %c0_i32, %c0_i32_0 : i32, i32, i32, i32
  }
  func.func @transform_2(%arg0: i32, %arg1: i32) -> (i32, i32, i32, i32, i32) {
    %c0_i32 = arith.constant 0 : i32
    %c0_i32_0 = arith.constant 0 : i32
    %c0_i32_1 = arith.constant 0 : i32
    %c0_i32_2 = arith.constant 0 : i32
    return %arg0, %arg1, %c0_i32, %c0_i32_0, %c0_i32_1 : i32, i32, i32, i32, i32
  }
  func.func @transform_3(%arg0: i32, %arg1: i32) -> (i32, i32, i32, i32, i32) {
    %c0_i32 = arith.constant 0 : i32
    %c0_i32_0 = arith.constant 0 : i32
    %c0_i32_1 = arith.constant 0 : i32
    %c0_i32_2 = arith.constant 0 : i32
    return %arg0, %arg1, %c0_i32, %c0_i32_0, %c0_i32_1 : i32, i32, i32, i32, i32
  }
  func.func @transform_4(%arg0: i32, %arg1: i32) -> (i32, i32) {
    %c0_i32 = arith.constant 0 : i32
    %c0_i32_0 = arith.constant 0 : i32
    %c0_i32_1 = arith.constant 0 : i32
    return %c0_i32, %c0_i32_0 : i32, i32
  }
  func.func @transform_5(%arg0: i32, %arg1: i32) -> (i32, i32) {
    %c0_i32 = arith.constant 0 : i32
    %c0_i32_0 = arith.constant 0 : i32
    %c0_i32_1 = arith.constant 0 : i32
    return %c0_i32, %c0_i32_0 : i32, i32
  }
  func.func @transform_6(%arg0: i32, %arg1: i32) -> (i32, i32) {
    %c0_i32 = arith.constant 0 : i32
    %c0_i32_0 = arith.constant 0 : i32
    %c0_i32_1 = arith.constant 0 : i32
    return %c0_i32, %c0_i32_0 : i32, i32
  }
  func.func @transform_7(%arg0: i32, %arg1: i32) -> (i32, i32) {
    %c0_i32 = arith.constant 0 : i32
    %c0_i32_0 = arith.constant 0 : i32
    %c0_i32_1 = arith.constant 0 : i32
    return %c0_i32, %c0_i32_0 : i32, i32
  }
  func.func @transform_8(%arg0: i32, %arg1: i32) -> (i32, i32) {
    %c0_i32 = arith.constant 0 : i32
    %c0_i32_0 = arith.constant 0 : i32
    %c0_i32_1 = arith.constant 0 : i32
    return %c0_i32, %c0_i32_0 : i32, i32
  }
  func.func @transform_9(%arg0: i32, %arg1: i32) -> (i32, i32) {
    %c0_i32 = arith.constant 0 : i32
    %c0_i32_0 = arith.constant 0 : i32
    %c0_i32_1 = arith.constant 0 : i32
    return %c0_i32, %c0_i32_0 : i32, i32
  }
  func.func @transform_10(%arg0: i32, %arg1: i32) -> (i32, i32) {
    %c0_i32 = arith.constant 0 : i32
    %c0_i32_0 = arith.constant 0 : i32
    %c0_i32_1 = arith.constant 0 : i32
    return %c0_i32, %c0_i32_0 : i32, i32
  }
  func.func @transform_11(%arg0: i32, %arg1: i32) -> (i32, i32) {
    %c0_i32 = arith.constant 0 : i32
    %c0_i32_0 = arith.constant 0 : i32
    %c0_i32_1 = arith.constant 0 : i32
    return %c0_i32, %c0_i32_0 : i32, i32
  }
  func.func @transform_12(%arg0: i32, %arg1: i32) -> (i32, i32) {
    %c0_i32 = arith.constant 0 : i32
    %c0_i32_0 = arith.constant 0 : i32
    %c0_i32_1 = arith.constant 0 : i32
    return %c0_i32, %c0_i32_0 : i32, i32
  }
  func.func @transform_13(%arg0: i32, %arg1: i32) -> (i32, i32, i32, i32) {
    %c0_i32 = arith.constant 0 : i32
    %c0_i32_0 = arith.constant 0 : i32
    %c0_i32_1 = arith.constant 0 : i32
    return %arg0, %arg1, %c0_i32, %c0_i32_0 : i32, i32, i32, i32
  }
}

module attributes {stable_mosaic.version = 11 : i64} {
  func.func @kernel(%arg0: i32, %arg1: i32, %arg2: memref<1x16x24x128xbf16, #tpu.memory_space<vmem>>, %arg3: memref<1x1x2x24x128xbf16, #tpu.memory_space<vmem>>, %arg4: memref<1152x128xbf16, #tpu.memory_space<vmem>>, %arg5: memref<1x128xf32, #tpu.memory_space<vmem>>, %arg6: memref<1x128xf32, #tpu.memory_space<vmem>>, %arg7: memref<1x16x16x128xf32, #tpu.memory_space<vmem>>) attributes {dimension_semantics = [#tpu.dimension_semantics<parallel>, #tpu.dimension_semantics<parallel>], iteration_bounds = array<i64: 2, 1>, scalar_prefetch = 0 : i64, scratch_operands = 0 : i64, tpu.core_type = #tpu.core_type<tc>, window_params = [{transform_indices = @transform_0, window_bounds = array<i64: 1, 16, 24, 128>}, {transform_indices = @transform_1, window_bounds = array<i64: 1, 1, 2, 24, 128>}, {pipeline_mode = #tpu.pipeline_mode<synchronous>, transform_indices = @transform_2, window_bounds = array<i64: 1152, 128>}, {pipeline_mode = #tpu.pipeline_mode<synchronous>, transform_indices = @transform_3, window_bounds = array<i64: 1, 128>}, {pipeline_mode = #tpu.pipeline_mode<synchronous>, transform_indices = @transform_4, window_bounds = array<i64: 1, 128>}, {transform_indices = @transform_5, window_bounds = array<i64: 1, 16, 16, 128>}]} {
    %c0 = arith.constant 0 : index
    %c0_0 = arith.constant 0 : index
    %c0_1 = arith.constant 0 : index
    %c0_2 = arith.constant 0 : index
    %c0_3 = arith.constant 0 : index
    %0 = vector.load %arg3[%c0, %c0_0, %c0_1, %c0_2, %c0_3] : memref<1x1x2x24x128xbf16, #tpu.memory_space<vmem>>, vector<1x1x2x24x128xbf16>
    %1 = vector.shape_cast %0 : vector<1x1x2x24x128xbf16> to vector<2x24x128xbf16>
    %2 = vector.extract_strided_slice %1 {offsets = [0, 0, 0], sizes = [1, 24, 128], strides = [1, 1, 1]} : vector<2x24x128xbf16> to vector<1x24x128xbf16>
    %c0_4 = arith.constant 0 : index
    %c0_5 = arith.constant 0 : index
    %c0_6 = arith.constant 0 : index
    %c0_7 = arith.constant 0 : index
    %3 = vector.load %arg2[%c0_4, %c0_5, %c0_6, %c0_7] : memref<1x16x24x128xbf16, #tpu.memory_space<vmem>>, vector<1x16x24x128xbf16>
    %4 = vector.shape_cast %3 : vector<1x16x24x128xbf16> to vector<16x24x128xbf16>
    %5 = vector.extract_strided_slice %1 {offsets = [1, 0, 0], sizes = [1, 24, 128], strides = [1, 1, 1]} : vector<2x24x128xbf16> to vector<1x24x128xbf16>
    %6 = tpu.concatenate %2, %4, %5 in 0 : vector<1x24x128xbf16>, vector<16x24x128xbf16>, vector<1x24x128xbf16> -> vector<18x24x128xbf16>
    %7 = vector.extract_strided_slice %6 {offsets = [0, 0, 0], sizes = [16, 24, 128], strides = [1, 1, 1]} : vector<18x24x128xbf16> to vector<16x24x128xbf16>
    %8 = vector.extract_strided_slice %6 {offsets = [1, 0, 0], sizes = [16, 24, 128], strides = [1, 1, 1]} : vector<18x24x128xbf16> to vector<16x24x128xbf16>
    %9 = vector.extract_strided_slice %6 {offsets = [2, 0, 0], sizes = [16, 24, 128], strides = [1, 1, 1]} : vector<18x24x128xbf16> to vector<16x24x128xbf16>
    %10 = tpu.concatenate %7, %8, %9 in 2 : vector<16x24x128xbf16>, vector<16x24x128xbf16>, vector<16x24x128xbf16> -> vector<16x24x384xbf16>
    %11 = vector.shape_cast %10 : vector<16x24x384xbf16> to vector<384x384xbf16>
    %c0_8 = arith.constant 0 : index
    %c0_9 = arith.constant 0 : index
    %12 = vector.load %arg4[%c0_8, %c0_9] : memref<1152x128xbf16, #tpu.memory_space<vmem>>, vector<384x128xbf16>
    %cst = arith.constant dense<0.000000e+00> : vector<384x128xf32>
    %13 = tpu.matmul %11, %12, %cst {dimension_numbers = #tpu.dot_dimension_numbers<[1], [0], [0], [1], [0, 0, 1, 1], [], []>} : vector<384x384xbf16>, vector<384x128xbf16>, vector<384x128xf32> -> vector<384x128xf32>
    %c1_i32 = arith.constant 1 : i32
    %14 = tpu.dynamic_rotate %13 by %c1_i32 dim 0 : vector<384x128xf32>, i32 -> vector<384x128xf32>
    %c384 = arith.constant 384 : index
    %c0_10 = arith.constant 0 : index
    %15 = vector.load %arg4[%c384, %c0_10] : memref<1152x128xbf16, #tpu.memory_space<vmem>>, vector<384x128xbf16>
    %cst_11 = arith.constant dense<0.000000e+00> : vector<384x128xf32>
    %16 = tpu.matmul %11, %15, %cst_11 {dimension_numbers = #tpu.dot_dimension_numbers<[1], [0], [0], [1], [0, 0, 1, 1], [], []>} : vector<384x384xbf16>, vector<384x128xbf16>, vector<384x128xf32> -> vector<384x128xf32>
    %17 = arith.addf %14, %16 : vector<384x128xf32>
    %c768 = arith.constant 768 : index
    %c0_12 = arith.constant 0 : index
    %18 = vector.load %arg4[%c768, %c0_12] : memref<1152x128xbf16, #tpu.memory_space<vmem>>, vector<384x128xbf16>
    %cst_13 = arith.constant dense<0.000000e+00> : vector<384x128xf32>
    %19 = tpu.matmul %11, %18, %cst_13 {dimension_numbers = #tpu.dot_dimension_numbers<[1], [0], [0], [1], [0, 0, 1, 1], [], []>} : vector<384x384xbf16>, vector<384x128xbf16>, vector<384x128xf32> -> vector<384x128xf32>
    %c383_i32 = arith.constant 383 : i32
    %20 = tpu.dynamic_rotate %19 by %c383_i32 dim 0 : vector<384x128xf32>, i32 -> vector<384x128xf32>
    %21 = arith.addf %17, %20 : vector<384x128xf32>
    %c0_14 = arith.constant 0 : index
    %c0_15 = arith.constant 0 : index
    %22 = vector.load %arg5[%c0_14, %c0_15] : memref<1x128xf32, #tpu.memory_space<vmem>>, vector<1x128xf32>
    %23 = vector.broadcast %22 : vector<1x128xf32> to vector<384x128xf32>
    %24 = arith.mulf %21, %23 : vector<384x128xf32>
    %c0_16 = arith.constant 0 : index
    %c0_17 = arith.constant 0 : index
    %25 = vector.load %arg6[%c0_16, %c0_17] : memref<1x128xf32, #tpu.memory_space<vmem>>, vector<1x128xf32>
    %26 = vector.broadcast %25 : vector<1x128xf32> to vector<384x128xf32>
    %27 = arith.addf %24, %26 : vector<384x128xf32>
    %cst_18 = arith.constant 0.000000e+00 : f32
    %28 = vector.broadcast %cst_18 : f32 to vector<384x128xf32>
    %29 = arith.maximumf %27, %28 : vector<384x128xf32>
    %30 = vector.shape_cast %29 : vector<384x128xf32> to vector<16x24x128xf32>
    %31 = vector.extract_strided_slice %30 {offsets = [0, 1, 0], sizes = [16, 16, 128], strides = [1, 1, 1]} : vector<16x24x128xf32> to vector<16x16x128xf32>
    %c0_19 = arith.constant 0 : index
    %c0_20 = arith.constant 0 : index
    %c0_21 = arith.constant 0 : index
    %c0_22 = arith.constant 0 : index
    %32 = vector.load %arg7[%c0_19, %c0_20, %c0_21, %c0_22] : memref<1x16x16x128xf32, #tpu.memory_space<vmem>>, vector<1x16x16x128xf32>
    %33 = vector.shape_cast %32 : vector<1x16x16x128xf32> to vector<16x16x128xf32>
    %34 = vector.shape_cast %31 : vector<16x16x128xf32> to vector<1x16x16x128xf32>
    tpu.vector_store %arg7[%c0_19, %c0_20, %c0_21, %c0_22], %34 {strides = array<i32>} : memref<1x16x16x128xf32, #tpu.memory_space<vmem>>, vector<1x16x16x128xf32>,
    return
  }
  func.func @transform_0(%arg0: i32, %arg1: i32) -> (i32, i32, i32, i32) {
    %c0_i32 = arith.constant 0 : i32
    %c0_i32_0 = arith.constant 0 : i32
    %c0_i32_1 = arith.constant 0 : i32
    return %arg0, %arg1, %c0_i32, %c0_i32_0 : i32, i32, i32, i32
  }
  func.func @transform_1(%arg0: i32, %arg1: i32) -> (i32, i32, i32, i32, i32) {
    %c0_i32 = arith.constant 0 : i32
    %c0_i32_0 = arith.constant 0 : i32
    %c0_i32_1 = arith.constant 0 : i32
    %c0_i32_2 = arith.constant 0 : i32
    return %arg0, %arg1, %c0_i32, %c0_i32_0, %c0_i32_1 : i32, i32, i32, i32, i32
  }
  func.func @transform_2(%arg0: i32, %arg1: i32) -> (i32, i32) {
    %c0_i32 = arith.constant 0 : i32
    %c0_i32_0 = arith.constant 0 : i32
    %c0_i32_1 = arith.constant 0 : i32
    return %c0_i32, %c0_i32_0 : i32, i32
  }
  func.func @transform_3(%arg0: i32, %arg1: i32) -> (i32, i32) {
    %c0_i32 = arith.constant 0 : i32
    %c0_i32_0 = arith.constant 0 : i32
    %c0_i32_1 = arith.constant 0 : i32
    return %c0_i32, %c0_i32_0 : i32, i32
  }
  func.func @transform_4(%arg0: i32, %arg1: i32) -> (i32, i32) {
    %c0_i32 = arith.constant 0 : i32
    %c0_i32_0 = arith.constant 0 : i32
    %c0_i32_1 = arith.constant 0 : i32
    return %c0_i32, %c0_i32_0 : i32, i32
  }
  func.func @transform_5(%arg0: i32, %arg1: i32) -> (i32, i32, i32, i32) {
    %c0_i32 = arith.constant 0 : i32
    %c0_i32_0 = arith.constant 0 : i32
    %c0_i32_1 = arith.constant 0 : i32
    return %arg0, %arg1, %c0_i32, %c0_i32_0 : i32, i32, i32, i32
  }
}

</mosaic_0001>

<llo_original>
// kernel: _lambda_.3
$region0: #{_lambda_.3}
  #allocation0 [shape = 'u32[]', space=smem, size = 0x4, offset = 0x4, fixed_abs, tag = 'smem constant byte address 0x4 - core index']
  #allocation1 [shape = 'u32[144,128]{1,0:T(1,128)}', space=vmem, size = 0x12000, scoped, tag = 'internal scratch']
  %s0 = inlined_call_operand.vmem [shape: bf16[2,8,8,128], index: 0, kind: input, shape index: {}]
  %s1 = inlined_call_operand.vmem [shape: bf16[128,512], index: 1, kind: input, shape index: {}]
  %s2 = inlined_call_operand.vmem [shape: f32[1,512], index: 2, kind: input, shape index: {}]
  %s3 = inlined_call_operand.vmem [shape: bf16[2,16,24,128], index: 3, kind: output, shape index: {}]
  %s4 = sld [smem:[#allocation0]]
  $region45: #{_lambda_.3} parent=0
    _
  %s6 = ssub.s32 1, %s4
  %s7 = scalar_select 0, %s6, %s4
  loop: start=0, step=1, limit=4
  $region2: #{_lambda_.3} parent=0 // loop_pre_header
    _
  $region3: #{_lambda_.3} parent=0 // loop_header
    %s9 = sphi 0, %s13
    %p10 = scmp.ge.s32.totalorder %s9, 4
    %s16 = sphi 0, %s28
    %s17 = sphi 0, %s24
    %s18 = sphi 0, %s16
    %s19 = sphi 0, %s17
    %s20 = sphi 0, %s18
    %s21 = sphi 0, %s19
    %s33 = sphi 0, %s35
    %s36 = sphi 0, %s33
    %s37 = sphi 0, %s36
    %s53 = sphi 0, %s37
    %s57 = sphi 0, %s57
    %s59 = sphi 0, %s57
    %s60 = sphi 0, %s59
    %s74 = sphi 0, %s60
    %s78 = sphi 0, %s78
    %s80 = sphi 0, %s78
    %s81 = sphi 0, %s80
    %s95 = sphi 0, %s81
    %s103 = sphi 0, %s105
    %s106 = sphi 0, %s103
    %s107 = sphi 0, %s106
    %s123 = sphi 0, %s107
  $region4: #{_lambda_.3} parent=0 // loop_header_branch
    %12 = sbr.rel (%p10) target = $region8
  $region5: #{_lambda_.3} parent=0 // loop_body
    %s14 = ssub.s32 %s9, 1
    %s15 = ssub.s32 %s9, 2
    %s22 = sadd.s32 1, %s17
    %p23 = scmp.ge.s32.totalorder %s22, 1
    %s24 = scalar_select %p23, 0, %s22
    %s25 = sadd.s32 1, %s16
    %s26 = scalar_select %p23, %s25, %s16
    %p27 = scmp.ge.s32.totalorder %s26, 2
    %s28 = scalar_select %p27, 0, %s26
    %s29 = ssub.s32 %s16, %s28
    %s30 = ssub.s32 %s17, %s24
    %s31 = sor.u32 %s29, %s30
    %p32 = scmp.eq.s32.totalorder %s31, 0
    %s34 = sadd.s32 %s33, 1
    %s35 = scalar_select %p32, %s33, %s34
    %p38 = pneg %p32
    %p39 = scmp.eq.s32.totalorder %s9, 1
    %p40 = por %p38, %p39
    %p41 = scmp.ne.s32.totalorder %s33, %s36
    %p42 = scmp.eq.s32.totalorder %s9, 0
    %p43 = por %p41, %p42
    %p44 = scmp.ne.s32.totalorder %s33, %s36
    %p45 = scmp.eq.s32.totalorder %s14, 1
    %p46 = por %p44, %p45
    %p47 = scmp.ne.s32.totalorder %s36, %s37
    %p48 = scmp.eq.s32.totalorder %s14, 0
    %p49 = por %p47, %p48
    %p50 = scmp.ne.s32.totalorder %s36, %s37
    %p51 = scmp.eq.s32.totalorder %s15, 1
    %p52 = por %p50, %p51
    %p54 = scmp.ne.s32.totalorder %s37, %s53
    %p55 = scmp.eq.s32.totalorder %s15, 0
    %p56 = por %p54, %p55
    %s58 = sadd.s32 %s57, 1
    %p61 = scmp.eq.s32.totalorder %s9, 1
    %p62 = scmp.ne.s32.totalorder %s57, %s59
    %p63 = scmp.eq.s32.totalorder %s9, 0
    %p64 = por %p62, %p63
    %p65 = scmp.ne.s32.totalorder %s57, %s59
    %p66 = scmp.eq.s32.totalorder %s14, 1
    %p67 = por %p65, %p66
    %p68 = scmp.ne.s32.totalorder %s59, %s60
    %p69 = scmp.eq.s32.totalorder %s14, 0
    %p70 = por %p68, %p69
    %p71 = scmp.ne.s32.totalorder %s59, %s60
    %p72 = scmp.eq.s32.totalorder %s15, 1
    %p73 = por %p71, %p72
    %p75 = scmp.ne.s32.totalorder %s60, %s74
    %p76 = scmp.eq.s32.totalorder %s15, 0
    %p77 = por %p75, %p76
    %s79 = sadd.s32 %s78, 1
    %p82 = scmp.eq.s32.totalorder %s9, 1
    %p83 = scmp.ne.s32.totalorder %s78, %s80
    %p84 = scmp.eq.s32.totalorder %s9, 0
    %p85 = por %p83, %p84
    %p86 = scmp.ne.s32.totalorder %s78, %s80
    %p87 = scmp.eq.s32.totalorder %s14, 1
    %p88 = por %p86, %p87
    %p89 = scmp.ne.s32.totalorder %s80, %s81
    %p90 = scmp.eq.s32.totalorder %s14, 0
    %p91 = por %p89, %p90
    %p92 = scmp.ne.s32.totalorder %s80, %s81
    %p93 = scmp.eq.s32.totalorder %s15, 1
    %p94 = por %p92, %p93
    %p96 = scmp.ne.s32.totalorder %s81, %s95
    %p97 = scmp.eq.s32.totalorder %s15, 0
    %p98 = por %p96, %p97
    %s99 = ssub.s32 %s16, %s28
    %s100 = ssub.s32 %s17, %s24
    %s101 = sor.u32 %s99, %s100
    %p102 = scmp.eq.s32.totalorder %s101, 0
    %s104 = sadd.s32 %s103, 1
    %s105 = scalar_select %p102, %s103, %s104
    %p108 = pneg %p102
    %p109 = scmp.eq.s32.totalorder %s9, 1
    %p110 = por %p108, %p109
    %p111 = scmp.ne.s32.totalorder %s103, %s106
    %p112 = scmp.eq.s32.totalorder %s9, 0
    %p113 = por %p111, %p112
    %p114 = scmp.ne.s32.totalorder %s103, %s106
    %p115 = scmp.eq.s32.totalorder %s14, 1
    %p116 = por %p114, %p115
    %p117 = scmp.ne.s32.totalorder %s106, %s107
    %p118 = scmp.eq.s32.totalorder %s14, 0
    %p119 = por %p117, %p118
    %p120 = scmp.ne.s32.totalorder %s106, %s107
    %p121 = scmp.eq.s32.totalorder %s15, 1
    %p122 = por %p120, %p121
    %p124 = scmp.ne.s32.totalorder %s107, %s123
    %p125 = scmp.eq.s32.totalorder %s15, 0
    %p126 = por %p124, %p125
    %p127 = scmp.le.s32.totalorder 1, %s9
    %p128 = scmp.lt.s32.totalorder %s9, 3
    %p129 = pnand %p127, %p128
    %p130 = pneg %p129
    // Predicated region
    $region9: #{_lambda_.3} parent=5 // pred_check
      _
    $region10: #{_lambda_.3} parent=5 // pred_check_branch
      %132 = sbr.rel (%p129) target = $region12
    $region11: #{_lambda_.3} parent=5 // pred_region
      %s133 = ssub.s32 %s9, 1
      // Predicated region
      $region13: #{_lambda_.3} parent=11 // pred_check
        %p134 = pneg %p70
      $region14: #{_lambda_.3} parent=11 // pred_check_branch
        %136 = sbr.rel (%p134) target = $region16
      $region15: #{_lambda_.3} parent=11 // pred_region
        _
      $region16: #{_lambda_.3} parent=11 // pred_fallthru
        _
      // Predicated region
      $region17: #{_lambda_.3} parent=11 // pred_check
        %p137 = pneg %p91
      $region18: #{_lambda_.3} parent=11 // pred_check_branch
        %139 = sbr.rel (%p137) target = $region20
      $region19: #{_lambda_.3} parent=11 // pred_region
        _
      $region20: #{_lambda_.3} parent=11 // pred_fallthru
        _
    $region12: #{_lambda_.3} parent=5 // pred_fallthru
      _
    %p140 = scmp.lt.s32.totalorder %s9, 2
    // Predicated region
    $region21: #{_lambda_.3} parent=5 // pred_check
      %p141 = pneg %p140
    $region22: #{_lambda_.3} parent=5 // pred_check_branch
      %143 = sbr.rel (%p141) target = $region24
    $region23: #{_lambda_.3} parent=5 // pred_region
      // Predicated region
      $region25: #{_lambda_.3} parent=23 // pred_check
        %p144 = pneg %p43
      $region26: #{_lambda_.3} parent=23 // pred_check_branch
        %146 = sbr.rel (%p144) target = $region28
      $region27: #{_lambda_.3} parent=23 // pred_region
        %s147 = smul.u32 8, %s17
        %p148 = scmp.lt.s32.totalorder %s16, 1
        %s149 = scalar_select %p148, %s16, 1
        %p150 = scmp.lt.s32.totalorder %s147, 7
        %s151 = scalar_select %p150, %s147, 7
        %s152 = smul.addr %s149, 8
        %s153 = sadd.s32 %s151, %s152
        %s154 = smul.addr %s153, 4
        %s155 = scalar_lea.vmem %s0, %s154
        %s156 = smul.u32 8, %s17
      $region28: #{_lambda_.3} parent=23 // pred_fallthru
        _
    $region24: #{_lambda_.3} parent=5 // pred_fallthru
      _
    %p157 = scmp.le.s32.totalorder 1, %s9
    %p158 = scmp.lt.s32.totalorder %s9, 3
    %p159 = pnand %p157, %p158
    %p160 = pneg %p159
    // Predicated region
    $region29: #{_lambda_.3} parent=5 // pred_check
      _
    $region30: #{_lambda_.3} parent=5 // pred_check_branch
      %162 = sbr.rel (%p159) target = $region32
    $region31: #{_lambda_.3} parent=5 // pred_region
      %s163 = ssub.s32 %s9, 1
      %s164 = smul.u32 8, %s19
      %p165 = scmp.lt.s32.totalorder %s18, 1
      %s166 = scalar_select %p165, %s18, 1
      %p167 = scmp.lt.s32.totalorder %s164, 7
      %s168 = scalar_select %p167, %s164, 7
      %s169 = smul.addr %s166, 8
      %s170 = sadd.s32 %s168, %s169
      %s171 = smul.addr %s170, 4
      %s172 = scalar_lea.vmem %s0, %s171
      %p173 = pneg %p49
      %p174 = pneg %p46
      %p175 = pneg %p70
      %p176 = pneg %p67
      %p177 = pneg %p91
      %p178 = pneg %p88
      %p179 = pneg %p119
      %p180 = pneg %p116
      %s181 = smul.u32 16, %s19
      %p182 = scmp.lt.s32.totalorder %s18, 1
      %s183 = scalar_select %p182, %s18, 1
      %p184 = scmp.lt.s32.totalorder %s181, 15
      %s185 = scalar_select %p184, %s181, 15
      %s186 = smul.addr %s185, 3
      %s187 = smul.addr %s183, 48
      %s188 = sadd.s32 %s186, %s187
      %s189 = smul.addr %s188, 4
      %s190 = scalar_lea.vmem %s3, %s189
      %s191 = smul.u32 8, %s19
      %p192 = scmp.lt.s32.totalorder %s18, 1
      %s193 = scalar_select %p192, %s18, 1
      %p194 = scmp.lt.s32.totalorder %s191, 7
      %s195 = scalar_select %p194, %s191, 7
      %s196 = smul.addr %s193, 8
      %s197 = sadd.s32 %s195, %s196
      %s198 = smul.addr %s197, 4
      %s199 = scalar_lea.vmem %s0, %s198
      %s200 = smul.u32 8, %s19
      %s201 = smul.u32 16, %s19
      %p202 = scmp.lt.s32.totalorder %s18, 1
      %s203 = scalar_select %p202, %s18, 1
      %p204 = scmp.lt.s32.totalorder %s201, 15
      %s205 = scalar_select %p204, %s201, 15
      %s206 = smul.addr %s205, 3
      %s207 = smul.addr %s203, 48
      %s208 = sadd.s32 %s206, %s207
      %s209 = smul.addr %s208, 4
      %s210 = scalar_lea.vmem %s3, %s209
      %s211 = smul.u32 16, %s19
      %v213 = vld [vmem:[%s199] sm:$0xf]
      %v214 = vld [vmem:[%s199 + $0x4] sm:$0xf]
      %v215 = vld [vmem:[%s199 + $0x8] sm:$0xf]
      %v216 = vld [vmem:[%s199 + $0xc] sm:$0xf]
      %v217 = vld [vmem:[%s199 + $0x10] sm:$0xf]
      %v218 = vld [vmem:[%s199 + $0x14] sm:$0xf]
      %v219 = vld [vmem:[%s199 + $0x18] sm:$0xf]
      %v220 = vld [vmem:[%s199 + $0x1c] sm:$0xf]
      %v221 = vld [vmem:[%s1] sm:$0xff]
      %v222 = vld [vmem:[%s1 + $0x8] sm:$0xff]
      %v223 = vld [vmem:[%s1 + $0x10] sm:$0xff]
      %v224 = vld [vmem:[%s1 + $0x18] sm:$0xff]
      %v225 = vld [vmem:[%s1 + $0x20] sm:$0xff]
      %v226 = vld [vmem:[%s1 + $0x28] sm:$0xff]
      %v227 = vld [vmem:[%s1 + $0x30] sm:$0xff]
      %v228 = vld [vmem:[%s1 + $0x38] sm:$0xff]
      %v229 = vld [vmem:[%s1 + $0x40] sm:$0xff]
      %v230 = vld [vmem:[%s1 + $0x48] sm:$0xff]
      %v231 = vld [vmem:[%s1 + $0x50] sm:$0xff]
      %v232 = vld [vmem:[%s1 + $0x58] sm:$0xff]
      %v233 = vld [vmem:[%s1 + $0x60] sm:$0xff]
      %v234 = vld [vmem:[%s1 + $0x68] sm:$0xff]
      %v235 = vld [vmem:[%s1 + $0x70] sm:$0xff]
      %v236 = vld [vmem:[%s1 + $0x78] sm:$0xff]
      %v237 = vld [vmem:[%s1 + $0x80] sm:$0xff]
      %v238 = vld [vmem:[%s1 + $0x88] sm:$0xff]
      %v239 = vld [vmem:[%s1 + $0x90] sm:$0xff]
      %v240 = vld [vmem:[%s1 + $0x98] sm:$0xff]
      %v241 = vld [vmem:[%s1 + $0xa0] sm:$0xff]
      %v242 = vld [vmem:[%s1 + $0xa8] sm:$0xff]
      %v243 = vld [vmem:[%s1 + $0xb0] sm:$0xff]
      %v244 = vld [vmem:[%s1 + $0xb8] sm:$0xff]
      %v245 = vld [vmem:[%s1 + $0xc0] sm:$0xff]
      %v246 = vld [vmem:[%s1 + $0xc8] sm:$0xff]
      %v247 = vld [vmem:[%s1 + $0xd0] sm:$0xff]
      %v248 = vld [vmem:[%s1 + $0xd8] sm:$0xff]
      %v249 = vld [vmem:[%s1 + $0xe0] sm:$0xff]
      %v250 = vld [vmem:[%s1 + $0xe8] sm:$0xff]
      %v251 = vld [vmem:[%s1 + $0xf0] sm:$0xff]
      %v252 = vld [vmem:[%s1 + $0xf8] sm:$0xff]
      %v253 = vld [vmem:[%s2] sm:$0xf]
      %v255 = vlaneseq
      %v256 = vshrl.u32 %v255, 7
      %v257 = vsub.s32 0, %v256
      %v258 = vrot.slane %v253, %v257
      %v259 = vlaneseq
      %v260 = vshrl.u32 %v259, 7
      %v261 = vsub.s32 1, %v260
      %v262 = vrot.slane %v253, %v261
      %v263 = vlaneseq
      %v264 = vshrl.u32 %v263, 7
      %v265 = vsub.s32 2, %v264
      %v266 = vrot.slane %v253, %v265
      %v267 = vlaneseq
      %v268 = vshrl.u32 %v267, 7
      %v269 = vsub.s32 3, %v268
      %v270 = vrot.slane %v253, %v269
      %v283 = vunpack.c.l.b16 %v213
      %v284 = vunpack.c.l.b16 %v214
      %v285 = vunpack.c.l.b16 %v215
      %v286 = vunpack.c.l.b16 %v216
      %v287 = vunpack.c.l.b16 %v217
      %v288 = vunpack.c.l.b16 %v218
      %v289 = vunpack.c.l.b16 %v219
      %v290 = vunpack.c.l.b16 %v220
      %v291 = vpack.c.b16 %v284, %v283
      %v292 = vpack.c.b16 %v286, %v285
      %v293 = vpack.c.b16 %v288, %v287
      %v294 = vpack.c.b16 %v290, %v289
      %v331 = vunpack.c.l.b16 %v221
      %v332 = vunpack.c.h.b16 %v221
      %v333 = vunpack.c.l.b16 %v222
      %v334 = vunpack.c.h.b16 %v222
      %v335 = vunpack.c.l.b16 %v223
      %v336 = vunpack.c.h.b16 %v223
      %v337 = vunpack.c.l.b16 %v224
      %v338 = vunpack.c.h.b16 %v224
      %v339 = vunpack.c.l.b16 %v225
      %v340 = vunpack.c.h.b16 %v225
      %v341 = vunpack.c.l.b16 %v226
      %v342 = vunpack.c.h.b16 %v226
      %v343 = vunpack.c.l.b16 %v227
      %v344 = vunpack.c.h.b16 %v227
      %v345 = vunpack.c.l.b16 %v228
      %v346 = vunpack.c.h.b16 %v228
      %v347 = vunpack.c.l.b16 %v229
      %v348 = vunpack.c.h.b16 %v229
      %v349 = vunpack.c.l.b16 %v230
      %v350 = vunpack.c.h.b16 %v230
      %v351 = vunpack.c.l.b16 %v231
      %v352 = vunpack.c.h.b16 %v231
      %v353 = vunpack.c.l.b16 %v232
      %v354 = vunpack.c.h.b16 %v232
      %v355 = vunpack.c.l.b16 %v233
      %v356 = vunpack.c.h.b16 %v233
      %v357 = vunpack.c.l.b16 %v234
      %v358 = vunpack.c.h.b16 %v234
      %v359 = vunpack.c.l.b16 %v235
      %v360 = vunpack.c.h.b16 %v235
      %v361 = vunpack.c.l.b16 %v236
      %v362 = vunpack.c.h.b16 %v236
      %v363 = vunpack.c.l.b16 %v237
      %v364 = vunpack.c.h.b16 %v237
      %v365 = vunpack.c.l.b16 %v238
      %v366 = vunpack.c.h.b16 %v238
      %v367 = vunpack.c.l.b16 %v239
      %v368 = vunpack.c.h.b16 %v239
      %v369 = vunpack.c.l.b16 %v240
      %v370 = vunpack.c.h.b16 %v240
      %v371 = vunpack.c.l.b16 %v241
      %v372 = vunpack.c.h.b16 %v241
      %v373 = vunpack.c.l.b16 %v242
      %v374 = vunpack.c.h.b16 %v242
      %v375 = vunpack.c.l.b16 %v243
      %v376 = vunpack.c.h.b16 %v243
      %v377 = vunpack.c.l.b16 %v244
      %v378 = vunpack.c.h.b16 %v244
      %v379 = vunpack.c.l.b16 %v245
      %v380 = vunpack.c.h.b16 %v245
      %v381 = vunpack.c.l.b16 %v246
      %v382 = vunpack.c.h.b16 %v246
      %v383 = vunpack.c.l.b16 %v247
      %v384 = vunpack.c.h.b16 %v247
      %v385 = vunpack.c.l.b16 %v248
      %v386 = vunpack.c.h.b16 %v248
      %v387 = vunpack.c.l.b16 %v249
      %v388 = vunpack.c.h.b16 %v249
      %v389 = vunpack.c.l.b16 %v250
      %v390 = vunpack.c.h.b16 %v250
      %v391 = vunpack.c.l.b16 %v251
      %v392 = vunpack.c.h.b16 %v251
      %v393 = vunpack.c.l.b16 %v252
      %v394 = vunpack.c.h.b16 %v252
      %v395 = vpack.c.b16 %v335, %v331
      %v396 = vpack.c.b16 %v336, %v332
      %v397 = vpack.c.b16 %v337, %v333
      %v398 = vpack.c.b16 %v338, %v334
      %v399 = vpack.c.b16 %v343, %v339
      %v400 = vpack.c.b16 %v344, %v340
      %v401 = vpack.c.b16 %v345, %v341
      %v402 = vpack.c.b16 %v346, %v342
      %v403 = vpack.c.b16 %v351, %v347
      %v404 = vpack.c.b16 %v352, %v348
      %v405 = vpack.c.b16 %v353, %v349
      %v406 = vpack.c.b16 %v354, %v350
      %v407 = vpack.c.b16 %v359, %v355
      %v408 = vpack.c.b16 %v360, %v356
      %v409 = vpack.c.b16 %v361, %v357
      %v410 = vpack.c.b16 %v362, %v358
      %v411 = vpack.c.b16 %v367, %v363
      %v412 = vpack.c.b16 %v368, %v364
      %v413 = vpack.c.b16 %v369, %v365
      %v414 = vpack.c.b16 %v370, %v366
      %v415 = vpack.c.b16 %v375, %v371
      %v416 = vpack.c.b16 %v376, %v372
      %v417 = vpack.c.b16 %v377, %v373
      %v418 = vpack.c.b16 %v378, %v374
      %v419 = vpack.c.b16 %v383, %v379
      %v420 = vpack.c.b16 %v384, %v380
      %v421 = vpack.c.b16 %v385, %v381
      %v422 = vpack.c.b16 %v386, %v382
      %v423 = vpack.c.b16 %v391, %v387
      %v424 = vpack.c.b16 %v392, %v388
      %v425 = vpack.c.b16 %v393, %v389
      %v426 = vpack.c.b16 %v394, %v390
      %459 = vmatprep.subr.bf16.mxu0 %v396
      %460 = vmatpush1.bf16.msra.mxu0 %v395
      %461 = vmatprep.subr.bf16.mxu0 %v400
      %462 = vmatpush1.bf16.msra.mxu0 %v399
      %463 = vmatprep.subr.bf16.mxu0 %v404
      %464 = vmatpush1.bf16.msra.mxu0 %v403
      %465 = vmatprep.subr.bf16.mxu0 %v408
      %466 = vmatpush1.bf16.msra.mxu0 %v407
      %467 = vmatprep.subr.bf16.mxu0 %v412
      %468 = vmatpush1.bf16.msra.mxu0 %v411
      %469 = vmatprep.subr.bf16.mxu0 %v416
      %470 = vmatpush1.bf16.msra.mxu0 %v415
      %471 = vmatprep.subr.bf16.mxu0 %v420
      %472 = vmatpush1.bf16.msra.mxu0 %v419
      %473 = vmatprep.subr.bf16.mxu0 %v424
      %474 = vmatpush1.bf16.msra.mxu0 %v423
      %475 = vmatprep.subr.bf16.mxu0 0
      %476 = vmatpush1.bf16.msra.mxu0 0
      %477 = vmatprep.subr.bf16.mxu0 0
      %478 = vmatpush1.bf16.msra.mxu0 0
      %479 = vmatprep.subr.bf16.mxu0 0
      %480 = vmatpush1.bf16.msra.mxu0 0
      %481 = vmatprep.subr.bf16.mxu0 0
      %482 = vmatpush1.bf16.msra.mxu0 0
      %483 = vmatprep.subr.bf16.mxu0 0
      %484 = vmatpush1.bf16.msra.mxu0 0
      %485 = vmatprep.subr.bf16.mxu0 0
      %486 = vmatpush1.bf16.msra.mxu0 0
      %487 = vmatprep.subr.bf16.mxu0 0
      %488 = vmatpush1.bf16.msra.mxu0 0
      %489 = vmatprep.subr.bf16.mxu0 0
      %490 = vmatpush1.bf16.msra.mxu0 0
      %491 = vmatprep.mubr.bf16.mxu0 0
      %492 = vmatmul.mubr.bf16.gmra.mrb[0].mxu0 %v291
      %v493 = vpop.f32.mrb[0].mxu0
      %v494 = vadd.f32 %v258, %v493
      %v495 = vpop.f32.mrb[0].mxu0
      %v496 = vadd.f32 %v262, %v495
      %v497 = vpop.f32.mrb[0].mxu0
      %v498 = vadd.f32 %v258, %v497
      %v499 = vpop.f32.mrb[0].mxu0
      %v500 = vadd.f32 %v262, %v499
      %501 = vmatprep.mubr.bf16.mxu0 0
      %502 = vmatmul.mubr.bf16.gmra.mrb[0].mxu0 %v292
      %v503 = vpop.f32.mrb[0].mxu0
      %v504 = vadd.f32 %v258, %v503
      %v505 = vpop.f32.mrb[0].mxu0
      %v506 = vadd.f32 %v262, %v505
      %v507 = vpop.f32.mrb[0].mxu0
      %v508 = vadd.f32 %v258, %v507
      %v509 = vpop.f32.mrb[0].mxu0
      %v510 = vadd.f32 %v262, %v509
      %511 = vmatprep.mubr.bf16.mxu0 0
      %512 = vmatmul.mubr.bf16.gmra.mrb[0].mxu0 %v293
      %v513 = vpop.f32.mrb[0].mxu0
      %v514 = vadd.f32 %v258, %v513
      %v515 = vpop.f32.mrb[0].mxu0
      %v516 = vadd.f32 %v262, %v515
      %v517 = vpop.f32.mrb[0].mxu0
      %v518 = vadd.f32 %v258, %v517
      %v519 = vpop.f32.mrb[0].mxu0
      %v520 = vadd.f32 %v262, %v519
      %521 = vmatprep.mubr.bf16.mxu0 0
      %522 = vmatmul.mubr.bf16.gmra.mrb[0].mxu0 %v294
      %v523 = vpop.f32.mrb[0].mxu0
      %v524 = vadd.f32 %v258, %v523
      %v525 = vpop.f32.mrb[0].mxu0
      %v526 = vadd.f32 %v262, %v525
      %v527 = vpop.f32.mrb[0].mxu0
      %v528 = vadd.f32 %v258, %v527
      %v529 = vpop.f32.mrb[0].mxu0
      %v530 = vadd.f32 %v262, %v529
      %531 = vdwg.mxu0
      %532 = vmatprep.subr.bf16.mxu0 %v398
      %533 = vmatpush1.bf16.msra.mxu0 %v397
      %534 = vmatprep.subr.bf16.mxu0 %v402
      %535 = vmatpush1.bf16.msra.mxu0 %v401
      %536 = vmatprep.subr.bf16.mxu0 %v406
      %537 = vmatpush1.bf16.msra.mxu0 %v405
      %538 = vmatprep.subr.bf16.mxu0 %v410
      %539 = vmatpush1.bf16.msra.mxu0 %v409
      %540 = vmatprep.subr.bf16.mxu0 %v414
      %541 = vmatpush1.bf16.msra.mxu0 %v413
      %542 = vmatprep.subr.bf16.mxu0 %v418
      %543 = vmatpush1.bf16.msra.mxu0 %v417
      %544 = vmatprep.subr.bf16.mxu0 %v422
      %545 = vmatpush1.bf16.msra.mxu0 %v421
      %546 = vmatprep.subr.bf16.mxu0 %v426
      %547 = vmatpush1.bf16.msra.mxu0 %v425
      %548 = vmatprep.subr.bf16.mxu0 0
      %549 = vmatpush1.bf16.msra.mxu0 0
      %550 = vmatprep.subr.bf16.mxu0 0
      %551 = vmatpush1.bf16.msra.mxu0 0
      %552 = vmatprep.subr.bf16.mxu0 0
      %553 = vmatpush1.bf16.msra.mxu0 0
      %554 = vmatprep.subr.bf16.mxu0 0
      %555 = vmatpush1.bf16.msra.mxu0 0
      %556 = vmatprep.subr.bf16.mxu0 0
      %557 = vmatpush1.bf16.msra.mxu0 0
      %558 = vmatprep.subr.bf16.mxu0 0
      %559 = vmatpush1.bf16.msra.mxu0 0
      %560 = vmatprep.subr.bf16.mxu0 0
      %561 = vmatpush1.bf16.msra.mxu0 0
      %562 = vmatprep.subr.bf16.mxu0 0
      %563 = vmatpush1.bf16.msra.mxu0 0
      %564 = vmatprep.mubr.bf16.mxu0 0
      %565 = vmatmul.mubr.bf16.gmra.mrb[0].mxu0 %v291
      %v566 = vpop.f32.mrb[0].mxu0
      %v567 = vadd.f32 %v266, %v566
      %v568 = vpop.f32.mrb[0].mxu0
      %v569 = vadd.f32 %v270, %v568
      %v570 = vpop.f32.mrb[0].mxu0
      %v571 = vadd.f32 %v266, %v570
      %v572 = vpop.f32.mrb[0].mxu0
      %v573 = vadd.f32 %v270, %v572
      %574 = vmatprep.mubr.bf16.mxu0 0
      %575 = vmatmul.mubr.bf16.gmra.mrb[0].mxu0 %v292
      %v576 = vpop.f32.mrb[0].mxu0
      %v577 = vadd.f32 %v266, %v576
      %v578 = vpop.f32.mrb[0].mxu0
      %v579 = vadd.f32 %v270, %v578
      %v580 = vpop.f32.mrb[0].mxu0
      %v581 = vadd.f32 %v266, %v580
      %v582 = vpop.f32.mrb[0].mxu0
      %v583 = vadd.f32 %v270, %v582
      %584 = vmatprep.mubr.bf16.mxu0 0
      %585 = vmatmul.mubr.bf16.gmra.mrb[0].mxu0 %v293
      %v586 = vpop.f32.mrb[0].mxu0
      %v587 = vadd.f32 %v266, %v586
      %v588 = vpop.f32.mrb[0].mxu0
      %v589 = vadd.f32 %v270, %v588
      %v590 = vpop.f32.mrb[0].mxu0
      %v591 = vadd.f32 %v266, %v590
      %v592 = vpop.f32.mrb[0].mxu0
      %v593 = vadd.f32 %v270, %v592
      %594 = vmatprep.mubr.bf16.mxu0 0
      %595 = vmatmul.mubr.bf16.gmra.mrb[0].mxu0 %v294
      %v596 = vpop.f32.mrb[0].mxu0
      %v597 = vadd.f32 %v266, %v596
      %v598 = vpop.f32.mrb[0].mxu0
      %v599 = vadd.f32 %v270, %v598
      %v600 = vpop.f32.mrb[0].mxu0
      %v601 = vadd.f32 %v266, %v600
      %v602 = vpop.f32.mrb[0].mxu0
      %v603 = vadd.f32 %v270, %v602
      %604 = vdwg.mxu0
      %v605 = vpack.c.bf16 %v498, %v494
      %v606 = vpack.c.bf16 %v500, %v496
      %v607 = vpack.c.bf16 %v571, %v567
      %v608 = vpack.c.bf16 %v573, %v569
      %v609 = vpack.c.bf16 %v508, %v504
      %v610 = vpack.c.bf16 %v510, %v506
      %v611 = vpack.c.bf16 %v581, %v577
      %v612 = vpack.c.bf16 %v583, %v579
      %v613 = vpack.c.bf16 %v518, %v514
      %v614 = vpack.c.bf16 %v520, %v516
      %v615 = vpack.c.bf16 %v591, %v587
      %v616 = vpack.c.bf16 %v593, %v589
      %v617 = vpack.c.bf16 %v528, %v524
      %v618 = vpack.c.bf16 %v530, %v526
      %v619 = vpack.c.bf16 %v601, %v597
      %v620 = vpack.c.bf16 %v603, %v599
      %v629 = vunpack.c.l.b16 %v605
      %v630 = vunpack.c.l.b16 %v606
      %v631 = vunpack.c.h.b16 %v605
      %v632 = vunpack.c.h.b16 %v606
      %v633 = vunpack.c.l.b16 %v609
      %v634 = vunpack.c.l.b16 %v610
      %v635 = vunpack.c.h.b16 %v609
      %v636 = vunpack.c.h.b16 %v610
      %v637 = vunpack.c.l.b16 %v613
      %v638 = vunpack.c.l.b16 %v614
      %v639 = vunpack.c.h.b16 %v613
      %v640 = vunpack.c.h.b16 %v614
      %v641 = vunpack.c.l.b16 %v617
      %v642 = vunpack.c.l.b16 %v618
      %v643 = vunpack.c.h.b16 %v617
      %v644 = vunpack.c.h.b16 %v618
      %v645 = vpack.c.b16 %v630, %v629
      %v646 = vpack.c.b16 %v632, %v631
      %v647 = vpack.c.b16 %v634, %v633
      %v648 = vpack.c.b16 %v636, %v635
      %v649 = vpack.c.b16 %v638, %v637
      %v650 = vpack.c.b16 %v640, %v639
      %v651 = vpack.c.b16 %v642, %v641
      %v652 = vpack.c.b16 %v644, %v643
      %v653 = vunpack.i.l.s16 %v645
      %v654 = vunpack.i.h.s16 %v645
      %v655 = vpack.c.b16 %v654, %v653
      %v656 = vunpack.i.l.s16 %v655
      %v657 = vunpack.i.h.s16 %v655
      %v658 = vpack.c.b16 %v657, %v656
      %v659 = vunpack.i.l.s16 %v658
      %v660 = vunpack.i.h.s16 %v658
      %v661 = vunpack.i.l.s16 %v646
      %v662 = vunpack.i.h.s16 %v646
      %v663 = vpack.c.b16 %v662, %v661
      %v664 = vunpack.i.l.s16 %v663
      %v665 = vunpack.i.h.s16 %v663
      %v666 = vpack.c.b16 %v665, %v664
      %v667 = vunpack.i.l.s16 %v666
      %v668 = vunpack.i.h.s16 %v666
      %v669 = vunpack.i.l.s16 %v647
      %v670 = vunpack.i.h.s16 %v647
      %v671 = vpack.c.b16 %v670, %v669
      %v672 = vunpack.i.l.s16 %v671
      %v673 = vunpack.i.h.s16 %v671
      %v674 = vpack.c.b16 %v673, %v672
      %v675 = vunpack.i.l.s16 %v674
      %v676 = vunpack.i.h.s16 %v674
      %v677 = vunpack.i.l.s16 %v648
      %v678 = vunpack.i.h.s16 %v648
      %v679 = vpack.c.b16 %v678, %v677
      %v680 = vunpack.i.l.s16 %v679
      %v681 = vunpack.i.h.s16 %v679
      %v682 = vpack.c.b16 %v681, %v680
      %v683 = vunpack.i.l.s16 %v682
      %v684 = vunpack.i.h.s16 %v682
      %v685 = vunpack.i.l.s16 %v649
      %v686 = vunpack.i.h.s16 %v649
      %v687 = vpack.c.b16 %v686, %v685
      %v688 = vunpack.i.l.s16 %v687
      %v689 = vunpack.i.h.s16 %v687
      %v690 = vpack.c.b16 %v689, %v688
      %v691 = vunpack.i.l.s16 %v690
      %v692 = vunpack.i.h.s16 %v690
      %v693 = vunpack.i.l.s16 %v650
      %v694 = vunpack.i.h.s16 %v650
      %v695 = vpack.c.b16 %v694, %v693
      %v696 = vunpack.i.l.s16 %v695
      %v697 = vunpack.i.h.s16 %v695
      %v698 = vpack.c.b16 %v697, %v696
      %v699 = vunpack.i.l.s16 %v698
      %v700 = vunpack.i.h.s16 %v698
      %v701 = vunpack.i.l.s16 %v651
      %v702 = vunpack.i.h.s16 %v651
      %v703 = vpack.c.b16 %v702, %v701
      %v704 = vunpack.i.l.s16 %v703
      %v705 = vunpack.i.h.s16 %v703
      %v706 = vpack.c.b16 %v705, %v704
      %v707 = vunpack.i.l.s16 %v706
      %v708 = vunpack.i.h.s16 %v706
      %v709 = vunpack.i.l.s16 %v652
      %v710 = vunpack.i.h.s16 %v652
      %v711 = vpack.c.b16 %v710, %v709
      %v712 = vunpack.i.l.s16 %v711
      %v713 = vunpack.i.h.s16 %v711
      %v714 = vpack.c.b16 %v713, %v712
      %v715 = vunpack.i.l.s16 %v714
      %v716 = vunpack.i.h.s16 %v714
      %v717 = vpack.i.b16 %v667, %v659
      %v718 = vpack.i.b16 %v668, %v660
      %v719 = vpack.i.b16 %v683, %v675
      %v720 = vpack.i.b16 %v684, %v676
      %v721 = vpack.i.b16 %v699, %v691
      %v722 = vpack.i.b16 %v700, %v692
      %v723 = vpack.i.b16 %v715, %v707
      %v724 = vpack.i.b16 %v716, %v708
      %v725 = vcombine.low %v717, %v719
      %v726 = vcombine.high %v717, %v719
      %v727 = vcombine.low %v721, %v723
      %v728 = vcombine.high %v721, %v723
      %v730 = vunpack.c.l.s4 1966171168
      %v731 = vunpack.c.0.s8 %v730
      %v732 = vlaneseq
      %v733 = vshrl.u32 %v732, 7
      %v734 = vsub.s32 %v731, %v733
      %v735 = vrot.slane %v725, %v734
      %v737 = vunpack.c.l.s4 1966171168
      %v738 = vunpack.c.0.s8 %v737
      %v739 = vlaneseq
      %v740 = vshrl.u32 %v739, 7
      %v741 = vsub.s32 %v738, %v740
      %v742 = vrot.slane %v726, %v741
      %v744 = vunpack.c.l.s4 1966171168
      %v745 = vunpack.c.0.s8 %v744
      %v746 = vlaneseq
      %v747 = vshrl.u32 %v746, 7
      %v748 = vsub.s32 %v745, %v747
      %v749 = vrot.slane %v727, %v748
      %v751 = vunpack.c.l.s4 1966171168
      %v752 = vunpack.c.0.s8 %v751
      %v753 = vlaneseq
      %v754 = vshrl.u32 %v753, 7
      %v755 = vsub.s32 %v752, %v754
      %v756 = vrot.slane %v728, %v755
      %v757 = vcombine.low %v735, %v749
      %v758 = vcombine.high %v735, %v749
      %v759 = vcombine.low %v742, %v756
      %v760 = vcombine.high %v742, %v756
      %v762 = vunpack.c.l.s4 1966171168
      %v763 = vunpack.c.0.s8 %v762
      %v764 = vlaneseq
      %v765 = vshrl.u32 %v764, 7
      %v766 = vsub.s32 %v763, %v765
      %v767 = vrot.slane %v757, %v766
      %v769 = vunpack.c.l.s4 1966171168
      %v770 = vunpack.c.0.s8 %v769
      %v771 = vlaneseq
      %v772 = vshrl.u32 %v771, 7
      %v773 = vsub.s32 %v770, %v772
      %v774 = vrot.slane %v759, %v773
      %v776 = vunpack.c.l.s4 1966171168
      %v777 = vunpack.c.0.s8 %v776
      %v778 = vlaneseq
      %v779 = vshrl.u32 %v778, 7
      %v780 = vsub.s32 %v777, %v779
      %v781 = vrot.slane %v758, %v780
      %v783 = vunpack.c.l.s4 1966171168
      %v784 = vunpack.c.0.s8 %v783
      %v785 = vlaneseq
      %v786 = vshrl.u32 %v785, 7
      %v787 = vsub.s32 %v784, %v786
      %v788 = vrot.slane %v760, %v787
      %v789 = vcombine.high %v767, %v767
      %v790 = vcombine.high %v774, %v774
      %v791 = vcombine.high %v781, %v781
      %v792 = vcombine.high %v788, %v788
      %v793 = vcombine.low %v718, %v720
      %v794 = vcombine.high %v718, %v720
      %v795 = vcombine.low %v722, %v724
      %v796 = vcombine.high %v722, %v724
      %v798 = vunpack.c.l.s4 1966171168
      %v799 = vunpack.c.0.s8 %v798
      %v800 = vlaneseq
      %v801 = vshrl.u32 %v800, 7
      %v802 = vsub.s32 %v799, %v801
      %v803 = vrot.slane %v793, %v802
      %v805 = vunpack.c.l.s4 1966171168
      %v806 = vunpack.c.0.s8 %v805
      %v807 = vlaneseq
      %v808 = vshrl.u32 %v807, 7
      %v809 = vsub.s32 %v806, %v808
      %v810 = vrot.slane %v794, %v809
      %v812 = vunpack.c.l.s4 1966171168
      %v813 = vunpack.c.0.s8 %v812
      %v814 = vlaneseq
      %v815 = vshrl.u32 %v814, 7
      %v816 = vsub.s32 %v813, %v815
      %v817 = vrot.slane %v795, %v816
      %v819 = vunpack.c.l.s4 1966171168
      %v820 = vunpack.c.0.s8 %v819
      %v821 = vlaneseq
      %v822 = vshrl.u32 %v821, 7
      %v823 = vsub.s32 %v820, %v822
      %v824 = vrot.slane %v796, %v823
      %v825 = vcombine.low %v803, %v817
      %v826 = vcombine.high %v803, %v817
      %v827 = vcombine.low %v810, %v824
      %v828 = vcombine.high %v810, %v824
      %v830 = vunpack.c.l.s4 1966171168
      %v831 = vunpack.c.0.s8 %v830
      %v832 = vlaneseq
      %v833 = vshrl.u32 %v832, 7
      %v834 = vsub.s32 %v831, %v833
      %v835 = vrot.slane %v825, %v834
      %v837 = vunpack.c.l.s4 1966171168
      %v838 = vunpack.c.0.s8 %v837
      %v839 = vlaneseq
      %v840 = vshrl.u32 %v839, 7
      %v841 = vsub.s32 %v838, %v840
      %v842 = vrot.slane %v827, %v841
      %v844 = vunpack.c.l.s4 1966171168
      %v845 = vunpack.c.0.s8 %v844
      %v846 = vlaneseq
      %v847 = vshrl.u32 %v846, 7
      %v848 = vsub.s32 %v845, %v847
      %v849 = vrot.slane %v826, %v848
      %v851 = vunpack.c.l.s4 1966171168
      %v852 = vunpack.c.0.s8 %v851
      %v853 = vlaneseq
      %v854 = vshrl.u32 %v853, 7
      %v855 = vsub.s32 %v852, %v854
      %v856 = vrot.slane %v828, %v855
      %v857 = vcombine.high %v835, %v835
      %v858 = vcombine.high %v842, %v842
      %v859 = vcombine.high %v849, %v849
      %v860 = vcombine.high %v856, %v856
      %v885 = vunpack.c.l.b16 %v607
      %v886 = vunpack.c.l.b16 %v608
      %v887 = vunpack.c.h.b16 %v607
      %v888 = vunpack.c.h.b16 %v608
      %v889 = vunpack.c.l.b16 %v611
      %v890 = vunpack.c.l.b16 %v612
      %v891 = vunpack.c.h.b16 %v611
      %v892 = vunpack.c.h.b16 %v612
      %v893 = vunpack.c.l.b16 %v615
      %v894 = vunpack.c.l.b16 %v616
      %v895 = vunpack.c.h.b16 %v615
      %v896 = vunpack.c.h.b16 %v616
      %v897 = vunpack.c.l.b16 %v619
      %v898 = vunpack.c.l.b16 %v620
      %v899 = vunpack.c.h.b16 %v619
      %v900 = vunpack.c.h.b16 %v620
      %v901 = vpack.c.b16 %v886, %v885
      %v902 = vpack.c.b16 %v888, %v887
      %v903 = vpack.c.b16 %v890, %v889
      %v904 = vpack.c.b16 %v892, %v891
      %v905 = vpack.c.b16 %v894, %v893
      %v906 = vpack.c.b16 %v896, %v895
      %v907 = vpack.c.b16 %v898, %v897
      %v908 = vpack.c.b16 %v900, %v899
      %v909 = vunpack.i.l.s16 %v901
      %v910 = vunpack.i.h.s16 %v901
      %v911 = vpack.c.b16 %v910, %v909
      %v912 = vunpack.i.l.s16 %v911
      %v913 = vunpack.i.h.s16 %v911
      %v914 = vpack.c.b16 %v913, %v912
      %v915 = vunpack.i.l.s16 %v914
      %v916 = vunpack.i.h.s16 %v914
      %v917 = vunpack.i.l.s16 %v902
      %v918 = vunpack.i.h.s16 %v902
      %v919 = vpack.c.b16 %v918, %v917
      %v920 = vunpack.i.l.s16 %v919
      %v921 = vunpack.i.h.s16 %v919
      %v922 = vpack.c.b16 %v921, %v920
      %v923 = vunpack.i.l.s16 %v922
      %v924 = vunpack.i.h.s16 %v922
      %v925 = vunpack.i.l.s16 %v903
      %v926 = vunpack.i.h.s16 %v903
      %v927 = vpack.c.b16 %v926, %v925
      %v928 = vunpack.i.l.s16 %v927
      %v929 = vunpack.i.h.s16 %v927
      %v930 = vpack.c.b16 %v929, %v928
      %v931 = vunpack.i.l.s16 %v930
      %v932 = vunpack.i.h.s16 %v930
      %v933 = vunpack.i.l.s16 %v904
      %v934 = vunpack.i.h.s16 %v904
      %v935 = vpack.c.b16 %v934, %v933
      %v936 = vunpack.i.l.s16 %v935
      %v937 = vunpack.i.h.s16 %v935
      %v938 = vpack.c.b16 %v937, %v936
      %v939 = vunpack.i.l.s16 %v938
      %v940 = vunpack.i.h.s16 %v938
      %v941 = vunpack.i.l.s16 %v905
      %v942 = vunpack.i.h.s16 %v905
      %v943 = vpack.c.b16 %v942, %v941
      %v944 = vunpack.i.l.s16 %v943
      %v945 = vunpack.i.h.s16 %v943
      %v946 = vpack.c.b16 %v945, %v944
      %v947 = vunpack.i.l.s16 %v946
      %v948 = vunpack.i.h.s16 %v946
      %v949 = vunpack.i.l.s16 %v906
      %v950 = vunpack.i.h.s16 %v906
      %v951 = vpack.c.b16 %v950, %v949
      %v952 = vunpack.i.l.s16 %v951
      %v953 = vunpack.i.h.s16 %v951
      %v954 = vpack.c.b16 %v953, %v952
      %v955 = vunpack.i.l.s16 %v954
      %v956 = vunpack.i.h.s16 %v954
      %v957 = vunpack.i.l.s16 %v907
      %v958 = vunpack.i.h.s16 %v907
      %v959 = vpack.c.b16 %v958, %v957
      %v960 = vunpack.i.l.s16 %v959
      %v961 = vunpack.i.h.s16 %v959
      %v962 = vpack.c.b16 %v961, %v960
      %v963 = vunpack.i.l.s16 %v962
      %v964 = vunpack.i.h.s16 %v962
      %v965 = vunpack.i.l.s16 %v908
      %v966 = vunpack.i.h.s16 %v908
      %v967 = vpack.c.b16 %v966, %v965
      %v968 = vunpack.i.l.s16 %v967
      %v969 = vunpack.i.h.s16 %v967
      %v970 = vpack.c.b16 %v969, %v968
      %v971 = vunpack.i.l.s16 %v970
      %v972 = vunpack.i.h.s16 %v970
      %v973 = vpack.i.b16 %v923, %v915
      %v974 = vpack.i.b16 %v924, %v916
      %v975 = vpack.i.b16 %v939, %v931
      %v976 = vpack.i.b16 %v940, %v932
      %v977 = vpack.i.b16 %v955, %v947
      %v978 = vpack.i.b16 %v956, %v948
      %v979 = vpack.i.b16 %v971, %v963
      %v980 = vpack.i.b16 %v972, %v964
      %v981 = vcombine.low %v973, %v975
      %v982 = vcombine.high %v973, %v975
      %v983 = vcombine.low %v977, %v979
      %v984 = vcombine.high %v977, %v979
      %v986 = vunpack.c.l.s4 1966171168
      %v987 = vunpack.c.0.s8 %v986
      %v988 = vlaneseq
      %v989 = vshrl.u32 %v988, 7
      %v990 = vsub.s32 %v987, %v989
      %v991 = vrot.slane %v981, %v990
      %v993 = vunpack.c.l.s4 1966171168
      %v994 = vunpack.c.0.s8 %v993
      %v995 = vlaneseq
      %v996 = vshrl.u32 %v995, 7
      %v997 = vsub.s32 %v994, %v996
      %v998 = vrot.slane %v982, %v997
      %v1000 = vunpack.c.l.s4 1966171168
      %v1001 = vunpack.c.0.s8 %v1000
      %v1002 = vlaneseq
      %v1003 = vshrl.u32 %v1002, 7
      %v1004 = vsub.s32 %v1001, %v1003
      %v1005 = vrot.slane %v983, %v1004
      %v1007 = vunpack.c.l.s4 1966171168
      %v1008 = vunpack.c.0.s8 %v1007
      %v1009 = vlaneseq
      %v1010 = vshrl.u32 %v1009, 7
      %v1011 = vsub.s32 %v1008, %v1010
      %v1012 = vrot.slane %v984, %v1011
      %v1013 = vcombine.low %v991, %v1005
      %v1014 = vcombine.high %v991, %v1005
      %v1015 = vcombine.low %v998, %v1012
      %v1016 = vcombine.high %v998, %v1012
      %v1018 = vunpack.c.l.s4 1966171168
      %v1019 = vunpack.c.0.s8 %v1018
      %v1020 = vlaneseq
      %v1021 = vshrl.u32 %v1020, 7
      %v1022 = vsub.s32 %v1019, %v1021
      %v1023 = vrot.slane %v1013, %v1022
      %v1025 = vunpack.c.l.s4 1966171168
      %v1026 = vunpack.c.0.s8 %v1025
      %v1027 = vlaneseq
      %v1028 = vshrl.u32 %v1027, 7
      %v1029 = vsub.s32 %v1026, %v1028
      %v1030 = vrot.slane %v1015, %v1029
      %v1032 = vunpack.c.l.s4 1966171168
      %v1033 = vunpack.c.0.s8 %v1032
      %v1034 = vlaneseq
      %v1035 = vshrl.u32 %v1034, 7
      %v1036 = vsub.s32 %v1033, %v1035
      %v1037 = vrot.slane %v1014, %v1036
      %v1039 = vunpack.c.l.s4 1966171168
      %v1040 = vunpack.c.0.s8 %v1039
      %v1041 = vlaneseq
      %v1042 = vshrl.u32 %v1041, 7
      %v1043 = vsub.s32 %v1040, %v1042
      %v1044 = vrot.slane %v1016, %v1043
      %v1045 = vcombine.high %v1023, %v1023
      %v1046 = vcombine.high %v1030, %v1030
      %v1047 = vcombine.high %v1037, %v1037
      %v1048 = vcombine.high %v1044, %v1044
      %v1049 = vcombine.low %v974, %v976
      %v1050 = vcombine.high %v974, %v976
      %v1051 = vcombine.low %v978, %v980
      %v1052 = vcombine.high %v978, %v980
      %v1054 = vunpack.c.l.s4 1966171168
      %v1055 = vunpack.c.0.s8 %v1054
      %v1056 = vlaneseq
      %v1057 = vshrl.u32 %v1056, 7
      %v1058 = vsub.s32 %v1055, %v1057
      %v1059 = vrot.slane %v1049, %v1058
      %v1061 = vunpack.c.l.s4 1966171168
      %v1062 = vunpack.c.0.s8 %v1061
      %v1063 = vlaneseq
      %v1064 = vshrl.u32 %v1063, 7
      %v1065 = vsub.s32 %v1062, %v1064
      %v1066 = vrot.slane %v1050, %v1065
      %v1068 = vunpack.c.l.s4 1966171168
      %v1069 = vunpack.c.0.s8 %v1068
      %v1070 = vlaneseq
      %v1071 = vshrl.u32 %v1070, 7
      %v1072 = vsub.s32 %v1069, %v1071
      %v1073 = vrot.slane %v1051, %v1072
      %v1075 = vunpack.c.l.s4 1966171168
      %v1076 = vunpack.c.0.s8 %v1075
      %v1077 = vlaneseq
      %v1078 = vshrl.u32 %v1077, 7
      %v1079 = vsub.s32 %v1076, %v1078
      %v1080 = vrot.slane %v1052, %v1079
      %v1081 = vcombine.low %v1059, %v1073
      %v1082 = vcombine.high %v1059, %v1073
      %v1083 = vcombine.low %v1066, %v1080
      %v1084 = vcombine.high %v1066, %v1080
      %v1086 = vunpack.c.l.s4 1966171168
      %v1087 = vunpack.c.0.s8 %v1086
      %v1088 = vlaneseq
      %v1089 = vshrl.u32 %v1088, 7
      %v1090 = vsub.s32 %v1087, %v1089
      %v1091 = vrot.slane %v1081, %v1090
      %v1093 = vunpack.c.l.s4 1966171168
      %v1094 = vunpack.c.0.s8 %v1093
      %v1095 = vlaneseq
      %v1096 = vshrl.u32 %v1095, 7
      %v1097 = vsub.s32 %v1094, %v1096
      %v1098 = vrot.slane %v1083, %v1097
      %v1100 = vunpack.c.l.s4 1966171168
      %v1101 = vunpack.c.0.s8 %v1100
      %v1102 = vlaneseq
      %v1103 = vshrl.u32 %v1102, 7
      %v1104 = vsub.s32 %v1101, %v1103
      %v1105 = vrot.slane %v1082, %v1104
      %v1107 = vunpack.c.l.s4 1966171168
      %v1108 = vunpack.c.0.s8 %v1107
      %v1109 = vlaneseq
      %v1110 = vshrl.u32 %v1109, 7
      %v1111 = vsub.s32 %v1108, %v1110
      %v1112 = vrot.slane %v1084, %v1111
      %v1113 = vcombine.high %v1091, %v1091
      %v1114 = vcombine.high %v1098, %v1098
      %v1115 = vcombine.high %v1105, %v1105
      %v1116 = vcombine.high %v1112, %v1112
      %vm1133 = vsmask.f32 256
      %v1134 = vsel %vm1133, 0, 0
      %v1136 = vshll.u32 %v767, 16
      %vm1138 = vsmask.f32 770
      %v1139 = vsel %vm1138, %v1136, %v1134
      %v1140 = vrot.slane %v781, 7
      %vm1141 = vsmask.f32 1284
      %v1142 = vsel %vm1141, %v1140, %v1139
      %v1143 = vrot.slane %v789, 7
      %v1145 = vshll.u32 %v1143, 16
      %vm1147 = vsmask.f32 1798
      %v1148 = vsel %vm1147, %v1145, %v1142
      %v1149 = vrot.slane %v791, 6
      %vm1150 = vsmask.f32 2312
      %v1151 = vsel %vm1150, %v1149, %v1148
      %v1152 = vrot.slane %v774, 6
      %v1154 = vshll.u32 %v1152, 16
      %vm1156 = vsmask.f32 2826
      %v1157 = vsel %vm1156, %v1154, %v1151
      %v1158 = vrot.slane %v788, 5
      %vm1159 = vsmask.f32 3340
      %v1160 = vsel %vm1159, %v1158, %v1157
      %v1161 = vrot.slane %v790, 5
      %v1163 = vshll.u32 %v1161, 16
      %vm1165 = vsmask.f32 3854
      %v1166 = vsel %vm1165, %v1163, %v1160
      %v1167 = vrot.slane %v792, 4
      %vm1168 = vsmask.f32 4368
      %v1169 = vsel %vm1168, %v1167, %v1166
      %v1170 = vrot.slane %v835, 4
      %v1172 = vshll.u32 %v1170, 16
      %vm1174 = vsmask.f32 4882
      %v1175 = vsel %vm1174, %v1172, %v1169
      %v1176 = vrot.slane %v849, 3
      %vm1177 = vsmask.f32 5396
      %v1178 = vsel %vm1177, %v1176, %v1175
      %v1179 = vrot.slane %v857, 3
      %v1181 = vshll.u32 %v1179, 16
      %vm1183 = vsmask.f32 5910
      %v1184 = vsel %vm1183, %v1181, %v1178
      %v1185 = vrot.slane %v859, 2
      %vm1186 = vsmask.f32 6424
      %v1187 = vsel %vm1186, %v1185, %v1184
      %v1188 = vrot.slane %v842, 2
      %v1190 = vshll.u32 %v1188, 16
      %vm1192 = vsmask.f32 6938
      %v1193 = vsel %vm1192, %v1190, %v1187
      %v1194 = vrot.slane %v856, 1
      %vm1195 = vsmask.f32 7452
      %v1196 = vsel %vm1195, %v1194, %v1193
      %v1197 = vrot.slane %v858, 1
      %v1199 = vshll.u32 %v1197, 16
      %vm1201 = vsmask.f32 7966
      %v1202 = vsel %vm1201, %v1199, %v1196
      %v1203 = vsel %vm1133, %v860, 0
      %v1205 = vshll.u32 0, 16
      %v1207 = vsel %vm1138, %v1205, %v1203
      %v1208 = vrot.slane 0, 7
      %v1209 = vsel %vm1141, %v1208, %v1207
      %v1211 = vshll.u32 %v1208, 16
      %v1213 = vsel %vm1147, %v1211, %v1209
      %v1214 = vrot.slane 0, 6
      %v1215 = vsel %vm1150, %v1214, %v1213
      %v1217 = vshll.u32 %v1214, 16
      %v1219 = vsel %vm1156, %v1217, %v1215
      %v1220 = vrot.slane 0, 5
      %v1221 = vsel %vm1159, %v1220, %v1219
      %v1223 = vshll.u32 %v1220, 16
      %v1225 = vsel %vm1165, %v1223, %v1221
      %v1227 = vshll.u32 %v1023, 16
      %v1229 = vsel %vm1138, %v1227, %v1134
      %v1230 = vrot.slane %v1037, 7
      %v1231 = vsel %vm1141, %v1230, %v1229
      %v1232 = vrot.slane %v1045, 7
      %v1234 = vshll.u32 %v1232, 16
      %v1236 = vsel %vm1147, %v1234, %v1231
      %v1237 = vrot.slane %v1047, 6
      %v1238 = vsel %vm1150, %v1237, %v1236
      %v1239 = vrot.slane %v1030, 6
      %v1241 = vshll.u32 %v1239, 16
      %v1243 = vsel %vm1156, %v1241, %v1238
      %v1244 = vrot.slane %v1044, 5
      %v1245 = vsel %vm1159, %v1244, %v1243
      %v1246 = vrot.slane %v1046, 5
      %v1248 = vshll.u32 %v1246, 16
      %v1250 = vsel %vm1165, %v1248, %v1245
      %v1251 = vrot.slane %v1048, 4
      %v1252 = vsel %vm1168, %v1251, %v1250
      %v1253 = vrot.slane %v1091, 4
      %v1255 = vshll.u32 %v1253, 16
      %v1257 = vsel %vm1174, %v1255, %v1252
      %v1258 = vrot.slane %v1105, 3
      %v1259 = vsel %vm1177, %v1258, %v1257
      %v1260 = vrot.slane %v1113, 3
      %v1262 = vshll.u32 %v1260, 16
      %v1264 = vsel %vm1183, %v1262, %v1259
      %v1265 = vrot.slane %v1115, 2
      %v1266 = vsel %vm1186, %v1265, %v1264
      %v1267 = vrot.slane %v1098, 2
      %v1269 = vshll.u32 %v1267, 16
      %v1271 = vsel %vm1192, %v1269, %v1266
      %v1272 = vrot.slane %v1112, 1
      %v1273 = vsel %vm1195, %v1272, %v1271
      %v1274 = vrot.slane %v1114, 1
      %v1276 = vshll.u32 %v1274, 16
      %v1278 = vsel %vm1201, %v1276, %v1273
      %v1279 = vsel %vm1133, %v1116, 0
      %v1280 = vsel %vm1138, %v1205, %v1279
      %v1281 = vsel %vm1141, %v1208, %v1280
      %v1282 = vsel %vm1147, %v1211, %v1281
      %v1283 = vsel %vm1150, %v1214, %v1282
      %v1284 = vsel %vm1156, %v1217, %v1283
      %v1285 = vsel %vm1159, %v1220, %v1284
      %v1286 = vsel %vm1165, %v1223, %v1285
      %v1287 = vshrl.u32 0, 16
      %v1289 = vsel %vm1133, %v1287, 0
      %v1290 = vsel %vm1138, %v767, %v1289
      %v1292 = vshrl.u32 %v1140, 16
      %v1294 = vsel %vm1141, %v1292, %v1290
      %v1295 = vsel %vm1147, %v1143, %v1294
      %v1297 = vshrl.u32 %v1149, 16
      %v1299 = vsel %vm1150, %v1297, %v1295
      %v1300 = vsel %vm1156, %v1152, %v1299
      %v1302 = vshrl.u32 %v1158, 16
      %v1304 = vsel %vm1159, %v1302, %v1300
      %v1305 = vsel %vm1165, %v1161, %v1304
      %v1307 = vshrl.u32 %v1167, 16
      %v1309 = vsel %vm1168, %v1307, %v1305
      %v1310 = vsel %vm1174, %v1170, %v1309
      %v1312 = vshrl.u32 %v1176, 16
      %v1314 = vsel %vm1177, %v1312, %v1310
      %v1315 = vsel %vm1183, %v1179, %v1314
      %v1317 = vshrl.u32 %v1185, 16
      %v1319 = vsel %vm1186, %v1317, %v1315
      %v1320 = vsel %vm1192, %v1188, %v1319
      %v1322 = vshrl.u32 %v1194, 16
      %v1324 = vsel %vm1195, %v1322, %v1320
      %v1325 = vsel %vm1201, %v1197, %v1324
      %v1327 = vshrl.u32 %v860, 16
      %v1329 = vsel %vm1133, %v1327, 0
      %v1330 = vsel %vm1138, 0, %v1329
      %v1331 = vshrl.u32 %v1208, 16
      %v1333 = vsel %vm1141, %v1331, %v1330
      %v1334 = vsel %vm1147, %v1208, %v1333
      %v1335 = vshrl.u32 %v1214, 16
      %v1337 = vsel %vm1150, %v1335, %v1334
      %v1338 = vsel %vm1156, %v1214, %v1337
      %v1339 = vshrl.u32 %v1220, 16
      %v1341 = vsel %vm1159, %v1339, %v1338
      %v1342 = vsel %vm1165, %v1220, %v1341
      %v1343 = vsel %vm1138, %v1023, %v1289
      %v1345 = vshrl.u32 %v1230, 16
      %v1347 = vsel %vm1141, %v1345, %v1343
      %v1348 = vsel %vm1147, %v1232, %v1347
      %v1350 = vshrl.u32 %v1237, 16
      %v1352 = vsel %vm1150, %v1350, %v1348
      %v1353 = vsel %vm1156, %v1239, %v1352
      %v1355 = vshrl.u32 %v1244, 16
      %v1357 = vsel %vm1159, %v1355, %v1353
      %v1358 = vsel %vm1165, %v1246, %v1357
      %v1360 = vshrl.u32 %v1251, 16
      %v1362 = vsel %vm1168, %v1360, %v1358
      %v1363 = vsel %vm1174, %v1253, %v1362
      %v1365 = vshrl.u32 %v1258, 16
      %v1367 = vsel %vm1177, %v1365, %v1363
      %v1368 = vsel %vm1183, %v1260, %v1367
      %v1370 = vshrl.u32 %v1265, 16
      %v1372 = vsel %vm1186, %v1370, %v1368
      %v1373 = vsel %vm1192, %v1267, %v1372
      %v1375 = vshrl.u32 %v1272, 16
      %v1377 = vsel %vm1195, %v1375, %v1373
      %v1378 = vsel %vm1201, %v1274, %v1377
      %v1380 = vshrl.u32 %v1116, 16
      %v1382 = vsel %vm1133, %v1380, 0
      %v1383 = vsel %vm1138, 0, %v1382
      %v1384 = vsel %vm1141, %v1331, %v1383
      %v1385 = vsel %vm1147, %v1208, %v1384
      %v1386 = vsel %vm1150, %v1335, %v1385
      %v1387 = vsel %vm1156, %v1214, %v1386
      %v1388 = vsel %vm1159, %v1339, %v1387
      %v1389 = vsel %vm1165, %v1220, %v1388
      %v1390 = vrot.slane 0, 1
      %v1391 = vsel %vm1133, %v1390, 0
      %v1392 = vrot.slane %v767, 1
      %v1394 = vshll.u32 %v1392, 16
      %v1396 = vsel %vm1138, %v1394, %v1391
      %v1397 = vsel %vm1141, %v781, %v1396
      %v1399 = vshll.u32 %v789, 16
      %v1401 = vsel %vm1147, %v1399, %v1397
      %v1402 = vrot.slane %v791, 7
      %v1403 = vsel %vm1150, %v1402, %v1401
      %v1404 = vrot.slane %v774, 7
      %v1406 = vshll.u32 %v1404, 16
      %v1408 = vsel %vm1156, %v1406, %v1403
      %v1409 = vrot.slane %v788, 6
      %v1410 = vsel %vm1159, %v1409, %v1408
      %v1411 = vrot.slane %v790, 6
      %v1413 = vshll.u32 %v1411, 16
      %v1415 = vsel %vm1165, %v1413, %v1410
      %v1416 = vrot.slane %v792, 5
      %v1417 = vsel %vm1168, %v1416, %v1415
      %v1418 = vrot.slane %v835, 5
      %v1420 = vshll.u32 %v1418, 16
      %v1422 = vsel %vm1174, %v1420, %v1417
      %v1423 = vrot.slane %v849, 4
      %v1424 = vsel %vm1177, %v1423, %v1422
      %v1425 = vrot.slane %v857, 4
      %v1427 = vshll.u32 %v1425, 16
      %v1429 = vsel %vm1183, %v1427, %v1424
      %v1430 = vrot.slane %v859, 3
      %v1431 = vsel %vm1186, %v1430, %v1429
      %v1432 = vrot.slane %v842, 3
      %v1434 = vshll.u32 %v1432, 16
      %v1436 = vsel %vm1192, %v1434, %v1431
      %v1437 = vrot.slane %v856, 2
      %v1438 = vsel %vm1195, %v1437, %v1436
      %v1439 = vrot.slane %v858, 2
      %v1441 = vshll.u32 %v1439, 16
      %v1443 = vsel %vm1201, %v1441, %v1438
      %v1444 = vrot.slane %v860, 1
      %v1445 = vsel %vm1133, %v1444, 0
      %v1447 = vshll.u32 %v1390, 16
      %v1449 = vsel %vm1138, %v1447, %v1445
      %v1450 = vsel %vm1141, 0, %v1449
      %v1451 = vsel %vm1147, %v1205, %v1450
      %v1452 = vsel %vm1150, %v1208, %v1451
      %v1453 = vsel %vm1156, %v1211, %v1452
      %v1454 = vsel %vm1159, %v1214, %v1453
      %v1455 = vsel %vm1165, %v1217, %v1454
      %v1456 = vrot.slane %v1023, 1
      %v1458 = vshll.u32 %v1456, 16
      %v1460 = vsel %vm1138, %v1458, %v1391
      %v1461 = vsel %vm1141, %v1037, %v1460
      %v1463 = vshll.u32 %v1045, 16
      %v1465 = vsel %vm1147, %v1463, %v1461
      %v1466 = vrot.slane %v1047, 7
      %v1467 = vsel %vm1150, %v1466, %v1465
      %v1468 = vrot.slane %v1030, 7
      %v1470 = vshll.u32 %v1468, 16
      %v1472 = vsel %vm1156, %v1470, %v1467
      %v1473 = vrot.slane %v1044, 6
      %v1474 = vsel %vm1159, %v1473, %v1472
      %v1475 = vrot.slane %v1046, 6
      %v1477 = vshll.u32 %v1475, 16
      %v1479 = vsel %vm1165, %v1477, %v1474
      %v1480 = vrot.slane %v1048, 5
      %v1481 = vsel %vm1168, %v1480, %v1479
      %v1482 = vrot.slane %v1091, 5
      %v1484 = vshll.u32 %v1482, 16
      %v1486 = vsel %vm1174, %v1484, %v1481
      %v1487 = vrot.slane %v1105, 4
      %v1488 = vsel %vm1177, %v1487, %v1486
      %v1489 = vrot.slane %v1113, 4
      %v1491 = vshll.u32 %v1489, 16
      %v1493 = vsel %vm1183, %v1491, %v1488
      %v1494 = vrot.slane %v1115, 3
      %v1495 = vsel %vm1186, %v1494, %v1493
      %v1496 = vrot.slane %v1098, 3
      %v1498 = vshll.u32 %v1496, 16
      %v1500 = vsel %vm1192, %v1498, %v1495
      %v1501 = vrot.slane %v1112, 2
      %v1502 = vsel %vm1195, %v1501, %v1500
      %v1503 = vrot.slane %v1114, 2
      %v1505 = vshll.u32 %v1503, 16
      %v1507 = vsel %vm1201, %v1505, %v1502
      %v1508 = vrot.slane %v1116, 1
      %v1509 = vsel %vm1133, %v1508, 0
      %v1510 = vsel %vm1138, %v1447, %v1509
      %v1511 = vsel %vm1141, 0, %v1510
      %v1512 = vsel %vm1147, %v1205, %v1511
      %v1513 = vsel %vm1150, %v1208, %v1512
      %v1514 = vsel %vm1156, %v1211, %v1513
      %v1515 = vsel %vm1159, %v1214, %v1514
      %v1516 = vsel %vm1165, %v1217, %v1515
      %v1517 = vshrl.u32 %v1390, 16
      %v1519 = vsel %vm1133, %v1517, 0
      %v1520 = vsel %vm1138, %v1392, %v1519
      %v1522 = vshrl.u32 %v781, 16
      %v1524 = vsel %vm1141, %v1522, %v1520
      %v1525 = vsel %vm1147, %v789, %v1524
      %v1527 = vshrl.u32 %v1402, 16
      %v1529 = vsel %vm1150, %v1527, %v1525
      %v1530 = vsel %vm1156, %v1404, %v1529
      %v1532 = vshrl.u32 %v1409, 16
      %v1534 = vsel %vm1159, %v1532, %v1530
      %v1535 = vsel %vm1165, %v1411, %v1534
      %v1537 = vshrl.u32 %v1416, 16
      %v1539 = vsel %vm1168, %v1537, %v1535
      %v1540 = vsel %vm1174, %v1418, %v1539
      %v1542 = vshrl.u32 %v1423, 16
      %v1544 = vsel %vm1177, %v1542, %v1540
      %v1545 = vsel %vm1183, %v1425, %v1544
      %v1547 = vshrl.u32 %v1430, 16
      %v1549 = vsel %vm1186, %v1547, %v1545
      %v1550 = vsel %vm1192, %v1432, %v1549
      %v1552 = vshrl.u32 %v1437, 16
      %v1554 = vsel %vm1195, %v1552, %v1550
      %v1555 = vsel %vm1201, %v1439, %v1554
      %v1557 = vshrl.u32 %v1444, 16
      %v1559 = vsel %vm1133, %v1557, 0
      %v1560 = vsel %vm1138, %v1390, %v1559
      %v1561 = vsel %vm1141, %v1287, %v1560
      %v1562 = vsel %vm1147, 0, %v1561
      %v1563 = vsel %vm1150, %v1331, %v1562
      %v1564 = vsel %vm1156, %v1208, %v1563
      %v1565 = vsel %vm1159, %v1335, %v1564
      %v1566 = vsel %vm1165, %v1214, %v1565
      %v1567 = vsel %vm1138, %v1456, %v1519
      %v1569 = vshrl.u32 %v1037, 16
      %v1571 = vsel %vm1141, %v1569, %v1567
      %v1572 = vsel %vm1147, %v1045, %v1571
      %v1574 = vshrl.u32 %v1466, 16
      %v1576 = vsel %vm1150, %v1574, %v1572
      %v1577 = vsel %vm1156, %v1468, %v1576
      %v1579 = vshrl.u32 %v1473, 16
      %v1581 = vsel %vm1159, %v1579, %v1577
      %v1582 = vsel %vm1165, %v1475, %v1581
      %v1584 = vshrl.u32 %v1480, 16
      %v1586 = vsel %vm1168, %v1584, %v1582
      %v1587 = vsel %vm1174, %v1482, %v1586
      %v1589 = vshrl.u32 %v1487, 16
      %v1591 = vsel %vm1177, %v1589, %v1587
      %v1592 = vsel %vm1183, %v1489, %v1591
      %v1594 = vshrl.u32 %v1494, 16
      %v1596 = vsel %vm1186, %v1594, %v1592
      %v1597 = vsel %vm1192, %v1496, %v1596
      %v1599 = vshrl.u32 %v1501, 16
      %v1601 = vsel %vm1195, %v1599, %v1597
      %v1602 = vsel %vm1201, %v1503, %v1601
      %v1604 = vshrl.u32 %v1508, 16
      %v1606 = vsel %vm1133, %v1604, 0
      %v1607 = vsel %vm1138, %v1390, %v1606
      %v1608 = vsel %vm1141, %v1287, %v1607
      %v1609 = vsel %vm1147, 0, %v1608
      %v1610 = vsel %vm1150, %v1331, %v1609
      %v1611 = vsel %vm1156, %v1208, %v1610
      %v1612 = vsel %vm1159, %v1335, %v1611
      %v1613 = vsel %vm1165, %v1214, %v1612
      %v1614 = vrot.slane 0, 2
      %v1615 = vsel %vm1133, %v1614, 0
      %v1616 = vrot.slane %v767, 2
      %v1618 = vshll.u32 %v1616, 16
      %v1620 = vsel %vm1138, %v1618, %v1615
      %v1621 = vrot.slane %v781, 1
      %v1622 = vsel %vm1141, %v1621, %v1620
      %v1623 = vrot.slane %v789, 1
      %v1625 = vshll.u32 %v1623, 16
      %v1627 = vsel %vm1147, %v1625, %v1622
      %v1628 = vsel %vm1150, %v791, %v1627
      %v1630 = vshll.u32 %v774, 16
      %v1632 = vsel %vm1156, %v1630, %v1628
      %v1633 = vrot.slane %v788, 7
      %v1634 = vsel %vm1159, %v1633, %v1632
      %v1635 = vrot.slane %v790, 7
      %v1637 = vshll.u32 %v1635, 16
      %v1639 = vsel %vm1165, %v1637, %v1634
      %v1640 = vrot.slane %v792, 6
      %v1641 = vsel %vm1168, %v1640, %v1639
      %v1642 = vrot.slane %v835, 6
      %v1644 = vshll.u32 %v1642, 16
      %v1646 = vsel %vm1174, %v1644, %v1641
      %v1647 = vrot.slane %v849, 5
      %v1648 = vsel %vm1177, %v1647, %v1646
      %v1649 = vrot.slane %v857, 5
      %v1651 = vshll.u32 %v1649, 16
      %v1653 = vsel %vm1183, %v1651, %v1648
      %v1654 = vrot.slane %v859, 4
      %v1655 = vsel %vm1186, %v1654, %v1653
      %v1656 = vrot.slane %v842, 4
      %v1658 = vshll.u32 %v1656, 16
      %v1660 = vsel %vm1192, %v1658, %v1655
      %v1661 = vrot.slane %v856, 3
      %v1662 = vsel %vm1195, %v1661, %v1660
      %v1663 = vrot.slane %v858, 3
      %v1665 = vshll.u32 %v1663, 16
      %v1667 = vsel %vm1201, %v1665, %v1662
      %v1668 = vrot.slane %v860, 2
      %v1669 = vsel %vm1133, %v1668, 0
      %v1671 = vshll.u32 %v1614, 16
      %v1673 = vsel %vm1138, %v1671, %v1669
      %v1674 = vsel %vm1141, %v1390, %v1673
      %v1675 = vsel %vm1147, %v1447, %v1674
      %v1676 = vsel %vm1150, 0, %v1675
      %v1677 = vsel %vm1156, %v1205, %v1676
      %v1678 = vsel %vm1159, %v1208, %v1677
      %v1679 = vsel %vm1165, %v1211, %v1678
      %v1680 = vrot.slane %v1023, 2
      %v1682 = vshll.u32 %v1680, 16
      %v1684 = vsel %vm1138, %v1682, %v1615
      %v1685 = vrot.slane %v1037, 1
      %v1686 = vsel %vm1141, %v1685, %v1684
      %v1687 = vrot.slane %v1045, 1
      %v1689 = vshll.u32 %v1687, 16
      %v1691 = vsel %vm1147, %v1689, %v1686
      %v1692 = vsel %vm1150, %v1047, %v1691
      %v1694 = vshll.u32 %v1030, 16
      %v1696 = vsel %vm1156, %v1694, %v1692
      %v1697 = vrot.slane %v1044, 7
      %v1698 = vsel %vm1159, %v1697, %v1696
      %v1699 = vrot.slane %v1046, 7
      %v1701 = vshll.u32 %v1699, 16
      %v1703 = vsel %vm1165, %v1701, %v1698
      %v1704 = vrot.slane %v1048, 6
      %v1705 = vsel %vm1168, %v1704, %v1703
      %v1706 = vrot.slane %v1091, 6
      %v1708 = vshll.u32 %v1706, 16
      %v1710 = vsel %vm1174, %v1708, %v1705
      %v1711 = vrot.slane %v1105, 5
      %v1712 = vsel %vm1177, %v1711, %v1710
      %v1713 = vrot.slane %v1113, 5
      %v1715 = vshll.u32 %v1713, 16
      %v1717 = vsel %vm1183, %v1715, %v1712
      %v1718 = vrot.slane %v1115, 4
      %v1719 = vsel %vm1186, %v1718, %v1717
      %v1720 = vrot.slane %v1098, 4
      %v1722 = vshll.u32 %v1720, 16
      %v1724 = vsel %vm1192, %v1722, %v1719
      %v1725 = vrot.slane %v1112, 3
      %v1726 = vsel %vm1195, %v1725, %v1724
      %v1727 = vrot.slane %v1114, 3
      %v1729 = vshll.u32 %v1727, 16
      %v1731 = vsel %vm1201, %v1729, %v1726
      %v1732 = vrot.slane %v1116, 2
      %v1733 = vsel %vm1133, %v1732, 0
      %v1734 = vsel %vm1138, %v1671, %v1733
      %v1735 = vsel %vm1141, %v1390, %v1734
      %v1736 = vsel %vm1147, %v1447, %v1735
      %v1737 = vsel %vm1150, 0, %v1736
      %v1738 = vsel %vm1156, %v1205, %v1737
      %v1739 = vsel %vm1159, %v1208, %v1738
      %v1740 = vsel %vm1165, %v1211, %v1739
      %v1741 = vshrl.u32 %v1614, 16
      %v1743 = vsel %vm1133, %v1741, 0
      %v1744 = vsel %vm1138, %v1616, %v1743
      %v1746 = vshrl.u32 %v1621, 16
      %v1748 = vsel %vm1141, %v1746, %v1744
      %v1749 = vsel %vm1147, %v1623, %v1748
      %v1751 = vshrl.u32 %v791, 16
      %v1753 = vsel %vm1150, %v1751, %v1749
      %v1754 = vsel %vm1156, %v774, %v1753
      %v1756 = vshrl.u32 %v1633, 16
      %v1758 = vsel %vm1159, %v1756, %v1754
      %v1759 = vsel %vm1165, %v1635, %v1758
      %v1761 = vshrl.u32 %v1640, 16
      %v1763 = vsel %vm1168, %v1761, %v1759
      %v1764 = vsel %vm1174, %v1642, %v1763
      %v1766 = vshrl.u32 %v1647, 16
      %v1768 = vsel %vm1177, %v1766, %v1764
      %v1769 = vsel %vm1183, %v1649, %v1768
      %v1771 = vshrl.u32 %v1654, 16
      %v1773 = vsel %vm1186, %v1771, %v1769
      %v1774 = vsel %vm1192, %v1656, %v1773
      %v1776 = vshrl.u32 %v1661, 16
      %v1778 = vsel %vm1195, %v1776, %v1774
      %v1779 = vsel %vm1201, %v1663, %v1778
      %v1781 = vshrl.u32 %v1668, 16
      %v1783 = vsel %vm1133, %v1781, 0
      %v1784 = vsel %vm1138, %v1614, %v1783
      %v1785 = vsel %vm1141, %v1517, %v1784
      %v1786 = vsel %vm1147, %v1390, %v1785
      %v1787 = vsel %vm1150, %v1287, %v1786
      %v1788 = vsel %vm1156, 0, %v1787
      %v1789 = vsel %vm1159, %v1331, %v1788
      %v1790 = vsel %vm1165, %v1208, %v1789
      %v1791 = vsel %vm1138, %v1680, %v1743
      %v1793 = vshrl.u32 %v1685, 16
      %v1795 = vsel %vm1141, %v1793, %v1791
      %v1796 = vsel %vm1147, %v1687, %v1795
      %v1798 = vshrl.u32 %v1047, 16
      %v1800 = vsel %vm1150, %v1798, %v1796
      %v1801 = vsel %vm1156, %v1030, %v1800
      %v1803 = vshrl.u32 %v1697, 16
      %v1805 = vsel %vm1159, %v1803, %v1801
      %v1806 = vsel %vm1165, %v1699, %v1805
      %v1808 = vshrl.u32 %v1704, 16
      %v1810 = vsel %vm1168, %v1808, %v1806
      %v1811 = vsel %vm1174, %v1706, %v1810
      %v1813 = vshrl.u32 %v1711, 16
      %v1815 = vsel %vm1177, %v1813, %v1811
      %v1816 = vsel %vm1183, %v1713, %v1815
      %v1818 = vshrl.u32 %v1718, 16
      %v1820 = vsel %vm1186, %v1818, %v1816
      %v1821 = vsel %vm1192, %v1720, %v1820
      %v1823 = vshrl.u32 %v1725, 16
      %v1825 = vsel %vm1195, %v1823, %v1821
      %v1826 = vsel %vm1201, %v1727, %v1825
      %v1828 = vshrl.u32 %v1732, 16
      %v1830 = vsel %vm1133, %v1828, 0
      %v1831 = vsel %vm1138, %v1614, %v1830
      %v1832 = vsel %vm1141, %v1517, %v1831
      %v1833 = vsel %vm1147, %v1390, %v1832
      %v1834 = vsel %vm1150, %v1287, %v1833
      %v1835 = vsel %vm1156, 0, %v1834
      %v1836 = vsel %vm1159, %v1331, %v1835
      %v1837 = vsel %vm1165, %v1208, %v1836
      %v1838 = vrot.slane 0, 3
      %v1839 = vsel %vm1133, %v1838, 0
      %v1840 = vrot.slane %v767, 3
      %v1842 = vshll.u32 %v1840, 16
      %v1844 = vsel %vm1138, %v1842, %v1839
      %v1845 = vrot.slane %v781, 2
      %v1846 = vsel %vm1141, %v1845, %v1844
      %v1847 = vrot.slane %v789, 2
      %v1849 = vshll.u32 %v1847, 16
      %v1851 = vsel %vm1147, %v1849, %v1846
      %v1852 = vrot.slane %v791, 1
      %v1853 = vsel %vm1150, %v1852, %v1851
      %v1854 = vrot.slane %v774, 1
      %v1856 = vshll.u32 %v1854, 16
      %v1858 = vsel %vm1156, %v1856, %v1853
      %v1859 = vsel %vm1159, %v788, %v1858
      %v1861 = vshll.u32 %v790, 16
      %v1863 = vsel %vm1165, %v1861, %v1859
      %v1864 = vrot.slane %v792, 7
      %v1865 = vsel %vm1168, %v1864, %v1863
      %v1866 = vrot.slane %v835, 7
      %v1868 = vshll.u32 %v1866, 16
      %v1870 = vsel %vm1174, %v1868, %v1865
      %v1871 = vrot.slane %v849, 6
      %v1872 = vsel %vm1177, %v1871, %v1870
      %v1873 = vrot.slane %v857, 6
      %v1875 = vshll.u32 %v1873, 16
      %v1877 = vsel %vm1183, %v1875, %v1872
      %v1878 = vrot.slane %v859, 5
      %v1879 = vsel %vm1186, %v1878, %v1877
      %v1880 = vrot.slane %v842, 5
      %v1882 = vshll.u32 %v1880, 16
      %v1884 = vsel %vm1192, %v1882, %v1879
      %v1885 = vrot.slane %v856, 4
      %v1886 = vsel %vm1195, %v1885, %v1884
      %v1887 = vrot.slane %v858, 4
      %v1889 = vshll.u32 %v1887, 16
      %v1891 = vsel %vm1201, %v1889, %v1886
      %v1892 = vrot.slane %v860, 3
      %v1893 = vsel %vm1133, %v1892, 0
      %v1895 = vshll.u32 %v1838, 16
      %v1897 = vsel %vm1138, %v1895, %v1893
      %v1898 = vsel %vm1141, %v1614, %v1897
      %v1899 = vsel %vm1147, %v1671, %v1898
      %v1900 = vsel %vm1150, %v1390, %v1899
      %v1901 = vsel %vm1156, %v1447, %v1900
      %v1902 = vsel %vm1159, 0, %v1901
      %v1903 = vsel %vm1165, %v1205, %v1902
      %v1904 = vrot.slane %v1023, 3
      %v1906 = vshll.u32 %v1904, 16
      %v1908 = vsel %vm1138, %v1906, %v1839
      %v1909 = vrot.slane %v1037, 2
      %v1910 = vsel %vm1141, %v1909, %v1908
      %v1911 = vrot.slane %v1045, 2
      %v1913 = vshll.u32 %v1911, 16
      %v1915 = vsel %vm1147, %v1913, %v1910
      %v1916 = vrot.slane %v1047, 1
      %v1917 = vsel %vm1150, %v1916, %v1915
      %v1918 = vrot.slane %v1030, 1
      %v1920 = vshll.u32 %v1918, 16
      %v1922 = vsel %vm1156, %v1920, %v1917
      %v1923 = vsel %vm1159, %v1044, %v1922
      %v1925 = vshll.u32 %v1046, 16
      %v1927 = vsel %vm1165, %v1925, %v1923
      %v1928 = vrot.slane %v1048, 7
      %v1929 = vsel %vm1168, %v1928, %v1927
      %v1930 = vrot.slane %v1091, 7
      %v1932 = vshll.u32 %v1930, 16
      %v1934 = vsel %vm1174, %v1932, %v1929
      %v1935 = vrot.slane %v1105, 6
      %v1936 = vsel %vm1177, %v1935, %v1934
      %v1937 = vrot.slane %v1113, 6
      %v1939 = vshll.u32 %v1937, 16
      %v1941 = vsel %vm1183, %v1939, %v1936
      %v1942 = vrot.slane %v1115, 5
      %v1943 = vsel %vm1186, %v1942, %v1941
      %v1944 = vrot.slane %v1098, 5
      %v1946 = vshll.u32 %v1944, 16
      %v1948 = vsel %vm1192, %v1946, %v1943
      %v1949 = vrot.slane %v1112, 4
      %v1950 = vsel %vm1195, %v1949, %v1948
      %v1951 = vrot.slane %v1114, 4
      %v1953 = vshll.u32 %v1951, 16
      %v1955 = vsel %vm1201, %v1953, %v1950
      %v1956 = vrot.slane %v1116, 3
      %v1957 = vsel %vm1133, %v1956, 0
      %v1958 = vsel %vm1138, %v1895, %v1957
      %v1959 = vsel %vm1141, %v1614, %v1958
      %v1960 = vsel %vm1147, %v1671, %v1959
      %v1961 = vsel %vm1150, %v1390, %v1960
      %v1962 = vsel %vm1156, %v1447, %v1961
      %v1963 = vsel %vm1159, 0, %v1962
      %v1964 = vsel %vm1165, %v1205, %v1963
      %v1965 = vshrl.u32 %v1838, 16
      %v1967 = vsel %vm1133, %v1965, 0
      %v1968 = vsel %vm1138, %v1840, %v1967
      %v1970 = vshrl.u32 %v1845, 16
      %v1972 = vsel %vm1141, %v1970, %v1968
      %v1973 = vsel %vm1147, %v1847, %v1972
      %v1975 = vshrl.u32 %v1852, 16
      %v1977 = vsel %vm1150, %v1975, %v1973
      %v1978 = vsel %vm1156, %v1854, %v1977
      %v1980 = vshrl.u32 %v788, 16
      %v1982 = vsel %vm1159, %v1980, %v1978
      %v1983 = vsel %vm1165, %v790, %v1982
      %v1985 = vshrl.u32 %v1864, 16
      %v1987 = vsel %vm1168, %v1985, %v1983
      %v1988 = vsel %vm1174, %v1866, %v1987
      %v1990 = vshrl.u32 %v1871, 16
      %v1992 = vsel %vm1177, %v1990, %v1988
      %v1993 = vsel %vm1183, %v1873, %v1992
      %v1995 = vshrl.u32 %v1878, 16
      %v1997 = vsel %vm1186, %v1995, %v1993
      %v1998 = vsel %vm1192, %v1880, %v1997
      %v2000 = vshrl.u32 %v1885, 16
      %v2002 = vsel %vm1195, %v2000, %v1998
      %v2003 = vsel %vm1201, %v1887, %v2002
      %v2005 = vshrl.u32 %v1892, 16
      %v2007 = vsel %vm1133, %v2005, 0
      %v2008 = vsel %vm1138, %v1838, %v2007
      %v2009 = vsel %vm1141, %v1741, %v2008
      %v2010 = vsel %vm1147, %v1614, %v2009
      %v2011 = vsel %vm1150, %v1517, %v2010
      %v2012 = vsel %vm1156, %v1390, %v2011
      %v2013 = vsel %vm1159, %v1287, %v2012
      %v2014 = vsel %vm1165, 0, %v2013
      %v2015 = vsel %vm1138, %v1904, %v1967
      %v2017 = vshrl.u32 %v1909, 16
      %v2019 = vsel %vm1141, %v2017, %v2015
      %v2020 = vsel %vm1147, %v1911, %v2019
      %v2022 = vshrl.u32 %v1916, 16
      %v2024 = vsel %vm1150, %v2022, %v2020
      %v2025 = vsel %vm1156, %v1918, %v2024
      %v2027 = vshrl.u32 %v1044, 16
      %v2029 = vsel %vm1159, %v2027, %v2025
      %v2030 = vsel %vm1165, %v1046, %v2029
      %v2032 = vshrl.u32 %v1928, 16
      %v2034 = vsel %vm1168, %v2032, %v2030
      %v2035 = vsel %vm1174, %v1930, %v2034
      %v2037 = vshrl.u32 %v1935, 16
      %v2039 = vsel %vm1177, %v2037, %v2035
      %v2040 = vsel %vm1183, %v1937, %v2039
      %v2042 = vshrl.u32 %v1942, 16
      %v2044 = vsel %vm1186, %v2042, %v2040
      %v2045 = vsel %vm1192, %v1944, %v2044
      %v2047 = vshrl.u32 %v1949, 16
      %v2049 = vsel %vm1195, %v2047, %v2045
      %v2050 = vsel %vm1201, %v1951, %v2049
      %v2052 = vshrl.u32 %v1956, 16
      %v2054 = vsel %vm1133, %v2052, 0
      %v2055 = vsel %vm1138, %v1838, %v2054
      %v2056 = vsel %vm1141, %v1741, %v2055
      %v2057 = vsel %vm1147, %v1614, %v2056
      %v2058 = vsel %vm1150, %v1517, %v2057
      %v2059 = vsel %vm1156, %v1390, %v2058
      %v2060 = vsel %vm1159, %v1287, %v2059
      %v2061 = vsel %vm1165, 0, %v2060
      %v2094 = vunpack.c.l.b16 %v1202
      %v2095 = vunpack.c.h.b16 %v1202
      %v2096 = vunpack.c.l.b16 %v1225
      %v2097 = vunpack.c.l.b16 %v1278
      %v2098 = vunpack.c.h.b16 %v1278
      %v2099 = vunpack.c.l.b16 %v1286
      %v2100 = vunpack.c.l.b16 %v1325
      %v2101 = vunpack.c.h.b16 %v1325
      %v2102 = vunpack.c.l.b16 %v1342
      %v2103 = vunpack.c.l.b16 %v1378
      %v2104 = vunpack.c.h.b16 %v1378
      %v2105 = vunpack.c.l.b16 %v1389
      %v2106 = vunpack.c.l.b16 %v1443
      %v2107 = vunpack.c.h.b16 %v1443
      %v2108 = vunpack.c.l.b16 %v1455
      %v2109 = vunpack.c.l.b16 %v1507
      %v2110 = vunpack.c.h.b16 %v1507
      %v2111 = vunpack.c.l.b16 %v1516
      %v2112 = vunpack.c.l.b16 %v1555
      %v2113 = vunpack.c.h.b16 %v1555
      %v2114 = vunpack.c.l.b16 %v1566
      %v2115 = vunpack.c.l.b16 %v1602
      %v2116 = vunpack.c.h.b16 %v1602
      %v2117 = vunpack.c.l.b16 %v1613
      %v2118 = vunpack.c.l.b16 %v1667
      %v2119 = vunpack.c.h.b16 %v1667
      %v2120 = vunpack.c.l.b16 %v1679
      %v2121 = vunpack.c.l.b16 %v1731
      %v2122 = vunpack.c.h.b16 %v1731
      %v2123 = vunpack.c.l.b16 %v1740
      %v2124 = vunpack.c.l.b16 %v1779
      %v2125 = vunpack.c.h.b16 %v1779
      %v2126 = vunpack.c.l.b16 %v1790
      %v2127 = vunpack.c.l.b16 %v1826
      %v2128 = vunpack.c.h.b16 %v1826
      %v2129 = vunpack.c.l.b16 %v1837
      %v2130 = vunpack.c.l.b16 %v1891
      %v2131 = vunpack.c.h.b16 %v1891
      %v2132 = vunpack.c.l.b16 %v1903
      %v2133 = vunpack.c.l.b16 %v1955
      %v2134 = vunpack.c.h.b16 %v1955
      %v2135 = vunpack.c.l.b16 %v1964
      %v2136 = vunpack.c.l.b16 %v2003
      %v2137 = vunpack.c.h.b16 %v2003
      %v2138 = vunpack.c.l.b16 %v2014
      %v2139 = vunpack.c.l.b16 %v2050
      %v2140 = vunpack.c.h.b16 %v2050
      %v2141 = vunpack.c.l.b16 %v2061
      %v2142 = vpack.c.b16 %v2094, %v2094
      %v2143 = vpack.c.b16 %v2095, %v2095
      %v2144 = vpack.c.b16 %v2096, %v2096
      %v2145 = vpack.c.b16 %v2097, %v2097
      %v2146 = vpack.c.b16 %v2098, %v2098
      %v2147 = vpack.c.b16 %v2099, %v2099
      %v2148 = vpack.c.b16 %v2100, %v2100
      %v2149 = vpack.c.b16 %v2101, %v2101
      %v2150 = vpack.c.b16 %v2102, %v2102
      %v2151 = vpack.c.b16 %v2103, %v2103
      %v2152 = vpack.c.b16 %v2104, %v2104
      %v2153 = vpack.c.b16 %v2105, %v2105
      %v2154 = vpack.c.b16 %v2106, %v2106
      %v2155 = vpack.c.b16 %v2107, %v2107
      %v2156 = vpack.c.b16 %v2108, %v2108
      %v2157 = vpack.c.b16 %v2109, %v2109
      %v2158 = vpack.c.b16 %v2110, %v2110
      %v2159 = vpack.c.b16 %v2111, %v2111
      %v2160 = vpack.c.b16 %v2112, %v2112
      %v2161 = vpack.c.b16 %v2113, %v2113
      %v2162 = vpack.c.b16 %v2114, %v2114
      %v2163 = vpack.c.b16 %v2115, %v2115
      %v2164 = vpack.c.b16 %v2116, %v2116
      %v2165 = vpack.c.b16 %v2117, %v2117
      %v2166 = vpack.c.b16 %v2118, %v2118
      %v2167 = vpack.c.b16 %v2119, %v2119
      %v2168 = vpack.c.b16 %v2120, %v2120
      %v2169 = vpack.c.b16 %v2121, %v2121
      %v2170 = vpack.c.b16 %v2122, %v2122
      %v2171 = vpack.c.b16 %v2123, %v2123
      %v2172 = vpack.c.b16 %v2124, %v2124
      %v2173 = vpack.c.b16 %v2125, %v2125
      %v2174 = vpack.c.b16 %v2126, %v2126
      %v2175 = vpack.c.b16 %v2127, %v2127
      %v2176 = vpack.c.b16 %v2128, %v2128
      %v2177 = vpack.c.b16 %v2129, %v2129
      %v2178 = vpack.c.b16 %v2130, %v2130
      %v2179 = vpack.c.b16 %v2131, %v2131
      %v2180 = vpack.c.b16 %v2132, %v2132
      %v2181 = vpack.c.b16 %v2133, %v2133
      %v2182 = vpack.c.b16 %v2134, %v2134
      %v2183 = vpack.c.b16 %v2135, %v2135
      %v2184 = vpack.c.b16 %v2136, %v2136
      %v2185 = vpack.c.b16 %v2137, %v2137
      %v2186 = vpack.c.b16 %v2138, %v2138
      %v2187 = vpack.c.b16 %v2139, %v2139
      %v2188 = vpack.c.b16 %v2140, %v2140
      %v2189 = vpack.c.b16 %v2141, %v2141
      %2238 = vst [vmem:[%s210] sm:$0xf] %v2142
      %2239 = vst [vmem:[%s210 + $0x4] sm:$0xf] %v2143
      %2240 = vst [vmem:[%s210 + $0x8] sm:$0xf] %v2144
      %2241 = vst [vmem:[%s210 + $0xc] sm:$0xf] %v2145
      %2242 = vst [vmem:[%s210 + $0x10] sm:$0xf] %v2146
      %2243 = vst [vmem:[%s210 + $0x14] sm:$0xf] %v2147
      %2244 = vst [vmem:[%s210 + $0x18] sm:$0xf] %v2148
      %2245 = vst [vmem:[%s210 + $0x1c] sm:$0xf] %v2149
      %2246 = vst [vmem:[%s210 + $0x20] sm:$0xf] %v2150
      %2247 = vst [vmem:[%s210 + $0x24] sm:$0xf] %v2151
      %2248 = vst [vmem:[%s210 + $0x28] sm:$0xf] %v2152
      %2249 = vst [vmem:[%s210 + $0x2c] sm:$0xf] %v2153
      %2250 = vst [vmem:[%s210 + $0x30] sm:$0xf] %v2154
      %2251 = vst [vmem:[%s210 + $0x34] sm:$0xf] %v2155
      %2252 = vst [vmem:[%s210 + $0x38] sm:$0xf] %v2156
      %2253 = vst [vmem:[%s210 + $0x3c] sm:$0xf] %v2157
      %2254 = vst [vmem:[%s210 + $0x40] sm:$0xf] %v2158
      %2255 = vst [vmem:[%s210 + $0x44] sm:$0xf] %v2159
      %2256 = vst [vmem:[%s210 + $0x48] sm:$0xf] %v2160
      %2257 = vst [vmem:[%s210 + $0x4c] sm:$0xf] %v2161
      %2258 = vst [vmem:[%s210 + $0x50] sm:$0xf] %v2162
      %2259 = vst [vmem:[%s210 + $0x54] sm:$0xf] %v2163
      %2260 = vst [vmem:[%s210 + $0x58] sm:$0xf] %v2164
      %2261 = vst [vmem:[%s210 + $0x5c] sm:$0xf] %v2165
      %2262 = vst [vmem:[%s210 + $0x60] sm:$0xf] %v2166
      %2263 = vst [vmem:[%s210 + $0x64] sm:$0xf] %v2167
      %2264 = vst [vmem:[%s210 + $0x68] sm:$0xf] %v2168
      %2265 = vst [vmem:[%s210 + $0x6c] sm:$0xf] %v2169
      %2266 = vst [vmem:[%s210 + $0x70] sm:$0xf] %v2170
      %2267 = vst [vmem:[%s210 + $0x74] sm:$0xf] %v2171
      %2268 = vst [vmem:[%s210 + $0x78] sm:$0xf] %v2172
      %2269 = vst [vmem:[%s210 + $0x7c] sm:$0xf] %v2173
      %2270 = vst [vmem:[%s210 + $0x80] sm:$0xf] %v2174
      %2271 = vst [vmem:[%s210 + $0x84] sm:$0xf] %v2175
      %2272 = vst [vmem:[%s210 + $0x88] sm:$0xf] %v2176
      %2273 = vst [vmem:[%s210 + $0x8c] sm:$0xf] %v2177
      %2274 = vst [vmem:[%s210 + $0x90] sm:$0xf] %v2178
      %2275 = vst [vmem:[%s210 + $0x94] sm:$0xf] %v2179
      %2276 = vst [vmem:[%s210 + $0x98] sm:$0xf] %v2180
      %2277 = vst [vmem:[%s210 + $0x9c] sm:$0xf] %v2181
      %2278 = vst [vmem:[%s210 + $0xa0] sm:$0xf] %v2182
      %2279 = vst [vmem:[%s210 + $0xa4] sm:$0xf] %v2183
      %2280 = vst [vmem:[%s210 + $0xa8] sm:$0xf] %v2184
      %2281 = vst [vmem:[%s210 + $0xac] sm:$0xf] %v2185
      %2282 = vst [vmem:[%s210 + $0xb0] sm:$0xf] %v2186
      %2283 = vst [vmem:[%s210 + $0xb4] sm:$0xf] %v2187
      %2284 = vst [vmem:[%s210 + $0xb8] sm:$0xf] %v2188
      %2285 = vst [vmem:[%s210 + $0xbc] sm:$0xf] %v2189
      %s2286 = smul.u32 16, %s19
      %p2287 = scmp.lt.s32.totalorder %s18, 1
      %s2288 = scalar_select %p2287, %s18, 1
      %p2289 = scmp.lt.s32.totalorder %s2286, 15
      %s2290 = scalar_select %p2289, %s2286, 15
      %s2291 = smul.addr %s2290, 3
      %s2292 = smul.addr %s2288, 48
      %s2293 = sadd.s32 %s2291, %s2292
      %s2294 = smul.addr %s2293, 4
      %s2295 = scalar_lea.vmem %s3, %s2294
      // Predicated region
      $region33: #{_lambda_.3} parent=31 // pred_check
        %p2296 = pneg %p116
      $region34: #{_lambda_.3} parent=31 // pred_check_branch
        %2298 = sbr.rel (%p2296) target = $region36
      $region35: #{_lambda_.3} parent=31 // pred_region
        %s2299 = smul.u32 16, %s19
      $region36: #{_lambda_.3} parent=31 // pred_fallthru
        _
    $region32: #{_lambda_.3} parent=5 // pred_fallthru
      _
    %p2300 = scmp.le.s32.totalorder 2, %s9
    // Predicated region
    $region37: #{_lambda_.3} parent=5 // pred_check
      %p2301 = pneg %p2300
    $region38: #{_lambda_.3} parent=5 // pred_check_branch
      %2303 = sbr.rel (%p2301) target = $region40
    $region39: #{_lambda_.3} parent=5 // pred_region
      %s2304 = ssub.s32 %s9, 2
      // Predicated region
      $region41: #{_lambda_.3} parent=39 // pred_check
        %p2305 = pneg %p122
      $region42: #{_lambda_.3} parent=39 // pred_check_branch
        %2307 = sbr.rel (%p2305) target = $region44
      $region43: #{_lambda_.3} parent=39 // pred_region
        %s2308 = smul.u32 16, %s21
        %p2309 = scmp.lt.s32.totalorder %s20, 1
        %s2310 = scalar_select %p2309, %s20, 1
        %p2311 = scmp.lt.s32.totalorder %s2308, 15
        %s2312 = scalar_select %p2311, %s2308, 15
        %s2313 = smul.addr %s2312, 3
        %s2314 = smul.addr %s2310, 48
        %s2315 = sadd.s32 %s2313, %s2314
        %s2316 = smul.addr %s2315, 4
        %s2317 = scalar_lea.vmem %s3, %s2316
      $region44: #{_lambda_.3} parent=39 // pred_fallthru
        _
    $region40: #{_lambda_.3} parent=5 // pred_fallthru
      _
  $region6: #{_lambda_.3} parent=0 // loop_footer
    %s13 = sadd.s32 1, %s9
  $region7: #{_lambda_.3} parent=0 // loop_footer_branch
    %8 = sbr.rel target = $region3
  $region8: #{_lambda_.3} parent=0 // loop_exit
    _

// kernel: _lambda_.5
$region0: #{_lambda_.5}
  #allocation0 [shape = 'u32[]', space=smem, size = 0x4, offset = 0x4, fixed_abs, tag = 'smem constant byte address 0x4 - core index']
  #allocation1 [shape = 'u32[144,128]{1,0:T(1,128)}', space=vmem, size = 0x12000, scoped, tag = 'internal scratch']
  %s0 = inlined_call_operand.vmem [shape: bf16[2,16,24,128], index: 0, kind: input, shape index: {}]
  %s1 = inlined_call_operand.vmem [shape: bf16[2,1,2,24,128], index: 1, kind: input, shape index: {}]
  %s2 = inlined_call_operand.vmem [shape: bf16[1152,128], index: 2, kind: input, shape index: {}]
  %s3 = inlined_call_operand.vmem [shape: f32[1,128], index: 3, kind: input, shape index: {}]
  %s4 = inlined_call_operand.vmem [shape: f32[1,128], index: 4, kind: input, shape index: {}]
  %s5 = inlined_call_operand.vmem [shape: f32[2,16,16,128], index: 5, kind: output, shape index: {}]
  %s6 = sld [smem:[#allocation0]]
  $region53: #{_lambda_.5} parent=0
    _
  %s8 = ssub.s32 1, %s6
  %s9 = scalar_select 0, %s8, %s6
  loop: start=0, step=1, limit=4
  $region2: #{_lambda_.5} parent=0 // loop_pre_header
    _
  $region3: #{_lambda_.5} parent=0 // loop_header
    %s11 = sphi 0, %s15
    %p12 = scmp.ge.s32.totalorder %s11, 4
    %s18 = sphi 0, %s30
    %s19 = sphi 0, %s26
    %s20 = sphi 0, %s18
    %s21 = sphi 0, %s19
    %s22 = sphi 0, %s20
    %s23 = sphi 0, %s21
    %s35 = sphi 0, %s37
    %s38 = sphi 0, %s35
    %s39 = sphi 0, %s38
    %s55 = sphi 0, %s39
    %s63 = sphi 0, %s65
    %s66 = sphi 0, %s63
    %s67 = sphi 0, %s66
    %s83 = sphi 0, %s67
    %s87 = sphi 0, %s87
    %s89 = sphi 0, %s87
    %s90 = sphi 0, %s89
    %s104 = sphi 0, %s90
    %s108 = sphi 0, %s108
    %s110 = sphi 0, %s108
    %s111 = sphi 0, %s110
    %s125 = sphi 0, %s111
    %s129 = sphi 0, %s129
    %s131 = sphi 0, %s129
    %s132 = sphi 0, %s131
    %s146 = sphi 0, %s132
    %s154 = sphi 0, %s156
    %s157 = sphi 0, %s154
    %s158 = sphi 0, %s157
    %s174 = sphi 0, %s158
  $region4: #{_lambda_.5} parent=0 // loop_header_branch
    %14 = sbr.rel (%p12) target = $region8
  $region5: #{_lambda_.5} parent=0 // loop_body
    %s16 = ssub.s32 %s11, 1
    %s17 = ssub.s32 %s11, 2
    %s24 = sadd.s32 1, %s19
    %p25 = scmp.ge.s32.totalorder %s24, 1
    %s26 = scalar_select %p25, 0, %s24
    %s27 = sadd.s32 1, %s18
    %s28 = scalar_select %p25, %s27, %s18
    %p29 = scmp.ge.s32.totalorder %s28, 2
    %s30 = scalar_select %p29, 0, %s28
    %s31 = ssub.s32 %s18, %s30
    %s32 = ssub.s32 %s19, %s26
    %s33 = sor.u32 %s31, %s32
    %p34 = scmp.eq.s32.totalorder %s33, 0
    %s36 = sadd.s32 %s35, 1
    %s37 = scalar_select %p34, %s35, %s36
    %p40 = pneg %p34
    %p41 = scmp.eq.s32.totalorder %s11, 1
    %p42 = por %p40, %p41
    %p43 = scmp.ne.s32.totalorder %s35, %s38
    %p44 = scmp.eq.s32.totalorder %s11, 0
    %p45 = por %p43, %p44
    %p46 = scmp.ne.s32.totalorder %s35, %s38
    %p47 = scmp.eq.s32.totalorder %s16, 1
    %p48 = por %p46, %p47
    %p49 = scmp.ne.s32.totalorder %s38, %s39
    %p50 = scmp.eq.s32.totalorder %s16, 0
    %p51 = por %p49, %p50
    %p52 = scmp.ne.s32.totalorder %s38, %s39
    %p53 = scmp.eq.s32.totalorder %s17, 1
    %p54 = por %p52, %p53
    %p56 = scmp.ne.s32.totalorder %s39, %s55
    %p57 = scmp.eq.s32.totalorder %s17, 0
    %p58 = por %p56, %p57
    %s59 = ssub.s32 %s18, %s30
    %s60 = ssub.s32 %s19, %s26
    %s61 = sor.u32 %s59, %s60
    %p62 = scmp.eq.s32.totalorder %s61, 0
    %s64 = sadd.s32 %s63, 1
    %s65 = scalar_select %p62, %s63, %s64
    %p68 = pneg %p62
    %p69 = scmp.eq.s32.totalorder %s11, 1
    %p70 = por %p68, %p69
    %p71 = scmp.ne.s32.totalorder %s63, %s66
    %p72 = scmp.eq.s32.totalorder %s11, 0
    %p73 = por %p71, %p72
    %p74 = scmp.ne.s32.totalorder %s63, %s66
    %p75 = scmp.eq.s32.totalorder %s16, 1
    %p76 = por %p74, %p75
    %p77 = scmp.ne.s32.totalorder %s66, %s67
    %p78 = scmp.eq.s32.totalorder %s16, 0
    %p79 = por %p77, %p78
    %p80 = scmp.ne.s32.totalorder %s66, %s67
    %p81 = scmp.eq.s32.totalorder %s17, 1
    %p82 = por %p80, %p81
    %p84 = scmp.ne.s32.totalorder %s67, %s83
    %p85 = scmp.eq.s32.totalorder %s17, 0
    %p86 = por %p84, %p85
    %s88 = sadd.s32 %s87, 1
    %p91 = scmp.eq.s32.totalorder %s11, 1
    %p92 = scmp.ne.s32.totalorder %s87, %s89
    %p93 = scmp.eq.s32.totalorder %s11, 0
    %p94 = por %p92, %p93
    %p95 = scmp.ne.s32.totalorder %s87, %s89
    %p96 = scmp.eq.s32.totalorder %s16, 1
    %p97 = por %p95, %p96
    %p98 = scmp.ne.s32.totalorder %s89, %s90
    %p99 = scmp.eq.s32.totalorder %s16, 0
    %p100 = por %p98, %p99
    %p101 = scmp.ne.s32.totalorder %s89, %s90
    %p102 = scmp.eq.s32.totalorder %s17, 1
    %p103 = por %p101, %p102
    %p105 = scmp.ne.s32.totalorder %s90, %s104
    %p106 = scmp.eq.s32.totalorder %s17, 0
    %p107 = por %p105, %p106
    %s109 = sadd.s32 %s108, 1
    %p112 = scmp.eq.s32.totalorder %s11, 1
    %p113 = scmp.ne.s32.totalorder %s108, %s110
    %p114 = scmp.eq.s32.totalorder %s11, 0
    %p115 = por %p113, %p114
    %p116 = scmp.ne.s32.totalorder %s108, %s110
    %p117 = scmp.eq.s32.totalorder %s16, 1
    %p118 = por %p116, %p117
    %p119 = scmp.ne.s32.totalorder %s110, %s111
    %p120 = scmp.eq.s32.totalorder %s16, 0
    %p121 = por %p119, %p120
    %p122 = scmp.ne.s32.totalorder %s110, %s111
    %p123 = scmp.eq.s32.totalorder %s17, 1
    %p124 = por %p122, %p123
    %p126 = scmp.ne.s32.totalorder %s111, %s125
    %p127 = scmp.eq.s32.totalorder %s17, 0
    %p128 = por %p126, %p127
    %s130 = sadd.s32 %s129, 1
    %p133 = scmp.eq.s32.totalorder %s11, 1
    %p134 = scmp.ne.s32.totalorder %s129, %s131
    %p135 = scmp.eq.s32.totalorder %s11, 0
    %p136 = por %p134, %p135
    %p137 = scmp.ne.s32.totalorder %s129, %s131
    %p138 = scmp.eq.s32.totalorder %s16, 1
    %p139 = por %p137, %p138
    %p140 = scmp.ne.s32.totalorder %s131, %s132
    %p141 = scmp.eq.s32.totalorder %s16, 0
    %p142 = por %p140, %p141
    %p143 = scmp.ne.s32.totalorder %s131, %s132
    %p144 = scmp.eq.s32.totalorder %s17, 1
    %p145 = por %p143, %p144
    %p147 = scmp.ne.s32.totalorder %s132, %s146
    %p148 = scmp.eq.s32.totalorder %s17, 0
    %p149 = por %p147, %p148
    %s150 = ssub.s32 %s18, %s30
    %s151 = ssub.s32 %s19, %s26
    %s152 = sor.u32 %s150, %s151
    %p153 = scmp.eq.s32.totalorder %s152, 0
    %s155 = sadd.s32 %s154, 1
    %s156 = scalar_select %p153, %s154, %s155
    %p159 = pneg %p153
    %p160 = scmp.eq.s32.totalorder %s11, 1
    %p161 = por %p159, %p160
    %p162 = scmp.ne.s32.totalorder %s154, %s157
    %p163 = scmp.eq.s32.totalorder %s11, 0
    %p164 = por %p162, %p163
    %p165 = scmp.ne.s32.totalorder %s154, %s157
    %p166 = scmp.eq.s32.totalorder %s16, 1
    %p167 = por %p165, %p166
    %p168 = scmp.ne.s32.totalorder %s157, %s158
    %p169 = scmp.eq.s32.totalorder %s16, 0
    %p170 = por %p168, %p169
    %p171 = scmp.ne.s32.totalorder %s157, %s158
    %p172 = scmp.eq.s32.totalorder %s17, 1
    %p173 = por %p171, %p172
    %p175 = scmp.ne.s32.totalorder %s158, %s174
    %p176 = scmp.eq.s32.totalorder %s17, 0
    %p177 = por %p175, %p176
    %p178 = scmp.le.s32.totalorder 1, %s11
    %p179 = scmp.lt.s32.totalorder %s11, 3
    %p180 = pnand %p178, %p179
    %p181 = pneg %p180
    // Predicated region
    $region9: #{_lambda_.5} parent=5 // pred_check
      _
    $region10: #{_lambda_.5} parent=5 // pred_check_branch
      %183 = sbr.rel (%p180) target = $region12
    $region11: #{_lambda_.5} parent=5 // pred_region
      %s184 = ssub.s32 %s11, 1
      // Predicated region
      $region13: #{_lambda_.5} parent=11 // pred_check
        %p185 = pneg %p100
      $region14: #{_lambda_.5} parent=11 // pred_check_branch
        %187 = sbr.rel (%p185) target = $region16
      $region15: #{_lambda_.5} parent=11 // pred_region
        _
      $region16: #{_lambda_.5} parent=11 // pred_fallthru
        _
      // Predicated region
      $region17: #{_lambda_.5} parent=11 // pred_check
        %p188 = pneg %p121
      $region18: #{_lambda_.5} parent=11 // pred_check_branch
        %190 = sbr.rel (%p188) target = $region20
      $region19: #{_lambda_.5} parent=11 // pred_region
        _
      $region20: #{_lambda_.5} parent=11 // pred_fallthru
        _
      // Predicated region
      $region21: #{_lambda_.5} parent=11 // pred_check
        %p191 = pneg %p142
      $region22: #{_lambda_.5} parent=11 // pred_check_branch
        %193 = sbr.rel (%p191) target = $region24
      $region23: #{_lambda_.5} parent=11 // pred_region
        _
      $region24: #{_lambda_.5} parent=11 // pred_fallthru
        _
    $region12: #{_lambda_.5} parent=5 // pred_fallthru
      _
    %p194 = scmp.lt.s32.totalorder %s11, 2
    // Predicated region
    $region25: #{_lambda_.5} parent=5 // pred_check
      %p195 = pneg %p194
    $region26: #{_lambda_.5} parent=5 // pred_check_branch
      %197 = sbr.rel (%p195) target = $region28
    $region27: #{_lambda_.5} parent=5 // pred_region
      // Predicated region
      $region29: #{_lambda_.5} parent=27 // pred_check
        %p198 = pneg %p45
      $region30: #{_lambda_.5} parent=27 // pred_check_branch
        %200 = sbr.rel (%p198) target = $region32
      $region31: #{_lambda_.5} parent=27 // pred_region
        %s201 = smul.u32 16, %s19
        %p202 = scmp.lt.s32.totalorder %s18, 1
        %s203 = scalar_select %p202, %s18, 1
        %p204 = scmp.lt.s32.totalorder %s201, 15
        %s205 = scalar_select %p204, %s201, 15
        %s206 = smul.addr %s205, 3
        %s207 = smul.addr %s203, 48
        %s208 = sadd.s32 %s206, %s207
        %s209 = smul.addr %s208, 4
        %s210 = scalar_lea.vmem %s0, %s209
        %s211 = smul.u32 16, %s19
      $region32: #{_lambda_.5} parent=27 // pred_fallthru
        _
      // Predicated region
      $region33: #{_lambda_.5} parent=27 // pred_check
        %p212 = pneg %p73
      $region34: #{_lambda_.5} parent=27 // pred_check_branch
        %214 = sbr.rel (%p212) target = $region36
      $region35: #{_lambda_.5} parent=27 // pred_region
        %p215 = scmp.lt.s32.totalorder %s18, 1
        %s216 = scalar_select %p215, %s18, 1
        %p217 = scmp.lt.s32.totalorder %s19, 0
        %s218 = scalar_select %p217, %s19, 0
        %s219 = smul.addr %s218, 6
        %s220 = smul.addr %s216, 6
        %s221 = sadd.s32 %s219, %s220
        %s222 = smul.addr %s221, 4
        %s223 = scalar_lea.vmem %s1, %s222
      $region36: #{_lambda_.5} parent=27 // pred_fallthru
        _
    $region28: #{_lambda_.5} parent=5 // pred_fallthru
      _
    %p224 = scmp.le.s32.totalorder 1, %s11
    %p225 = scmp.lt.s32.totalorder %s11, 3
    %p226 = pnand %p224, %p225
    %p227 = pneg %p226
    // Predicated region
    $region37: #{_lambda_.5} parent=5 // pred_check
      _
    $region38: #{_lambda_.5} parent=5 // pred_check_branch
      %229 = sbr.rel (%p226) target = $region40
    $region39: #{_lambda_.5} parent=5 // pred_region
      %s230 = ssub.s32 %s11, 1
      %s231 = smul.u32 16, %s21
      %p232 = scmp.lt.s32.totalorder %s20, 1
      %s233 = scalar_select %p232, %s20, 1
      %p234 = scmp.lt.s32.totalorder %s231, 15
      %s235 = scalar_select %p234, %s231, 15
      %s236 = smul.addr %s235, 3
      %s237 = smul.addr %s233, 48
      %s238 = sadd.s32 %s236, %s237
      %s239 = smul.addr %s238, 4
      %s240 = scalar_lea.vmem %s0, %s239
      %p241 = pneg %p51
      %p242 = pneg %p48
      %p243 = scmp.lt.s32.totalorder %s20, 1
      %s244 = scalar_select %p243, %s20, 1
      %p245 = scmp.lt.s32.totalorder %s21, 0
      %s246 = scalar_select %p245, %s21, 0
      %s247 = smul.addr %s246, 6
      %s248 = smul.addr %s244, 6
      %s249 = sadd.s32 %s247, %s248
      %s250 = smul.addr %s249, 4
      %s251 = scalar_lea.vmem %s1, %s250
      %p252 = pneg %p79
      %p253 = pneg %p76
      %p254 = pneg %p100
      %p255 = pneg %p97
      %p256 = pneg %p121
      %p257 = pneg %p118
      %p258 = pneg %p142
      %p259 = pneg %p139
      %p260 = pneg %p170
      %p261 = pneg %p167
      %s262 = smul.u32 16, %s21
      %p263 = scmp.lt.s32.totalorder %s20, 1
      %s264 = scalar_select %p263, %s20, 1
      %p265 = scmp.lt.s32.totalorder %s262, 15
      %s266 = scalar_select %p265, %s262, 15
      %s267 = smul.addr %s266, 2
      %s268 = smul.addr %s264, 32
      %s269 = sadd.s32 %s267, %s268
      %s270 = smul.addr %s269, 8
      %s271 = scalar_lea.vmem %s5, %s270
      %s272 = smul.u32 16, %s21
      %p273 = scmp.lt.s32.totalorder %s20, 1
      %s274 = scalar_select %p273, %s20, 1
      %p275 = scmp.lt.s32.totalorder %s272, 15
      %s276 = scalar_select %p275, %s272, 15
      %s277 = smul.addr %s276, 3
      %s278 = smul.addr %s274, 48
      %s279 = sadd.s32 %s277, %s278
      %s280 = smul.addr %s279, 4
      %s281 = scalar_lea.vmem %s0, %s280
      %s282 = smul.u32 16, %s21
      %p283 = scmp.lt.s32.totalorder %s20, 1
      %s284 = scalar_select %p283, %s20, 1
      %p285 = scmp.lt.s32.totalorder %s21, 0
      %s286 = scalar_select %p285, %s21, 0
      %s287 = smul.addr %s286, 6
      %s288 = smul.addr %s284, 6
      %s289 = sadd.s32 %s287, %s288
      %s290 = smul.addr %s289, 4
      %s291 = scalar_lea.vmem %s1, %s290
      %s292 = smul.u32 16, %s21
      %p293 = scmp.lt.s32.totalorder %s20, 1
      %s294 = scalar_select %p293, %s20, 1
      %p295 = scmp.lt.s32.totalorder %s292, 15
      %s296 = scalar_select %p295, %s292, 15
      %s297 = smul.addr %s296, 2
      %s298 = smul.addr %s294, 32
      %s299 = sadd.s32 %s297, %s298
      %s300 = smul.addr %s299, 8
      %s301 = scalar_lea.vmem %s5, %s300
      %s302 = smul.u32 16, %s21
      %v304 = vld [vmem:[%s291] sm:$0xf]
      %v305 = vld [vmem:[%s291 + $0x4] sm:$0xf]
      %v306 = vld [vmem:[%s291 + $0x8] sm:$0xf]
      %v307 = vld [vmem:[%s291 + $0xc] sm:$0xf]
      %v308 = vld [vmem:[%s291 + $0x10] sm:$0xf]
      %v309 = vld [vmem:[%s291 + $0x14] sm:$0xf]
      %v310 = vld [vmem:[%s281] sm:$0xf]
      %v311 = vld [vmem:[%s281 + $0x4] sm:$0xf]
      %v312 = vld [vmem:[%s281 + $0x8] sm:$0xf]
      %v313 = vld [vmem:[%s281 + $0xc] sm:$0xf]
      %v314 = vld [vmem:[%s281 + $0x10] sm:$0xf]
      %v315 = vld [vmem:[%s281 + $0x14] sm:$0xf]
      %v316 = vld [vmem:[%s281 + $0x18] sm:$0xf]
      %v317 = vld [vmem:[%s281 + $0x1c] sm:$0xf]
      %v318 = vld [vmem:[%s281 + $0x20] sm:$0xf]
      %v319 = vld [vmem:[%s281 + $0x24] sm:$0xf]
      %v320 = vld [vmem:[%s281 + $0x28] sm:$0xf]
      %v321 = vld [vmem:[%s281 + $0x2c] sm:$0xf]
      %v322 = vld [vmem:[%s281 + $0x30] sm:$0xf]
      %v323 = vld [vmem:[%s281 + $0x34] sm:$0xf]
      %v324 = vld [vmem:[%s281 + $0x38] sm:$0xf]
      %v325 = vld [vmem:[%s281 + $0x3c] sm:$0xf]
      %v326 = vld [vmem:[%s281 + $0x40] sm:$0xf]
      %v327 = vld [vmem:[%s281 + $0x44] sm:$0xf]
      %v328 = vld [vmem:[%s281 + $0x48] sm:$0xf]
      %v329 = vld [vmem:[%s281 + $0x4c] sm:$0xf]
      %v330 = vld [vmem:[%s281 + $0x50] sm:$0xf]
      %v331 = vld [vmem:[%s281 + $0x54] sm:$0xf]
      %v332 = vld [vmem:[%s281 + $0x58] sm:$0xf]
      %v333 = vld [vmem:[%s281 + $0x5c] sm:$0xf]
      %v334 = vld [vmem:[%s281 + $0x60] sm:$0xf]
      %v335 = vld [vmem:[%s281 + $0x64] sm:$0xf]
      %v336 = vld [vmem:[%s281 + $0x68] sm:$0xf]
      %v337 = vld [vmem:[%s281 + $0x6c] sm:$0xf]
      %v338 = vld [vmem:[%s281 + $0x70] sm:$0xf]
      %v339 = vld [vmem:[%s281 + $0x74] sm:$0xf]
      %v340 = vld [vmem:[%s281 + $0x78] sm:$0xf]
      %v341 = vld [vmem:[%s281 + $0x7c] sm:$0xf]
      %v342 = vld [vmem:[%s281 + $0x80] sm:$0xf]
      %v343 = vld [vmem:[%s281 + $0x84] sm:$0xf]
      %v344 = vld [vmem:[%s281 + $0x88] sm:$0xf]
      %v345 = vld [vmem:[%s281 + $0x8c] sm:$0xf]
      %v346 = vld [vmem:[%s281 + $0x90] sm:$0xf]
      %v347 = vld [vmem:[%s281 + $0x94] sm:$0xf]
      %v348 = vld [vmem:[%s281 + $0x98] sm:$0xf]
      %v349 = vld [vmem:[%s281 + $0x9c] sm:$0xf]
      %v350 = vld [vmem:[%s281 + $0xa0] sm:$0xf]
      %v351 = vld [vmem:[%s281 + $0xa4] sm:$0xf]
      %v352 = vld [vmem:[%s281 + $0xa8] sm:$0xf]
      %v353 = vld [vmem:[%s281 + $0xac] sm:$0xf]
      %v354 = vld [vmem:[%s281 + $0xb0] sm:$0xf]
      %v355 = vld [vmem:[%s281 + $0xb4] sm:$0xf]
      %v356 = vld [vmem:[%s281 + $0xb8] sm:$0xf]
      %v357 = vld [vmem:[%s281 + $0xbc] sm:$0xf]
      %v406 = vunpack.c.l.b16 %v304
      %v407 = vunpack.c.l.b16 %v305
      %v408 = vunpack.c.l.b16 %v306
      %v409 = vunpack.c.l.b16 %v310
      %v410 = vunpack.c.l.b16 %v311
      %v411 = vunpack.c.l.b16 %v312
      %v412 = vunpack.c.l.b16 %v313
      %v413 = vunpack.c.l.b16 %v314
      %v414 = vunpack.c.l.b16 %v315
      %v415 = vunpack.c.l.b16 %v316
      %v416 = vunpack.c.l.b16 %v317
      %v417 = vunpack.c.l.b16 %v318
      %v418 = vunpack.c.l.b16 %v319
      %v419 = vunpack.c.l.b16 %v320
      %v420 = vunpack.c.l.b16 %v321
      %v421 = vunpack.c.l.b16 %v322
      %v422 = vunpack.c.l.b16 %v323
      %v423 = vunpack.c.l.b16 %v324
      %v424 = vunpack.c.l.b16 %v325
      %v425 = vunpack.c.l.b16 %v326
      %v426 = vunpack.c.l.b16 %v327
      %v427 = vunpack.c.l.b16 %v328
      %v428 = vunpack.c.l.b16 %v329
      %v429 = vunpack.c.l.b16 %v330
      %v430 = vunpack.c.l.b16 %v331
      %v431 = vunpack.c.l.b16 %v332
      %v432 = vunpack.c.l.b16 %v333
      %v433 = vunpack.c.l.b16 %v334
      %v434 = vunpack.c.l.b16 %v335
      %v435 = vunpack.c.l.b16 %v336
      %v436 = vunpack.c.l.b16 %v337
      %v437 = vunpack.c.l.b16 %v338
      %v438 = vunpack.c.l.b16 %v339
      %v439 = vunpack.c.l.b16 %v340
      %v440 = vunpack.c.l.b16 %v341
      %v441 = vunpack.c.l.b16 %v342
      %v442 = vunpack.c.l.b16 %v343
      %v443 = vunpack.c.l.b16 %v344
      %v444 = vunpack.c.l.b16 %v345
      %v445 = vunpack.c.l.b16 %v346
      %v446 = vunpack.c.l.b16 %v347
      %v447 = vunpack.c.l.b16 %v348
      %v448 = vunpack.c.l.b16 %v349
      %v449 = vunpack.c.l.b16 %v350
      %v450 = vunpack.c.l.b16 %v351
      %v451 = vunpack.c.l.b16 %v352
      %v452 = vunpack.c.l.b16 %v353
      %v453 = vunpack.c.l.b16 %v354
      %v457 = vunpack.c.l.b16 %v355
      %v458 = vunpack.c.l.b16 %v356
      %v459 = vunpack.c.l.b16 %v357
      %v463 = vunpack.c.l.b16 %v307
      %v464 = vunpack.c.l.b16 %v308
      %v465 = vunpack.c.l.b16 %v309
      %v466 = vld [vmem:[%s2] sm:$0xf]
      %v467 = vld [vmem:[%s2 + $0x4] sm:$0xf]
      %v468 = vld [vmem:[%s2 + $0x8] sm:$0xf]
      %v469 = vld [vmem:[%s2 + $0xc] sm:$0xf]
      %v470 = vld [vmem:[%s2 + $0x10] sm:$0xf]
      %v471 = vld [vmem:[%s2 + $0x14] sm:$0xf]
      %v472 = vld [vmem:[%s2 + $0x18] sm:$0xf]
      %v473 = vld [vmem:[%s2 + $0x1c] sm:$0xf]
      %v474 = vld [vmem:[%s2 + $0x20] sm:$0xf]
      %v475 = vld [vmem:[%s2 + $0x24] sm:$0xf]
      %v476 = vld [vmem:[%s2 + $0x28] sm:$0xf]
      %v477 = vld [vmem:[%s2 + $0x2c] sm:$0xf]
      %v478 = vld [vmem:[%s2 + $0x30] sm:$0xf]
      %v479 = vld [vmem:[%s2 + $0x34] sm:$0xf]
      %v480 = vld [vmem:[%s2 + $0x38] sm:$0xf]
      %v481 = vld [vmem:[%s2 + $0x3c] sm:$0xf]
      %v482 = vld [vmem:[%s2 + $0x40] sm:$0xf]
      %v483 = vld [vmem:[%s2 + $0x44] sm:$0xf]
      %v484 = vld [vmem:[%s2 + $0x48] sm:$0xf]
      %v485 = vld [vmem:[%s2 + $0x4c] sm:$0xf]
      %v486 = vld [vmem:[%s2 + $0x50] sm:$0xf]
      %v487 = vld [vmem:[%s2 + $0x54] sm:$0xf]
      %v488 = vld [vmem:[%s2 + $0x58] sm:$0xf]
      %v489 = vld [vmem:[%s2 + $0x5c] sm:$0xf]
      %v490 = vld [vmem:[%s2 + $0x60] sm:$0xf]
      %v491 = vld [vmem:[%s2 + $0x64] sm:$0xf]
      %v492 = vld [vmem:[%s2 + $0x68] sm:$0xf]
      %v493 = vld [vmem:[%s2 + $0x6c] sm:$0xf]
      %v494 = vld [vmem:[%s2 + $0x70] sm:$0xf]
      %v495 = vld [vmem:[%s2 + $0x74] sm:$0xf]
      %v496 = vld [vmem:[%s2 + $0x78] sm:$0xf]
      %v497 = vld [vmem:[%s2 + $0x7c] sm:$0xf]
      %v498 = vld [vmem:[%s2 + $0x80] sm:$0xf]
      %v499 = vld [vmem:[%s2 + $0x84] sm:$0xf]
      %v500 = vld [vmem:[%s2 + $0x88] sm:$0xf]
      %v501 = vld [vmem:[%s2 + $0x8c] sm:$0xf]
      %v502 = vld [vmem:[%s2 + $0x90] sm:$0xf]
      %v503 = vld [vmem:[%s2 + $0x94] sm:$0xf]
      %v504 = vld [vmem:[%s2 + $0x98] sm:$0xf]
      %v505 = vld [vmem:[%s2 + $0x9c] sm:$0xf]
      %v506 = vld [vmem:[%s2 + $0xa0] sm:$0xf]
      %v507 = vld [vmem:[%s2 + $0xa4] sm:$0xf]
      %v508 = vld [vmem:[%s2 + $0xa8] sm:$0xf]
      %v509 = vld [vmem:[%s2 + $0xac] sm:$0xf]
      %v510 = vld [vmem:[%s2 + $0xb0] sm:$0xf]
      %v511 = vld [vmem:[%s2 + $0xb4] sm:$0xf]
      %v512 = vld [vmem:[%s2 + $0xb8] sm:$0xf]
      %v513 = vld [vmem:[%s2 + $0xbc] sm:$0xf]
      %v514 = vpack.c.b16 %v407, %v406
      %v515 = vpack.c.b16 %v410, %v409
      %v516 = vpack.c.b16 %v413, %v412
      %v517 = vpack.c.b16 %v409, %v408
      %v518 = vpack.c.b16 %v412, %v411
      %v519 = vpack.c.b16 %v415, %v414
      %v520 = vpack.c.b16 %v411, %v410
      %v521 = vpack.c.b16 %v414, %v413
      %v522 = vpack.c.b16 %v417, %v416
      %v523 = vpack.c.b16 %v416, %v415
      %v524 = vpack.c.b16 %v419, %v418
      %v525 = vpack.c.b16 %v418, %v417
      %v526 = vpack.c.b16 %v421, %v420
      %v527 = vpack.c.b16 %v420, %v419
      %v528 = vpack.c.b16 %v423, %v422
      %v529 = vpack.c.b16 %v422, %v421
      %v530 = vpack.c.b16 %v425, %v424
      %v531 = vpack.c.b16 %v424, %v423
      %v532 = vpack.c.b16 %v427, %v426
      %v533 = vpack.c.b16 %v426, %v425
      %v534 = vpack.c.b16 %v429, %v428
      %v535 = vpack.c.b16 %v428, %v427
      %v536 = vpack.c.b16 %v431, %v430
      %v537 = vpack.c.b16 %v430, %v429
      %v538 = vpack.c.b16 %v433, %v432
      %v539 = vpack.c.b16 %v432, %v431
      %v540 = vpack.c.b16 %v435, %v434
      %v541 = vpack.c.b16 %v434, %v433
      %v542 = vpack.c.b16 %v437, %v436
      %v543 = vpack.c.b16 %v436, %v435
      %v544 = vpack.c.b16 %v439, %v438
      %v545 = vpack.c.b16 %v438, %v437
      %v546 = vpack.c.b16 %v441, %v440
      %v547 = vpack.c.b16 %v440, %v439
      %v548 = vpack.c.b16 %v443, %v442
      %v549 = vpack.c.b16 %v442, %v441
      %v550 = vpack.c.b16 %v445, %v444
      %v551 = vpack.c.b16 %v444, %v443
      %v552 = vpack.c.b16 %v447, %v446
      %v553 = vpack.c.b16 %v446, %v445
      %v554 = vpack.c.b16 %v449, %v448
      %v555 = vpack.c.b16 %v448, %v447
      %v556 = vpack.c.b16 %v451, %v450
      %v557 = vpack.c.b16 %v450, %v449
      %v558 = vpack.c.b16 %v453, %v452
      %v559 = vpack.c.b16 %v452, %v451
      %v560 = vpack.c.b16 %v458, %v457
      %v561 = vpack.c.b16 %v457, %v453
      %v562 = vpack.c.b16 %v463, %v459
      %v563 = vpack.c.b16 %v459, %v458
      %v564 = vpack.c.b16 %v465, %v464
      %v664 = vunpack.c.l.b16 %v466
      %v665 = vunpack.c.l.b16 %v467
      %v666 = vunpack.c.l.b16 %v468
      %v667 = vunpack.c.l.b16 %v469
      %v668 = vunpack.c.l.b16 %v470
      %v669 = vunpack.c.l.b16 %v471
      %v670 = vunpack.c.l.b16 %v472
      %v671 = vunpack.c.l.b16 %v473
      %v672 = vunpack.c.l.b16 %v474
      %v673 = vunpack.c.l.b16 %v475
      %v674 = vunpack.c.l.b16 %v476
      %v675 = vunpack.c.l.b16 %v477
      %v676 = vunpack.c.l.b16 %v478
      %v677 = vunpack.c.l.b16 %v479
      %v678 = vunpack.c.l.b16 %v480
      %v679 = vunpack.c.l.b16 %v481
      %v680 = vunpack.c.l.b16 %v482
      %v681 = vunpack.c.l.b16 %v483
      %v682 = vunpack.c.l.b16 %v484
      %v683 = vunpack.c.l.b16 %v485
      %v684 = vunpack.c.l.b16 %v486
      %v685 = vunpack.c.l.b16 %v487
      %v686 = vunpack.c.l.b16 %v488
      %v687 = vunpack.c.l.b16 %v489
      %v688 = vunpack.c.l.b16 %v490
      %v689 = vunpack.c.l.b16 %v491
      %v690 = vunpack.c.l.b16 %v492
      %v691 = vunpack.c.l.b16 %v493
      %v692 = vunpack.c.l.b16 %v494
      %v693 = vunpack.c.l.b16 %v495
      %v694 = vunpack.c.l.b16 %v496
      %v695 = vunpack.c.l.b16 %v497
      %v696 = vunpack.c.l.b16 %v498
      %v697 = vunpack.c.l.b16 %v499
      %v698 = vunpack.c.l.b16 %v500
      %v699 = vunpack.c.l.b16 %v501
      %v700 = vunpack.c.l.b16 %v502
      %v701 = vunpack.c.l.b16 %v503
      %v702 = vunpack.c.l.b16 %v504
      %v703 = vunpack.c.l.b16 %v505
      %v704 = vunpack.c.l.b16 %v506
      %v705 = vunpack.c.l.b16 %v507
      %v706 = vunpack.c.l.b16 %v508
      %v707 = vunpack.c.l.b16 %v509
      %v708 = vunpack.c.l.b16 %v510
      %v709 = vunpack.c.l.b16 %v511
      %v710 = vunpack.c.l.b16 %v512
      %v711 = vunpack.c.l.b16 %v513
      %v712 = vpack.c.b16 %v665, %v664
      %v713 = vpack.c.b16 %v667, %v666
      %v714 = vpack.c.b16 %v669, %v668
      %v715 = vpack.c.b16 %v671, %v670
      %v716 = vpack.c.b16 %v673, %v672
      %v717 = vpack.c.b16 %v675, %v674
      %v718 = vpack.c.b16 %v677, %v676
      %v719 = vpack.c.b16 %v679, %v678
      %v720 = vpack.c.b16 %v681, %v680
      %v721 = vpack.c.b16 %v683, %v682
      %v722 = vpack.c.b16 %v685, %v684
      %v723 = vpack.c.b16 %v687, %v686
      %v724 = vpack.c.b16 %v689, %v688
      %v725 = vpack.c.b16 %v691, %v690
      %v726 = vpack.c.b16 %v693, %v692
      %v727 = vpack.c.b16 %v695, %v694
      %v728 = vpack.c.b16 %v697, %v696
      %v729 = vpack.c.b16 %v699, %v698
      %v730 = vpack.c.b16 %v701, %v700
      %v731 = vpack.c.b16 %v703, %v702
      %v732 = vpack.c.b16 %v705, %v704
      %v733 = vpack.c.b16 %v707, %v706
      %v734 = vpack.c.b16 %v709, %v708
      %v735 = vpack.c.b16 %v711, %v710
      %760 = vmatprep.subr.bf16.mxu0 0
      %761 = vmatpush1.bf16.msra.mxu0 %v712
      %762 = vmatprep.subr.bf16.mxu0 0
      %763 = vmatpush1.bf16.msra.mxu0 %v713
      %764 = vmatprep.subr.bf16.mxu0 0
      %765 = vmatpush1.bf16.msra.mxu0 %v714
      %766 = vmatprep.subr.bf16.mxu0 0
      %767 = vmatpush1.bf16.msra.mxu0 %v715
      %768 = vmatprep.subr.bf16.mxu0 0
      %769 = vmatpush1.bf16.msra.mxu0 %v716
      %770 = vmatprep.subr.bf16.mxu0 0
      %771 = vmatpush1.bf16.msra.mxu0 %v717
      %772 = vmatprep.subr.bf16.mxu0 0
      %773 = vmatpush1.bf16.msra.mxu0 %v718
      %774 = vmatprep.subr.bf16.mxu0 0
      %775 = vmatpush1.bf16.msra.mxu0 %v719
      %776 = vmatprep.subr.bf16.mxu0 0
      %777 = vmatpush1.bf16.msra.mxu0 %v720
      %778 = vmatprep.subr.bf16.mxu0 0
      %779 = vmatpush1.bf16.msra.mxu0 %v721
      %780 = vmatprep.subr.bf16.mxu0 0
      %781 = vmatpush1.bf16.msra.mxu0 %v722
      %782 = vmatprep.subr.bf16.mxu0 0
      %783 = vmatpush1.bf16.msra.mxu0 %v723
      %784 = vmatprep.subr.bf16.mxu0 0
      %785 = vmatpush1.bf16.msra.mxu0 %v724
      %786 = vmatprep.subr.bf16.mxu0 0
      %787 = vmatpush1.bf16.msra.mxu0 %v725
      %788 = vmatprep.subr.bf16.mxu0 0
      %789 = vmatpush1.bf16.msra.mxu0 %v726
      %790 = vmatprep.subr.bf16.mxu0 0
      %791 = vmatpush1.bf16.msra.mxu0 %v727
      %792 = vmatprep.mubr.bf16.mxu0 %v515
      %793 = vmatmul.mubr.bf16.gmra.mrb[0].mxu0 %v514
      %v794 = vpop.f32.mrb[0].mxu0
      %v795 = vadd.f32 0.0, %v794
      %v796 = vpop.f32.mrb[0].mxu0
      %v797 = vpop.f32.mrb[0].mxu0
      %v798 = vadd.f32 0.0, %v797
      %v799 = vpop.f32.mrb[0].mxu0
      %800 = vmatprep.mubr.bf16.mxu0 %v518
      %801 = vmatmul.mubr.bf16.gmra.mrb[0].mxu0 %v517
      %v802 = vpop.f32.mrb[0].mxu0
      %v803 = vadd.f32 0.0, %v802
      %v804 = vpop.f32.mrb[0].mxu0
      %v805 = vpop.f32.mrb[0].mxu0
      %v806 = vadd.f32 0.0, %v805
      %v807 = vpop.f32.mrb[0].mxu0
      %808 = vmatprep.mubr.bf16.mxu0 %v521
      %809 = vmatmul.mubr.bf16.gmra.mrb[0].mxu0 %v520
      %v810 = vpop.f32.mrb[0].mxu0
      %v811 = vadd.f32 0.0, %v810
      %v812 = vpop.f32.mrb[0].mxu0
      %v813 = vpop.f32.mrb[0].mxu0
      %v814 = vadd.f32 0.0, %v813
      %v815 = vpop.f32.mrb[0].mxu0
      %816 = vmatprep.mubr.bf16.mxu0 %v523
      %817 = vmatmul.mubr.bf16.gmra.mrb[0].mxu0 %v516
      %v818 = vpop.f32.mrb[0].mxu0
      %v819 = vadd.f32 0.0, %v818
      %v820 = vpop.f32.mrb[0].mxu0
      %v821 = vpop.f32.mrb[0].mxu0
      %v822 = vadd.f32 0.0, %v821
      %v823 = vpop.f32.mrb[0].mxu0
      %824 = vmatprep.mubr.bf16.mxu0 %v525
      %825 = vmatmul.mubr.bf16.gmra.mrb[0].mxu0 %v519
      %v826 = vpop.f32.mrb[0].mxu0
      %v827 = vadd.f32 0.0, %v826
      %v828 = vpop.f32.mrb[0].mxu0
      %v829 = vpop.f32.mrb[0].mxu0
      %v830 = vadd.f32 0.0, %v829
      %v831 = vpop.f32.mrb[0].mxu0
      %832 = vmatprep.mubr.bf16.mxu0 %v527
      %833 = vmatmul.mubr.bf16.gmra.mrb[0].mxu0 %v522
      %v834 = vpop.f32.mrb[0].mxu0
      %v835 = vadd.f32 0.0, %v834
      %v836 = vpop.f32.mrb[0].mxu0
      %v837 = vpop.f32.mrb[0].mxu0
      %v838 = vadd.f32 0.0, %v837
      %v839 = vpop.f32.mrb[0].mxu0
      %840 = vmatprep.mubr.bf16.mxu0 %v529
      %841 = vmatmul.mubr.bf16.gmra.mrb[0].mxu0 %v524
      %v842 = vpop.f32.mrb[0].mxu0
      %v843 = vadd.f32 0.0, %v842
      %v844 = vpop.f32.mrb[0].mxu0
      %v845 = vpop.f32.mrb[0].mxu0
      %v846 = vadd.f32 0.0, %v845
      %v847 = vpop.f32.mrb[0].mxu0
      %848 = vmatprep.mubr.bf16.mxu0 %v531
      %849 = vmatmul.mubr.bf16.gmra.mrb[0].mxu0 %v526
      %v850 = vpop.f32.mrb[0].mxu0
      %v851 = vadd.f32 0.0, %v850
      %v852 = vpop.f32.mrb[0].mxu0
      %v853 = vpop.f32.mrb[0].mxu0
      %v854 = vadd.f32 0.0, %v853
      %v855 = vpop.f32.mrb[0].mxu0
      %856 = vmatprep.mubr.bf16.mxu0 %v533
      %857 = vmatmul.mubr.bf16.gmra.mrb[0].mxu0 %v528
      %v858 = vpop.f32.mrb[0].mxu0
      %v859 = vadd.f32 0.0, %v858
      %v860 = vpop.f32.mrb[0].mxu0
      %v861 = vpop.f32.mrb[0].mxu0
      %v862 = vadd.f32 0.0, %v861
      %v863 = vpop.f32.mrb[0].mxu0
      %864 = vmatprep.mubr.bf16.mxu0 %v535
      %865 = vmatmul.mubr.bf16.gmra.mrb[0].mxu0 %v530
      %v866 = vpop.f32.mrb[0].mxu0
      %v867 = vadd.f32 0.0, %v866
      %v868 = vpop.f32.mrb[0].mxu0
      %v869 = vpop.f32.mrb[0].mxu0
      %v870 = vadd.f32 0.0, %v869
      %v871 = vpop.f32.mrb[0].mxu0
      %872 = vmatprep.mubr.bf16.mxu0 %v537
      %873 = vmatmul.mubr.bf16.gmra.mrb[0].mxu0 %v532
      %v874 = vpop.f32.mrb[0].mxu0
      %v875 = vadd.f32 0.0, %v874
      %v876 = vpop.f32.mrb[0].mxu0
      %v877 = vpop.f32.mrb[0].mxu0
      %v878 = vadd.f32 0.0, %v877
      %v879 = vpop.f32.mrb[0].mxu0
      %880 = vmatprep.mubr.bf16.mxu0 %v539
      %881 = vmatmul.mubr.bf16.gmra.mrb[0].mxu0 %v534
      %v882 = vpop.f32.mrb[0].mxu0
      %v883 = vadd.f32 0.0, %v882
      %v884 = vpop.f32.mrb[0].mxu0
      %v885 = vpop.f32.mrb[0].mxu0
      %v886 = vadd.f32 0.0, %v885
      %v887 = vpop.f32.mrb[0].mxu0
      %888 = vmatprep.mubr.bf16.mxu0 %v541
      %889 = vmatmul.mubr.bf16.gmra.mrb[0].mxu0 %v536
      %v890 = vpop.f32.mrb[0].mxu0
      %v891 = vadd.f32 0.0, %v890
      %v892 = vpop.f32.mrb[0].mxu0
      %v893 = vpop.f32.mrb[0].mxu0
      %v894 = vadd.f32 0.0, %v893
      %v895 = vpop.f32.mrb[0].mxu0
      %896 = vmatprep.mubr.bf16.mxu0 %v543
      %897 = vmatmul.mubr.bf16.gmra.mrb[0].mxu0 %v538
      %v898 = vpop.f32.mrb[0].mxu0
      %v899 = vadd.f32 0.0, %v898
      %v900 = vpop.f32.mrb[0].mxu0
      %v901 = vpop.f32.mrb[0].mxu0
      %v902 = vadd.f32 0.0, %v901
      %v903 = vpop.f32.mrb[0].mxu0
      %904 = vmatprep.mubr.bf16.mxu0 %v545
      %905 = vmatmul.mubr.bf16.gmra.mrb[0].mxu0 %v540
      %v906 = vpop.f32.mrb[0].mxu0
      %v907 = vadd.f32 0.0, %v906
      %v908 = vpop.f32.mrb[0].mxu0
      %v909 = vpop.f32.mrb[0].mxu0
      %v910 = vadd.f32 0.0, %v909
      %v911 = vpop.f32.mrb[0].mxu0
      %912 = vmatprep.mubr.bf16.mxu0 %v547
      %913 = vmatmul.mubr.bf16.gmra.mrb[0].mxu0 %v542
      %v914 = vpop.f32.mrb[0].mxu0
      %v915 = vadd.f32 0.0, %v914
      %v916 = vpop.f32.mrb[0].mxu0
      %v917 = vpop.f32.mrb[0].mxu0
      %v918 = vadd.f32 0.0, %v917
      %v919 = vpop.f32.mrb[0].mxu0
      %920 = vmatprep.mubr.bf16.mxu0 %v549
      %921 = vmatmul.mubr.bf16.gmra.mrb[0].mxu0 %v544
      %v922 = vpop.f32.mrb[0].mxu0
      %v923 = vadd.f32 0.0, %v922
      %v924 = vpop.f32.mrb[0].mxu0
      %v925 = vpop.f32.mrb[0].mxu0
      %v926 = vadd.f32 0.0, %v925
      %v927 = vpop.f32.mrb[0].mxu0
      %928 = vmatprep.mubr.bf16.mxu0 %v551
      %929 = vmatmul.mubr.bf16.gmra.mrb[0].mxu0 %v546
      %v930 = vpop.f32.mrb[0].mxu0
      %v931 = vadd.f32 0.0, %v930
      %v932 = vpop.f32.mrb[0].mxu0
      %v933 = vpop.f32.mrb[0].mxu0
      %v934 = vadd.f32 0.0, %v933
      %v935 = vpop.f32.mrb[0].mxu0
      %936 = vmatprep.mubr.bf16.mxu0 %v553
      %937 = vmatmul.mubr.bf16.gmra.mrb[0].mxu0 %v548
      %v938 = vpop.f32.mrb[0].mxu0
      %v939 = vadd.f32 0.0, %v938
      %v940 = vpop.f32.mrb[0].mxu0
      %v941 = vpop.f32.mrb[0].mxu0
      %v942 = vadd.f32 0.0, %v941
      %v943 = vpop.f32.mrb[0].mxu0
      %944 = vmatprep.mubr.bf16.mxu0 %v555
      %945 = vmatmul.mubr.bf16.gmra.mrb[0].mxu0 %v550
      %v946 = vpop.f32.mrb[0].mxu0
      %v947 = vadd.f32 0.0, %v946
      %v948 = vpop.f32.mrb[0].mxu0
      %v949 = vpop.f32.mrb[0].mxu0
      %v950 = vadd.f32 0.0, %v949
      %v951 = vpop.f32.mrb[0].mxu0
      %952 = vmatprep.mubr.bf16.mxu0 %v557
      %953 = vmatmul.mubr.bf16.gmra.mrb[0].mxu0 %v552
      %v954 = vpop.f32.mrb[0].mxu0
      %v955 = vadd.f32 0.0, %v954
      %v956 = vpop.f32.mrb[0].mxu0
      %v957 = vpop.f32.mrb[0].mxu0
      %v958 = vadd.f32 0.0, %v957
      %v959 = vpop.f32.mrb[0].mxu0
      %960 = vmatprep.mubr.bf16.mxu0 %v559
      %961 = vmatmul.mubr.bf16.gmra.mrb[0].mxu0 %v554
      %v962 = vpop.f32.mrb[0].mxu0
      %v963 = vadd.f32 0.0, %v962
      %v964 = vpop.f32.mrb[0].mxu0
      %v965 = vpop.f32.mrb[0].mxu0
      %v966 = vadd.f32 0.0, %v965
      %v967 = vpop.f32.mrb[0].mxu0
      %968 = vmatprep.mubr.bf16.mxu0 %v561
      %969 = vmatmul.mubr.bf16.gmra.mrb[0].mxu0 %v556
      %v970 = vpop.f32.mrb[0].mxu0
      %v971 = vadd.f32 0.0, %v970
      %v972 = vpop.f32.mrb[0].mxu0
      %v973 = vpop.f32.mrb[0].mxu0
      %v974 = vadd.f32 0.0, %v973
      %v975 = vpop.f32.mrb[0].mxu0
      %976 = vmatprep.mubr.bf16.mxu0 %v563
      %977 = vmatmul.mubr.bf16.gmra.mrb[0].mxu0 %v558
      %v978 = vpop.f32.mrb[0].mxu0
      %v979 = vadd.f32 0.0, %v978
      %v980 = vpop.f32.mrb[0].mxu0
      %v981 = vpop.f32.mrb[0].mxu0
      %v982 = vadd.f32 0.0, %v981
      %v983 = vpop.f32.mrb[0].mxu0
      %984 = vdwg.mxu0
      %985 = vmatprep.subr.bf16.mxu0 0
      %986 = vmatpush1.bf16.msra.mxu0 %v728
      %987 = vmatprep.subr.bf16.mxu0 0
      %988 = vmatpush1.bf16.msra.mxu0 %v729
      %989 = vmatprep.subr.bf16.mxu0 0
      %990 = vmatpush1.bf16.msra.mxu0 %v730
      %991 = vmatprep.subr.bf16.mxu0 0
      %992 = vmatpush1.bf16.msra.mxu0 %v731
      %993 = vmatprep.subr.bf16.mxu0 0
      %994 = vmatpush1.bf16.msra.mxu0 %v732
      %995 = vmatprep.subr.bf16.mxu0 0
      %996 = vmatpush1.bf16.msra.mxu0 %v733
      %997 = vmatprep.subr.bf16.mxu0 0
      %998 = vmatpush1.bf16.msra.mxu0 %v734
      %999 = vmatprep.subr.bf16.mxu0 0
      %1000 = vmatpush1.bf16.msra.mxu0 %v735
      %1001 = vmatprep.subr.bf16.mxu0 0
      %1002 = vmatpush1.bf16.msra.mxu0 0
      %1003 = vmatprep.subr.bf16.mxu0 0
      %1004 = vmatpush1.bf16.msra.mxu0 0
      %1005 = vmatprep.subr.bf16.mxu0 0
      %1006 = vmatpush1.bf16.msra.mxu0 0
      %1007 = vmatprep.subr.bf16.mxu0 0
      %1008 = vmatpush1.bf16.msra.mxu0 0
      %1009 = vmatprep.subr.bf16.mxu0 0
      %1010 = vmatpush1.bf16.msra.mxu0 0
      %1011 = vmatprep.subr.bf16.mxu0 0
      %1012 = vmatpush1.bf16.msra.mxu0 0
      %1013 = vmatprep.subr.bf16.mxu0 0
      %1014 = vmatpush1.bf16.msra.mxu0 0
      %1015 = vmatprep.subr.bf16.mxu0 0
      %1016 = vmatpush1.bf16.msra.mxu0 0
      %1017 = vmatprep.mubr.bf16.mxu0 0
      %1018 = vmatmul.mubr.bf16.gmra.mrb[0].mxu0 %v516
      %v1019 = vpop.f32.mrb[0].mxu0
      %v1020 = vadd.f32 %v795, %v1019
      %v1021 = vpop.f32.mrb[0].mxu0
      %v1022 = vpop.f32.mrb[0].mxu0
      %v1023 = vadd.f32 %v798, %v1022
      %v1024 = vpop.f32.mrb[0].mxu0
      %1025 = vmatprep.mubr.bf16.mxu0 0
      %1026 = vmatmul.mubr.bf16.gmra.mrb[0].mxu0 %v519
      %v1027 = vpop.f32.mrb[0].mxu0
      %v1028 = vadd.f32 %v803, %v1027
      %v1029 = vpop.f32.mrb[0].mxu0
      %v1030 = vpop.f32.mrb[0].mxu0
      %v1031 = vadd.f32 %v806, %v1030
      %v1032 = vpop.f32.mrb[0].mxu0
      %1033 = vmatprep.mubr.bf16.mxu0 0
      %1034 = vmatmul.mubr.bf16.gmra.mrb[0].mxu0 %v522
      %v1035 = vpop.f32.mrb[0].mxu0
      %v1036 = vadd.f32 %v811, %v1035
      %v1037 = vpop.f32.mrb[0].mxu0
      %v1038 = vpop.f32.mrb[0].mxu0
      %v1039 = vadd.f32 %v814, %v1038
      %v1040 = vpop.f32.mrb[0].mxu0
      %1041 = vmatprep.mubr.bf16.mxu0 0
      %1042 = vmatmul.mubr.bf16.gmra.mrb[0].mxu0 %v524
      %v1043 = vpop.f32.mrb[0].mxu0
      %v1044 = vadd.f32 %v819, %v1043
      %v1045 = vpop.f32.mrb[0].mxu0
      %v1046 = vpop.f32.mrb[0].mxu0
      %v1047 = vadd.f32 %v822, %v1046
      %v1048 = vpop.f32.mrb[0].mxu0
      %1049 = vmatprep.mubr.bf16.mxu0 0
      %1050 = vmatmul.mubr.bf16.gmra.mrb[0].mxu0 %v526
      %v1051 = vpop.f32.mrb[0].mxu0
      %v1052 = vadd.f32 %v827, %v1051
      %v1053 = vpop.f32.mrb[0].mxu0
      %v1054 = vpop.f32.mrb[0].mxu0
      %v1055 = vadd.f32 %v830, %v1054
      %v1056 = vpop.f32.mrb[0].mxu0
      %1057 = vmatprep.mubr.bf16.mxu0 0
      %1058 = vmatmul.mubr.bf16.gmra.mrb[0].mxu0 %v528
      %v1059 = vpop.f32.mrb[0].mxu0
      %v1060 = vadd.f32 %v835, %v1059
      %v1061 = vpop.f32.mrb[0].mxu0
      %v1062 = vpop.f32.mrb[0].mxu0
      %v1063 = vadd.f32 %v838, %v1062
      %v1064 = vpop.f32.mrb[0].mxu0
      %1065 = vmatprep.mubr.bf16.mxu0 0
      %1066 = vmatmul.mubr.bf16.gmra.mrb[0].mxu0 %v530
      %v1067 = vpop.f32.mrb[0].mxu0
      %v1068 = vadd.f32 %v843, %v1067
      %v1069 = vpop.f32.mrb[0].mxu0
      %v1070 = vpop.f32.mrb[0].mxu0
      %v1071 = vadd.f32 %v846, %v1070
      %v1072 = vpop.f32.mrb[0].mxu0
      %1073 = vmatprep.mubr.bf16.mxu0 0
      %1074 = vmatmul.mubr.bf16.gmra.mrb[0].mxu0 %v532
      %v1075 = vpop.f32.mrb[0].mxu0
      %v1076 = vadd.f32 %v851, %v1075
      %v1077 = vpop.f32.mrb[0].mxu0
      %v1078 = vpop.f32.mrb[0].mxu0
      %v1079 = vadd.f32 %v854, %v1078
      %v1080 = vpop.f32.mrb[0].mxu0
      %1081 = vmatprep.mubr.bf16.mxu0 0
      %1082 = vmatmul.mubr.bf16.gmra.mrb[0].mxu0 %v534
      %v1083 = vpop.f32.mrb[0].mxu0
      %v1084 = vadd.f32 %v859, %v1083
      %v1085 = vpop.f32.mrb[0].mxu0
      %v1086 = vpop.f32.mrb[0].mxu0
      %v1087 = vadd.f32 %v862, %v1086
      %v1088 = vpop.f32.mrb[0].mxu0
      %1089 = vmatprep.mubr.bf16.mxu0 0
      %1090 = vmatmul.mubr.bf16.gmra.mrb[0].mxu0 %v536
      %v1091 = vpop.f32.mrb[0].mxu0
      %v1092 = vadd.f32 %v867, %v1091
      %v1093 = vpop.f32.mrb[0].mxu0
      %v1094 = vpop.f32.mrb[0].mxu0
      %v1095 = vadd.f32 %v870, %v1094
      %v1096 = vpop.f32.mrb[0].mxu0
      %1097 = vmatprep.mubr.bf16.mxu0 0
      %1098 = vmatmul.mubr.bf16.gmra.mrb[0].mxu0 %v538
      %v1099 = vpop.f32.mrb[0].mxu0
      %v1100 = vadd.f32 %v875, %v1099
      %v1101 = vpop.f32.mrb[0].mxu0
      %v1102 = vpop.f32.mrb[0].mxu0
      %v1103 = vadd.f32 %v878, %v1102
      %v1104 = vpop.f32.mrb[0].mxu0
      %1105 = vmatprep.mubr.bf16.mxu0 0
      %1106 = vmatmul.mubr.bf16.gmra.mrb[0].mxu0 %v540
      %v1107 = vpop.f32.mrb[0].mxu0
      %v1108 = vadd.f32 %v883, %v1107
      %v1109 = vpop.f32.mrb[0].mxu0
      %v1110 = vpop.f32.mrb[0].mxu0
      %v1111 = vadd.f32 %v886, %v1110
      %v1112 = vpop.f32.mrb[0].mxu0
      %1113 = vmatprep.mubr.bf16.mxu0 0
      %1114 = vmatmul.mubr.bf16.gmra.mrb[0].mxu0 %v542
      %v1115 = vpop.f32.mrb[0].mxu0
      %v1116 = vadd.f32 %v891, %v1115
      %v1117 = vpop.f32.mrb[0].mxu0
      %v1118 = vpop.f32.mrb[0].mxu0
      %v1119 = vadd.f32 %v894, %v1118
      %v1120 = vpop.f32.mrb[0].mxu0
      %1121 = vmatprep.mubr.bf16.mxu0 0
      %1122 = vmatmul.mubr.bf16.gmra.mrb[0].mxu0 %v544
      %v1123 = vpop.f32.mrb[0].mxu0
      %v1124 = vadd.f32 %v899, %v1123
      %v1125 = vpop.f32.mrb[0].mxu0
      %v1126 = vpop.f32.mrb[0].mxu0
      %v1127 = vadd.f32 %v902, %v1126
      %v1128 = vpop.f32.mrb[0].mxu0
      %1129 = vmatprep.mubr.bf16.mxu0 0
      %1130 = vmatmul.mubr.bf16.gmra.mrb[0].mxu0 %v546
      %v1131 = vpop.f32.mrb[0].mxu0
      %v1132 = vadd.f32 %v907, %v1131
      %v1133 = vpop.f32.mrb[0].mxu0
      %v1134 = vpop.f32.mrb[0].mxu0
      %v1135 = vadd.f32 %v910, %v1134
      %v1136 = vpop.f32.mrb[0].mxu0
      %1137 = vmatprep.mubr.bf16.mxu0 0
      %1138 = vmatmul.mubr.bf16.gmra.mrb[0].mxu0 %v548
      %v1139 = vpop.f32.mrb[0].mxu0
      %v1140 = vadd.f32 %v915, %v1139
      %v1141 = vpop.f32.mrb[0].mxu0
      %v1142 = vpop.f32.mrb[0].mxu0
      %v1143 = vadd.f32 %v918, %v1142
      %v1144 = vpop.f32.mrb[0].mxu0
      %1145 = vmatprep.mubr.bf16.mxu0 0
      %1146 = vmatmul.mubr.bf16.gmra.mrb[0].mxu0 %v550
      %v1147 = vpop.f32.mrb[0].mxu0
      %v1148 = vadd.f32 %v923, %v1147
      %v1149 = vpop.f32.mrb[0].mxu0
      %v1150 = vpop.f32.mrb[0].mxu0
      %v1151 = vadd.f32 %v926, %v1150
      %v1152 = vpop.f32.mrb[0].mxu0
      %1153 = vmatprep.mubr.bf16.mxu0 0
      %1154 = vmatmul.mubr.bf16.gmra.mrb[0].mxu0 %v552
      %v1155 = vpop.f32.mrb[0].mxu0
      %v1156 = vadd.f32 %v931, %v1155
      %v1157 = vpop.f32.mrb[0].mxu0
      %v1158 = vpop.f32.mrb[0].mxu0
      %v1159 = vadd.f32 %v934, %v1158
      %v1160 = vpop.f32.mrb[0].mxu0
      %1161 = vmatprep.mubr.bf16.mxu0 0
      %1162 = vmatmul.mubr.bf16.gmra.mrb[0].mxu0 %v554
      %v1163 = vpop.f32.mrb[0].mxu0
      %v1164 = vadd.f32 %v939, %v1163
      %v1165 = vpop.f32.mrb[0].mxu0
      %v1166 = vpop.f32.mrb[0].mxu0
      %v1167 = vadd.f32 %v942, %v1166
      %v1168 = vpop.f32.mrb[0].mxu0
      %1169 = vmatprep.mubr.bf16.mxu0 0
      %1170 = vmatmul.mubr.bf16.gmra.mrb[0].mxu0 %v556
      %v1171 = vpop.f32.mrb[0].mxu0
      %v1172 = vadd.f32 %v947, %v1171
      %v1173 = vpop.f32.mrb[0].mxu0
      %v1174 = vpop.f32.mrb[0].mxu0
      %v1175 = vadd.f32 %v950, %v1174
      %v1176 = vpop.f32.mrb[0].mxu0
      %1177 = vmatprep.mubr.bf16.mxu0 0
      %1178 = vmatmul.mubr.bf16.gmra.mrb[0].mxu0 %v558
      %v1179 = vpop.f32.mrb[0].mxu0
      %v1180 = vadd.f32 %v955, %v1179
      %v1181 = vpop.f32.mrb[0].mxu0
      %v1182 = vpop.f32.mrb[0].mxu0
      %v1183 = vadd.f32 %v958, %v1182
      %v1184 = vpop.f32.mrb[0].mxu0
      %1185 = vmatprep.mubr.bf16.mxu0 0
      %1186 = vmatmul.mubr.bf16.gmra.mrb[0].mxu0 %v560
      %v1187 = vpop.f32.mrb[0].mxu0
      %v1188 = vadd.f32 %v963, %v1187
      %v1189 = vpop.f32.mrb[0].mxu0
      %v1190 = vpop.f32.mrb[0].mxu0
      %v1191 = vadd.f32 %v966, %v1190
      %v1192 = vpop.f32.mrb[0].mxu0
      %1193 = vmatprep.mubr.bf16.mxu0 0
      %1194 = vmatmul.mubr.bf16.gmra.mrb[0].mxu0 %v562
      %v1195 = vpop.f32.mrb[0].mxu0
      %v1196 = vadd.f32 %v971, %v1195
      %v1197 = vpop.f32.mrb[0].mxu0
      %v1198 = vpop.f32.mrb[0].mxu0
      %v1199 = vadd.f32 %v974, %v1198
      %v1200 = vpop.f32.mrb[0].mxu0
      %1201 = vmatprep.mubr.bf16.mxu0 0
      %1202 = vmatmul.mubr.bf16.gmra.mrb[0].mxu0 %v564
      %v1203 = vpop.f32.mrb[0].mxu0
      %v1204 = vadd.f32 %v979, %v1203
      %v1205 = vpop.f32.mrb[0].mxu0
      %v1206 = vpop.f32.mrb[0].mxu0
      %v1207 = vadd.f32 %v982, %v1206
      %v1208 = vpop.f32.mrb[0].mxu0
      %1209 = vdwg.mxu0
      %v1210 = vrot.slane %v1020, 7
      %v1211 = vrot.slane %v1023, 7
      %v1212 = vrot.slane %v1028, 7
      %v1213 = vrot.slane %v1031, 7
      %v1214 = vrot.slane %v1036, 7
      %v1215 = vrot.slane %v1039, 7
      %v1216 = vrot.slane %v1044, 7
      %v1217 = vrot.slane %v1047, 7
      %v1218 = vrot.slane %v1052, 7
      %v1219 = vrot.slane %v1055, 7
      %v1220 = vrot.slane %v1060, 7
      %v1221 = vrot.slane %v1063, 7
      %v1222 = vrot.slane %v1068, 7
      %v1223 = vrot.slane %v1071, 7
      %v1224 = vrot.slane %v1076, 7
      %v1225 = vrot.slane %v1079, 7
      %v1226 = vrot.slane %v1084, 7
      %v1227 = vrot.slane %v1087, 7
      %v1228 = vrot.slane %v1092, 7
      %v1229 = vrot.slane %v1095, 7
      %v1230 = vrot.slane %v1100, 7
      %v1231 = vrot.slane %v1103, 7
      %v1232 = vrot.slane %v1108, 7
      %v1233 = vrot.slane %v1111, 7
      %v1234 = vrot.slane %v1116, 7
      %v1235 = vrot.slane %v1119, 7
      %v1236 = vrot.slane %v1124, 7
      %v1237 = vrot.slane %v1127, 7
      %v1238 = vrot.slane %v1132, 7
      %v1239 = vrot.slane %v1135, 7
      %v1240 = vrot.slane %v1140, 7
      %v1241 = vrot.slane %v1143, 7
      %v1242 = vrot.slane %v1148, 7
      %v1243 = vrot.slane %v1151, 7
      %v1244 = vrot.slane %v1156, 7
      %v1245 = vrot.slane %v1159, 7
      %v1246 = vrot.slane %v1164, 7
      %v1247 = vrot.slane %v1167, 7
      %v1248 = vrot.slane %v1172, 7
      %v1249 = vrot.slane %v1175, 7
      %v1250 = vrot.slane %v1180, 7
      %v1251 = vrot.slane %v1183, 7
      %v1252 = vrot.slane %v1188, 7
      %v1253 = vrot.slane %v1191, 7
      %v1254 = vrot.slane %v1196, 7
      %v1255 = vrot.slane %v1199, 7
      %v1256 = vrot.slane %v1204, 7
      %v1257 = vrot.slane %v1207, 7
      %v1258 = vlaneseq
      %v1259 = vshrl.u32 %v1258, 7
      %vm1260 = vcmp.lt.s32.totalorder %v1259, 1
      %v1261 = vsel %vm1260, %v1256, %v1257
      %v1262 = vsel %vm1260, %v1255, %v1256
      %v1263 = vsel %vm1260, %v1254, %v1255
      %v1264 = vsel %vm1260, %v1253, %v1254
      %v1265 = vsel %vm1260, %v1252, %v1253
      %v1266 = vsel %vm1260, %v1251, %v1252
      %v1267 = vsel %vm1260, %v1250, %v1251
      %v1268 = vsel %vm1260, %v1249, %v1250
      %v1269 = vsel %vm1260, %v1248, %v1249
      %v1270 = vsel %vm1260, %v1247, %v1248
      %v1271 = vsel %vm1260, %v1246, %v1247
      %v1272 = vsel %vm1260, %v1245, %v1246
      %v1273 = vsel %vm1260, %v1244, %v1245
      %v1274 = vsel %vm1260, %v1243, %v1244
      %v1275 = vsel %vm1260, %v1242, %v1243
      %v1276 = vsel %vm1260, %v1241, %v1242
      %v1277 = vsel %vm1260, %v1240, %v1241
      %v1278 = vsel %vm1260, %v1239, %v1240
      %v1279 = vsel %vm1260, %v1238, %v1239
      %v1280 = vsel %vm1260, %v1237, %v1238
      %v1281 = vsel %vm1260, %v1236, %v1237
      %v1282 = vsel %vm1260, %v1235, %v1236
      %v1283 = vsel %vm1260, %v1234, %v1235
      %v1284 = vsel %vm1260, %v1233, %v1234
      %v1285 = vsel %vm1260, %v1232, %v1233
      %v1286 = vsel %vm1260, %v1231, %v1232
      %v1287 = vsel %vm1260, %v1230, %v1231
      %v1288 = vsel %vm1260, %v1229, %v1230
      %v1289 = vsel %vm1260, %v1228, %v1229
      %v1290 = vsel %vm1260, %v1227, %v1228
      %v1291 = vsel %vm1260, %v1226, %v1227
      %v1292 = vsel %vm1260, %v1225, %v1226
      %v1293 = vsel %vm1260, %v1224, %v1225
      %v1294 = vsel %vm1260, %v1223, %v1224
      %v1295 = vsel %vm1260, %v1222, %v1223
      %v1296 = vsel %vm1260, %v1221, %v1222
      %v1297 = vsel %vm1260, %v1220, %v1221
      %v1298 = vsel %vm1260, %v1219, %v1220
      %v1299 = vsel %vm1260, %v1218, %v1219
      %v1300 = vsel %vm1260, %v1217, %v1218
      %v1301 = vsel %vm1260, %v1216, %v1217
      %v1302 = vsel %vm1260, %v1215, %v1216
      %v1303 = vsel %vm1260, %v1214, %v1215
      %v1304 = vsel %vm1260, %v1213, %v1214
      %v1305 = vsel %vm1260, %v1212, %v1213
      %v1306 = vsel %vm1260, %v1211, %v1212
      %v1307 = vsel %vm1260, %v1210, %v1211
      %v1308 = vsel %vm1260, %v1257, %v1210
      %v1309 = vld [vmem:[%s2 + $0xc0] sm:$0xf]
      %v1310 = vld [vmem:[%s2 + $0xc4] sm:$0xf]
      %v1311 = vld [vmem:[%s2 + $0xc8] sm:$0xf]
      %v1312 = vld [vmem:[%s2 + $0xcc] sm:$0xf]
      %v1313 = vld [vmem:[%s2 + $0xd0] sm:$0xf]
      %v1314 = vld [vmem:[%s2 + $0xd4] sm:$0xf]
      %v1315 = vld [vmem:[%s2 + $0xd8] sm:$0xf]
      %v1316 = vld [vmem:[%s2 + $0xdc] sm:$0xf]
      %v1317 = vld [vmem:[%s2 + $0xe0] sm:$0xf]
      %v1318 = vld [vmem:[%s2 + $0xe4] sm:$0xf]
      %v1319 = vld [vmem:[%s2 + $0xe8] sm:$0xf]
      %v1320 = vld [vmem:[%s2 + $0xec] sm:$0xf]
      %v1321 = vld [vmem:[%s2 + $0xf0] sm:$0xf]
      %v1322 = vld [vmem:[%s2 + $0xf4] sm:$0xf]
      %v1323 = vld [vmem:[%s2 + $0xf8] sm:$0xf]
      %v1324 = vld [vmem:[%s2 + $0xfc] sm:$0xf]
      %v1325 = vld [vmem:[%s2 + $0x100] sm:$0xf]
      %v1326 = vld [vmem:[%s2 + $0x104] sm:$0xf]
      %v1327 = vld [vmem:[%s2 + $0x108] sm:$0xf]
      %v1328 = vld [vmem:[%s2 + $0x10c] sm:$0xf]
      %v1329 = vld [vmem:[%s2 + $0x110] sm:$0xf]
      %v1330 = vld [vmem:[%s2 + $0x114] sm:$0xf]
      %v1331 = vld [vmem:[%s2 + $0x118] sm:$0xf]
      %v1332 = vld [vmem:[%s2 + $0x11c] sm:$0xf]
      %v1333 = vld [vmem:[%s2 + $0x120] sm:$0xf]
      %v1334 = vld [vmem:[%s2 + $0x124] sm:$0xf]
      %v1335 = vld [vmem:[%s2 + $0x128] sm:$0xf]
      %v1336 = vld [vmem:[%s2 + $0x12c] sm:$0xf]
      %v1337 = vld [vmem:[%s2 + $0x130] sm:$0xf]
      %v1338 = vld [vmem:[%s2 + $0x134] sm:$0xf]
      %v1339 = vld [vmem:[%s2 + $0x138] sm:$0xf]
      %v1340 = vld [vmem:[%s2 + $0x13c] sm:$0xf]
      %v1341 = vld [vmem:[%s2 + $0x140] sm:$0xf]
      %v1342 = vld [vmem:[%s2 + $0x144] sm:$0xf]
      %v1343 = vld [vmem:[%s2 + $0x148] sm:$0xf]
      %v1344 = vld [vmem:[%s2 + $0x14c] sm:$0xf]
      %v1345 = vld [vmem:[%s2 + $0x150] sm:$0xf]
      %v1346 = vld [vmem:[%s2 + $0x154] sm:$0xf]
      %v1347 = vld [vmem:[%s2 + $0x158] sm:$0xf]
      %v1348 = vld [vmem:[%s2 + $0x15c] sm:$0xf]
      %v1349 = vld [vmem:[%s2 + $0x160] sm:$0xf]
      %v1350 = vld [vmem:[%s2 + $0x164] sm:$0xf]
      %v1351 = vld [vmem:[%s2 + $0x168] sm:$0xf]
      %v1352 = vld [vmem:[%s2 + $0x16c] sm:$0xf]
      %v1353 = vld [vmem:[%s2 + $0x170] sm:$0xf]
      %v1354 = vld [vmem:[%s2 + $0x174] sm:$0xf]
      %v1355 = vld [vmem:[%s2 + $0x178] sm:$0xf]
      %v1356 = vld [vmem:[%s2 + $0x17c] sm:$0xf]
      %v1405 = vunpack.c.l.b16 %v1309
      %v1406 = vunpack.c.l.b16 %v1310
      %v1407 = vunpack.c.l.b16 %v1311
      %v1408 = vunpack.c.l.b16 %v1312
      %v1409 = vunpack.c.l.b16 %v1313
      %v1410 = vunpack.c.l.b16 %v1314
      %v1411 = vunpack.c.l.b16 %v1315
      %v1412 = vunpack.c.l.b16 %v1316
      %v1413 = vunpack.c.l.b16 %v1317
      %v1414 = vunpack.c.l.b16 %v1318
      %v1415 = vunpack.c.l.b16 %v1319
      %v1416 = vunpack.c.l.b16 %v1320
      %v1417 = vunpack.c.l.b16 %v1321
      %v1418 = vunpack.c.l.b16 %v1322
      %v1419 = vunpack.c.l.b16 %v1323
      %v1420 = vunpack.c.l.b16 %v1324
      %v1421 = vunpack.c.l.b16 %v1325
      %v1422 = vunpack.c.l.b16 %v1326
      %v1423 = vunpack.c.l.b16 %v1327
      %v1424 = vunpack.c.l.b16 %v1328
      %v1425 = vunpack.c.l.b16 %v1329
      %v1426 = vunpack.c.l.b16 %v1330
      %v1427 = vunpack.c.l.b16 %v1331
      %v1428 = vunpack.c.l.b16 %v1332
      %v1429 = vunpack.c.l.b16 %v1333
      %v1430 = vunpack.c.l.b16 %v1334
      %v1431 = vunpack.c.l.b16 %v1335
      %v1432 = vunpack.c.l.b16 %v1336
      %v1433 = vunpack.c.l.b16 %v1337
      %v1434 = vunpack.c.l.b16 %v1338
      %v1435 = vunpack.c.l.b16 %v1339
      %v1436 = vunpack.c.l.b16 %v1340
      %v1437 = vunpack.c.l.b16 %v1341
      %v1438 = vunpack.c.l.b16 %v1342
      %v1439 = vunpack.c.l.b16 %v1343
      %v1440 = vunpack.c.l.b16 %v1344
      %v1441 = vunpack.c.l.b16 %v1345
      %v1442 = vunpack.c.l.b16 %v1346
      %v1443 = vunpack.c.l.b16 %v1347
      %v1444 = vunpack.c.l.b16 %v1348
      %v1445 = vunpack.c.l.b16 %v1349
      %v1446 = vunpack.c.l.b16 %v1350
      %v1447 = vunpack.c.l.b16 %v1351
      %v1448 = vunpack.c.l.b16 %v1352
      %v1449 = vunpack.c.l.b16 %v1353
      %v1450 = vunpack.c.l.b16 %v1354
      %v1451 = vunpack.c.l.b16 %v1355
      %v1452 = vunpack.c.l.b16 %v1356
      %v1453 = vpack.c.b16 %v1406, %v1405
      %v1454 = vpack.c.b16 %v1408, %v1407
      %v1455 = vpack.c.b16 %v1410, %v1409
      %v1456 = vpack.c.b16 %v1412, %v1411
      %v1457 = vpack.c.b16 %v1414, %v1413
      %v1458 = vpack.c.b16 %v1416, %v1415
      %v1459 = vpack.c.b16 %v1418, %v1417
      %v1460 = vpack.c.b16 %v1420, %v1419
      %v1461 = vpack.c.b16 %v1422, %v1421
      %v1462 = vpack.c.b16 %v1424, %v1423
      %v1463 = vpack.c.b16 %v1426, %v1425
      %v1464 = vpack.c.b16 %v1428, %v1427
      %v1465 = vpack.c.b16 %v1430, %v1429
      %v1466 = vpack.c.b16 %v1432, %v1431
      %v1467 = vpack.c.b16 %v1434, %v1433
      %v1468 = vpack.c.b16 %v1436, %v1435
      %v1469 = vpack.c.b16 %v1438, %v1437
      %v1470 = vpack.c.b16 %v1440, %v1439
      %v1471 = vpack.c.b16 %v1442, %v1441
      %v1472 = vpack.c.b16 %v1444, %v1443
      %v1473 = vpack.c.b16 %v1446, %v1445
      %v1474 = vpack.c.b16 %v1448, %v1447
      %v1475 = vpack.c.b16 %v1450, %v1449
      %v1476 = vpack.c.b16 %v1452, %v1451
      %1501 = vmatprep.subr.bf16.mxu0 0
      %1502 = vmatpush1.bf16.msra.mxu0 %v1453
      %1503 = vmatprep.subr.bf16.mxu0 0
      %1504 = vmatpush1.bf16.msra.mxu0 %v1454
      %1505 = vmatprep.subr.bf16.mxu0 0
      %1506 = vmatpush1.bf16.msra.mxu0 %v1455
      %1507 = vmatprep.subr.bf16.mxu0 0
      %1508 = vmatpush1.bf16.msra.mxu0 %v1456
      %1509 = vmatprep.subr.bf16.mxu0 0
      %1510 = vmatpush1.bf16.msra.mxu0 %v1457
      %1511 = vmatprep.subr.bf16.mxu0 0
      %1512 = vmatpush1.bf16.msra.mxu0 %v1458
      %1513 = vmatprep.subr.bf16.mxu0 0
      %1514 = vmatpush1.bf16.msra.mxu0 %v1459
      %1515 = vmatprep.subr.bf16.mxu0 0
      %1516 = vmatpush1.bf16.msra.mxu0 %v1460
      %1517 = vmatprep.subr.bf16.mxu0 0
      %1518 = vmatpush1.bf16.msra.mxu0 %v1461
      %1519 = vmatprep.subr.bf16.mxu0 0
      %1520 = vmatpush1.bf16.msra.mxu0 %v1462
      %1521 = vmatprep.subr.bf16.mxu0 0
      %1522 = vmatpush1.bf16.msra.mxu0 %v1463
      %1523 = vmatprep.subr.bf16.mxu0 0
      %1524 = vmatpush1.bf16.msra.mxu0 %v1464
      %1525 = vmatprep.subr.bf16.mxu0 0
      %1526 = vmatpush1.bf16.msra.mxu0 %v1465
      %1527 = vmatprep.subr.bf16.mxu0 0
      %1528 = vmatpush1.bf16.msra.mxu0 %v1466
      %1529 = vmatprep.subr.bf16.mxu0 0
      %1530 = vmatpush1.bf16.msra.mxu0 %v1467
      %1531 = vmatprep.subr.bf16.mxu0 0
      %1532 = vmatpush1.bf16.msra.mxu0 %v1468
      %1533 = vmatprep.mubr.bf16.mxu0 %v515
      %1534 = vmatmul.mubr.bf16.gmra.mrb[0].mxu0 %v514
      %v1535 = vpop.f32.mrb[0].mxu0
      %v1536 = vadd.f32 0.0, %v1535
      %v1537 = vpop.f32.mrb[0].mxu0
      %v1538 = vpop.f32.mrb[0].mxu0
      %v1539 = vadd.f32 0.0, %v1538
      %v1540 = vpop.f32.mrb[0].mxu0
      %1541 = vmatprep.mubr.bf16.mxu0 %v518
      %1542 = vmatmul.mubr.bf16.gmra.mrb[0].mxu0 %v517
      %v1543 = vpop.f32.mrb[0].mxu0
      %v1544 = vadd.f32 0.0, %v1543
      %v1545 = vpop.f32.mrb[0].mxu0
      %v1546 = vpop.f32.mrb[0].mxu0
      %v1547 = vadd.f32 0.0, %v1546
      %v1548 = vpop.f32.mrb[0].mxu0
      %1549 = vmatprep.mubr.bf16.mxu0 %v521
      %1550 = vmatmul.mubr.bf16.gmra.mrb[0].mxu0 %v520
      %v1551 = vpop.f32.mrb[0].mxu0
      %v1552 = vadd.f32 0.0, %v1551
      %v1553 = vpop.f32.mrb[0].mxu0
      %v1554 = vpop.f32.mrb[0].mxu0
      %v1555 = vadd.f32 0.0, %v1554
      %v1556 = vpop.f32.mrb[0].mxu0
      %1557 = vmatprep.mubr.bf16.mxu0 %v523
      %1558 = vmatmul.mubr.bf16.gmra.mrb[0].mxu0 %v516
      %v1559 = vpop.f32.mrb[0].mxu0
      %v1560 = vadd.f32 0.0, %v1559
      %v1561 = vpop.f32.mrb[0].mxu0
      %v1562 = vpop.f32.mrb[0].mxu0
      %v1563 = vadd.f32 0.0, %v1562
      %v1564 = vpop.f32.mrb[0].mxu0
      %1565 = vmatprep.mubr.bf16.mxu0 %v525
      %1566 = vmatmul.mubr.bf16.gmra.mrb[0].mxu0 %v519
      %v1567 = vpop.f32.mrb[0].mxu0
      %v1568 = vadd.f32 0.0, %v1567
      %v1569 = vpop.f32.mrb[0].mxu0
      %v1570 = vpop.f32.mrb[0].mxu0
      %v1571 = vadd.f32 0.0, %v1570
      %v1572 = vpop.f32.mrb[0].mxu0
      %1573 = vmatprep.mubr.bf16.mxu0 %v527
      %1574 = vmatmul.mubr.bf16.gmra.mrb[0].mxu0 %v522
      %v1575 = vpop.f32.mrb[0].mxu0
      %v1576 = vadd.f32 0.0, %v1575
      %v1577 = vpop.f32.mrb[0].mxu0
      %v1578 = vpop.f32.mrb[0].mxu0
      %v1579 = vadd.f32 0.0, %v1578
      %v1580 = vpop.f32.mrb[0].mxu0
      %1581 = vmatprep.mubr.bf16.mxu0 %v529
      %1582 = vmatmul.mubr.bf16.gmra.mrb[0].mxu0 %v524
      %v1583 = vpop.f32.mrb[0].mxu0
      %v1584 = vadd.f32 0.0, %v1583
      %v1585 = vpop.f32.mrb[0].mxu0
      %v1586 = vpop.f32.mrb[0].mxu0
      %v1587 = vadd.f32 0.0, %v1586
      %v1588 = vpop.f32.mrb[0].mxu0
      %1589 = vmatprep.mubr.bf16.mxu0 %v531
      %1590 = vmatmul.mubr.bf16.gmra.mrb[0].mxu0 %v526
      %v1591 = vpop.f32.mrb[0].mxu0
      %v1592 = vadd.f32 0.0, %v1591
      %v1593 = vpop.f32.mrb[0].mxu0
      %v1594 = vpop.f32.mrb[0].mxu0
      %v1595 = vadd.f32 0.0, %v1594
      %v1596 = vpop.f32.mrb[0].mxu0
      %1597 = vmatprep.mubr.bf16.mxu0 %v533
      %1598 = vmatmul.mubr.bf16.gmra.mrb[0].mxu0 %v528
      %v1599 = vpop.f32.mrb[0].mxu0
      %v1600 = vadd.f32 0.0, %v1599
      %v1601 = vpop.f32.mrb[0].mxu0
      %v1602 = vpop.f32.mrb[0].mxu0
      %v1603 = vadd.f32 0.0, %v1602
      %v1604 = vpop.f32.mrb[0].mxu0
      %1605 = vmatprep.mubr.bf16.mxu0 %v535
      %1606 = vmatmul.mubr.bf16.gmra.mrb[0].mxu0 %v530
      %v1607 = vpop.f32.mrb[0].mxu0
      %v1608 = vadd.f32 0.0, %v1607
      %v1609 = vpop.f32.mrb[0].mxu0
      %v1610 = vpop.f32.mrb[0].mxu0
      %v1611 = vadd.f32 0.0, %v1610
      %v1612 = vpop.f32.mrb[0].mxu0
      %1613 = vmatprep.mubr.bf16.mxu0 %v537
      %1614 = vmatmul.mubr.bf16.gmra.mrb[0].mxu0 %v532
      %v1615 = vpop.f32.mrb[0].mxu0
      %v1616 = vadd.f32 0.0, %v1615
      %v1617 = vpop.f32.mrb[0].mxu0
      %v1618 = vpop.f32.mrb[0].mxu0
      %v1619 = vadd.f32 0.0, %v1618
      %v1620 = vpop.f32.mrb[0].mxu0
      %1621 = vmatprep.mubr.bf16.mxu0 %v539
      %1622 = vmatmul.mubr.bf16.gmra.mrb[0].mxu0 %v534
      %v1623 = vpop.f32.mrb[0].mxu0
      %v1624 = vadd.f32 0.0, %v1623
      %v1625 = vpop.f32.mrb[0].mxu0
      %v1626 = vpop.f32.mrb[0].mxu0
      %v1627 = vadd.f32 0.0, %v1626
      %v1628 = vpop.f32.mrb[0].mxu0
      %1629 = vmatprep.mubr.bf16.mxu0 %v541
      %1630 = vmatmul.mubr.bf16.gmra.mrb[0].mxu0 %v536
      %v1631 = vpop.f32.mrb[0].mxu0
      %v1632 = vadd.f32 0.0, %v1631
      %v1633 = vpop.f32.mrb[0].mxu0
      %v1634 = vpop.f32.mrb[0].mxu0
      %v1635 = vadd.f32 0.0, %v1634
      %v1636 = vpop.f32.mrb[0].mxu0
      %1637 = vmatprep.mubr.bf16.mxu0 %v543
      %1638 = vmatmul.mubr.bf16.gmra.mrb[0].mxu0 %v538
      %v1639 = vpop.f32.mrb[0].mxu0
      %v1640 = vadd.f32 0.0, %v1639
      %v1641 = vpop.f32.mrb[0].mxu0
      %v1642 = vpop.f32.mrb[0].mxu0
      %v1643 = vadd.f32 0.0, %v1642
      %v1644 = vpop.f32.mrb[0].mxu0
      %1645 = vmatprep.mubr.bf16.mxu0 %v545
      %1646 = vmatmul.mubr.bf16.gmra.mrb[0].mxu0 %v540
      %v1647 = vpop.f32.mrb[0].mxu0
      %v1648 = vadd.f32 0.0, %v1647
      %v1649 = vpop.f32.mrb[0].mxu0
      %v1650 = vpop.f32.mrb[0].mxu0
      %v1651 = vadd.f32 0.0, %v1650
      %v1652 = vpop.f32.mrb[0].mxu0
      %1653 = vmatprep.mubr.bf16.mxu0 %v547
      %1654 = vmatmul.mubr.bf16.gmra.mrb[0].mxu0 %v542
      %v1655 = vpop.f32.mrb[0].mxu0
      %v1656 = vadd.f32 0.0, %v1655
      %v1657 = vpop.f32.mrb[0].mxu0
      %v1658 = vpop.f32.mrb[0].mxu0
      %v1659 = vadd.f32 0.0, %v1658
      %v1660 = vpop.f32.mrb[0].mxu0
      %1661 = vmatprep.mubr.bf16.mxu0 %v549
      %1662 = vmatmul.mubr.bf16.gmra.mrb[0].mxu0 %v544
      %v1663 = vpop.f32.mrb[0].mxu0
      %v1664 = vadd.f32 0.0, %v1663
      %v1665 = vpop.f32.mrb[0].mxu0
      %v1666 = vpop.f32.mrb[0].mxu0
      %v1667 = vadd.f32 0.0, %v1666
      %v1668 = vpop.f32.mrb[0].mxu0
      %1669 = vmatprep.mubr.bf16.mxu0 %v551
      %1670 = vmatmul.mubr.bf16.gmra.mrb[0].mxu0 %v546
      %v1671 = vpop.f32.mrb[0].mxu0
      %v1672 = vadd.f32 0.0, %v1671
      %v1673 = vpop.f32.mrb[0].mxu0
      %v1674 = vpop.f32.mrb[0].mxu0
      %v1675 = vadd.f32 0.0, %v1674
      %v1676 = vpop.f32.mrb[0].mxu0
      %1677 = vmatprep.mubr.bf16.mxu0 %v553
      %1678 = vmatmul.mubr.bf16.gmra.mrb[0].mxu0 %v548
      %v1679 = vpop.f32.mrb[0].mxu0
      %v1680 = vadd.f32 0.0, %v1679
      %v1681 = vpop.f32.mrb[0].mxu0
      %v1682 = vpop.f32.mrb[0].mxu0
      %v1683 = vadd.f32 0.0, %v1682
      %v1684 = vpop.f32.mrb[0].mxu0
      %1685 = vmatprep.mubr.bf16.mxu0 %v555
      %1686 = vmatmul.mubr.bf16.gmra.mrb[0].mxu0 %v550
      %v1687 = vpop.f32.mrb[0].mxu0
      %v1688 = vadd.f32 0.0, %v1687
      %v1689 = vpop.f32.mrb[0].mxu0
      %v1690 = vpop.f32.mrb[0].mxu0
      %v1691 = vadd.f32 0.0, %v1690
      %v1692 = vpop.f32.mrb[0].mxu0
      %1693 = vmatprep.mubr.bf16.mxu0 %v557
      %1694 = vmatmul.mubr.bf16.gmra.mrb[0].mxu0 %v552
      %v1695 = vpop.f32.mrb[0].mxu0
      %v1696 = vadd.f32 0.0, %v1695
      %v1697 = vpop.f32.mrb[0].mxu0
      %v1698 = vpop.f32.mrb[0].mxu0
      %v1699 = vadd.f32 0.0, %v1698
      %v1700 = vpop.f32.mrb[0].mxu0
      %1701 = vmatprep.mubr.bf16.mxu0 %v559
      %1702 = vmatmul.mubr.bf16.gmra.mrb[0].mxu0 %v554
      %v1703 = vpop.f32.mrb[0].mxu0
      %v1704 = vadd.f32 0.0, %v1703
      %v1705 = vpop.f32.mrb[0].mxu0
      %v1706 = vpop.f32.mrb[0].mxu0
      %v1707 = vadd.f32 0.0, %v1706
      %v1708 = vpop.f32.mrb[0].mxu0
      %1709 = vmatprep.mubr.bf16.mxu0 %v561
      %1710 = vmatmul.mubr.bf16.gmra.mrb[0].mxu0 %v556
      %v1711 = vpop.f32.mrb[0].mxu0
      %v1712 = vadd.f32 0.0, %v1711
      %v1713 = vpop.f32.mrb[0].mxu0
      %v1714 = vpop.f32.mrb[0].mxu0
      %v1715 = vadd.f32 0.0, %v1714
      %v1716 = vpop.f32.mrb[0].mxu0
      %1717 = vmatprep.mubr.bf16.mxu0 %v563
      %1718 = vmatmul.mubr.bf16.gmra.mrb[0].mxu0 %v558
      %v1719 = vpop.f32.mrb[0].mxu0
      %v1720 = vadd.f32 0.0, %v1719
      %v1721 = vpop.f32.mrb[0].mxu0
      %v1722 = vpop.f32.mrb[0].mxu0
      %v1723 = vadd.f32 0.0, %v1722
      %v1724 = vpop.f32.mrb[0].mxu0
      %1725 = vdwg.mxu0
      %1726 = vmatprep.subr.bf16.mxu0 0
      %1727 = vmatpush1.bf16.msra.mxu0 %v1469
      %1728 = vmatprep.subr.bf16.mxu0 0
      %1729 = vmatpush1.bf16.msra.mxu0 %v1470
      %1730 = vmatprep.subr.bf16.mxu0 0
      %1731 = vmatpush1.bf16.msra.mxu0 %v1471
      %1732 = vmatprep.subr.bf16.mxu0 0
      %1733 = vmatpush1.bf16.msra.mxu0 %v1472
      %1734 = vmatprep.subr.bf16.mxu0 0
      %1735 = vmatpush1.bf16.msra.mxu0 %v1473
      %1736 = vmatprep.subr.bf16.mxu0 0
      %1737 = vmatpush1.bf16.msra.mxu0 %v1474
      %1738 = vmatprep.subr.bf16.mxu0 0
      %1739 = vmatpush1.bf16.msra.mxu0 %v1475
      %1740 = vmatprep.subr.bf16.mxu0 0
      %1741 = vmatpush1.bf16.msra.mxu0 %v1476
      %1742 = vmatprep.subr.bf16.mxu0 0
      %1743 = vmatpush1.bf16.msra.mxu0 0
      %1744 = vmatprep.subr.bf16.mxu0 0
      %1745 = vmatpush1.bf16.msra.mxu0 0
      %1746 = vmatprep.subr.bf16.mxu0 0
      %1747 = vmatpush1.bf16.msra.mxu0 0
      %1748 = vmatprep.subr.bf16.mxu0 0
      %1749 = vmatpush1.bf16.msra.mxu0 0
      %1750 = vmatprep.subr.bf16.mxu0 0
      %1751 = vmatpush1.bf16.msra.mxu0 0
      %1752 = vmatprep.subr.bf16.mxu0 0
      %1753 = vmatpush1.bf16.msra.mxu0 0
      %1754 = vmatprep.subr.bf16.mxu0 0
      %1755 = vmatpush1.bf16.msra.mxu0 0
      %1756 = vmatprep.subr.bf16.mxu0 0
      %1757 = vmatpush1.bf16.msra.mxu0 0
      %1758 = vmatprep.mubr.bf16.mxu0 0
      %1759 = vmatmul.mubr.bf16.gmra.mrb[0].mxu0 %v516
      %v1760 = vpop.f32.mrb[0].mxu0
      %v1761 = vadd.f32 %v1536, %v1760
      %v1762 = vpop.f32.mrb[0].mxu0
      %v1763 = vpop.f32.mrb[0].mxu0
      %v1764 = vadd.f32 %v1539, %v1763
      %v1765 = vpop.f32.mrb[0].mxu0
      %1766 = vmatprep.mubr.bf16.mxu0 0
      %1767 = vmatmul.mubr.bf16.gmra.mrb[0].mxu0 %v519
      %v1768 = vpop.f32.mrb[0].mxu0
      %v1769 = vadd.f32 %v1544, %v1768
      %v1770 = vpop.f32.mrb[0].mxu0
      %v1771 = vpop.f32.mrb[0].mxu0
      %v1772 = vadd.f32 %v1547, %v1771
      %v1773 = vpop.f32.mrb[0].mxu0
      %1774 = vmatprep.mubr.bf16.mxu0 0
      %1775 = vmatmul.mubr.bf16.gmra.mrb[0].mxu0 %v522
      %v1776 = vpop.f32.mrb[0].mxu0
      %v1777 = vadd.f32 %v1552, %v1776
      %v1778 = vpop.f32.mrb[0].mxu0
      %v1779 = vpop.f32.mrb[0].mxu0
      %v1780 = vadd.f32 %v1555, %v1779
      %v1781 = vpop.f32.mrb[0].mxu0
      %1782 = vmatprep.mubr.bf16.mxu0 0
      %1783 = vmatmul.mubr.bf16.gmra.mrb[0].mxu0 %v524
      %v1784 = vpop.f32.mrb[0].mxu0
      %v1785 = vadd.f32 %v1560, %v1784
      %v1786 = vpop.f32.mrb[0].mxu0
      %v1787 = vpop.f32.mrb[0].mxu0
      %v1788 = vadd.f32 %v1563, %v1787
      %v1789 = vpop.f32.mrb[0].mxu0
      %1790 = vmatprep.mubr.bf16.mxu0 0
      %1791 = vmatmul.mubr.bf16.gmra.mrb[0].mxu0 %v526
      %v1792 = vpop.f32.mrb[0].mxu0
      %v1793 = vadd.f32 %v1568, %v1792
      %v1794 = vpop.f32.mrb[0].mxu0
      %v1795 = vpop.f32.mrb[0].mxu0
      %v1796 = vadd.f32 %v1571, %v1795
      %v1797 = vpop.f32.mrb[0].mxu0
      %1798 = vmatprep.mubr.bf16.mxu0 0
      %1799 = vmatmul.mubr.bf16.gmra.mrb[0].mxu0 %v528
      %v1800 = vpop.f32.mrb[0].mxu0
      %v1801 = vadd.f32 %v1576, %v1800
      %v1802 = vpop.f32.mrb[0].mxu0
      %v1803 = vpop.f32.mrb[0].mxu0
      %v1804 = vadd.f32 %v1579, %v1803
      %v1805 = vpop.f32.mrb[0].mxu0
      %1806 = vmatprep.mubr.bf16.mxu0 0
      %1807 = vmatmul.mubr.bf16.gmra.mrb[0].mxu0 %v530
      %v1808 = vpop.f32.mrb[0].mxu0
      %v1809 = vadd.f32 %v1584, %v1808
      %v1810 = vpop.f32.mrb[0].mxu0
      %v1811 = vpop.f32.mrb[0].mxu0
      %v1812 = vadd.f32 %v1587, %v1811
      %v1813 = vpop.f32.mrb[0].mxu0
      %1814 = vmatprep.mubr.bf16.mxu0 0
      %1815 = vmatmul.mubr.bf16.gmra.mrb[0].mxu0 %v532
      %v1816 = vpop.f32.mrb[0].mxu0
      %v1817 = vadd.f32 %v1592, %v1816
      %v1818 = vpop.f32.mrb[0].mxu0
      %v1819 = vpop.f32.mrb[0].mxu0
      %v1820 = vadd.f32 %v1595, %v1819
      %v1821 = vpop.f32.mrb[0].mxu0
      %1822 = vmatprep.mubr.bf16.mxu0 0
      %1823 = vmatmul.mubr.bf16.gmra.mrb[0].mxu0 %v534
      %v1824 = vpop.f32.mrb[0].mxu0
      %v1825 = vadd.f32 %v1600, %v1824
      %v1826 = vpop.f32.mrb[0].mxu0
      %v1827 = vpop.f32.mrb[0].mxu0
      %v1828 = vadd.f32 %v1603, %v1827
      %v1829 = vpop.f32.mrb[0].mxu0
      %1830 = vmatprep.mubr.bf16.mxu0 0
      %1831 = vmatmul.mubr.bf16.gmra.mrb[0].mxu0 %v536
      %v1832 = vpop.f32.mrb[0].mxu0
      %v1833 = vadd.f32 %v1608, %v1832
      %v1834 = vpop.f32.mrb[0].mxu0
      %v1835 = vpop.f32.mrb[0].mxu0
      %v1836 = vadd.f32 %v1611, %v1835
      %v1837 = vpop.f32.mrb[0].mxu0
      %1838 = vmatprep.mubr.bf16.mxu0 0
      %1839 = vmatmul.mubr.bf16.gmra.mrb[0].mxu0 %v538
      %v1840 = vpop.f32.mrb[0].mxu0
      %v1841 = vadd.f32 %v1616, %v1840
      %v1842 = vpop.f32.mrb[0].mxu0
      %v1843 = vpop.f32.mrb[0].mxu0
      %v1844 = vadd.f32 %v1619, %v1843
      %v1845 = vpop.f32.mrb[0].mxu0
      %1846 = vmatprep.mubr.bf16.mxu0 0
      %1847 = vmatmul.mubr.bf16.gmra.mrb[0].mxu0 %v540
      %v1848 = vpop.f32.mrb[0].mxu0
      %v1849 = vadd.f32 %v1624, %v1848
      %v1850 = vpop.f32.mrb[0].mxu0
      %v1851 = vpop.f32.mrb[0].mxu0
      %v1852 = vadd.f32 %v1627, %v1851
      %v1853 = vpop.f32.mrb[0].mxu0
      %1854 = vmatprep.mubr.bf16.mxu0 0
      %1855 = vmatmul.mubr.bf16.gmra.mrb[0].mxu0 %v542
      %v1856 = vpop.f32.mrb[0].mxu0
      %v1857 = vadd.f32 %v1632, %v1856
      %v1858 = vpop.f32.mrb[0].mxu0
      %v1859 = vpop.f32.mrb[0].mxu0
      %v1860 = vadd.f32 %v1635, %v1859
      %v1861 = vpop.f32.mrb[0].mxu0
      %1862 = vmatprep.mubr.bf16.mxu0 0
      %1863 = vmatmul.mubr.bf16.gmra.mrb[0].mxu0 %v544
      %v1864 = vpop.f32.mrb[0].mxu0
      %v1865 = vadd.f32 %v1640, %v1864
      %v1866 = vpop.f32.mrb[0].mxu0
      %v1867 = vpop.f32.mrb[0].mxu0
      %v1868 = vadd.f32 %v1643, %v1867
      %v1869 = vpop.f32.mrb[0].mxu0
      %1870 = vmatprep.mubr.bf16.mxu0 0
      %1871 = vmatmul.mubr.bf16.gmra.mrb[0].mxu0 %v546
      %v1872 = vpop.f32.mrb[0].mxu0
      %v1873 = vadd.f32 %v1648, %v1872
      %v1874 = vpop.f32.mrb[0].mxu0
      %v1875 = vpop.f32.mrb[0].mxu0
      %v1876 = vadd.f32 %v1651, %v1875
      %v1877 = vpop.f32.mrb[0].mxu0
      %1878 = vmatprep.mubr.bf16.mxu0 0
      %1879 = vmatmul.mubr.bf16.gmra.mrb[0].mxu0 %v548
      %v1880 = vpop.f32.mrb[0].mxu0
      %v1881 = vadd.f32 %v1656, %v1880
      %v1882 = vpop.f32.mrb[0].mxu0
      %v1883 = vpop.f32.mrb[0].mxu0
      %v1884 = vadd.f32 %v1659, %v1883
      %v1885 = vpop.f32.mrb[0].mxu0
      %1886 = vmatprep.mubr.bf16.mxu0 0
      %1887 = vmatmul.mubr.bf16.gmra.mrb[0].mxu0 %v550
      %v1888 = vpop.f32.mrb[0].mxu0
      %v1889 = vadd.f32 %v1664, %v1888
      %v1890 = vpop.f32.mrb[0].mxu0
      %v1891 = vpop.f32.mrb[0].mxu0
      %v1892 = vadd.f32 %v1667, %v1891
      %v1893 = vpop.f32.mrb[0].mxu0
      %1894 = vmatprep.mubr.bf16.mxu0 0
      %1895 = vmatmul.mubr.bf16.gmra.mrb[0].mxu0 %v552
      %v1896 = vpop.f32.mrb[0].mxu0
      %v1897 = vadd.f32 %v1672, %v1896
      %v1898 = vpop.f32.mrb[0].mxu0
      %v1899 = vpop.f32.mrb[0].mxu0
      %v1900 = vadd.f32 %v1675, %v1899
      %v1901 = vpop.f32.mrb[0].mxu0
      %1902 = vmatprep.mubr.bf16.mxu0 0
      %1903 = vmatmul.mubr.bf16.gmra.mrb[0].mxu0 %v554
      %v1904 = vpop.f32.mrb[0].mxu0
      %v1905 = vadd.f32 %v1680, %v1904
      %v1906 = vpop.f32.mrb[0].mxu0
      %v1907 = vpop.f32.mrb[0].mxu0
      %v1908 = vadd.f32 %v1683, %v1907
      %v1909 = vpop.f32.mrb[0].mxu0
      %1910 = vmatprep.mubr.bf16.mxu0 0
      %1911 = vmatmul.mubr.bf16.gmra.mrb[0].mxu0 %v556
      %v1912 = vpop.f32.mrb[0].mxu0
      %v1913 = vadd.f32 %v1688, %v1912
      %v1914 = vpop.f32.mrb[0].mxu0
      %v1915 = vpop.f32.mrb[0].mxu0
      %v1916 = vadd.f32 %v1691, %v1915
      %v1917 = vpop.f32.mrb[0].mxu0
      %1918 = vmatprep.mubr.bf16.mxu0 0
      %1919 = vmatmul.mubr.bf16.gmra.mrb[0].mxu0 %v558
      %v1920 = vpop.f32.mrb[0].mxu0
      %v1921 = vadd.f32 %v1696, %v1920
      %v1922 = vpop.f32.mrb[0].mxu0
      %v1923 = vpop.f32.mrb[0].mxu0
      %v1924 = vadd.f32 %v1699, %v1923
      %v1925 = vpop.f32.mrb[0].mxu0
      %1926 = vmatprep.mubr.bf16.mxu0 0
      %1927 = vmatmul.mubr.bf16.gmra.mrb[0].mxu0 %v560
      %v1928 = vpop.f32.mrb[0].mxu0
      %v1929 = vadd.f32 %v1704, %v1928
      %v1930 = vpop.f32.mrb[0].mxu0
      %v1931 = vpop.f32.mrb[0].mxu0
      %v1932 = vadd.f32 %v1707, %v1931
      %v1933 = vpop.f32.mrb[0].mxu0
      %1934 = vmatprep.mubr.bf16.mxu0 0
      %1935 = vmatmul.mubr.bf16.gmra.mrb[0].mxu0 %v562
      %v1936 = vpop.f32.mrb[0].mxu0
      %v1937 = vadd.f32 %v1712, %v1936
      %v1938 = vpop.f32.mrb[0].mxu0
      %v1939 = vpop.f32.mrb[0].mxu0
      %v1940 = vadd.f32 %v1715, %v1939
      %v1941 = vpop.f32.mrb[0].mxu0
      %1942 = vmatprep.mubr.bf16.mxu0 0
      %1943 = vmatmul.mubr.bf16.gmra.mrb[0].mxu0 %v564
      %v1944 = vpop.f32.mrb[0].mxu0
      %v1945 = vadd.f32 %v1720, %v1944
      %v1946 = vpop.f32.mrb[0].mxu0
      %v1947 = vpop.f32.mrb[0].mxu0
      %v1948 = vadd.f32 %v1723, %v1947
      %v1949 = vpop.f32.mrb[0].mxu0
      %1950 = vdwg.mxu0
      %v1951 = vadd.f32 %v1308, %v1761
      %v1952 = vadd.f32 %v1307, %v1764
      %v1953 = vadd.f32 %v1306, %v1769
      %v1954 = vadd.f32 %v1305, %v1772
      %v1955 = vadd.f32 %v1304, %v1777
      %v1956 = vadd.f32 %v1303, %v1780
      %v1957 = vadd.f32 %v1302, %v1785
      %v1958 = vadd.f32 %v1301, %v1788
      %v1959 = vadd.f32 %v1300, %v1793
      %v1960 = vadd.f32 %v1299, %v1796
      %v1961 = vadd.f32 %v1298, %v1801
      %v1962 = vadd.f32 %v1297, %v1804
      %v1963 = vadd.f32 %v1296, %v1809
      %v1964 = vadd.f32 %v1295, %v1812
      %v1965 = vadd.f32 %v1294, %v1817
      %v1966 = vadd.f32 %v1293, %v1820
      %v1967 = vadd.f32 %v1292, %v1825
      %v1968 = vadd.f32 %v1291, %v1828
      %v1969 = vadd.f32 %v1290, %v1833
      %v1970 = vadd.f32 %v1289, %v1836
      %v1971 = vadd.f32 %v1288, %v1841
      %v1972 = vadd.f32 %v1287, %v1844
      %v1973 = vadd.f32 %v1286, %v1849
      %v1974 = vadd.f32 %v1285, %v1852
      %v1975 = vadd.f32 %v1284, %v1857
      %v1976 = vadd.f32 %v1283, %v1860
      %v1977 = vadd.f32 %v1282, %v1865
      %v1978 = vadd.f32 %v1281, %v1868
      %v1979 = vadd.f32 %v1280, %v1873
      %v1980 = vadd.f32 %v1279, %v1876
      %v1981 = vadd.f32 %v1278, %v1881
      %v1982 = vadd.f32 %v1277, %v1884
      %v1983 = vadd.f32 %v1276, %v1889
      %v1984 = vadd.f32 %v1275, %v1892
      %v1985 = vadd.f32 %v1274, %v1897
      %v1986 = vadd.f32 %v1273, %v1900
      %v1987 = vadd.f32 %v1272, %v1905
      %v1988 = vadd.f32 %v1271, %v1908
      %v1989 = vadd.f32 %v1270, %v1913
      %v1990 = vadd.f32 %v1269, %v1916
      %v1991 = vadd.f32 %v1268, %v1921
      %v1992 = vadd.f32 %v1267, %v1924
      %v1993 = vadd.f32 %v1266, %v1929
      %v1994 = vadd.f32 %v1265, %v1932
      %v1995 = vadd.f32 %v1264, %v1937
      %v1996 = vadd.f32 %v1263, %v1940
      %v1997 = vadd.f32 %v1262, %v1945
      %v1998 = vadd.f32 %v1261, %v1948
      %v1999 = vld [vmem:[%s2 + $0x180] sm:$0xf]
      %v2000 = vld [vmem:[%s2 + $0x184] sm:$0xf]
      %v2001 = vld [vmem:[%s2 + $0x188] sm:$0xf]
      %v2002 = vld [vmem:[%s2 + $0x18c] sm:$0xf]
      %v2003 = vld [vmem:[%s2 + $0x190] sm:$0xf]
      %v2004 = vld [vmem:[%s2 + $0x194] sm:$0xf]
      %v2005 = vld [vmem:[%s2 + $0x198] sm:$0xf]
      %v2006 = vld [vmem:[%s2 + $0x19c] sm:$0xf]
      %v2007 = vld [vmem:[%s2 + $0x1a0] sm:$0xf]
      %v2008 = vld [vmem:[%s2 + $0x1a4] sm:$0xf]
      %v2009 = vld [vmem:[%s2 + $0x1a8] sm:$0xf]
      %v2010 = vld [vmem:[%s2 + $0x1ac] sm:$0xf]
      %v2011 = vld [vmem:[%s2 + $0x1b0] sm:$0xf]
      %v2012 = vld [vmem:[%s2 + $0x1b4] sm:$0xf]
      %v2013 = vld [vmem:[%s2 + $0x1b8] sm:$0xf]
      %v2014 = vld [vmem:[%s2 + $0x1bc] sm:$0xf]
      %v2015 = vld [vmem:[%s2 + $0x1c0] sm:$0xf]
      %v2016 = vld [vmem:[%s2 + $0x1c4] sm:$0xf]
      %v2017 = vld [vmem:[%s2 + $0x1c8] sm:$0xf]
      %v2018 = vld [vmem:[%s2 + $0x1cc] sm:$0xf]
      %v2019 = vld [vmem:[%s2 + $0x1d0] sm:$0xf]
      %v2020 = vld [vmem:[%s2 + $0x1d4] sm:$0xf]
      %v2021 = vld [vmem:[%s2 + $0x1d8] sm:$0xf]
      %v2022 = vld [vmem:[%s2 + $0x1dc] sm:$0xf]
      %v2023 = vld [vmem:[%s2 + $0x1e0] sm:$0xf]
      %v2024 = vld [vmem:[%s2 + $0x1e4] sm:$0xf]
      %v2025 = vld [vmem:[%s2 + $0x1e8] sm:$0xf]
      %v2026 = vld [vmem:[%s2 + $0x1ec] sm:$0xf]
      %v2027 = vld [vmem:[%s2 + $0x1f0] sm:$0xf]
      %v2028 = vld [vmem:[%s2 + $0x1f4] sm:$0xf]
      %v2029 = vld [vmem:[%s2 + $0x1f8] sm:$0xf]
      %v2030 = vld [vmem:[%s2 + $0x1fc] sm:$0xf]
      %v2031 = vld [vmem:[%s2 + $0x200] sm:$0xf]
      %v2032 = vld [vmem:[%s2 + $0x204] sm:$0xf]
      %v2033 = vld [vmem:[%s2 + $0x208] sm:$0xf]
      %v2034 = vld [vmem:[%s2 + $0x20c] sm:$0xf]
      %v2035 = vld [vmem:[%s2 + $0x210] sm:$0xf]
      %v2036 = vld [vmem:[%s2 + $0x214] sm:$0xf]
      %v2037 = vld [vmem:[%s2 + $0x218] sm:$0xf]
      %v2038 = vld [vmem:[%s2 + $0x21c] sm:$0xf]
      %v2039 = vld [vmem:[%s2 + $0x220] sm:$0xf]
      %v2040 = vld [vmem:[%s2 + $0x224] sm:$0xf]
      %v2041 = vld [vmem:[%s2 + $0x228] sm:$0xf]
      %v2042 = vld [vmem:[%s2 + $0x22c] sm:$0xf]
      %v2043 = vld [vmem:[%s2 + $0x230] sm:$0xf]
      %v2044 = vld [vmem:[%s2 + $0x234] sm:$0xf]
      %v2045 = vld [vmem:[%s2 + $0x238] sm:$0xf]
      %v2046 = vld [vmem:[%s2 + $0x23c] sm:$0xf]
      %v2095 = vunpack.c.l.b16 %v1999
      %v2096 = vunpack.c.l.b16 %v2000
      %v2097 = vunpack.c.l.b16 %v2001
      %v2098 = vunpack.c.l.b16 %v2002
      %v2099 = vunpack.c.l.b16 %v2003
      %v2100 = vunpack.c.l.b16 %v2004
      %v2101 = vunpack.c.l.b16 %v2005
      %v2102 = vunpack.c.l.b16 %v2006
      %v2103 = vunpack.c.l.b16 %v2007
      %v2104 = vunpack.c.l.b16 %v2008
      %v2105 = vunpack.c.l.b16 %v2009
      %v2106 = vunpack.c.l.b16 %v2010
      %v2107 = vunpack.c.l.b16 %v2011
      %v2108 = vunpack.c.l.b16 %v2012
      %v2109 = vunpack.c.l.b16 %v2013
      %v2110 = vunpack.c.l.b16 %v2014
      %v2111 = vunpack.c.l.b16 %v2015
      %v2112 = vunpack.c.l.b16 %v2016
      %v2113 = vunpack.c.l.b16 %v2017
      %v2114 = vunpack.c.l.b16 %v2018
      %v2115 = vunpack.c.l.b16 %v2019
      %v2116 = vunpack.c.l.b16 %v2020
      %v2117 = vunpack.c.l.b16 %v2021
      %v2118 = vunpack.c.l.b16 %v2022
      %v2119 = vunpack.c.l.b16 %v2023
      %v2120 = vunpack.c.l.b16 %v2024
      %v2121 = vunpack.c.l.b16 %v2025
      %v2122 = vunpack.c.l.b16 %v2026
      %v2123 = vunpack.c.l.b16 %v2027
      %v2124 = vunpack.c.l.b16 %v2028
      %v2125 = vunpack.c.l.b16 %v2029
      %v2126 = vunpack.c.l.b16 %v2030
      %v2127 = vunpack.c.l.b16 %v2031
      %v2128 = vunpack.c.l.b16 %v2032
      %v2129 = vunpack.c.l.b16 %v2033
      %v2130 = vunpack.c.l.b16 %v2034
      %v2131 = vunpack.c.l.b16 %v2035
      %v2132 = vunpack.c.l.b16 %v2036
      %v2133 = vunpack.c.l.b16 %v2037
      %v2134 = vunpack.c.l.b16 %v2038
      %v2135 = vunpack.c.l.b16 %v2039
      %v2136 = vunpack.c.l.b16 %v2040
      %v2137 = vunpack.c.l.b16 %v2041
      %v2138 = vunpack.c.l.b16 %v2042
      %v2139 = vunpack.c.l.b16 %v2043
      %v2140 = vunpack.c.l.b16 %v2044
      %v2141 = vunpack.c.l.b16 %v2045
      %v2142 = vunpack.c.l.b16 %v2046
      %v2143 = vpack.c.b16 %v2096, %v2095
      %v2144 = vpack.c.b16 %v2098, %v2097
      %v2145 = vpack.c.b16 %v2100, %v2099
      %v2146 = vpack.c.b16 %v2102, %v2101
      %v2147 = vpack.c.b16 %v2104, %v2103
      %v2148 = vpack.c.b16 %v2106, %v2105
      %v2149 = vpack.c.b16 %v2108, %v2107
      %v2150 = vpack.c.b16 %v2110, %v2109
      %v2151 = vpack.c.b16 %v2112, %v2111
      %v2152 = vpack.c.b16 %v2114, %v2113
      %v2153 = vpack.c.b16 %v2116, %v2115
      %v2154 = vpack.c.b16 %v2118, %v2117
      %v2155 = vpack.c.b16 %v2120, %v2119
      %v2156 = vpack.c.b16 %v2122, %v2121
      %v2157 = vpack.c.b16 %v2124, %v2123
      %v2158 = vpack.c.b16 %v2126, %v2125
      %v2159 = vpack.c.b16 %v2128, %v2127
      %v2160 = vpack.c.b16 %v2130, %v2129
      %v2161 = vpack.c.b16 %v2132, %v2131
      %v2162 = vpack.c.b16 %v2134, %v2133
      %v2163 = vpack.c.b16 %v2136, %v2135
      %v2164 = vpack.c.b16 %v2138, %v2137
      %v2165 = vpack.c.b16 %v2140, %v2139
      %v2166 = vpack.c.b16 %v2142, %v2141
      %2191 = vmatprep.subr.bf16.mxu0 0
      %2192 = vmatpush1.bf16.msra.mxu0 %v2143
      %2193 = vmatprep.subr.bf16.mxu0 0
      %2194 = vmatpush1.bf16.msra.mxu0 %v2144
      %2195 = vmatprep.subr.bf16.mxu0 0
      %2196 = vmatpush1.bf16.msra.mxu0 %v2145
      %2197 = vmatprep.subr.bf16.mxu0 0
      %2198 = vmatpush1.bf16.msra.mxu0 %v2146
      %2199 = vmatprep.subr.bf16.mxu0 0
      %2200 = vmatpush1.bf16.msra.mxu0 %v2147
      %2201 = vmatprep.subr.bf16.mxu0 0
      %2202 = vmatpush1.bf16.msra.mxu0 %v2148
      %2203 = vmatprep.subr.bf16.mxu0 0
      %2204 = vmatpush1.bf16.msra.mxu0 %v2149
      %2205 = vmatprep.subr.bf16.mxu0 0
      %2206 = vmatpush1.bf16.msra.mxu0 %v2150
      %2207 = vmatprep.subr.bf16.mxu0 0
      %2208 = vmatpush1.bf16.msra.mxu0 %v2151
      %2209 = vmatprep.subr.bf16.mxu0 0
      %2210 = vmatpush1.bf16.msra.mxu0 %v2152
      %2211 = vmatprep.subr.bf16.mxu0 0
      %2212 = vmatpush1.bf16.msra.mxu0 %v2153
      %2213 = vmatprep.subr.bf16.mxu0 0
      %2214 = vmatpush1.bf16.msra.mxu0 %v2154
      %2215 = vmatprep.subr.bf16.mxu0 0
      %2216 = vmatpush1.bf16.msra.mxu0 %v2155
      %2217 = vmatprep.subr.bf16.mxu0 0
      %2218 = vmatpush1.bf16.msra.mxu0 %v2156
      %2219 = vmatprep.subr.bf16.mxu0 0
      %2220 = vmatpush1.bf16.msra.mxu0 %v2157
      %2221 = vmatprep.subr.bf16.mxu0 0
      %2222 = vmatpush1.bf16.msra.mxu0 %v2158
      %2223 = vmatprep.mubr.bf16.mxu0 %v515
      %2224 = vmatmul.mubr.bf16.gmra.mrb[0].mxu0 %v514
      %v2225 = vpop.f32.mrb[0].mxu0
      %v2226 = vadd.f32 0.0, %v2225
      %v2227 = vpop.f32.mrb[0].mxu0
      %v2228 = vpop.f32.mrb[0].mxu0
      %v2229 = vadd.f32 0.0, %v2228
      %v2230 = vpop.f32.mrb[0].mxu0
      %2231 = vmatprep.mubr.bf16.mxu0 %v518
      %2232 = vmatmul.mubr.bf16.gmra.mrb[0].mxu0 %v517
      %v2233 = vpop.f32.mrb[0].mxu0
      %v2234 = vadd.f32 0.0, %v2233
      %v2235 = vpop.f32.mrb[0].mxu0
      %v2236 = vpop.f32.mrb[0].mxu0
      %v2237 = vadd.f32 0.0, %v2236
      %v2238 = vpop.f32.mrb[0].mxu0
      %2239 = vmatprep.mubr.bf16.mxu0 %v521
      %2240 = vmatmul.mubr.bf16.gmra.mrb[0].mxu0 %v520
      %v2241 = vpop.f32.mrb[0].mxu0
      %v2242 = vadd.f32 0.0, %v2241
      %v2243 = vpop.f32.mrb[0].mxu0
      %v2244 = vpop.f32.mrb[0].mxu0
      %v2245 = vadd.f32 0.0, %v2244
      %v2246 = vpop.f32.mrb[0].mxu0
      %2247 = vmatprep.mubr.bf16.mxu0 %v523
      %2248 = vmatmul.mubr.bf16.gmra.mrb[0].mxu0 %v516
      %v2249 = vpop.f32.mrb[0].mxu0
      %v2250 = vadd.f32 0.0, %v2249
      %v2251 = vpop.f32.mrb[0].mxu0
      %v2252 = vpop.f32.mrb[0].mxu0
      %v2253 = vadd.f32 0.0, %v2252
      %v2254 = vpop.f32.mrb[0].mxu0
      %2255 = vmatprep.mubr.bf16.mxu0 %v525
      %2256 = vmatmul.mubr.bf16.gmra.mrb[0].mxu0 %v519
      %v2257 = vpop.f32.mrb[0].mxu0
      %v2258 = vadd.f32 0.0, %v2257
      %v2259 = vpop.f32.mrb[0].mxu0
      %v2260 = vpop.f32.mrb[0].mxu0
      %v2261 = vadd.f32 0.0, %v2260
      %v2262 = vpop.f32.mrb[0].mxu0
      %2263 = vmatprep.mubr.bf16.mxu0 %v527
      %2264 = vmatmul.mubr.bf16.gmra.mrb[0].mxu0 %v522
      %v2265 = vpop.f32.mrb[0].mxu0
      %v2266 = vadd.f32 0.0, %v2265
      %v2267 = vpop.f32.mrb[0].mxu0
      %v2268 = vpop.f32.mrb[0].mxu0
      %v2269 = vadd.f32 0.0, %v2268
      %v2270 = vpop.f32.mrb[0].mxu0
      %2271 = vmatprep.mubr.bf16.mxu0 %v529
      %2272 = vmatmul.mubr.bf16.gmra.mrb[0].mxu0 %v524
      %v2273 = vpop.f32.mrb[0].mxu0
      %v2274 = vadd.f32 0.0, %v2273
      %v2275 = vpop.f32.mrb[0].mxu0
      %v2276 = vpop.f32.mrb[0].mxu0
      %v2277 = vadd.f32 0.0, %v2276
      %v2278 = vpop.f32.mrb[0].mxu0
      %2279 = vmatprep.mubr.bf16.mxu0 %v531
      %2280 = vmatmul.mubr.bf16.gmra.mrb[0].mxu0 %v526
      %v2281 = vpop.f32.mrb[0].mxu0
      %v2282 = vadd.f32 0.0, %v2281
      %v2283 = vpop.f32.mrb[0].mxu0
      %v2284 = vpop.f32.mrb[0].mxu0
      %v2285 = vadd.f32 0.0, %v2284
      %v2286 = vpop.f32.mrb[0].mxu0
      %2287 = vmatprep.mubr.bf16.mxu0 %v533
      %2288 = vmatmul.mubr.bf16.gmra.mrb[0].mxu0 %v528
      %v2289 = vpop.f32.mrb[0].mxu0
      %v2290 = vadd.f32 0.0, %v2289
      %v2291 = vpop.f32.mrb[0].mxu0
      %v2292 = vpop.f32.mrb[0].mxu0
      %v2293 = vadd.f32 0.0, %v2292
      %v2294 = vpop.f32.mrb[0].mxu0
      %2295 = vmatprep.mubr.bf16.mxu0 %v535
      %2296 = vmatmul.mubr.bf16.gmra.mrb[0].mxu0 %v530
      %v2297 = vpop.f32.mrb[0].mxu0
      %v2298 = vadd.f32 0.0, %v2297
      %v2299 = vpop.f32.mrb[0].mxu0
      %v2300 = vpop.f32.mrb[0].mxu0
      %v2301 = vadd.f32 0.0, %v2300
      %v2302 = vpop.f32.mrb[0].mxu0
      %2303 = vmatprep.mubr.bf16.mxu0 %v537
      %2304 = vmatmul.mubr.bf16.gmra.mrb[0].mxu0 %v532
      %v2305 = vpop.f32.mrb[0].mxu0
      %v2306 = vadd.f32 0.0, %v2305
      %v2307 = vpop.f32.mrb[0].mxu0
      %v2308 = vpop.f32.mrb[0].mxu0
      %v2309 = vadd.f32 0.0, %v2308
      %v2310 = vpop.f32.mrb[0].mxu0
      %2311 = vmatprep.mubr.bf16.mxu0 %v539
      %2312 = vmatmul.mubr.bf16.gmra.mrb[0].mxu0 %v534
      %v2313 = vpop.f32.mrb[0].mxu0
      %v2314 = vadd.f32 0.0, %v2313
      %v2315 = vpop.f32.mrb[0].mxu0
      %v2316 = vpop.f32.mrb[0].mxu0
      %v2317 = vadd.f32 0.0, %v2316
      %v2318 = vpop.f32.mrb[0].mxu0
      %2319 = vmatprep.mubr.bf16.mxu0 %v541
      %2320 = vmatmul.mubr.bf16.gmra.mrb[0].mxu0 %v536
      %v2321 = vpop.f32.mrb[0].mxu0
      %v2322 = vadd.f32 0.0, %v2321
      %v2323 = vpop.f32.mrb[0].mxu0
      %v2324 = vpop.f32.mrb[0].mxu0
      %v2325 = vadd.f32 0.0, %v2324
      %v2326 = vpop.f32.mrb[0].mxu0
      %2327 = vmatprep.mubr.bf16.mxu0 %v543
      %2328 = vmatmul.mubr.bf16.gmra.mrb[0].mxu0 %v538
      %v2329 = vpop.f32.mrb[0].mxu0
      %v2330 = vadd.f32 0.0, %v2329
      %v2331 = vpop.f32.mrb[0].mxu0
      %v2332 = vpop.f32.mrb[0].mxu0
      %v2333 = vadd.f32 0.0, %v2332
      %v2334 = vpop.f32.mrb[0].mxu0
      %2335 = vmatprep.mubr.bf16.mxu0 %v545
      %2336 = vmatmul.mubr.bf16.gmra.mrb[0].mxu0 %v540
      %v2337 = vpop.f32.mrb[0].mxu0
      %v2338 = vadd.f32 0.0, %v2337
      %v2339 = vpop.f32.mrb[0].mxu0
      %v2340 = vpop.f32.mrb[0].mxu0
      %v2341 = vadd.f32 0.0, %v2340
      %v2342 = vpop.f32.mrb[0].mxu0
      %2343 = vmatprep.mubr.bf16.mxu0 %v547
      %2344 = vmatmul.mubr.bf16.gmra.mrb[0].mxu0 %v542
      %v2345 = vpop.f32.mrb[0].mxu0
      %v2346 = vadd.f32 0.0, %v2345
      %v2347 = vpop.f32.mrb[0].mxu0
      %v2348 = vpop.f32.mrb[0].mxu0
      %v2349 = vadd.f32 0.0, %v2348
      %v2350 = vpop.f32.mrb[0].mxu0
      %2351 = vmatprep.mubr.bf16.mxu0 %v549
      %2352 = vmatmul.mubr.bf16.gmra.mrb[0].mxu0 %v544
      %v2353 = vpop.f32.mrb[0].mxu0
      %v2354 = vadd.f32 0.0, %v2353
      %v2355 = vpop.f32.mrb[0].mxu0
      %v2356 = vpop.f32.mrb[0].mxu0
      %v2357 = vadd.f32 0.0, %v2356
      %v2358 = vpop.f32.mrb[0].mxu0
      %2359 = vmatprep.mubr.bf16.mxu0 %v551
      %2360 = vmatmul.mubr.bf16.gmra.mrb[0].mxu0 %v546
      %v2361 = vpop.f32.mrb[0].mxu0
      %v2362 = vadd.f32 0.0, %v2361
      %v2363 = vpop.f32.mrb[0].mxu0
      %v2364 = vpop.f32.mrb[0].mxu0
      %v2365 = vadd.f32 0.0, %v2364
      %v2366 = vpop.f32.mrb[0].mxu0
      %2367 = vmatprep.mubr.bf16.mxu0 %v553
      %2368 = vmatmul.mubr.bf16.gmra.mrb[0].mxu0 %v548
      %v2369 = vpop.f32.mrb[0].mxu0
      %v2370 = vadd.f32 0.0, %v2369
      %v2371 = vpop.f32.mrb[0].mxu0
      %v2372 = vpop.f32.mrb[0].mxu0
      %v2373 = vadd.f32 0.0, %v2372
      %v2374 = vpop.f32.mrb[0].mxu0
      %2375 = vmatprep.mubr.bf16.mxu0 %v555
      %2376 = vmatmul.mubr.bf16.gmra.mrb[0].mxu0 %v550
      %v2377 = vpop.f32.mrb[0].mxu0
      %v2378 = vadd.f32 0.0, %v2377
      %v2379 = vpop.f32.mrb[0].mxu0
      %v2380 = vpop.f32.mrb[0].mxu0
      %v2381 = vadd.f32 0.0, %v2380
      %v2382 = vpop.f32.mrb[0].mxu0
      %2383 = vmatprep.mubr.bf16.mxu0 %v557
      %2384 = vmatmul.mubr.bf16.gmra.mrb[0].mxu0 %v552
      %v2385 = vpop.f32.mrb[0].mxu0
      %v2386 = vadd.f32 0.0, %v2385
      %v2387 = vpop.f32.mrb[0].mxu0
      %v2388 = vpop.f32.mrb[0].mxu0
      %v2389 = vadd.f32 0.0, %v2388
      %v2390 = vpop.f32.mrb[0].mxu0
      %2391 = vmatprep.mubr.bf16.mxu0 %v559
      %2392 = vmatmul.mubr.bf16.gmra.mrb[0].mxu0 %v554
      %v2393 = vpop.f32.mrb[0].mxu0
      %v2394 = vadd.f32 0.0, %v2393
      %v2395 = vpop.f32.mrb[0].mxu0
      %v2396 = vpop.f32.mrb[0].mxu0
      %v2397 = vadd.f32 0.0, %v2396
      %v2398 = vpop.f32.mrb[0].mxu0
      %2399 = vmatprep.mubr.bf16.mxu0 %v561
      %2400 = vmatmul.mubr.bf16.gmra.mrb[0].mxu0 %v556
      %v2401 = vpop.f32.mrb[0].mxu0
      %v2402 = vadd.f32 0.0, %v2401
      %v2403 = vpop.f32.mrb[0].mxu0
      %v2404 = vpop.f32.mrb[0].mxu0
      %v2405 = vadd.f32 0.0, %v2404
      %v2406 = vpop.f32.mrb[0].mxu0
      %2407 = vmatprep.mubr.bf16.mxu0 %v563
      %2408 = vmatmul.mubr.bf16.gmra.mrb[0].mxu0 %v558
      %v2409 = vpop.f32.mrb[0].mxu0
      %v2410 = vadd.f32 0.0, %v2409
      %v2411 = vpop.f32.mrb[0].mxu0
      %v2412 = vpop.f32.mrb[0].mxu0
      %v2413 = vadd.f32 0.0, %v2412
      %v2414 = vpop.f32.mrb[0].mxu0
      %2415 = vdwg.mxu0
      %2416 = vmatprep.subr.bf16.mxu0 0
      %2417 = vmatpush1.bf16.msra.mxu0 %v2159
      %2418 = vmatprep.subr.bf16.mxu0 0
      %2419 = vmatpush1.bf16.msra.mxu0 %v2160
      %2420 = vmatprep.subr.bf16.mxu0 0
      %2421 = vmatpush1.bf16.msra.mxu0 %v2161
      %2422 = vmatprep.subr.bf16.mxu0 0
      %2423 = vmatpush1.bf16.msra.mxu0 %v2162
      %2424 = vmatprep.subr.bf16.mxu0 0
      %2425 = vmatpush1.bf16.msra.mxu0 %v2163
      %2426 = vmatprep.subr.bf16.mxu0 0
      %2427 = vmatpush1.bf16.msra.mxu0 %v2164
      %2428 = vmatprep.subr.bf16.mxu0 0
      %2429 = vmatpush1.bf16.msra.mxu0 %v2165
      %2430 = vmatprep.subr.bf16.mxu0 0
      %2431 = vmatpush1.bf16.msra.mxu0 %v2166
      %2432 = vmatprep.subr.bf16.mxu0 0
      %2433 = vmatpush1.bf16.msra.mxu0 0
      %2434 = vmatprep.subr.bf16.mxu0 0
      %2435 = vmatpush1.bf16.msra.mxu0 0
      %2436 = vmatprep.subr.bf16.mxu0 0
      %2437 = vmatpush1.bf16.msra.mxu0 0
      %2438 = vmatprep.subr.bf16.mxu0 0
      %2439 = vmatpush1.bf16.msra.mxu0 0
      %2440 = vmatprep.subr.bf16.mxu0 0
      %2441 = vmatpush1.bf16.msra.mxu0 0
      %2442 = vmatprep.subr.bf16.mxu0 0
      %2443 = vmatpush1.bf16.msra.mxu0 0
      %2444 = vmatprep.subr.bf16.mxu0 0
      %2445 = vmatpush1.bf16.msra.mxu0 0
      %2446 = vmatprep.subr.bf16.mxu0 0
      %2447 = vmatpush1.bf16.msra.mxu0 0
      %2448 = vmatprep.mubr.bf16.mxu0 0
      %2449 = vmatmul.mubr.bf16.gmra.mrb[0].mxu0 %v516
      %v2450 = vpop.f32.mrb[0].mxu0
      %v2451 = vadd.f32 %v2226, %v2450
      %v2452 = vpop.f32.mrb[0].mxu0
      %v2453 = vpop.f32.mrb[0].mxu0
      %v2454 = vadd.f32 %v2229, %v2453
      %v2455 = vpop.f32.mrb[0].mxu0
      %2456 = vmatprep.mubr.bf16.mxu0 0
      %2457 = vmatmul.mubr.bf16.gmra.mrb[0].mxu0 %v519
      %v2458 = vpop.f32.mrb[0].mxu0
      %v2459 = vadd.f32 %v2234, %v2458
      %v2460 = vpop.f32.mrb[0].mxu0
      %v2461 = vpop.f32.mrb[0].mxu0
      %v2462 = vadd.f32 %v2237, %v2461
      %v2463 = vpop.f32.mrb[0].mxu0
      %2464 = vmatprep.mubr.bf16.mxu0 0
      %2465 = vmatmul.mubr.bf16.gmra.mrb[0].mxu0 %v522
      %v2466 = vpop.f32.mrb[0].mxu0
      %v2467 = vadd.f32 %v2242, %v2466
      %v2468 = vpop.f32.mrb[0].mxu0
      %v2469 = vpop.f32.mrb[0].mxu0
      %v2470 = vadd.f32 %v2245, %v2469
      %v2471 = vpop.f32.mrb[0].mxu0
      %2472 = vmatprep.mubr.bf16.mxu0 0
      %2473 = vmatmul.mubr.bf16.gmra.mrb[0].mxu0 %v524
      %v2474 = vpop.f32.mrb[0].mxu0
      %v2475 = vadd.f32 %v2250, %v2474
      %v2476 = vpop.f32.mrb[0].mxu0
      %v2477 = vpop.f32.mrb[0].mxu0
      %v2478 = vadd.f32 %v2253, %v2477
      %v2479 = vpop.f32.mrb[0].mxu0
      %2480 = vmatprep.mubr.bf16.mxu0 0
      %2481 = vmatmul.mubr.bf16.gmra.mrb[0].mxu0 %v526
      %v2482 = vpop.f32.mrb[0].mxu0
      %v2483 = vadd.f32 %v2258, %v2482
      %v2484 = vpop.f32.mrb[0].mxu0
      %v2485 = vpop.f32.mrb[0].mxu0
      %v2486 = vadd.f32 %v2261, %v2485
      %v2487 = vpop.f32.mrb[0].mxu0
      %2488 = vmatprep.mubr.bf16.mxu0 0
      %2489 = vmatmul.mubr.bf16.gmra.mrb[0].mxu0 %v528
      %v2490 = vpop.f32.mrb[0].mxu0
      %v2491 = vadd.f32 %v2266, %v2490
      %v2492 = vpop.f32.mrb[0].mxu0
      %v2493 = vpop.f32.mrb[0].mxu0
      %v2494 = vadd.f32 %v2269, %v2493
      %v2495 = vpop.f32.mrb[0].mxu0
      %2496 = vmatprep.mubr.bf16.mxu0 0
      %2497 = vmatmul.mubr.bf16.gmra.mrb[0].mxu0 %v530
      %v2498 = vpop.f32.mrb[0].mxu0
      %v2499 = vadd.f32 %v2274, %v2498
      %v2500 = vpop.f32.mrb[0].mxu0
      %v2501 = vpop.f32.mrb[0].mxu0
      %v2502 = vadd.f32 %v2277, %v2501
      %v2503 = vpop.f32.mrb[0].mxu0
      %2504 = vmatprep.mubr.bf16.mxu0 0
      %2505 = vmatmul.mubr.bf16.gmra.mrb[0].mxu0 %v532
      %v2506 = vpop.f32.mrb[0].mxu0
      %v2507 = vadd.f32 %v2282, %v2506
      %v2508 = vpop.f32.mrb[0].mxu0
      %v2509 = vpop.f32.mrb[0].mxu0
      %v2510 = vadd.f32 %v2285, %v2509
      %v2511 = vpop.f32.mrb[0].mxu0
      %2512 = vmatprep.mubr.bf16.mxu0 0
      %2513 = vmatmul.mubr.bf16.gmra.mrb[0].mxu0 %v534
      %v2514 = vpop.f32.mrb[0].mxu0
      %v2515 = vadd.f32 %v2290, %v2514
      %v2516 = vpop.f32.mrb[0].mxu0
      %v2517 = vpop.f32.mrb[0].mxu0
      %v2518 = vadd.f32 %v2293, %v2517
      %v2519 = vpop.f32.mrb[0].mxu0
      %2520 = vmatprep.mubr.bf16.mxu0 0
      %2521 = vmatmul.mubr.bf16.gmra.mrb[0].mxu0 %v536
      %v2522 = vpop.f32.mrb[0].mxu0
      %v2523 = vadd.f32 %v2298, %v2522
      %v2524 = vpop.f32.mrb[0].mxu0
      %v2525 = vpop.f32.mrb[0].mxu0
      %v2526 = vadd.f32 %v2301, %v2525
      %v2527 = vpop.f32.mrb[0].mxu0
      %2528 = vmatprep.mubr.bf16.mxu0 0
      %2529 = vmatmul.mubr.bf16.gmra.mrb[0].mxu0 %v538
      %v2530 = vpop.f32.mrb[0].mxu0
      %v2531 = vadd.f32 %v2306, %v2530
      %v2532 = vpop.f32.mrb[0].mxu0
      %v2533 = vpop.f32.mrb[0].mxu0
      %v2534 = vadd.f32 %v2309, %v2533
      %v2535 = vpop.f32.mrb[0].mxu0
      %2536 = vmatprep.mubr.bf16.mxu0 0
      %2537 = vmatmul.mubr.bf16.gmra.mrb[0].mxu0 %v540
      %v2538 = vpop.f32.mrb[0].mxu0
      %v2539 = vadd.f32 %v2314, %v2538
      %v2540 = vpop.f32.mrb[0].mxu0
      %v2541 = vpop.f32.mrb[0].mxu0
      %v2542 = vadd.f32 %v2317, %v2541
      %v2543 = vpop.f32.mrb[0].mxu0
      %2544 = vmatprep.mubr.bf16.mxu0 0
      %2545 = vmatmul.mubr.bf16.gmra.mrb[0].mxu0 %v542
      %v2546 = vpop.f32.mrb[0].mxu0
      %v2547 = vadd.f32 %v2322, %v2546
      %v2548 = vpop.f32.mrb[0].mxu0
      %v2549 = vpop.f32.mrb[0].mxu0
      %v2550 = vadd.f32 %v2325, %v2549
      %v2551 = vpop.f32.mrb[0].mxu0
      %2552 = vmatprep.mubr.bf16.mxu0 0
      %2553 = vmatmul.mubr.bf16.gmra.mrb[0].mxu0 %v544
      %v2554 = vpop.f32.mrb[0].mxu0
      %v2555 = vadd.f32 %v2330, %v2554
      %v2556 = vpop.f32.mrb[0].mxu0
      %v2557 = vpop.f32.mrb[0].mxu0
      %v2558 = vadd.f32 %v2333, %v2557
      %v2559 = vpop.f32.mrb[0].mxu0
      %2560 = vmatprep.mubr.bf16.mxu0 0
      %2561 = vmatmul.mubr.bf16.gmra.mrb[0].mxu0 %v546
      %v2562 = vpop.f32.mrb[0].mxu0
      %v2563 = vadd.f32 %v2338, %v2562
      %v2564 = vpop.f32.mrb[0].mxu0
      %v2565 = vpop.f32.mrb[0].mxu0
      %v2566 = vadd.f32 %v2341, %v2565
      %v2567 = vpop.f32.mrb[0].mxu0
      %2568 = vmatprep.mubr.bf16.mxu0 0
      %2569 = vmatmul.mubr.bf16.gmra.mrb[0].mxu0 %v548
      %v2570 = vpop.f32.mrb[0].mxu0
      %v2571 = vadd.f32 %v2346, %v2570
      %v2572 = vpop.f32.mrb[0].mxu0
      %v2573 = vpop.f32.mrb[0].mxu0
      %v2574 = vadd.f32 %v2349, %v2573
      %v2575 = vpop.f32.mrb[0].mxu0
      %2576 = vmatprep.mubr.bf16.mxu0 0
      %2577 = vmatmul.mubr.bf16.gmra.mrb[0].mxu0 %v550
      %v2578 = vpop.f32.mrb[0].mxu0
      %v2579 = vadd.f32 %v2354, %v2578
      %v2580 = vpop.f32.mrb[0].mxu0
      %v2581 = vpop.f32.mrb[0].mxu0
      %v2582 = vadd.f32 %v2357, %v2581
      %v2583 = vpop.f32.mrb[0].mxu0
      %2584 = vmatprep.mubr.bf16.mxu0 0
      %2585 = vmatmul.mubr.bf16.gmra.mrb[0].mxu0 %v552
      %v2586 = vpop.f32.mrb[0].mxu0
      %v2587 = vadd.f32 %v2362, %v2586
      %v2588 = vpop.f32.mrb[0].mxu0
      %v2589 = vpop.f32.mrb[0].mxu0
      %v2590 = vadd.f32 %v2365, %v2589
      %v2591 = vpop.f32.mrb[0].mxu0
      %2592 = vmatprep.mubr.bf16.mxu0 0
      %2593 = vmatmul.mubr.bf16.gmra.mrb[0].mxu0 %v554
      %v2594 = vpop.f32.mrb[0].mxu0
      %v2595 = vadd.f32 %v2370, %v2594
      %v2596 = vpop.f32.mrb[0].mxu0
      %v2597 = vpop.f32.mrb[0].mxu0
      %v2598 = vadd.f32 %v2373, %v2597
      %v2599 = vpop.f32.mrb[0].mxu0
      %2600 = vmatprep.mubr.bf16.mxu0 0
      %2601 = vmatmul.mubr.bf16.gmra.mrb[0].mxu0 %v556
      %v2602 = vpop.f32.mrb[0].mxu0
      %v2603 = vadd.f32 %v2378, %v2602
      %v2604 = vpop.f32.mrb[0].mxu0
      %v2605 = vpop.f32.mrb[0].mxu0
      %v2606 = vadd.f32 %v2381, %v2605
      %v2607 = vpop.f32.mrb[0].mxu0
      %2608 = vmatprep.mubr.bf16.mxu0 0
      %2609 = vmatmul.mubr.bf16.gmra.mrb[0].mxu0 %v558
      %v2610 = vpop.f32.mrb[0].mxu0
      %v2611 = vadd.f32 %v2386, %v2610
      %v2612 = vpop.f32.mrb[0].mxu0
      %v2613 = vpop.f32.mrb[0].mxu0
      %v2614 = vadd.f32 %v2389, %v2613
      %v2615 = vpop.f32.mrb[0].mxu0
      %2616 = vmatprep.mubr.bf16.mxu0 0
      %2617 = vmatmul.mubr.bf16.gmra.mrb[0].mxu0 %v560
      %v2618 = vpop.f32.mrb[0].mxu0
      %v2619 = vadd.f32 %v2394, %v2618
      %v2620 = vpop.f32.mrb[0].mxu0
      %v2621 = vpop.f32.mrb[0].mxu0
      %v2622 = vadd.f32 %v2397, %v2621
      %v2623 = vpop.f32.mrb[0].mxu0
      %2624 = vmatprep.mubr.bf16.mxu0 0
      %2625 = vmatmul.mubr.bf16.gmra.mrb[0].mxu0 %v562
      %v2626 = vpop.f32.mrb[0].mxu0
      %v2627 = vadd.f32 %v2402, %v2626
      %v2628 = vpop.f32.mrb[0].mxu0
      %v2629 = vpop.f32.mrb[0].mxu0
      %v2630 = vadd.f32 %v2405, %v2629
      %v2631 = vpop.f32.mrb[0].mxu0
      %2632 = vmatprep.mubr.bf16.mxu0 0
      %2633 = vmatmul.mubr.bf16.gmra.mrb[0].mxu0 %v564
      %v2634 = vpop.f32.mrb[0].mxu0
      %v2635 = vadd.f32 %v2410, %v2634
      %v2636 = vpop.f32.mrb[0].mxu0
      %v2637 = vpop.f32.mrb[0].mxu0
      %v2638 = vadd.f32 %v2413, %v2637
      %v2639 = vpop.f32.mrb[0].mxu0
      %2640 = vdwg.mxu0
      %v2641 = vrot.slane %v2451, 1
      %v2642 = vrot.slane %v2454, 1
      %v2643 = vrot.slane %v2459, 1
      %v2644 = vrot.slane %v2462, 1
      %v2645 = vrot.slane %v2467, 1
      %v2646 = vrot.slane %v2470, 1
      %v2647 = vrot.slane %v2475, 1
      %v2648 = vrot.slane %v2478, 1
      %v2649 = vrot.slane %v2483, 1
      %v2650 = vrot.slane %v2486, 1
      %v2651 = vrot.slane %v2491, 1
      %v2652 = vrot.slane %v2494, 1
      %v2653 = vrot.slane %v2499, 1
      %v2654 = vrot.slane %v2502, 1
      %v2655 = vrot.slane %v2507, 1
      %v2656 = vrot.slane %v2510, 1
      %v2657 = vrot.slane %v2515, 1
      %v2658 = vrot.slane %v2518, 1
      %v2659 = vrot.slane %v2523, 1
      %v2660 = vrot.slane %v2526, 1
      %v2661 = vrot.slane %v2531, 1
      %v2662 = vrot.slane %v2534, 1
      %v2663 = vrot.slane %v2539, 1
      %v2664 = vrot.slane %v2542, 1
      %v2665 = vrot.slane %v2547, 1
      %v2666 = vrot.slane %v2550, 1
      %v2667 = vrot.slane %v2555, 1
      %v2668 = vrot.slane %v2558, 1
      %v2669 = vrot.slane %v2563, 1
      %v2670 = vrot.slane %v2566, 1
      %v2671 = vrot.slane %v2571, 1
      %v2672 = vrot.slane %v2574, 1
      %v2673 = vrot.slane %v2579, 1
      %v2674 = vrot.slane %v2582, 1
      %v2675 = vrot.slane %v2587, 1
      %v2676 = vrot.slane %v2590, 1
      %v2677 = vrot.slane %v2595, 1
      %v2678 = vrot.slane %v2598, 1
      %v2679 = vrot.slane %v2603, 1
      %v2680 = vrot.slane %v2606, 1
      %v2681 = vrot.slane %v2611, 1
      %v2682 = vrot.slane %v2614, 1
      %v2683 = vrot.slane %v2619, 1
      %v2684 = vrot.slane %v2622, 1
      %v2685 = vrot.slane %v2627, 1
      %v2686 = vrot.slane %v2630, 1
      %v2687 = vrot.slane %v2635, 1
      %v2688 = vrot.slane %v2638, 1
      %vm2689 = vcmp.lt.s32.totalorder %v1259, 7
      %v2690 = vsel %vm2689, %v2687, %v2688
      %v2691 = vsel %vm2689, %v2686, %v2687
      %v2692 = vsel %vm2689, %v2685, %v2686
      %v2693 = vsel %vm2689, %v2684, %v2685
      %v2694 = vsel %vm2689, %v2683, %v2684
      %v2695 = vsel %vm2689, %v2682, %v2683
      %v2696 = vsel %vm2689, %v2681, %v2682
      %v2697 = vsel %vm2689, %v2680, %v2681
      %v2698 = vsel %vm2689, %v2679, %v2680
      %v2699 = vsel %vm2689, %v2678, %v2679
      %v2700 = vsel %vm2689, %v2677, %v2678
      %v2701 = vsel %vm2689, %v2676, %v2677
      %v2702 = vsel %vm2689, %v2675, %v2676
      %v2703 = vsel %vm2689, %v2674, %v2675
      %v2704 = vsel %vm2689, %v2673, %v2674
      %v2705 = vsel %vm2689, %v2672, %v2673
      %v2706 = vsel %vm2689, %v2671, %v2672
      %v2707 = vsel %vm2689, %v2670, %v2671
      %v2708 = vsel %vm2689, %v2669, %v2670
      %v2709 = vsel %vm2689, %v2668, %v2669
      %v2710 = vsel %vm2689, %v2667, %v2668
      %v2711 = vsel %vm2689, %v2666, %v2667
      %v2712 = vsel %vm2689, %v2665, %v2666
      %v2713 = vsel %vm2689, %v2664, %v2665
      %v2714 = vsel %vm2689, %v2663, %v2664
      %v2715 = vsel %vm2689, %v2662, %v2663
      %v2716 = vsel %vm2689, %v2661, %v2662
      %v2717 = vsel %vm2689, %v2660, %v2661
      %v2718 = vsel %vm2689, %v2659, %v2660
      %v2719 = vsel %vm2689, %v2658, %v2659
      %v2720 = vsel %vm2689, %v2657, %v2658
      %v2721 = vsel %vm2689, %v2656, %v2657
      %v2722 = vsel %vm2689, %v2655, %v2656
      %v2723 = vsel %vm2689, %v2654, %v2655
      %v2724 = vsel %vm2689, %v2653, %v2654
      %v2725 = vsel %vm2689, %v2652, %v2653
      %v2726 = vsel %vm2689, %v2651, %v2652
      %v2727 = vsel %vm2689, %v2650, %v2651
      %v2728 = vsel %vm2689, %v2649, %v2650
      %v2729 = vsel %vm2689, %v2648, %v2649
      %v2730 = vsel %vm2689, %v2647, %v2648
      %v2731 = vsel %vm2689, %v2646, %v2647
      %v2732 = vsel %vm2689, %v2645, %v2646
      %v2733 = vsel %vm2689, %v2644, %v2645
      %v2734 = vsel %vm2689, %v2643, %v2644
      %v2735 = vsel %vm2689, %v2642, %v2643
      %v2736 = vsel %vm2689, %v2641, %v2642
      %v2737 = vsel %vm2689, %v2688, %v2641
      %v2738 = vadd.f32 %v1951, %v2736
      %v2739 = vadd.f32 %v1952, %v2735
      %v2740 = vadd.f32 %v1953, %v2734
      %v2741 = vadd.f32 %v1954, %v2733
      %v2742 = vadd.f32 %v1955, %v2732
      %v2743 = vadd.f32 %v1956, %v2731
      %v2744 = vadd.f32 %v1957, %v2730
      %v2745 = vadd.f32 %v1958, %v2729
      %v2746 = vadd.f32 %v1959, %v2728
      %v2747 = vadd.f32 %v1960, %v2727
      %v2748 = vadd.f32 %v1961, %v2726
      %v2749 = vadd.f32 %v1962, %v2725
      %v2750 = vadd.f32 %v1963, %v2724
      %v2751 = vadd.f32 %v1964, %v2723
      %v2752 = vadd.f32 %v1965, %v2722
      %v2753 = vadd.f32 %v1966, %v2721
      %v2754 = vadd.f32 %v1967, %v2720
      %v2755 = vadd.f32 %v1968, %v2719
      %v2756 = vadd.f32 %v1969, %v2718
      %v2757 = vadd.f32 %v1970, %v2717
      %v2758 = vadd.f32 %v1971, %v2716
      %v2759 = vadd.f32 %v1972, %v2715
      %v2760 = vadd.f32 %v1973, %v2714
      %v2761 = vadd.f32 %v1974, %v2713
      %v2762 = vadd.f32 %v1975, %v2712
      %v2763 = vadd.f32 %v1976, %v2711
      %v2764 = vadd.f32 %v1977, %v2710
      %v2765 = vadd.f32 %v1978, %v2709
      %v2766 = vadd.f32 %v1979, %v2708
      %v2767 = vadd.f32 %v1980, %v2707
      %v2768 = vadd.f32 %v1981, %v2706
      %v2769 = vadd.f32 %v1982, %v2705
      %v2770 = vadd.f32 %v1983, %v2704
      %v2771 = vadd.f32 %v1984, %v2703
      %v2772 = vadd.f32 %v1985, %v2702
      %v2773 = vadd.f32 %v1986, %v2701
      %v2774 = vadd.f32 %v1987, %v2700
      %v2775 = vadd.f32 %v1988, %v2699
      %v2776 = vadd.f32 %v1989, %v2698
      %v2777 = vadd.f32 %v1990, %v2697
      %v2778 = vadd.f32 %v1991, %v2696
      %v2779 = vadd.f32 %v1992, %v2695
      %v2780 = vadd.f32 %v1993, %v2694
      %v2781 = vadd.f32 %v1994, %v2693
      %v2782 = vadd.f32 %v1995, %v2692
      %v2783 = vadd.f32 %v1996, %v2691
      %v2784 = vadd.f32 %v1997, %v2690
      %v2785 = vadd.f32 %v1998, %v2737
      %v2786 = vld [vmem:[%s3] sm:$0x1]
      %v2788 = vlaneseq
      %v2789 = vshrl.u32 %v2788, 7
      %v2790 = vsub.s32 0, %v2789
      %v2791 = vrot.slane %v2786, %v2790
      %v2793 = vmul.f32 %v2738, %v2791
      %v2794 = vmul.f32 %v2739, %v2791
      %v2795 = vmul.f32 %v2740, %v2791
      %v2796 = vmul.f32 %v2741, %v2791
      %v2797 = vmul.f32 %v2742, %v2791
      %v2798 = vmul.f32 %v2743, %v2791
      %v2799 = vmul.f32 %v2744, %v2791
      %v2800 = vmul.f32 %v2745, %v2791
      %v2801 = vmul.f32 %v2746, %v2791
      %v2802 = vmul.f32 %v2747, %v2791
      %v2803 = vmul.f32 %v2748, %v2791
      %v2804 = vmul.f32 %v2749, %v2791
      %v2805 = vmul.f32 %v2750, %v2791
      %v2806 = vmul.f32 %v2751, %v2791
      %v2807 = vmul.f32 %v2752, %v2791
      %v2808 = vmul.f32 %v2753, %v2791
      %v2809 = vmul.f32 %v2754, %v2791
      %v2810 = vmul.f32 %v2755, %v2791
      %v2811 = vmul.f32 %v2756, %v2791
      %v2812 = vmul.f32 %v2757, %v2791
      %v2813 = vmul.f32 %v2758, %v2791
      %v2814 = vmul.f32 %v2759, %v2791
      %v2815 = vmul.f32 %v2760, %v2791
      %v2816 = vmul.f32 %v2761, %v2791
      %v2817 = vmul.f32 %v2762, %v2791
      %v2818 = vmul.f32 %v2763, %v2791
      %v2819 = vmul.f32 %v2764, %v2791
      %v2820 = vmul.f32 %v2765, %v2791
      %v2821 = vmul.f32 %v2766, %v2791
      %v2822 = vmul.f32 %v2767, %v2791
      %v2823 = vmul.f32 %v2768, %v2791
      %v2824 = vmul.f32 %v2769, %v2791
      %v2825 = vmul.f32 %v2770, %v2791
      %v2826 = vmul.f32 %v2771, %v2791
      %v2827 = vmul.f32 %v2772, %v2791
      %v2828 = vmul.f32 %v2773, %v2791
      %v2829 = vmul.f32 %v2774, %v2791
      %v2830 = vmul.f32 %v2775, %v2791
      %v2831 = vmul.f32 %v2776, %v2791
      %v2832 = vmul.f32 %v2777, %v2791
      %v2833 = vmul.f32 %v2778, %v2791
      %v2834 = vmul.f32 %v2779, %v2791
      %v2835 = vmul.f32 %v2780, %v2791
      %v2836 = vmul.f32 %v2781, %v2791
      %v2837 = vmul.f32 %v2782, %v2791
      %v2838 = vmul.f32 %v2783, %v2791
      %v2839 = vmul.f32 %v2784, %v2791
      %v2840 = vmul.f32 %v2785, %v2791
      %v2841 = vld [vmem:[%s4] sm:$0x1]
      %v2843 = vlaneseq
      %v2844 = vshrl.u32 %v2843, 7
      %v2845 = vsub.s32 0, %v2844
      %v2846 = vrot.slane %v2841, %v2845
      %v2848 = vadd.f32 %v2793, %v2846
      %v2849 = vadd.f32 %v2794, %v2846
      %v2850 = vadd.f32 %v2795, %v2846
      %v2851 = vadd.f32 %v2796, %v2846
      %v2852 = vadd.f32 %v2797, %v2846
      %v2853 = vadd.f32 %v2798, %v2846
      %v2854 = vadd.f32 %v2799, %v2846
      %v2855 = vadd.f32 %v2800, %v2846
      %v2856 = vadd.f32 %v2801, %v2846
      %v2857 = vadd.f32 %v2802, %v2846
      %v2858 = vadd.f32 %v2803, %v2846
      %v2859 = vadd.f32 %v2804, %v2846
      %v2860 = vadd.f32 %v2805, %v2846
      %v2861 = vadd.f32 %v2806, %v2846
      %v2862 = vadd.f32 %v2807, %v2846
      %v2863 = vadd.f32 %v2808, %v2846
      %v2864 = vadd.f32 %v2809, %v2846
      %v2865 = vadd.f32 %v2810, %v2846
      %v2866 = vadd.f32 %v2811, %v2846
      %v2867 = vadd.f32 %v2812, %v2846
      %v2868 = vadd.f32 %v2813, %v2846
      %v2869 = vadd.f32 %v2814, %v2846
      %v2870 = vadd.f32 %v2815, %v2846
      %v2871 = vadd.f32 %v2816, %v2846
      %v2872 = vadd.f32 %v2817, %v2846
      %v2873 = vadd.f32 %v2818, %v2846
      %v2874 = vadd.f32 %v2819, %v2846
      %v2875 = vadd.f32 %v2820, %v2846
      %v2876 = vadd.f32 %v2821, %v2846
      %v2877 = vadd.f32 %v2822, %v2846
      %v2878 = vadd.f32 %v2823, %v2846
      %v2879 = vadd.f32 %v2824, %v2846
      %v2880 = vadd.f32 %v2825, %v2846
      %v2881 = vadd.f32 %v2826, %v2846
      %v2882 = vadd.f32 %v2827, %v2846
      %v2883 = vadd.f32 %v2828, %v2846
      %v2884 = vadd.f32 %v2829, %v2846
      %v2885 = vadd.f32 %v2830, %v2846
      %v2886 = vadd.f32 %v2831, %v2846
      %v2887 = vadd.f32 %v2832, %v2846
      %v2888 = vadd.f32 %v2833, %v2846
      %v2889 = vadd.f32 %v2834, %v2846
      %v2890 = vadd.f32 %v2835, %v2846
      %v2891 = vadd.f32 %v2836, %v2846
      %v2892 = vadd.f32 %v2837, %v2846
      %v2893 = vadd.f32 %v2838, %v2846
      %v2894 = vadd.f32 %v2839, %v2846
      %v2895 = vadd.f32 %v2840, %v2846
      %v2896 = vmax.f32 %v2848, 0.0
      %v2897 = vmax.f32 %v2849, 0.0
      %v2898 = vmax.f32 %v2850, 0.0
      %v2899 = vmax.f32 %v2851, 0.0
      %v2900 = vmax.f32 %v2852, 0.0
      %v2901 = vmax.f32 %v2853, 0.0
      %v2902 = vmax.f32 %v2854, 0.0
      %v2903 = vmax.f32 %v2855, 0.0
      %v2904 = vmax.f32 %v2856, 0.0
      %v2905 = vmax.f32 %v2857, 0.0
      %v2906 = vmax.f32 %v2858, 0.0
      %v2907 = vmax.f32 %v2859, 0.0
      %v2908 = vmax.f32 %v2860, 0.0
      %v2909 = vmax.f32 %v2861, 0.0
      %v2910 = vmax.f32 %v2862, 0.0
      %v2911 = vmax.f32 %v2863, 0.0
      %v2912 = vmax.f32 %v2864, 0.0
      %v2913 = vmax.f32 %v2865, 0.0
      %v2914 = vmax.f32 %v2866, 0.0
      %v2915 = vmax.f32 %v2867, 0.0
      %v2916 = vmax.f32 %v2868, 0.0
      %v2917 = vmax.f32 %v2869, 0.0
      %v2918 = vmax.f32 %v2870, 0.0
      %v2919 = vmax.f32 %v2871, 0.0
      %v2920 = vmax.f32 %v2872, 0.0
      %v2921 = vmax.f32 %v2873, 0.0
      %v2922 = vmax.f32 %v2874, 0.0
      %v2923 = vmax.f32 %v2875, 0.0
      %v2924 = vmax.f32 %v2876, 0.0
      %v2925 = vmax.f32 %v2877, 0.0
      %v2926 = vmax.f32 %v2878, 0.0
      %v2927 = vmax.f32 %v2879, 0.0
      %v2928 = vmax.f32 %v2880, 0.0
      %v2929 = vmax.f32 %v2881, 0.0
      %v2930 = vmax.f32 %v2882, 0.0
      %v2931 = vmax.f32 %v2883, 0.0
      %v2932 = vmax.f32 %v2884, 0.0
      %v2933 = vmax.f32 %v2885, 0.0
      %v2934 = vmax.f32 %v2886, 0.0
      %v2935 = vmax.f32 %v2887, 0.0
      %v2936 = vmax.f32 %v2888, 0.0
      %v2937 = vmax.f32 %v2889, 0.0
      %v2938 = vmax.f32 %v2890, 0.0
      %v2939 = vmax.f32 %v2891, 0.0
      %v2940 = vmax.f32 %v2892, 0.0
      %v2941 = vmax.f32 %v2893, 0.0
      %v2942 = vmax.f32 %v2894, 0.0
      %v2943 = vmax.f32 %v2895, 0.0
      %2944 = vst [vmem:[%s301 - $0x1] sm:$0xfe] %v2896
      %2945 = vst [vmem:[%s301 + $0x7] sm:$0xff] %v2897
      %2946 = vst [vmem:[%s301 + $0xf] sm:$0x1] %v2898
      %2947 = vst [vmem:[%s301 + $0xf] sm:$0xfe] %v2899
      %2948 = vst [vmem:[%s301 + $0x17] sm:$0xff] %v2900
      %2949 = vst [vmem:[%s301 + $0x1f] sm:$0x1] %v2901
      %2950 = vst [vmem:[%s301 + $0x1f] sm:$0xfe] %v2902
      %2951 = vst [vmem:[%s301 + $0x27] sm:$0xff] %v2903
      %2952 = vst [vmem:[%s301 + $0x2f] sm:$0x1] %v2904
      %2953 = vst [vmem:[%s301 + $0x2f] sm:$0xfe] %v2905
      %2954 = vst [vmem:[%s301 + $0x37] sm:$0xff] %v2906
      %2955 = vst [vmem:[%s301 + $0x3f] sm:$0x1] %v2907
      %2956 = vst [vmem:[%s301 + $0x3f] sm:$0xfe] %v2908
      %2957 = vst [vmem:[%s301 + $0x47] sm:$0xff] %v2909
      %2958 = vst [vmem:[%s301 + $0x4f] sm:$0x1] %v2910
      %2959 = vst [vmem:[%s301 + $0x4f] sm:$0xfe] %v2911
      %2960 = vst [vmem:[%s301 + $0x57] sm:$0xff] %v2912
      %2961 = vst [vmem:[%s301 + $0x5f] sm:$0x1] %v2913
      %2962 = vst [vmem:[%s301 + $0x5f] sm:$0xfe] %v2914
      %2963 = vst [vmem:[%s301 + $0x67] sm:$0xff] %v2915
      %2964 = vst [vmem:[%s301 + $0x6f] sm:$0x1] %v2916
      %2965 = vst [vmem:[%s301 + $0x6f] sm:$0xfe] %v2917
      %2966 = vst [vmem:[%s301 + $0x77] sm:$0xff] %v2918
      %2967 = vst [vmem:[%s301 + $0x7f] sm:$0x1] %v2919
      %2968 = vst [vmem:[%s301 + $0x7f] sm:$0xfe] %v2920
      %2969 = vst [vmem:[%s301 + $0x87] sm:$0xff] %v2921
      %2970 = vst [vmem:[%s301 + $0x8f] sm:$0x1] %v2922
      %2971 = vst [vmem:[%s301 + $0x8f] sm:$0xfe] %v2923
      %2972 = vst [vmem:[%s301 + $0x97] sm:$0xff] %v2924
      %2973 = vst [vmem:[%s301 + $0x9f] sm:$0x1] %v2925
      %2974 = vst [vmem:[%s301 + $0x9f] sm:$0xfe] %v2926
      %2975 = vst [vmem:[%s301 + $0xa7] sm:$0xff] %v2927
      %2976 = vst [vmem:[%s301 + $0xaf] sm:$0x1] %v2928
      %2977 = vst [vmem:[%s301 + $0xaf] sm:$0xfe] %v2929
      %2978 = vst [vmem:[%s301 + $0xb7] sm:$0xff] %v2930
      %2979 = vst [vmem:[%s301 + $0xbf] sm:$0x1] %v2931
      %2980 = vst [vmem:[%s301 + $0xbf] sm:$0xfe] %v2932
      %2981 = vst [vmem:[%s301 + $0xc7] sm:$0xff] %v2933
      %2982 = vst [vmem:[%s301 + $0xcf] sm:$0x1] %v2934
      %2983 = vst [vmem:[%s301 + $0xcf] sm:$0xfe] %v2935
      %2984 = vst [vmem:[%s301 + $0xd7] sm:$0xff] %v2936
      %2985 = vst [vmem:[%s301 + $0xdf] sm:$0x1] %v2937
      %2986 = vst [vmem:[%s301 + $0xdf] sm:$0xfe] %v2938
      %2987 = vst [vmem:[%s301 + $0xe7] sm:$0xff] %v2939
      %2988 = vst [vmem:[%s301 + $0xef] sm:$0x1] %v2940
      %2989 = vst [vmem:[%s301 + $0xef] sm:$0xfe] %v2941
      %2990 = vst [vmem:[%s301 + $0xf7] sm:$0xff] %v2942
      %2991 = vst [vmem:[%s301 + $0xff] sm:$0x1] %v2943
      %s2992 = smul.u32 16, %s21
      %p2993 = scmp.lt.s32.totalorder %s20, 1
      %s2994 = scalar_select %p2993, %s20, 1
      %p2995 = scmp.lt.s32.totalorder %s2992, 15
      %s2996 = scalar_select %p2995, %s2992, 15
      %s2997 = smul.addr %s2996, 2
      %s2998 = smul.addr %s2994, 32
      %s2999 = sadd.s32 %s2997, %s2998
      %s3000 = smul.addr %s2999, 8
      %s3001 = scalar_lea.vmem %s5, %s3000
      // Predicated region
      $region41: #{_lambda_.5} parent=39 // pred_check
        %p3002 = pneg %p167
      $region42: #{_lambda_.5} parent=39 // pred_check_branch
        %3004 = sbr.rel (%p3002) target = $region44
      $region43: #{_lambda_.5} parent=39 // pred_region
        %s3005 = smul.u32 16, %s21
      $region44: #{_lambda_.5} parent=39 // pred_fallthru
        _
    $region40: #{_lambda_.5} parent=5 // pred_fallthru
      _
    %p3006 = scmp.le.s32.totalorder 2, %s11
    // Predicated region
    $region45: #{_lambda_.5} parent=5 // pred_check
      %p3007 = pneg %p3006
    $region46: #{_lambda_.5} parent=5 // pred_check_branch
      %3009 = sbr.rel (%p3007) target = $region48
    $region47: #{_lambda_.5} parent=5 // pred_region
      %s3010 = ssub.s32 %s11, 2
      // Predicated region
      $region49: #{_lambda_.5} parent=47 // pred_check
        %p3011 = pneg %p173
      $region50: #{_lambda_.5} parent=47 // pred_check_branch
        %3013 = sbr.rel (%p3011) target = $region52
      $region51: #{_lambda_.5} parent=47 // pred_region
        %s3014 = smul.u32 16, %s23
        %p3015 = scmp.lt.s32.totalorder %s22, 1
        %s3016 = scalar_select %p3015, %s22, 1
        %p3017 = scmp.lt.s32.totalorder %s3014, 15
        %s3018 = scalar_select %p3017, %s3014, 15
        %s3019 = smul.addr %s3018, 2
        %s3020 = smul.addr %s3016, 32
        %s3021 = sadd.s32 %s3019, %s3020
        %s3022 = smul.addr %s3021, 8
        %s3023 = scalar_lea.vmem %s5, %s3022
      $region52: #{_lambda_.5} parent=47 // pred_fallthru
        _
    $region48: #{_lambda_.5} parent=5 // pred_fallthru
      _
  $region6: #{_lambda_.5} parent=0 // loop_footer
    %s15 = sadd.s32 1, %s11
  $region7: #{_lambda_.5} parent=0 // loop_footer_branch
    %10 = sbr.rel target = $region3
  $region8: #{_lambda_.5} parent=0 // loop_exit
    _

// kernel: _lambda_.4
$region0: #{_lambda_.4}
  #allocation0 [shape = 'u32[]', space=smem, size = 0x4, offset = 0x4, fixed_abs, tag = 'smem constant byte address 0x4 - core index']
  #allocation1 [shape = 'u32[144,128]{1,0:T(1,128)}', space=vmem, size = 0x12000, scoped, tag = 'internal scratch']
  #allocation2 [shape = 'f32[1,1]{1,0:T(1,128)S(1)}', space=vmem, size = 0x200, scoped, tag = 'scoped memory for _lambda_.4']
  %s0 = inlined_call_operand.vmem [shape: bf16[2,16,24,128], index: 0, kind: input, shape index: {}]
  %s1 = inlined_call_operand.vmem [shape: bf16[2,16,24,128], index: 1, kind: input, shape index: {}]
  %s2 = inlined_call_operand.vmem [shape: bf16[2,1,2,24,128], index: 2, kind: input, shape index: {}, may-alias: {2,3}]
  %s3 = inlined_call_operand.vmem [shape: bf16[2,1,2,24,128], index: 3, kind: input, shape index: {}, may-alias: {2,3}]
  %s4 = inlined_call_operand.vmem [shape: bf16[2304,128], index: 4, kind: input, shape index: {}]
  %s5 = inlined_call_operand.vmem [shape: f32[1,128], index: 5, kind: input, shape index: {}]
  %s6 = inlined_call_operand.vmem [shape: f32[1,128], index: 6, kind: input, shape index: {}]
  %s7 = inlined_call_operand.vmem [shape: bf16[128,128], index: 7, kind: input, shape index: {}]
  %s8 = inlined_call_operand.vmem [shape: f32[1,128], index: 8, kind: input, shape index: {}]
  %s9 = inlined_call_operand.vmem [shape: bf16[128,128], index: 9, kind: input, shape index: {}]
  %s10 = inlined_call_operand.vmem [shape: f32[1,128], index: 10, kind: input, shape index: {}]
  %s11 = inlined_call_operand.vmem [shape: f32[1,128], index: 11, kind: input, shape index: {}]
  %s12 = inlined_call_operand.<no memory space> [shape: f32[1,1], index: 12, kind: input, shape index: {}]
  %s13 = inlined_call_operand.vmem [shape: bf16[2,16,24,128], index: 13, kind: output, shape index: {}]
  %s14 = sld [smem:[#allocation0]]
  $region85: #{_lambda_.4} parent=0
    _
  %s16 = ssub.s32 1, %s14
  %s17 = scalar_select 0, %s16, %s14
  %v18 = vstv %s12
  %19 = vst [vmem:[#allocation2] sm:$0x1] %v18
  loop: start=0, step=1, limit=4
  $region2: #{_lambda_.4} parent=0 // loop_pre_header
    _
  $region3: #{_lambda_.4} parent=0 // loop_header
    %s21 = sphi 0, %s25
    %p22 = scmp.ge.s32.totalorder %s21, 4
    %s28 = sphi 0, %s40
    %s29 = sphi 0, %s36
    %s30 = sphi 0, %s28
    %s31 = sphi 0, %s29
    %s32 = sphi 0, %s30
    %s33 = sphi 0, %s31
    %s45 = sphi 0, %s47
    %s48 = sphi 0, %s45
    %s49 = sphi 0, %s48
    %s65 = sphi 0, %s49
    %s73 = sphi 0, %s75
    %s76 = sphi 0, %s73
    %s77 = sphi 0, %s76
    %s93 = sphi 0, %s77
    %s101 = sphi 0, %s103
    %s104 = sphi 0, %s101
    %s105 = sphi 0, %s104
    %s121 = sphi 0, %s105
    %s129 = sphi 0, %s131
    %s132 = sphi 0, %s129
    %s133 = sphi 0, %s132
    %s149 = sphi 0, %s133
    %s153 = sphi 0, %s153
    %s155 = sphi 0, %s153
    %s156 = sphi 0, %s155
    %s170 = sphi 0, %s156
    %s174 = sphi 0, %s174
    %s176 = sphi 0, %s174
    %s177 = sphi 0, %s176
    %s191 = sphi 0, %s177
    %s195 = sphi 0, %s195
    %s197 = sphi 0, %s195
    %s198 = sphi 0, %s197
    %s212 = sphi 0, %s198
    %s216 = sphi 0, %s216
    %s218 = sphi 0, %s216
    %s219 = sphi 0, %s218
    %s233 = sphi 0, %s219
    %s237 = sphi 0, %s237
    %s239 = sphi 0, %s237
    %s240 = sphi 0, %s239
    %s254 = sphi 0, %s240
    %s258 = sphi 0, %s258
    %s260 = sphi 0, %s258
    %s261 = sphi 0, %s260
    %s275 = sphi 0, %s261
    %s279 = sphi 0, %s279
    %s281 = sphi 0, %s279
    %s282 = sphi 0, %s281
    %s296 = sphi 0, %s282
    %s300 = sphi 0, %s300
    %s302 = sphi 0, %s300
    %s303 = sphi 0, %s302
    %s317 = sphi 0, %s303
    %s321 = sphi 0, %s321
    %s323 = sphi 0, %s321
    %s324 = sphi 0, %s323
    %s338 = sphi 0, %s324
    %s346 = sphi 0, %s348
    %s349 = sphi 0, %s346
    %s350 = sphi 0, %s349
    %s366 = sphi 0, %s350
  $region4: #{_lambda_.4} parent=0 // loop_header_branch
    %24 = sbr.rel (%p22) target = $region8
  $region5: #{_lambda_.4} parent=0 // loop_body
    %s26 = ssub.s32 %s21, 1
    %s27 = ssub.s32 %s21, 2
    %s34 = sadd.s32 1, %s29
    %p35 = scmp.ge.s32.totalorder %s34, 1
    %s36 = scalar_select %p35, 0, %s34
    %s37 = sadd.s32 1, %s28
    %s38 = scalar_select %p35, %s37, %s28
    %p39 = scmp.ge.s32.totalorder %s38, 2
    %s40 = scalar_select %p39, 0, %s38
    %s41 = ssub.s32 %s28, %s40
    %s42 = ssub.s32 %s29, %s36
    %s43 = sor.u32 %s41, %s42
    %p44 = scmp.eq.s32.totalorder %s43, 0
    %s46 = sadd.s32 %s45, 1
    %s47 = scalar_select %p44, %s45, %s46
    %p50 = pneg %p44
    %p51 = scmp.eq.s32.totalorder %s21, 1
    %p52 = por %p50, %p51
    %p53 = scmp.ne.s32.totalorder %s45, %s48
    %p54 = scmp.eq.s32.totalorder %s21, 0
    %p55 = por %p53, %p54
    %p56 = scmp.ne.s32.totalorder %s45, %s48
    %p57 = scmp.eq.s32.totalorder %s26, 1
    %p58 = por %p56, %p57
    %p59 = scmp.ne.s32.totalorder %s48, %s49
    %p60 = scmp.eq.s32.totalorder %s26, 0
    %p61 = por %p59, %p60
    %p62 = scmp.ne.s32.totalorder %s48, %s49
    %p63 = scmp.eq.s32.totalorder %s27, 1
    %p64 = por %p62, %p63
    %p66 = scmp.ne.s32.totalorder %s49, %s65
    %p67 = scmp.eq.s32.totalorder %s27, 0
    %p68 = por %p66, %p67
    %s69 = ssub.s32 %s28, %s40
    %s70 = ssub.s32 %s29, %s36
    %s71 = sor.u32 %s69, %s70
    %p72 = scmp.eq.s32.totalorder %s71, 0
    %s74 = sadd.s32 %s73, 1
    %s75 = scalar_select %p72, %s73, %s74
    %p78 = pneg %p72
    %p79 = scmp.eq.s32.totalorder %s21, 1
    %p80 = por %p78, %p79
    %p81 = scmp.ne.s32.totalorder %s73, %s76
    %p82 = scmp.eq.s32.totalorder %s21, 0
    %p83 = por %p81, %p82
    %p84 = scmp.ne.s32.totalorder %s73, %s76
    %p85 = scmp.eq.s32.totalorder %s26, 1
    %p86 = por %p84, %p85
    %p87 = scmp.ne.s32.totalorder %s76, %s77
    %p88 = scmp.eq.s32.totalorder %s26, 0
    %p89 = por %p87, %p88
    %p90 = scmp.ne.s32.totalorder %s76, %s77
    %p91 = scmp.eq.s32.totalorder %s27, 1
    %p92 = por %p90, %p91
    %p94 = scmp.ne.s32.totalorder %s77, %s93
    %p95 = scmp.eq.s32.totalorder %s27, 0
    %p96 = por %p94, %p95
    %s97 = ssub.s32 %s28, %s40
    %s98 = ssub.s32 %s29, %s36
    %s99 = sor.u32 %s97, %s98
    %p100 = scmp.eq.s32.totalorder %s99, 0
    %s102 = sadd.s32 %s101, 1
    %s103 = scalar_select %p100, %s101, %s102
    %p106 = pneg %p100
    %p107 = scmp.eq.s32.totalorder %s21, 1
    %p108 = por %p106, %p107
    %p109 = scmp.ne.s32.totalorder %s101, %s104
    %p110 = scmp.eq.s32.totalorder %s21, 0
    %p111 = por %p109, %p110
    %p112 = scmp.ne.s32.totalorder %s101, %s104
    %p113 = scmp.eq.s32.totalorder %s26, 1
    %p114 = por %p112, %p113
    %p115 = scmp.ne.s32.totalorder %s104, %s105
    %p116 = scmp.eq.s32.totalorder %s26, 0
    %p117 = por %p115, %p116
    %p118 = scmp.ne.s32.totalorder %s104, %s105
    %p119 = scmp.eq.s32.totalorder %s27, 1
    %p120 = por %p118, %p119
    %p122 = scmp.ne.s32.totalorder %s105, %s121
    %p123 = scmp.eq.s32.totalorder %s27, 0
    %p124 = por %p122, %p123
    %s125 = ssub.s32 %s28, %s40
    %s126 = ssub.s32 %s29, %s36
    %s127 = sor.u32 %s125, %s126
    %p128 = scmp.eq.s32.totalorder %s127, 0
    %s130 = sadd.s32 %s129, 1
    %s131 = scalar_select %p128, %s129, %s130
    %p134 = pneg %p128
    %p135 = scmp.eq.s32.totalorder %s21, 1
    %p136 = por %p134, %p135
    %p137 = scmp.ne.s32.totalorder %s129, %s132
    %p138 = scmp.eq.s32.totalorder %s21, 0
    %p139 = por %p137, %p138
    %p140 = scmp.ne.s32.totalorder %s129, %s132
    %p141 = scmp.eq.s32.totalorder %s26, 1
    %p142 = por %p140, %p141
    %p143 = scmp.ne.s32.totalorder %s132, %s133
    %p144 = scmp.eq.s32.totalorder %s26, 0
    %p145 = por %p143, %p144
    %p146 = scmp.ne.s32.totalorder %s132, %s133
    %p147 = scmp.eq.s32.totalorder %s27, 1
    %p148 = por %p146, %p147
    %p150 = scmp.ne.s32.totalorder %s133, %s149
    %p151 = scmp.eq.s32.totalorder %s27, 0
    %p152 = por %p150, %p151
    %s154 = sadd.s32 %s153, 1
    %p157 = scmp.eq.s32.totalorder %s21, 1
    %p158 = scmp.ne.s32.totalorder %s153, %s155
    %p159 = scmp.eq.s32.totalorder %s21, 0
    %p160 = por %p158, %p159
    %p161 = scmp.ne.s32.totalorder %s153, %s155
    %p162 = scmp.eq.s32.totalorder %s26, 1
    %p163 = por %p161, %p162
    %p164 = scmp.ne.s32.totalorder %s155, %s156
    %p165 = scmp.eq.s32.totalorder %s26, 0
    %p166 = por %p164, %p165
    %p167 = scmp.ne.s32.totalorder %s155, %s156
    %p168 = scmp.eq.s32.totalorder %s27, 1
    %p169 = por %p167, %p168
    %p171 = scmp.ne.s32.totalorder %s156, %s170
    %p172 = scmp.eq.s32.totalorder %s27, 0
    %p173 = por %p171, %p172
    %s175 = sadd.s32 %s174, 1
    %p178 = scmp.eq.s32.totalorder %s21, 1
    %p179 = scmp.ne.s32.totalorder %s174, %s176
    %p180 = scmp.eq.s32.totalorder %s21, 0
    %p181 = por %p179, %p180
    %p182 = scmp.ne.s32.totalorder %s174, %s176
    %p183 = scmp.eq.s32.totalorder %s26, 1
    %p184 = por %p182, %p183
    %p185 = scmp.ne.s32.totalorder %s176, %s177
    %p186 = scmp.eq.s32.totalorder %s26, 0
    %p187 = por %p185, %p186
    %p188 = scmp.ne.s32.totalorder %s176, %s177
    %p189 = scmp.eq.s32.totalorder %s27, 1
    %p190 = por %p188, %p189
    %p192 = scmp.ne.s32.totalorder %s177, %s191
    %p193 = scmp.eq.s32.totalorder %s27, 0
    %p194 = por %p192, %p193
    %s196 = sadd.s32 %s195, 1
    %p199 = scmp.eq.s32.totalorder %s21, 1
    %p200 = scmp.ne.s32.totalorder %s195, %s197
    %p201 = scmp.eq.s32.totalorder %s21, 0
    %p202 = por %p200, %p201
    %p203 = scmp.ne.s32.totalorder %s195, %s197
    %p204 = scmp.eq.s32.totalorder %s26, 1
    %p205 = por %p203, %p204
    %p206 = scmp.ne.s32.totalorder %s197, %s198
    %p207 = scmp.eq.s32.totalorder %s26, 0
    %p208 = por %p206, %p207
    %p209 = scmp.ne.s32.totalorder %s197, %s198
    %p210 = scmp.eq.s32.totalorder %s27, 1
    %p211 = por %p209, %p210
    %p213 = scmp.ne.s32.totalorder %s198, %s212
    %p214 = scmp.eq.s32.totalorder %s27, 0
    %p215 = por %p213, %p214
    %s217 = sadd.s32 %s216, 1
    %p220 = scmp.eq.s32.totalorder %s21, 1
    %p221 = scmp.ne.s32.totalorder %s216, %s218
    %p222 = scmp.eq.s32.totalorder %s21, 0
    %p223 = por %p221, %p222
    %p224 = scmp.ne.s32.totalorder %s216, %s218
    %p225 = scmp.eq.s32.totalorder %s26, 1
    %p226 = por %p224, %p225
    %p227 = scmp.ne.s32.totalorder %s218, %s219
    %p228 = scmp.eq.s32.totalorder %s26, 0
    %p229 = por %p227, %p228
    %p230 = scmp.ne.s32.totalorder %s218, %s219
    %p231 = scmp.eq.s32.totalorder %s27, 1
    %p232 = por %p230, %p231
    %p234 = scmp.ne.s32.totalorder %s219, %s233
    %p235 = scmp.eq.s32.totalorder %s27, 0
    %p236 = por %p234, %p235
    %s238 = sadd.s32 %s237, 1
    %p241 = scmp.eq.s32.totalorder %s21, 1
    %p242 = scmp.ne.s32.totalorder %s237, %s239
    %p243 = scmp.eq.s32.totalorder %s21, 0
    %p244 = por %p242, %p243
    %p245 = scmp.ne.s32.totalorder %s237, %s239
    %p246 = scmp.eq.s32.totalorder %s26, 1
    %p247 = por %p245, %p246
    %p248 = scmp.ne.s32.totalorder %s239, %s240
    %p249 = scmp.eq.s32.totalorder %s26, 0
    %p250 = por %p248, %p249
    %p251 = scmp.ne.s32.totalorder %s239, %s240
    %p252 = scmp.eq.s32.totalorder %s27, 1
    %p253 = por %p251, %p252
    %p255 = scmp.ne.s32.totalorder %s240, %s254
    %p256 = scmp.eq.s32.totalorder %s27, 0
    %p257 = por %p255, %p256
    %s259 = sadd.s32 %s258, 1
    %p262 = scmp.eq.s32.totalorder %s21, 1
    %p263 = scmp.ne.s32.totalorder %s258, %s260
    %p264 = scmp.eq.s32.totalorder %s21, 0
    %p265 = por %p263, %p264
    %p266 = scmp.ne.s32.totalorder %s258, %s260
    %p267 = scmp.eq.s32.totalorder %s26, 1
    %p268 = por %p266, %p267
    %p269 = scmp.ne.s32.totalorder %s260, %s261
    %p270 = scmp.eq.s32.totalorder %s26, 0
    %p271 = por %p269, %p270
    %p272 = scmp.ne.s32.totalorder %s260, %s261
    %p273 = scmp.eq.s32.totalorder %s27, 1
    %p274 = por %p272, %p273
    %p276 = scmp.ne.s32.totalorder %s261, %s275
    %p277 = scmp.eq.s32.totalorder %s27, 0
    %p278 = por %p276, %p277
    %s280 = sadd.s32 %s279, 1
    %p283 = scmp.eq.s32.totalorder %s21, 1
    %p284 = scmp.ne.s32.totalorder %s279, %s281
    %p285 = scmp.eq.s32.totalorder %s21, 0
    %p286 = por %p284, %p285
    %p287 = scmp.ne.s32.totalorder %s279, %s281
    %p288 = scmp.eq.s32.totalorder %s26, 1
    %p289 = por %p287, %p288
    %p290 = scmp.ne.s32.totalorder %s281, %s282
    %p291 = scmp.eq.s32.totalorder %s26, 0
    %p292 = por %p290, %p291
    %p293 = scmp.ne.s32.totalorder %s281, %s282
    %p294 = scmp.eq.s32.totalorder %s27, 1
    %p295 = por %p293, %p294
    %p297 = scmp.ne.s32.totalorder %s282, %s296
    %p298 = scmp.eq.s32.totalorder %s27, 0
    %p299 = por %p297, %p298
    %s301 = sadd.s32 %s300, 1
    %p304 = scmp.eq.s32.totalorder %s21, 1
    %p305 = scmp.ne.s32.totalorder %s300, %s302
    %p306 = scmp.eq.s32.totalorder %s21, 0
    %p307 = por %p305, %p306
    %p308 = scmp.ne.s32.totalorder %s300, %s302
    %p309 = scmp.eq.s32.totalorder %s26, 1
    %p310 = por %p308, %p309
    %p311 = scmp.ne.s32.totalorder %s302, %s303
    %p312 = scmp.eq.s32.totalorder %s26, 0
    %p313 = por %p311, %p312
    %p314 = scmp.ne.s32.totalorder %s302, %s303
    %p315 = scmp.eq.s32.totalorder %s27, 1
    %p316 = por %p314, %p315
    %p318 = scmp.ne.s32.totalorder %s303, %s317
    %p319 = scmp.eq.s32.totalorder %s27, 0
    %p320 = por %p318, %p319
    %s322 = sadd.s32 %s321, 1
    %p325 = scmp.eq.s32.totalorder %s21, 1
    %p326 = scmp.ne.s32.totalorder %s321, %s323
    %p327 = scmp.eq.s32.totalorder %s21, 0
    %p328 = por %p326, %p327
    %p329 = scmp.ne.s32.totalorder %s321, %s323
    %p330 = scmp.eq.s32.totalorder %s26, 1
    %p331 = por %p329, %p330
    %p332 = scmp.ne.s32.totalorder %s323, %s324
    %p333 = scmp.eq.s32.totalorder %s26, 0
    %p334 = por %p332, %p333
    %p335 = scmp.ne.s32.totalorder %s323, %s324
    %p336 = scmp.eq.s32.totalorder %s27, 1
    %p337 = por %p335, %p336
    %p339 = scmp.ne.s32.totalorder %s324, %s338
    %p340 = scmp.eq.s32.totalorder %s27, 0
    %p341 = por %p339, %p340
    %s342 = ssub.s32 %s28, %s40
    %s343 = ssub.s32 %s29, %s36
    %s344 = sor.u32 %s342, %s343
    %p345 = scmp.eq.s32.totalorder %s344, 0
    %s347 = sadd.s32 %s346, 1
    %s348 = scalar_select %p345, %s346, %s347
    %p351 = pneg %p345
    %p352 = scmp.eq.s32.totalorder %s21, 1
    %p353 = por %p351, %p352
    %p354 = scmp.ne.s32.totalorder %s346, %s349
    %p355 = scmp.eq.s32.totalorder %s21, 0
    %p356 = por %p354, %p355
    %p357 = scmp.ne.s32.totalorder %s346, %s349
    %p358 = scmp.eq.s32.totalorder %s26, 1
    %p359 = por %p357, %p358
    %p360 = scmp.ne.s32.totalorder %s349, %s350
    %p361 = scmp.eq.s32.totalorder %s26, 0
    %p362 = por %p360, %p361
    %p363 = scmp.ne.s32.totalorder %s349, %s350
    %p364 = scmp.eq.s32.totalorder %s27, 1
    %p365 = por %p363, %p364
    %p367 = scmp.ne.s32.totalorder %s350, %s366
    %p368 = scmp.eq.s32.totalorder %s27, 0
    %p369 = por %p367, %p368
    %p370 = scmp.le.s32.totalorder 1, %s21
    %p371 = scmp.lt.s32.totalorder %s21, 3
    %p372 = pnand %p370, %p371
    %p373 = pneg %p372
    // Predicated region
    $region9: #{_lambda_.4} parent=5 // pred_check
      _
    $region10: #{_lambda_.4} parent=5 // pred_check_branch
      %375 = sbr.rel (%p372) target = $region12
    $region11: #{_lambda_.4} parent=5 // pred_region
      %s376 = ssub.s32 %s21, 1
      // Predicated region
      $region13: #{_lambda_.4} parent=11 // pred_check
        %p377 = pneg %p166
      $region14: #{_lambda_.4} parent=11 // pred_check_branch
        %379 = sbr.rel (%p377) target = $region16
      $region15: #{_lambda_.4} parent=11 // pred_region
        _
      $region16: #{_lambda_.4} parent=11 // pred_fallthru
        _
      // Predicated region
      $region17: #{_lambda_.4} parent=11 // pred_check
        %p380 = pneg %p187
      $region18: #{_lambda_.4} parent=11 // pred_check_branch
        %382 = sbr.rel (%p380) target = $region20
      $region19: #{_lambda_.4} parent=11 // pred_region
        _
      $region20: #{_lambda_.4} parent=11 // pred_fallthru
        _
      // Predicated region
      $region21: #{_lambda_.4} parent=11 // pred_check
        %p383 = pneg %p208
      $region22: #{_lambda_.4} parent=11 // pred_check_branch
        %385 = sbr.rel (%p383) target = $region24
      $region23: #{_lambda_.4} parent=11 // pred_region
        _
      $region24: #{_lambda_.4} parent=11 // pred_fallthru
        _
      // Predicated region
      $region25: #{_lambda_.4} parent=11 // pred_check
        %p386 = pneg %p229
      $region26: #{_lambda_.4} parent=11 // pred_check_branch
        %388 = sbr.rel (%p386) target = $region28
      $region27: #{_lambda_.4} parent=11 // pred_region
        _
      $region28: #{_lambda_.4} parent=11 // pred_fallthru
        _
      // Predicated region
      $region29: #{_lambda_.4} parent=11 // pred_check
        %p389 = pneg %p250
      $region30: #{_lambda_.4} parent=11 // pred_check_branch
        %391 = sbr.rel (%p389) target = $region32
      $region31: #{_lambda_.4} parent=11 // pred_region
        _
      $region32: #{_lambda_.4} parent=11 // pred_fallthru
        _
      // Predicated region
      $region33: #{_lambda_.4} parent=11 // pred_check
        %p392 = pneg %p271
      $region34: #{_lambda_.4} parent=11 // pred_check_branch
        %394 = sbr.rel (%p392) target = $region36
      $region35: #{_lambda_.4} parent=11 // pred_region
        _
      $region36: #{_lambda_.4} parent=11 // pred_fallthru
        _
      // Predicated region
      $region37: #{_lambda_.4} parent=11 // pred_check
        %p395 = pneg %p292
      $region38: #{_lambda_.4} parent=11 // pred_check_branch
        %397 = sbr.rel (%p395) target = $region40
      $region39: #{_lambda_.4} parent=11 // pred_region
        _
      $region40: #{_lambda_.4} parent=11 // pred_fallthru
        _
      // Predicated region
      $region41: #{_lambda_.4} parent=11 // pred_check
        %p398 = pneg %p313
      $region42: #{_lambda_.4} parent=11 // pred_check_branch
        %400 = sbr.rel (%p398) target = $region44
      $region43: #{_lambda_.4} parent=11 // pred_region
        _
      $region44: #{_lambda_.4} parent=11 // pred_fallthru
        _
      // Predicated region
      $region45: #{_lambda_.4} parent=11 // pred_check
        %p401 = pneg %p334
      $region46: #{_lambda_.4} parent=11 // pred_check_branch
        %403 = sbr.rel (%p401) target = $region48
      $region47: #{_lambda_.4} parent=11 // pred_region
        _
      $region48: #{_lambda_.4} parent=11 // pred_fallthru
        _
    $region12: #{_lambda_.4} parent=5 // pred_fallthru
      _
    %p404 = scmp.lt.s32.totalorder %s21, 2
    // Predicated region
    $region49: #{_lambda_.4} parent=5 // pred_check
      %p405 = pneg %p404
    $region50: #{_lambda_.4} parent=5 // pred_check_branch
      %407 = sbr.rel (%p405) target = $region52
    $region51: #{_lambda_.4} parent=5 // pred_region
      // Predicated region
      $region53: #{_lambda_.4} parent=51 // pred_check
        %p408 = pneg %p55
      $region54: #{_lambda_.4} parent=51 // pred_check_branch
        %410 = sbr.rel (%p408) target = $region56
      $region55: #{_lambda_.4} parent=51 // pred_region
        %s411 = smul.u32 16, %s29
        %p412 = scmp.lt.s32.totalorder %s28, 1
        %s413 = scalar_select %p412, %s28, 1
        %p414 = scmp.lt.s32.totalorder %s411, 15
        %s415 = scalar_select %p414, %s411, 15
        %s416 = smul.addr %s415, 3
        %s417 = smul.addr %s413, 48
        %s418 = sadd.s32 %s416, %s417
        %s419 = smul.addr %s418, 4
        %s420 = scalar_lea.vmem %s0, %s419
        %s421 = smul.u32 16, %s29
      $region56: #{_lambda_.4} parent=51 // pred_fallthru
        _
      // Predicated region
      $region57: #{_lambda_.4} parent=51 // pred_check
        %p422 = pneg %p83
      $region58: #{_lambda_.4} parent=51 // pred_check_branch
        %424 = sbr.rel (%p422) target = $region60
      $region59: #{_lambda_.4} parent=51 // pred_region
        %s425 = smul.u32 16, %s29
        %p426 = scmp.lt.s32.totalorder %s28, 1
        %s427 = scalar_select %p426, %s28, 1
        %p428 = scmp.lt.s32.totalorder %s425, 15
        %s429 = scalar_select %p428, %s425, 15
        %s430 = smul.addr %s429, 3
        %s431 = smul.addr %s427, 48
        %s432 = sadd.s32 %s430, %s431
        %s433 = smul.addr %s432, 4
        %s434 = scalar_lea.vmem %s1, %s433
        %s435 = smul.u32 16, %s29
      $region60: #{_lambda_.4} parent=51 // pred_fallthru
        _
      // Predicated region
      $region61: #{_lambda_.4} parent=51 // pred_check
        %p436 = pneg %p111
      $region62: #{_lambda_.4} parent=51 // pred_check_branch
        %438 = sbr.rel (%p436) target = $region64
      $region63: #{_lambda_.4} parent=51 // pred_region
        %p439 = scmp.lt.s32.totalorder %s28, 1
        %s440 = scalar_select %p439, %s28, 1
        %p441 = scmp.lt.s32.totalorder %s29, 0
        %s442 = scalar_select %p441, %s29, 0
        %s443 = smul.addr %s442, 6
        %s444 = smul.addr %s440, 6
        %s445 = sadd.s32 %s443, %s444
        %s446 = smul.addr %s445, 4
        %s447 = scalar_lea.vmem %s2, %s446
      $region64: #{_lambda_.4} parent=51 // pred_fallthru
        _
      // Predicated region
      $region65: #{_lambda_.4} parent=51 // pred_check
        %p448 = pneg %p139
      $region66: #{_lambda_.4} parent=51 // pred_check_branch
        %450 = sbr.rel (%p448) target = $region68
      $region67: #{_lambda_.4} parent=51 // pred_region
        %p451 = scmp.lt.s32.totalorder %s28, 1
        %s452 = scalar_select %p451, %s28, 1
        %p453 = scmp.lt.s32.totalorder %s29, 0
        %s454 = scalar_select %p453, %s29, 0
        %s455 = smul.addr %s454, 6
        %s456 = smul.addr %s452, 6
        %s457 = sadd.s32 %s455, %s456
        %s458 = smul.addr %s457, 4
        %s459 = scalar_lea.vmem %s3, %s458
      $region68: #{_lambda_.4} parent=51 // pred_fallthru
        _
    $region52: #{_lambda_.4} parent=5 // pred_fallthru
      _
    %p460 = scmp.le.s32.totalorder 1, %s21
    %p461 = scmp.lt.s32.totalorder %s21, 3
    %p462 = pnand %p460, %p461
    %p463 = pneg %p462
    // Predicated region
    $region69: #{_lambda_.4} parent=5 // pred_check
      _
    $region70: #{_lambda_.4} parent=5 // pred_check_branch
      %465 = sbr.rel (%p462) target = $region72
    $region71: #{_lambda_.4} parent=5 // pred_region
      %s466 = ssub.s32 %s21, 1
      %s467 = smul.u32 16, %s31
      %p468 = scmp.lt.s32.totalorder %s30, 1
      %s469 = scalar_select %p468, %s30, 1
      %p470 = scmp.lt.s32.totalorder %s467, 15
      %s471 = scalar_select %p470, %s467, 15
      %s472 = smul.addr %s471, 3
      %s473 = smul.addr %s469, 48
      %s474 = sadd.s32 %s472, %s473
      %s475 = smul.addr %s474, 4
      %s476 = scalar_lea.vmem %s0, %s475
      %p477 = pneg %p61
      %p478 = pneg %p58
      %s479 = smul.u32 16, %s31
      %p480 = scmp.lt.s32.totalorder %s30, 1
      %s481 = scalar_select %p480, %s30, 1
      %p482 = scmp.lt.s32.totalorder %s479, 15
      %s483 = scalar_select %p482, %s479, 15
      %s484 = smul.addr %s483, 3
      %s485 = smul.addr %s481, 48
      %s486 = sadd.s32 %s484, %s485
      %s487 = smul.addr %s486, 4
      %s488 = scalar_lea.vmem %s1, %s487
      %p489 = pneg %p89
      %p490 = pneg %p86
      %p491 = scmp.lt.s32.totalorder %s30, 1
      %s492 = scalar_select %p491, %s30, 1
      %p493 = scmp.lt.s32.totalorder %s31, 0
      %s494 = scalar_select %p493, %s31, 0
      %s495 = smul.addr %s494, 6
      %s496 = smul.addr %s492, 6
      %s497 = sadd.s32 %s495, %s496
      %s498 = smul.addr %s497, 4
      %s499 = scalar_lea.vmem %s2, %s498
      %p500 = pneg %p117
      %p501 = pneg %p114
      %p502 = scmp.lt.s32.totalorder %s30, 1
      %s503 = scalar_select %p502, %s30, 1
      %p504 = scmp.lt.s32.totalorder %s31, 0
      %s505 = scalar_select %p504, %s31, 0
      %s506 = smul.addr %s505, 6
      %s507 = smul.addr %s503, 6
      %s508 = sadd.s32 %s506, %s507
      %s509 = smul.addr %s508, 4
      %s510 = scalar_lea.vmem %s3, %s509
      %p511 = pneg %p145
      %p512 = pneg %p142
      %p513 = pneg %p166
      %p514 = pneg %p163
      %p515 = pneg %p187
      %p516 = pneg %p184
      %p517 = pneg %p208
      %p518 = pneg %p205
      %p519 = pneg %p229
      %p520 = pneg %p226
      %p521 = pneg %p250
      %p522 = pneg %p247
      %p523 = pneg %p271
      %p524 = pneg %p268
      %p525 = pneg %p292
      %p526 = pneg %p289
      %p527 = pneg %p313
      %p528 = pneg %p310
      %p529 = pneg %p334
      %p530 = pneg %p331
      %p531 = pneg %p362
      %p532 = pneg %p359
      %s533 = smul.u32 16, %s31
      %p534 = scmp.lt.s32.totalorder %s30, 1
      %s535 = scalar_select %p534, %s30, 1
      %p536 = scmp.lt.s32.totalorder %s533, 15
      %s537 = scalar_select %p536, %s533, 15
      %s538 = smul.addr %s537, 3
      %s539 = smul.addr %s535, 48
      %s540 = sadd.s32 %s538, %s539
      %s541 = smul.addr %s540, 4
      %s542 = scalar_lea.vmem %s13, %s541
      %s543 = smul.u32 16, %s31
      %p544 = scmp.lt.s32.totalorder %s30, 1
      %s545 = scalar_select %p544, %s30, 1
      %p546 = scmp.lt.s32.totalorder %s543, 15
      %s547 = scalar_select %p546, %s543, 15
      %s548 = smul.addr %s547, 3
      %s549 = smul.addr %s545, 48
      %s550 = sadd.s32 %s548, %s549
      %s551 = smul.addr %s550, 4
      %s552 = scalar_lea.vmem %s0, %s551
      %s553 = smul.u32 16, %s31
      %s554 = smul.u32 16, %s31
      %p555 = scmp.lt.s32.totalorder %s30, 1
      %s556 = scalar_select %p555, %s30, 1
      %p557 = scmp.lt.s32.totalorder %s554, 15
      %s558 = scalar_select %p557, %s554, 15
      %s559 = smul.addr %s558, 3
      %s560 = smul.addr %s556, 48
      %s561 = sadd.s32 %s559, %s560
      %s562 = smul.addr %s561, 4
      %s563 = scalar_lea.vmem %s1, %s562
      %s564 = smul.u32 16, %s31
      %p565 = scmp.lt.s32.totalorder %s30, 1
      %s566 = scalar_select %p565, %s30, 1
      %p567 = scmp.lt.s32.totalorder %s31, 0
      %s568 = scalar_select %p567, %s31, 0
      %s569 = smul.addr %s568, 6
      %s570 = smul.addr %s566, 6
      %s571 = sadd.s32 %s569, %s570
      %s572 = smul.addr %s571, 4
      %s573 = scalar_lea.vmem %s2, %s572
      %p574 = scmp.lt.s32.totalorder %s30, 1
      %s575 = scalar_select %p574, %s30, 1
      %p576 = scmp.lt.s32.totalorder %s31, 0
      %s577 = scalar_select %p576, %s31, 0
      %s578 = smul.addr %s577, 6
      %s579 = smul.addr %s575, 6
      %s580 = sadd.s32 %s578, %s579
      %s581 = smul.addr %s580, 4
      %s582 = scalar_lea.vmem %s3, %s581
      %s583 = smul.u32 16, %s31
      %p584 = scmp.lt.s32.totalorder %s30, 1
      %s585 = scalar_select %p584, %s30, 1
      %p586 = scmp.lt.s32.totalorder %s583, 15
      %s587 = scalar_select %p586, %s583, 15
      %s588 = smul.addr %s587, 3
      %s589 = smul.addr %s585, 48
      %s590 = sadd.s32 %s588, %s589
      %s591 = smul.addr %s590, 4
      %s592 = scalar_lea.vmem %s13, %s591
      %s593 = smul.u32 16, %s31
      %v595 = vld [vmem:[%s573] sm:$0xf]
      %v596 = vld [vmem:[%s573 + $0x4] sm:$0xf]
      %v597 = vld [vmem:[%s573 + $0x8] sm:$0xf]
      %v598 = vld [vmem:[%s573 + $0xc] sm:$0xf]
      %v599 = vld [vmem:[%s573 + $0x10] sm:$0xf]
      %v600 = vld [vmem:[%s573 + $0x14] sm:$0xf]
      %v601 = vld [vmem:[%s552] sm:$0xf]
      %v602 = vld [vmem:[%s552 + $0x4] sm:$0xf]
      %v603 = vld [vmem:[%s552 + $0x8] sm:$0xf]
      %v604 = vld [vmem:[%s552 + $0xc] sm:$0xf]
      %v605 = vld [vmem:[%s552 + $0x10] sm:$0xf]
      %v606 = vld [vmem:[%s552 + $0x14] sm:$0xf]
      %v607 = vld [vmem:[%s552 + $0x18] sm:$0xf]
      %v608 = vld [vmem:[%s552 + $0x1c] sm:$0xf]
      %v609 = vld [vmem:[%s552 + $0x20] sm:$0xf]
      %v610 = vld [vmem:[%s552 + $0x24] sm:$0xf]
      %v611 = vld [vmem:[%s552 + $0x28] sm:$0xf]
      %v612 = vld [vmem:[%s552 + $0x2c] sm:$0xf]
      %v613 = vld [vmem:[%s552 + $0x30] sm:$0xf]
      %v614 = vld [vmem:[%s552 + $0x34] sm:$0xf]
      %v615 = vld [vmem:[%s552 + $0x38] sm:$0xf]
      %v616 = vld [vmem:[%s552 + $0x3c] sm:$0xf]
      %v617 = vld [vmem:[%s552 + $0x40] sm:$0xf]
      %v618 = vld [vmem:[%s552 + $0x44] sm:$0xf]
      %v619 = vld [vmem:[%s552 + $0x48] sm:$0xf]
      %v620 = vld [vmem:[%s552 + $0x4c] sm:$0xf]
      %v621 = vld [vmem:[%s552 + $0x50] sm:$0xf]
      %v622 = vld [vmem:[%s552 + $0x54] sm:$0xf]
      %v623 = vld [vmem:[%s552 + $0x58] sm:$0xf]
      %v624 = vld [vmem:[%s552 + $0x5c] sm:$0xf]
      %v625 = vld [vmem:[%s552 + $0x60] sm:$0xf]
      %v626 = vld [vmem:[%s552 + $0x64] sm:$0xf]
      %v627 = vld [vmem:[%s552 + $0x68] sm:$0xf]
      %v628 = vld [vmem:[%s552 + $0x6c] sm:$0xf]
      %v629 = vld [vmem:[%s552 + $0x70] sm:$0xf]
      %v630 = vld [vmem:[%s552 + $0x74] sm:$0xf]
      %v631 = vld [vmem:[%s552 + $0x78] sm:$0xf]
      %v632 = vld [vmem:[%s552 + $0x7c] sm:$0xf]
      %v633 = vld [vmem:[%s552 + $0x80] sm:$0xf]
      %v634 = vld [vmem:[%s552 + $0x84] sm:$0xf]
      %v635 = vld [vmem:[%s552 + $0x88] sm:$0xf]
      %v636 = vld [vmem:[%s552 + $0x8c] sm:$0xf]
      %v637 = vld [vmem:[%s552 + $0x90] sm:$0xf]
      %v638 = vld [vmem:[%s552 + $0x94] sm:$0xf]
      %v639 = vld [vmem:[%s552 + $0x98] sm:$0xf]
      %v640 = vld [vmem:[%s552 + $0x9c] sm:$0xf]
      %v641 = vld [vmem:[%s552 + $0xa0] sm:$0xf]
      %v642 = vld [vmem:[%s552 + $0xa4] sm:$0xf]
      %v643 = vld [vmem:[%s552 + $0xa8] sm:$0xf]
      %v644 = vld [vmem:[%s552 + $0xac] sm:$0xf]
      %v645 = vld [vmem:[%s552 + $0xb0] sm:$0xf]
      %v646 = vld [vmem:[%s552 + $0xb4] sm:$0xf]
      %v647 = vld [vmem:[%s552 + $0xb8] sm:$0xf]
      %v648 = vld [vmem:[%s552 + $0xbc] sm:$0xf]
      %v649 = vld [vmem:[%s582] sm:$0xf]
      %v650 = vld [vmem:[%s582 + $0x4] sm:$0xf]
      %v651 = vld [vmem:[%s582 + $0x8] sm:$0xf]
      %v652 = vld [vmem:[%s582 + $0xc] sm:$0xf]
      %v653 = vld [vmem:[%s582 + $0x10] sm:$0xf]
      %v654 = vld [vmem:[%s582 + $0x14] sm:$0xf]
      %v655 = vld [vmem:[%s563] sm:$0xf]
      %v656 = vld [vmem:[%s563 + $0x4] sm:$0xf]
      %v657 = vld [vmem:[%s563 + $0x8] sm:$0xf]
      %v658 = vld [vmem:[%s563 + $0xc] sm:$0xf]
      %v659 = vld [vmem:[%s563 + $0x10] sm:$0xf]
      %v660 = vld [vmem:[%s563 + $0x14] sm:$0xf]
      %v661 = vld [vmem:[%s563 + $0x18] sm:$0xf]
      %v662 = vld [vmem:[%s563 + $0x1c] sm:$0xf]
      %v663 = vld [vmem:[%s563 + $0x20] sm:$0xf]
      %v664 = vld [vmem:[%s563 + $0x24] sm:$0xf]
      %v665 = vld [vmem:[%s563 + $0x28] sm:$0xf]
      %v666 = vld [vmem:[%s563 + $0x2c] sm:$0xf]
      %v667 = vld [vmem:[%s563 + $0x30] sm:$0xf]
      %v668 = vld [vmem:[%s563 + $0x34] sm:$0xf]
      %v669 = vld [vmem:[%s563 + $0x38] sm:$0xf]
      %v670 = vld [vmem:[%s563 + $0x3c] sm:$0xf]
      %v671 = vld [vmem:[%s563 + $0x40] sm:$0xf]
      %v672 = vld [vmem:[%s563 + $0x44] sm:$0xf]
      %v673 = vld [vmem:[%s563 + $0x48] sm:$0xf]
      %v674 = vld [vmem:[%s563 + $0x4c] sm:$0xf]
      %v675 = vld [vmem:[%s563 + $0x50] sm:$0xf]
      %v676 = vld [vmem:[%s563 + $0x54] sm:$0xf]
      %v677 = vld [vmem:[%s563 + $0x58] sm:$0xf]
      %v678 = vld [vmem:[%s563 + $0x5c] sm:$0xf]
      %v679 = vld [vmem:[%s563 + $0x60] sm:$0xf]
      %v680 = vld [vmem:[%s563 + $0x64] sm:$0xf]
      %v681 = vld [vmem:[%s563 + $0x68] sm:$0xf]
      %v682 = vld [vmem:[%s563 + $0x6c] sm:$0xf]
      %v683 = vld [vmem:[%s563 + $0x70] sm:$0xf]
      %v684 = vld [vmem:[%s563 + $0x74] sm:$0xf]
      %v685 = vld [vmem:[%s563 + $0x78] sm:$0xf]
      %v686 = vld [vmem:[%s563 + $0x7c] sm:$0xf]
      %v687 = vld [vmem:[%s563 + $0x80] sm:$0xf]
      %v688 = vld [vmem:[%s563 + $0x84] sm:$0xf]
      %v689 = vld [vmem:[%s563 + $0x88] sm:$0xf]
      %v690 = vld [vmem:[%s563 + $0x8c] sm:$0xf]
      %v691 = vld [vmem:[%s563 + $0x90] sm:$0xf]
      %v692 = vld [vmem:[%s563 + $0x94] sm:$0xf]
      %v693 = vld [vmem:[%s563 + $0x98] sm:$0xf]
      %v694 = vld [vmem:[%s563 + $0x9c] sm:$0xf]
      %v695 = vld [vmem:[%s563 + $0xa0] sm:$0xf]
      %v696 = vld [vmem:[%s563 + $0xa4] sm:$0xf]
      %v697 = vld [vmem:[%s563 + $0xa8] sm:$0xf]
      %v698 = vld [vmem:[%s563 + $0xac] sm:$0xf]
      %v699 = vld [vmem:[%s563 + $0xb0] sm:$0xf]
      %v700 = vld [vmem:[%s563 + $0xb4] sm:$0xf]
      %v701 = vld [vmem:[%s563 + $0xb8] sm:$0xf]
      %v702 = vld [vmem:[%s563 + $0xbc] sm:$0xf]
      %v703 = vld [vmem:[%s7] sm:$0xf]
      %v704 = vld [vmem:[%s7 + $0x4] sm:$0xf]
      %v705 = vld [vmem:[%s7 + $0x8] sm:$0xf]
      %v706 = vld [vmem:[%s7 + $0xc] sm:$0xf]
      %v707 = vld [vmem:[%s7 + $0x10] sm:$0xf]
      %v708 = vld [vmem:[%s7 + $0x14] sm:$0xf]
      %v709 = vld [vmem:[%s7 + $0x18] sm:$0xf]
      %v710 = vld [vmem:[%s7 + $0x1c] sm:$0xf]
      %v711 = vld [vmem:[%s7 + $0x20] sm:$0xf]
      %v712 = vld [vmem:[%s7 + $0x24] sm:$0xf]
      %v713 = vld [vmem:[%s7 + $0x28] sm:$0xf]
      %v714 = vld [vmem:[%s7 + $0x2c] sm:$0xf]
      %v715 = vld [vmem:[%s7 + $0x30] sm:$0xf]
      %v716 = vld [vmem:[%s7 + $0x34] sm:$0xf]
      %v717 = vld [vmem:[%s7 + $0x38] sm:$0xf]
      %v718 = vld [vmem:[%s7 + $0x3c] sm:$0xf]
      %v719 = vld [vmem:[%s8] sm:$0x1]
      %v721 = vlaneseq
      %v722 = vshrl.u32 %v721, 7
      %v723 = vsub.s32 0, %v722
      %v724 = vrot.slane %v719, %v723
      %v780 = vunpack.c.l.b16 %v595
      %v781 = vunpack.c.l.b16 %v596
      %v782 = vunpack.c.l.b16 %v597
      %v783 = vunpack.c.l.b16 %v601
      %v784 = vunpack.c.l.b16 %v602
      %v785 = vunpack.c.l.b16 %v603
      %v786 = vunpack.c.l.b16 %v604
      %v787 = vunpack.c.l.b16 %v605
      %v788 = vunpack.c.l.b16 %v606
      %v789 = vunpack.c.l.b16 %v607
      %v790 = vunpack.c.l.b16 %v608
      %v791 = vunpack.c.l.b16 %v609
      %v792 = vunpack.c.l.b16 %v610
      %v793 = vunpack.c.l.b16 %v611
      %v794 = vunpack.c.l.b16 %v612
      %v795 = vunpack.c.l.b16 %v613
      %v796 = vunpack.c.l.b16 %v614
      %v797 = vunpack.c.l.b16 %v615
      %v798 = vunpack.c.l.b16 %v616
      %v799 = vunpack.c.l.b16 %v617
      %v800 = vunpack.c.l.b16 %v618
      %v801 = vunpack.c.l.b16 %v619
      %v802 = vunpack.c.l.b16 %v620
      %v803 = vunpack.c.l.b16 %v621
      %v804 = vunpack.c.l.b16 %v622
      %v805 = vunpack.c.l.b16 %v623
      %v806 = vunpack.c.l.b16 %v624
      %v807 = vunpack.c.l.b16 %v625
      %v808 = vunpack.c.l.b16 %v626
      %v809 = vunpack.c.l.b16 %v627
      %v810 = vunpack.c.l.b16 %v628
      %v811 = vunpack.c.l.b16 %v629
      %v812 = vunpack.c.l.b16 %v630
      %v813 = vunpack.c.l.b16 %v631
      %v814 = vunpack.c.l.b16 %v632
      %v815 = vunpack.c.l.b16 %v633
      %v816 = vunpack.c.l.b16 %v634
      %v817 = vunpack.c.l.b16 %v635
      %v818 = vunpack.c.l.b16 %v636
      %v819 = vunpack.c.l.b16 %v637
      %v820 = vunpack.c.l.b16 %v638
      %v821 = vunpack.c.l.b16 %v639
      %v822 = vunpack.c.l.b16 %v640
      %v823 = vunpack.c.l.b16 %v641
      %v824 = vunpack.c.l.b16 %v642
      %v825 = vunpack.c.l.b16 %v643
      %v826 = vunpack.c.l.b16 %v644
      %v827 = vunpack.c.l.b16 %v645
      %v828 = vunpack.c.l.b16 %v646
      %v829 = vunpack.c.l.b16 %v647
      %v830 = vunpack.c.l.b16 %v648
      %v831 = vunpack.c.l.b16 %v598
      %v832 = vunpack.c.l.b16 %v599
      %v833 = vunpack.c.l.b16 %v600
      %v834 = vpack.c.b16 %v781, %v780
      %v835 = vpack.c.b16 %v783, %v782
      %v836 = vpack.c.b16 %v785, %v784
      %v837 = vpack.c.b16 %v787, %v786
      %v838 = vpack.c.b16 %v789, %v788
      %v839 = vpack.c.b16 %v791, %v790
      %v840 = vpack.c.b16 %v793, %v792
      %v841 = vpack.c.b16 %v795, %v794
      %v842 = vpack.c.b16 %v797, %v796
      %v843 = vpack.c.b16 %v799, %v798
      %v844 = vpack.c.b16 %v801, %v800
      %v845 = vpack.c.b16 %v803, %v802
      %v846 = vpack.c.b16 %v805, %v804
      %v847 = vpack.c.b16 %v807, %v806
      %v848 = vpack.c.b16 %v809, %v808
      %v849 = vpack.c.b16 %v811, %v810
      %v850 = vpack.c.b16 %v813, %v812
      %v851 = vpack.c.b16 %v815, %v814
      %v852 = vpack.c.b16 %v817, %v816
      %v853 = vpack.c.b16 %v819, %v818
      %v854 = vpack.c.b16 %v821, %v820
      %v855 = vpack.c.b16 %v823, %v822
      %v856 = vpack.c.b16 %v825, %v824
      %v857 = vpack.c.b16 %v827, %v826
      %v858 = vpack.c.b16 %v829, %v828
      %v859 = vpack.c.b16 %v831, %v830
      %v860 = vpack.c.b16 %v833, %v832
      %v904 = vunpack.c.l.b16 %v703
      %v905 = vunpack.c.l.b16 %v704
      %v906 = vunpack.c.l.b16 %v705
      %v907 = vunpack.c.l.b16 %v706
      %v908 = vunpack.c.l.b16 %v707
      %v909 = vunpack.c.l.b16 %v708
      %v910 = vunpack.c.l.b16 %v709
      %v911 = vunpack.c.l.b16 %v710
      %v912 = vunpack.c.l.b16 %v711
      %v913 = vunpack.c.l.b16 %v712
      %v914 = vunpack.c.l.b16 %v713
      %v915 = vunpack.c.l.b16 %v714
      %v916 = vunpack.c.l.b16 %v715
      %v917 = vunpack.c.l.b16 %v716
      %v918 = vunpack.c.l.b16 %v717
      %v919 = vunpack.c.l.b16 %v718
      %v920 = vpack.c.b16 %v905, %v904
      %v921 = vpack.c.b16 %v907, %v906
      %v922 = vpack.c.b16 %v909, %v908
      %v923 = vpack.c.b16 %v911, %v910
      %v924 = vpack.c.b16 %v913, %v912
      %v925 = vpack.c.b16 %v915, %v914
      %v926 = vpack.c.b16 %v917, %v916
      %v927 = vpack.c.b16 %v919, %v918
      %936 = vmatprep.subr.bf16.mxu0 0
      %937 = vmatpush1.bf16.msra.mxu0 %v920
      %938 = vmatprep.subr.bf16.mxu0 0
      %939 = vmatpush1.bf16.msra.mxu0 %v921
      %940 = vmatprep.subr.bf16.mxu0 0
      %941 = vmatpush1.bf16.msra.mxu0 %v922
      %942 = vmatprep.subr.bf16.mxu0 0
      %943 = vmatpush1.bf16.msra.mxu0 %v923
      %944 = vmatprep.subr.bf16.mxu0 0
      %945 = vmatpush1.bf16.msra.mxu0 %v924
      %946 = vmatprep.subr.bf16.mxu0 0
      %947 = vmatpush1.bf16.msra.mxu0 %v925
      %948 = vmatprep.subr.bf16.mxu0 0
      %949 = vmatpush1.bf16.msra.mxu0 %v926
      %950 = vmatprep.subr.bf16.mxu0 0
      %951 = vmatpush1.bf16.msra.mxu0 %v927
      %952 = vmatprep.subr.bf16.mxu0 0
      %953 = vmatpush1.bf16.msra.mxu0 0
      %954 = vmatprep.subr.bf16.mxu0 0
      %955 = vmatpush1.bf16.msra.mxu0 0
      %956 = vmatprep.subr.bf16.mxu0 0
      %957 = vmatpush1.bf16.msra.mxu0 0
      %958 = vmatprep.subr.bf16.mxu0 0
      %959 = vmatpush1.bf16.msra.mxu0 0
      %960 = vmatprep.subr.bf16.mxu0 0
      %961 = vmatpush1.bf16.msra.mxu0 0
      %962 = vmatprep.subr.bf16.mxu0 0
      %963 = vmatpush1.bf16.msra.mxu0 0
      %964 = vmatprep.subr.bf16.mxu0 0
      %965 = vmatpush1.bf16.msra.mxu0 0
      %966 = vmatprep.subr.bf16.mxu0 0
      %967 = vmatpush1.bf16.msra.mxu0 0
      %968 = vmatprep.mubr.bf16.mxu0 0
      %969 = vmatmul.mubr.bf16.gmra.mrb[0].mxu0 %v834
      %v970 = vpop.f32.mrb[0].mxu0
      %v971 = vadd.f32 %v724, %v970
      %v972 = vpop.f32.mrb[0].mxu0
      %v973 = vpop.f32.mrb[0].mxu0
      %v974 = vadd.f32 %v724, %v973
      %v975 = vpop.f32.mrb[0].mxu0
      %976 = vmatprep.mubr.bf16.mxu0 0
      %977 = vmatmul.mubr.bf16.gmra.mrb[0].mxu0 %v835
      %v978 = vpop.f32.mrb[0].mxu0
      %v979 = vadd.f32 %v724, %v978
      %v980 = vpop.f32.mrb[0].mxu0
      %v981 = vpop.f32.mrb[0].mxu0
      %v982 = vadd.f32 %v724, %v981
      %v983 = vpop.f32.mrb[0].mxu0
      %984 = vmatprep.mubr.bf16.mxu0 0
      %985 = vmatmul.mubr.bf16.gmra.mrb[0].mxu0 %v836
      %v986 = vpop.f32.mrb[0].mxu0
      %v987 = vadd.f32 %v724, %v986
      %v988 = vpop.f32.mrb[0].mxu0
      %v989 = vpop.f32.mrb[0].mxu0
      %v990 = vadd.f32 %v724, %v989
      %v991 = vpop.f32.mrb[0].mxu0
      %992 = vmatprep.mubr.bf16.mxu0 0
      %993 = vmatmul.mubr.bf16.gmra.mrb[0].mxu0 %v837
      %v994 = vpop.f32.mrb[0].mxu0
      %v995 = vadd.f32 %v724, %v994
      %v996 = vpop.f32.mrb[0].mxu0
      %v997 = vpop.f32.mrb[0].mxu0
      %v998 = vadd.f32 %v724, %v997
      %v999 = vpop.f32.mrb[0].mxu0
      %1000 = vmatprep.mubr.bf16.mxu0 0
      %1001 = vmatmul.mubr.bf16.gmra.mrb[0].mxu0 %v838
      %v1002 = vpop.f32.mrb[0].mxu0
      %v1003 = vadd.f32 %v724, %v1002
      %v1004 = vpop.f32.mrb[0].mxu0
      %v1005 = vpop.f32.mrb[0].mxu0
      %v1006 = vadd.f32 %v724, %v1005
      %v1007 = vpop.f32.mrb[0].mxu0
      %1008 = vmatprep.mubr.bf16.mxu0 0
      %1009 = vmatmul.mubr.bf16.gmra.mrb[0].mxu0 %v839
      %v1010 = vpop.f32.mrb[0].mxu0
      %v1011 = vadd.f32 %v724, %v1010
      %v1012 = vpop.f32.mrb[0].mxu0
      %v1013 = vpop.f32.mrb[0].mxu0
      %v1014 = vadd.f32 %v724, %v1013
      %v1015 = vpop.f32.mrb[0].mxu0
      %1016 = vmatprep.mubr.bf16.mxu0 0
      %1017 = vmatmul.mubr.bf16.gmra.mrb[0].mxu0 %v840
      %v1018 = vpop.f32.mrb[0].mxu0
      %v1019 = vadd.f32 %v724, %v1018
      %v1020 = vpop.f32.mrb[0].mxu0
      %v1021 = vpop.f32.mrb[0].mxu0
      %v1022 = vadd.f32 %v724, %v1021
      %v1023 = vpop.f32.mrb[0].mxu0
      %1024 = vmatprep.mubr.bf16.mxu0 0
      %1025 = vmatmul.mubr.bf16.gmra.mrb[0].mxu0 %v841
      %v1026 = vpop.f32.mrb[0].mxu0
      %v1027 = vadd.f32 %v724, %v1026
      %v1028 = vpop.f32.mrb[0].mxu0
      %v1029 = vpop.f32.mrb[0].mxu0
      %v1030 = vadd.f32 %v724, %v1029
      %v1031 = vpop.f32.mrb[0].mxu0
      %1032 = vmatprep.mubr.bf16.mxu0 0
      %1033 = vmatmul.mubr.bf16.gmra.mrb[0].mxu0 %v842
      %v1034 = vpop.f32.mrb[0].mxu0
      %v1035 = vadd.f32 %v724, %v1034
      %v1036 = vpop.f32.mrb[0].mxu0
      %v1037 = vpop.f32.mrb[0].mxu0
      %v1038 = vadd.f32 %v724, %v1037
      %v1039 = vpop.f32.mrb[0].mxu0
      %1040 = vmatprep.mubr.bf16.mxu0 0
      %1041 = vmatmul.mubr.bf16.gmra.mrb[0].mxu0 %v843
      %v1042 = vpop.f32.mrb[0].mxu0
      %v1043 = vadd.f32 %v724, %v1042
      %v1044 = vpop.f32.mrb[0].mxu0
      %v1045 = vpop.f32.mrb[0].mxu0
      %v1046 = vadd.f32 %v724, %v1045
      %v1047 = vpop.f32.mrb[0].mxu0
      %1048 = vmatprep.mubr.bf16.mxu0 0
      %1049 = vmatmul.mubr.bf16.gmra.mrb[0].mxu0 %v844
      %v1050 = vpop.f32.mrb[0].mxu0
      %v1051 = vadd.f32 %v724, %v1050
      %v1052 = vpop.f32.mrb[0].mxu0
      %v1053 = vpop.f32.mrb[0].mxu0
      %v1054 = vadd.f32 %v724, %v1053
      %v1055 = vpop.f32.mrb[0].mxu0
      %1056 = vmatprep.mubr.bf16.mxu0 0
      %1057 = vmatmul.mubr.bf16.gmra.mrb[0].mxu0 %v845
      %v1058 = vpop.f32.mrb[0].mxu0
      %v1059 = vadd.f32 %v724, %v1058
      %v1060 = vpop.f32.mrb[0].mxu0
      %v1061 = vpop.f32.mrb[0].mxu0
      %v1062 = vadd.f32 %v724, %v1061
      %v1063 = vpop.f32.mrb[0].mxu0
      %1064 = vmatprep.mubr.bf16.mxu0 0
      %1065 = vmatmul.mubr.bf16.gmra.mrb[0].mxu0 %v846
      %v1066 = vpop.f32.mrb[0].mxu0
      %v1067 = vadd.f32 %v724, %v1066
      %v1068 = vpop.f32.mrb[0].mxu0
      %v1069 = vpop.f32.mrb[0].mxu0
      %v1070 = vadd.f32 %v724, %v1069
      %v1071 = vpop.f32.mrb[0].mxu0
      %1072 = vmatprep.mubr.bf16.mxu0 0
      %1073 = vmatmul.mubr.bf16.gmra.mrb[0].mxu0 %v847
      %v1074 = vpop.f32.mrb[0].mxu0
      %v1075 = vadd.f32 %v724, %v1074
      %v1076 = vpop.f32.mrb[0].mxu0
      %v1077 = vpop.f32.mrb[0].mxu0
      %v1078 = vadd.f32 %v724, %v1077
      %v1079 = vpop.f32.mrb[0].mxu0
      %1080 = vmatprep.mubr.bf16.mxu0 0
      %1081 = vmatmul.mubr.bf16.gmra.mrb[0].mxu0 %v848
      %v1082 = vpop.f32.mrb[0].mxu0
      %v1083 = vadd.f32 %v724, %v1082
      %v1084 = vpop.f32.mrb[0].mxu0
      %v1085 = vpop.f32.mrb[0].mxu0
      %v1086 = vadd.f32 %v724, %v1085
      %v1087 = vpop.f32.mrb[0].mxu0
      %1088 = vmatprep.mubr.bf16.mxu0 0
      %1089 = vmatmul.mubr.bf16.gmra.mrb[0].mxu0 %v849
      %v1090 = vpop.f32.mrb[0].mxu0
      %v1091 = vadd.f32 %v724, %v1090
      %v1092 = vpop.f32.mrb[0].mxu0
      %v1093 = vpop.f32.mrb[0].mxu0
      %v1094 = vadd.f32 %v724, %v1093
      %v1095 = vpop.f32.mrb[0].mxu0
      %1096 = vmatprep.mubr.bf16.mxu0 0
      %1097 = vmatmul.mubr.bf16.gmra.mrb[0].mxu0 %v850
      %v1098 = vpop.f32.mrb[0].mxu0
      %v1099 = vadd.f32 %v724, %v1098
      %v1100 = vpop.f32.mrb[0].mxu0
      %v1101 = vpop.f32.mrb[0].mxu0
      %v1102 = vadd.f32 %v724, %v1101
      %v1103 = vpop.f32.mrb[0].mxu0
      %1104 = vmatprep.mubr.bf16.mxu0 0
      %1105 = vmatmul.mubr.bf16.gmra.mrb[0].mxu0 %v851
      %v1106 = vpop.f32.mrb[0].mxu0
      %v1107 = vadd.f32 %v724, %v1106
      %v1108 = vpop.f32.mrb[0].mxu0
      %v1109 = vpop.f32.mrb[0].mxu0
      %v1110 = vadd.f32 %v724, %v1109
      %v1111 = vpop.f32.mrb[0].mxu0
      %1112 = vmatprep.mubr.bf16.mxu0 0
      %1113 = vmatmul.mubr.bf16.gmra.mrb[0].mxu0 %v852
      %v1114 = vpop.f32.mrb[0].mxu0
      %v1115 = vadd.f32 %v724, %v1114
      %v1116 = vpop.f32.mrb[0].mxu0
      %v1117 = vpop.f32.mrb[0].mxu0
      %v1118 = vadd.f32 %v724, %v1117
      %v1119 = vpop.f32.mrb[0].mxu0
      %1120 = vmatprep.mubr.bf16.mxu0 0
      %1121 = vmatmul.mubr.bf16.gmra.mrb[0].mxu0 %v853
      %v1122 = vpop.f32.mrb[0].mxu0
      %v1123 = vadd.f32 %v724, %v1122
      %v1124 = vpop.f32.mrb[0].mxu0
      %v1125 = vpop.f32.mrb[0].mxu0
      %v1126 = vadd.f32 %v724, %v1125
      %v1127 = vpop.f32.mrb[0].mxu0
      %1128 = vmatprep.mubr.bf16.mxu0 0
      %1129 = vmatmul.mubr.bf16.gmra.mrb[0].mxu0 %v854
      %v1130 = vpop.f32.mrb[0].mxu0
      %v1131 = vadd.f32 %v724, %v1130
      %v1132 = vpop.f32.mrb[0].mxu0
      %v1133 = vpop.f32.mrb[0].mxu0
      %v1134 = vadd.f32 %v724, %v1133
      %v1135 = vpop.f32.mrb[0].mxu0
      %1136 = vmatprep.mubr.bf16.mxu0 0
      %1137 = vmatmul.mubr.bf16.gmra.mrb[0].mxu0 %v855
      %v1138 = vpop.f32.mrb[0].mxu0
      %v1139 = vadd.f32 %v724, %v1138
      %v1140 = vpop.f32.mrb[0].mxu0
      %v1141 = vpop.f32.mrb[0].mxu0
      %v1142 = vadd.f32 %v724, %v1141
      %v1143 = vpop.f32.mrb[0].mxu0
      %1144 = vmatprep.mubr.bf16.mxu0 0
      %1145 = vmatmul.mubr.bf16.gmra.mrb[0].mxu0 %v856
      %v1146 = vpop.f32.mrb[0].mxu0
      %v1147 = vadd.f32 %v724, %v1146
      %v1148 = vpop.f32.mrb[0].mxu0
      %v1149 = vpop.f32.mrb[0].mxu0
      %v1150 = vadd.f32 %v724, %v1149
      %v1151 = vpop.f32.mrb[0].mxu0
      %1152 = vmatprep.mubr.bf16.mxu0 0
      %1153 = vmatmul.mubr.bf16.gmra.mrb[0].mxu0 %v857
      %v1154 = vpop.f32.mrb[0].mxu0
      %v1155 = vadd.f32 %v724, %v1154
      %v1156 = vpop.f32.mrb[0].mxu0
      %v1157 = vpop.f32.mrb[0].mxu0
      %v1158 = vadd.f32 %v724, %v1157
      %v1159 = vpop.f32.mrb[0].mxu0
      %1160 = vmatprep.mubr.bf16.mxu0 0
      %1161 = vmatmul.mubr.bf16.gmra.mrb[0].mxu0 %v858
      %v1162 = vpop.f32.mrb[0].mxu0
      %v1163 = vadd.f32 %v724, %v1162
      %v1164 = vpop.f32.mrb[0].mxu0
      %v1165 = vpop.f32.mrb[0].mxu0
      %v1166 = vadd.f32 %v724, %v1165
      %v1167 = vpop.f32.mrb[0].mxu0
      %1168 = vmatprep.mubr.bf16.mxu0 0
      %1169 = vmatmul.mubr.bf16.gmra.mrb[0].mxu0 %v859
      %v1170 = vpop.f32.mrb[0].mxu0
      %v1171 = vadd.f32 %v724, %v1170
      %v1172 = vpop.f32.mrb[0].mxu0
      %v1173 = vpop.f32.mrb[0].mxu0
      %v1174 = vadd.f32 %v724, %v1173
      %v1175 = vpop.f32.mrb[0].mxu0
      %1176 = vmatprep.mubr.bf16.mxu0 0
      %1177 = vmatmul.mubr.bf16.gmra.mrb[0].mxu0 %v860
      %v1178 = vpop.f32.mrb[0].mxu0
      %v1179 = vadd.f32 %v724, %v1178
      %v1180 = vpop.f32.mrb[0].mxu0
      %v1181 = vpop.f32.mrb[0].mxu0
      %v1182 = vadd.f32 %v724, %v1181
      %v1183 = vpop.f32.mrb[0].mxu0
      %1184 = vdwg.mxu0
      %v1185 = vld [vmem:[%s9] sm:$0xf]
      %v1186 = vld [vmem:[%s9 + $0x4] sm:$0xf]
      %v1187 = vld [vmem:[%s9 + $0x8] sm:$0xf]
      %v1188 = vld [vmem:[%s9 + $0xc] sm:$0xf]
      %v1189 = vld [vmem:[%s9 + $0x10] sm:$0xf]
      %v1190 = vld [vmem:[%s9 + $0x14] sm:$0xf]
      %v1191 = vld [vmem:[%s9 + $0x18] sm:$0xf]
      %v1192 = vld [vmem:[%s9 + $0x1c] sm:$0xf]
      %v1193 = vld [vmem:[%s9 + $0x20] sm:$0xf]
      %v1194 = vld [vmem:[%s9 + $0x24] sm:$0xf]
      %v1195 = vld [vmem:[%s9 + $0x28] sm:$0xf]
      %v1196 = vld [vmem:[%s9 + $0x2c] sm:$0xf]
      %v1197 = vld [vmem:[%s9 + $0x30] sm:$0xf]
      %v1198 = vld [vmem:[%s9 + $0x34] sm:$0xf]
      %v1199 = vld [vmem:[%s9 + $0x38] sm:$0xf]
      %v1200 = vld [vmem:[%s9 + $0x3c] sm:$0xf]
      %v1201 = vld [vmem:[%s10] sm:$0x1]
      %v1203 = vlaneseq
      %v1204 = vshrl.u32 %v1203, 7
      %v1205 = vsub.s32 0, %v1204
      %v1206 = vrot.slane %v1201, %v1205
      %v1262 = vunpack.c.l.b16 %v649
      %v1263 = vunpack.c.l.b16 %v650
      %v1264 = vunpack.c.l.b16 %v651
      %v1265 = vunpack.c.l.b16 %v655
      %v1266 = vunpack.c.l.b16 %v656
      %v1267 = vunpack.c.l.b16 %v657
      %v1268 = vunpack.c.l.b16 %v658
      %v1269 = vunpack.c.l.b16 %v659
      %v1270 = vunpack.c.l.b16 %v660
      %v1271 = vunpack.c.l.b16 %v661
      %v1272 = vunpack.c.l.b16 %v662
      %v1273 = vunpack.c.l.b16 %v663
      %v1274 = vunpack.c.l.b16 %v664
      %v1275 = vunpack.c.l.b16 %v665
      %v1276 = vunpack.c.l.b16 %v666
      %v1277 = vunpack.c.l.b16 %v667
      %v1278 = vunpack.c.l.b16 %v668
      %v1279 = vunpack.c.l.b16 %v669
      %v1280 = vunpack.c.l.b16 %v670
      %v1281 = vunpack.c.l.b16 %v671
      %v1282 = vunpack.c.l.b16 %v672
      %v1283 = vunpack.c.l.b16 %v673
      %v1284 = vunpack.c.l.b16 %v674
      %v1285 = vunpack.c.l.b16 %v675
      %v1286 = vunpack.c.l.b16 %v676
      %v1287 = vunpack.c.l.b16 %v677
      %v1288 = vunpack.c.l.b16 %v678
      %v1289 = vunpack.c.l.b16 %v679
      %v1290 = vunpack.c.l.b16 %v680
      %v1291 = vunpack.c.l.b16 %v681
      %v1292 = vunpack.c.l.b16 %v682
      %v1293 = vunpack.c.l.b16 %v683
      %v1294 = vunpack.c.l.b16 %v684
      %v1295 = vunpack.c.l.b16 %v685
      %v1296 = vunpack.c.l.b16 %v686
      %v1297 = vunpack.c.l.b16 %v687
      %v1298 = vunpack.c.l.b16 %v688
      %v1299 = vunpack.c.l.b16 %v689
      %v1300 = vunpack.c.l.b16 %v690
      %v1301 = vunpack.c.l.b16 %v691
      %v1302 = vunpack.c.l.b16 %v692
      %v1303 = vunpack.c.l.b16 %v693
      %v1304 = vunpack.c.l.b16 %v694
      %v1305 = vunpack.c.l.b16 %v695
      %v1306 = vunpack.c.l.b16 %v696
      %v1307 = vunpack.c.l.b16 %v697
      %v1308 = vunpack.c.l.b16 %v698
      %v1309 = vunpack.c.l.b16 %v699
      %v1310 = vunpack.c.l.b16 %v700
      %v1311 = vunpack.c.l.b16 %v701
      %v1312 = vunpack.c.l.b16 %v702
      %v1313 = vunpack.c.l.b16 %v652
      %v1314 = vunpack.c.l.b16 %v653
      %v1315 = vunpack.c.l.b16 %v654
      %v1316 = vpack.c.b16 %v1263, %v1262
      %v1317 = vpack.c.b16 %v1265, %v1264
      %v1318 = vpack.c.b16 %v1267, %v1266
      %v1319 = vpack.c.b16 %v1269, %v1268
      %v1320 = vpack.c.b16 %v1271, %v1270
      %v1321 = vpack.c.b16 %v1273, %v1272
      %v1322 = vpack.c.b16 %v1275, %v1274
      %v1323 = vpack.c.b16 %v1277, %v1276
      %v1324 = vpack.c.b16 %v1279, %v1278
      %v1325 = vpack.c.b16 %v1281, %v1280
      %v1326 = vpack.c.b16 %v1283, %v1282
      %v1327 = vpack.c.b16 %v1285, %v1284
      %v1328 = vpack.c.b16 %v1287, %v1286
      %v1329 = vpack.c.b16 %v1289, %v1288
      %v1330 = vpack.c.b16 %v1291, %v1290
      %v1331 = vpack.c.b16 %v1293, %v1292
      %v1332 = vpack.c.b16 %v1295, %v1294
      %v1333 = vpack.c.b16 %v1297, %v1296
      %v1334 = vpack.c.b16 %v1299, %v1298
      %v1335 = vpack.c.b16 %v1301, %v1300
      %v1336 = vpack.c.b16 %v1303, %v1302
      %v1337 = vpack.c.b16 %v1305, %v1304
      %v1338 = vpack.c.b16 %v1307, %v1306
      %v1339 = vpack.c.b16 %v1309, %v1308
      %v1340 = vpack.c.b16 %v1311, %v1310
      %v1341 = vpack.c.b16 %v1313, %v1312
      %v1342 = vpack.c.b16 %v1315, %v1314
      %v1386 = vunpack.c.l.b16 %v1185
      %v1387 = vunpack.c.l.b16 %v1186
      %v1388 = vunpack.c.l.b16 %v1187
      %v1389 = vunpack.c.l.b16 %v1188
      %v1390 = vunpack.c.l.b16 %v1189
      %v1391 = vunpack.c.l.b16 %v1190
      %v1392 = vunpack.c.l.b16 %v1191
      %v1393 = vunpack.c.l.b16 %v1192
      %v1394 = vunpack.c.l.b16 %v1193
      %v1395 = vunpack.c.l.b16 %v1194
      %v1396 = vunpack.c.l.b16 %v1195
      %v1397 = vunpack.c.l.b16 %v1196
      %v1398 = vunpack.c.l.b16 %v1197
      %v1399 = vunpack.c.l.b16 %v1198
      %v1400 = vunpack.c.l.b16 %v1199
      %v1401 = vunpack.c.l.b16 %v1200
      %v1402 = vpack.c.b16 %v1387, %v1386
      %v1403 = vpack.c.b16 %v1389, %v1388
      %v1404 = vpack.c.b16 %v1391, %v1390
      %v1405 = vpack.c.b16 %v1393, %v1392
      %v1406 = vpack.c.b16 %v1395, %v1394
      %v1407 = vpack.c.b16 %v1397, %v1396
      %v1408 = vpack.c.b16 %v1399, %v1398
      %v1409 = vpack.c.b16 %v1401, %v1400
      %1418 = vmatprep.subr.bf16.mxu0 0
      %1419 = vmatpush1.bf16.msra.mxu0 %v1402
      %1420 = vmatprep.subr.bf16.mxu0 0
      %1421 = vmatpush1.bf16.msra.mxu0 %v1403
      %1422 = vmatprep.subr.bf16.mxu0 0
      %1423 = vmatpush1.bf16.msra.mxu0 %v1404
      %1424 = vmatprep.subr.bf16.mxu0 0
      %1425 = vmatpush1.bf16.msra.mxu0 %v1405
      %1426 = vmatprep.subr.bf16.mxu0 0
      %1427 = vmatpush1.bf16.msra.mxu0 %v1406
      %1428 = vmatprep.subr.bf16.mxu0 0
      %1429 = vmatpush1.bf16.msra.mxu0 %v1407
      %1430 = vmatprep.subr.bf16.mxu0 0
      %1431 = vmatpush1.bf16.msra.mxu0 %v1408
      %1432 = vmatprep.subr.bf16.mxu0 0
      %1433 = vmatpush1.bf16.msra.mxu0 %v1409
      %1434 = vmatprep.subr.bf16.mxu0 0
      %1435 = vmatpush1.bf16.msra.mxu0 0
      %1436 = vmatprep.subr.bf16.mxu0 0
      %1437 = vmatpush1.bf16.msra.mxu0 0
      %1438 = vmatprep.subr.bf16.mxu0 0
      %1439 = vmatpush1.bf16.msra.mxu0 0
      %1440 = vmatprep.subr.bf16.mxu0 0
      %1441 = vmatpush1.bf16.msra.mxu0 0
      %1442 = vmatprep.subr.bf16.mxu0 0
      %1443 = vmatpush1.bf16.msra.mxu0 0
      %1444 = vmatprep.subr.bf16.mxu0 0
      %1445 = vmatpush1.bf16.msra.mxu0 0
      %1446 = vmatprep.subr.bf16.mxu0 0
      %1447 = vmatpush1.bf16.msra.mxu0 0
      %1448 = vmatprep.subr.bf16.mxu0 0
      %1449 = vmatpush1.bf16.msra.mxu0 0
      %1450 = vmatprep.mubr.bf16.mxu0 0
      %1451 = vmatmul.mubr.bf16.gmra.mrb[0].mxu0 %v1316
      %v1452 = vpop.f32.mrb[0].mxu0
      %v1453 = vadd.f32 %v1206, %v1452
      %v1454 = vpop.f32.mrb[0].mxu0
      %v1455 = vpop.f32.mrb[0].mxu0
      %v1456 = vadd.f32 %v1206, %v1455
      %v1457 = vpop.f32.mrb[0].mxu0
      %1458 = vmatprep.mubr.bf16.mxu0 0
      %1459 = vmatmul.mubr.bf16.gmra.mrb[0].mxu0 %v1317
      %v1460 = vpop.f32.mrb[0].mxu0
      %v1461 = vadd.f32 %v1206, %v1460
      %v1462 = vpop.f32.mrb[0].mxu0
      %v1463 = vpop.f32.mrb[0].mxu0
      %v1464 = vadd.f32 %v1206, %v1463
      %v1465 = vpop.f32.mrb[0].mxu0
      %1466 = vmatprep.mubr.bf16.mxu0 0
      %1467 = vmatmul.mubr.bf16.gmra.mrb[0].mxu0 %v1318
      %v1468 = vpop.f32.mrb[0].mxu0
      %v1469 = vadd.f32 %v1206, %v1468
      %v1470 = vpop.f32.mrb[0].mxu0
      %v1471 = vpop.f32.mrb[0].mxu0
      %v1472 = vadd.f32 %v1206, %v1471
      %v1473 = vpop.f32.mrb[0].mxu0
      %1474 = vmatprep.mubr.bf16.mxu0 0
      %1475 = vmatmul.mubr.bf16.gmra.mrb[0].mxu0 %v1319
      %v1476 = vpop.f32.mrb[0].mxu0
      %v1477 = vadd.f32 %v1206, %v1476
      %v1478 = vpop.f32.mrb[0].mxu0
      %v1479 = vpop.f32.mrb[0].mxu0
      %v1480 = vadd.f32 %v1206, %v1479
      %v1481 = vpop.f32.mrb[0].mxu0
      %1482 = vmatprep.mubr.bf16.mxu0 0
      %1483 = vmatmul.mubr.bf16.gmra.mrb[0].mxu0 %v1320
      %v1484 = vpop.f32.mrb[0].mxu0
      %v1485 = vadd.f32 %v1206, %v1484
      %v1486 = vpop.f32.mrb[0].mxu0
      %v1487 = vpop.f32.mrb[0].mxu0
      %v1488 = vadd.f32 %v1206, %v1487
      %v1489 = vpop.f32.mrb[0].mxu0
      %1490 = vmatprep.mubr.bf16.mxu0 0
      %1491 = vmatmul.mubr.bf16.gmra.mrb[0].mxu0 %v1321
      %v1492 = vpop.f32.mrb[0].mxu0
      %v1493 = vadd.f32 %v1206, %v1492
      %v1494 = vpop.f32.mrb[0].mxu0
      %v1495 = vpop.f32.mrb[0].mxu0
      %v1496 = vadd.f32 %v1206, %v1495
      %v1497 = vpop.f32.mrb[0].mxu0
      %1498 = vmatprep.mubr.bf16.mxu0 0
      %1499 = vmatmul.mubr.bf16.gmra.mrb[0].mxu0 %v1322
      %v1500 = vpop.f32.mrb[0].mxu0
      %v1501 = vadd.f32 %v1206, %v1500
      %v1502 = vpop.f32.mrb[0].mxu0
      %v1503 = vpop.f32.mrb[0].mxu0
      %v1504 = vadd.f32 %v1206, %v1503
      %v1505 = vpop.f32.mrb[0].mxu0
      %1506 = vmatprep.mubr.bf16.mxu0 0
      %1507 = vmatmul.mubr.bf16.gmra.mrb[0].mxu0 %v1323
      %v1508 = vpop.f32.mrb[0].mxu0
      %v1509 = vadd.f32 %v1206, %v1508
      %v1510 = vpop.f32.mrb[0].mxu0
      %v1511 = vpop.f32.mrb[0].mxu0
      %v1512 = vadd.f32 %v1206, %v1511
      %v1513 = vpop.f32.mrb[0].mxu0
      %1514 = vmatprep.mubr.bf16.mxu0 0
      %1515 = vmatmul.mubr.bf16.gmra.mrb[0].mxu0 %v1324
      %v1516 = vpop.f32.mrb[0].mxu0
      %v1517 = vadd.f32 %v1206, %v1516
      %v1518 = vpop.f32.mrb[0].mxu0
      %v1519 = vpop.f32.mrb[0].mxu0
      %v1520 = vadd.f32 %v1206, %v1519
      %v1521 = vpop.f32.mrb[0].mxu0
      %1522 = vmatprep.mubr.bf16.mxu0 0
      %1523 = vmatmul.mubr.bf16.gmra.mrb[0].mxu0 %v1325
      %v1524 = vpop.f32.mrb[0].mxu0
      %v1525 = vadd.f32 %v1206, %v1524
      %v1526 = vpop.f32.mrb[0].mxu0
      %v1527 = vpop.f32.mrb[0].mxu0
      %v1528 = vadd.f32 %v1206, %v1527
      %v1529 = vpop.f32.mrb[0].mxu0
      %1530 = vmatprep.mubr.bf16.mxu0 0
      %1531 = vmatmul.mubr.bf16.gmra.mrb[0].mxu0 %v1326
      %v1532 = vpop.f32.mrb[0].mxu0
      %v1533 = vadd.f32 %v1206, %v1532
      %v1534 = vpop.f32.mrb[0].mxu0
      %v1535 = vpop.f32.mrb[0].mxu0
      %v1536 = vadd.f32 %v1206, %v1535
      %v1537 = vpop.f32.mrb[0].mxu0
      %1538 = vmatprep.mubr.bf16.mxu0 0
      %1539 = vmatmul.mubr.bf16.gmra.mrb[0].mxu0 %v1327
      %v1540 = vpop.f32.mrb[0].mxu0
      %v1541 = vadd.f32 %v1206, %v1540
      %v1542 = vpop.f32.mrb[0].mxu0
      %v1543 = vpop.f32.mrb[0].mxu0
      %v1544 = vadd.f32 %v1206, %v1543
      %v1545 = vpop.f32.mrb[0].mxu0
      %1546 = vmatprep.mubr.bf16.mxu0 0
      %1547 = vmatmul.mubr.bf16.gmra.mrb[0].mxu0 %v1328
      %v1548 = vpop.f32.mrb[0].mxu0
      %v1549 = vadd.f32 %v1206, %v1548
      %v1550 = vpop.f32.mrb[0].mxu0
      %v1551 = vpop.f32.mrb[0].mxu0
      %v1552 = vadd.f32 %v1206, %v1551
      %v1553 = vpop.f32.mrb[0].mxu0
      %1554 = vmatprep.mubr.bf16.mxu0 0
      %1555 = vmatmul.mubr.bf16.gmra.mrb[0].mxu0 %v1329
      %v1556 = vpop.f32.mrb[0].mxu0
      %v1557 = vadd.f32 %v1206, %v1556
      %v1558 = vpop.f32.mrb[0].mxu0
      %v1559 = vpop.f32.mrb[0].mxu0
      %v1560 = vadd.f32 %v1206, %v1559
      %v1561 = vpop.f32.mrb[0].mxu0
      %1562 = vmatprep.mubr.bf16.mxu0 0
      %1563 = vmatmul.mubr.bf16.gmra.mrb[0].mxu0 %v1330
      %v1564 = vpop.f32.mrb[0].mxu0
      %v1565 = vadd.f32 %v1206, %v1564
      %v1566 = vpop.f32.mrb[0].mxu0
      %v1567 = vpop.f32.mrb[0].mxu0
      %v1568 = vadd.f32 %v1206, %v1567
      %v1569 = vpop.f32.mrb[0].mxu0
      %1570 = vmatprep.mubr.bf16.mxu0 0
      %1571 = vmatmul.mubr.bf16.gmra.mrb[0].mxu0 %v1331
      %v1572 = vpop.f32.mrb[0].mxu0
      %v1573 = vadd.f32 %v1206, %v1572
      %v1574 = vpop.f32.mrb[0].mxu0
      %v1575 = vpop.f32.mrb[0].mxu0
      %v1576 = vadd.f32 %v1206, %v1575
      %v1577 = vpop.f32.mrb[0].mxu0
      %1578 = vmatprep.mubr.bf16.mxu0 0
      %1579 = vmatmul.mubr.bf16.gmra.mrb[0].mxu0 %v1332
      %v1580 = vpop.f32.mrb[0].mxu0
      %v1581 = vadd.f32 %v1206, %v1580
      %v1582 = vpop.f32.mrb[0].mxu0
      %v1583 = vpop.f32.mrb[0].mxu0
      %v1584 = vadd.f32 %v1206, %v1583
      %v1585 = vpop.f32.mrb[0].mxu0
      %1586 = vmatprep.mubr.bf16.mxu0 0
      %1587 = vmatmul.mubr.bf16.gmra.mrb[0].mxu0 %v1333
      %v1588 = vpop.f32.mrb[0].mxu0
      %v1589 = vadd.f32 %v1206, %v1588
      %v1590 = vpop.f32.mrb[0].mxu0
      %v1591 = vpop.f32.mrb[0].mxu0
      %v1592 = vadd.f32 %v1206, %v1591
      %v1593 = vpop.f32.mrb[0].mxu0
      %1594 = vmatprep.mubr.bf16.mxu0 0
      %1595 = vmatmul.mubr.bf16.gmra.mrb[0].mxu0 %v1334
      %v1596 = vpop.f32.mrb[0].mxu0
      %v1597 = vadd.f32 %v1206, %v1596
      %v1598 = vpop.f32.mrb[0].mxu0
      %v1599 = vpop.f32.mrb[0].mxu0
      %v1600 = vadd.f32 %v1206, %v1599
      %v1601 = vpop.f32.mrb[0].mxu0
      %1602 = vmatprep.mubr.bf16.mxu0 0
      %1603 = vmatmul.mubr.bf16.gmra.mrb[0].mxu0 %v1335
      %v1604 = vpop.f32.mrb[0].mxu0
      %v1605 = vadd.f32 %v1206, %v1604
      %v1606 = vpop.f32.mrb[0].mxu0
      %v1607 = vpop.f32.mrb[0].mxu0
      %v1608 = vadd.f32 %v1206, %v1607
      %v1609 = vpop.f32.mrb[0].mxu0
      %1610 = vmatprep.mubr.bf16.mxu0 0
      %1611 = vmatmul.mubr.bf16.gmra.mrb[0].mxu0 %v1336
      %v1612 = vpop.f32.mrb[0].mxu0
      %v1613 = vadd.f32 %v1206, %v1612
      %v1614 = vpop.f32.mrb[0].mxu0
      %v1615 = vpop.f32.mrb[0].mxu0
      %v1616 = vadd.f32 %v1206, %v1615
      %v1617 = vpop.f32.mrb[0].mxu0
      %1618 = vmatprep.mubr.bf16.mxu0 0
      %1619 = vmatmul.mubr.bf16.gmra.mrb[0].mxu0 %v1337
      %v1620 = vpop.f32.mrb[0].mxu0
      %v1621 = vadd.f32 %v1206, %v1620
      %v1622 = vpop.f32.mrb[0].mxu0
      %v1623 = vpop.f32.mrb[0].mxu0
      %v1624 = vadd.f32 %v1206, %v1623
      %v1625 = vpop.f32.mrb[0].mxu0
      %1626 = vmatprep.mubr.bf16.mxu0 0
      %1627 = vmatmul.mubr.bf16.gmra.mrb[0].mxu0 %v1338
      %v1628 = vpop.f32.mrb[0].mxu0
      %v1629 = vadd.f32 %v1206, %v1628
      %v1630 = vpop.f32.mrb[0].mxu0
      %v1631 = vpop.f32.mrb[0].mxu0
      %v1632 = vadd.f32 %v1206, %v1631
      %v1633 = vpop.f32.mrb[0].mxu0
      %1634 = vmatprep.mubr.bf16.mxu0 0
      %1635 = vmatmul.mubr.bf16.gmra.mrb[0].mxu0 %v1339
      %v1636 = vpop.f32.mrb[0].mxu0
      %v1637 = vadd.f32 %v1206, %v1636
      %v1638 = vpop.f32.mrb[0].mxu0
      %v1639 = vpop.f32.mrb[0].mxu0
      %v1640 = vadd.f32 %v1206, %v1639
      %v1641 = vpop.f32.mrb[0].mxu0
      %1642 = vmatprep.mubr.bf16.mxu0 0
      %1643 = vmatmul.mubr.bf16.gmra.mrb[0].mxu0 %v1340
      %v1644 = vpop.f32.mrb[0].mxu0
      %v1645 = vadd.f32 %v1206, %v1644
      %v1646 = vpop.f32.mrb[0].mxu0
      %v1647 = vpop.f32.mrb[0].mxu0
      %v1648 = vadd.f32 %v1206, %v1647
      %v1649 = vpop.f32.mrb[0].mxu0
      %1650 = vmatprep.mubr.bf16.mxu0 0
      %1651 = vmatmul.mubr.bf16.gmra.mrb[0].mxu0 %v1341
      %v1652 = vpop.f32.mrb[0].mxu0
      %v1653 = vadd.f32 %v1206, %v1652
      %v1654 = vpop.f32.mrb[0].mxu0
      %v1655 = vpop.f32.mrb[0].mxu0
      %v1656 = vadd.f32 %v1206, %v1655
      %v1657 = vpop.f32.mrb[0].mxu0
      %1658 = vmatprep.mubr.bf16.mxu0 0
      %1659 = vmatmul.mubr.bf16.gmra.mrb[0].mxu0 %v1342
      %v1660 = vpop.f32.mrb[0].mxu0
      %v1661 = vadd.f32 %v1206, %v1660
      %v1662 = vpop.f32.mrb[0].mxu0
      %v1663 = vpop.f32.mrb[0].mxu0
      %v1664 = vadd.f32 %v1206, %v1663
      %v1665 = vpop.f32.mrb[0].mxu0
      %1666 = vdwg.mxu0
      %v1667 = vadd.f32 %v971, %v1453
      %v1668 = vadd.f32 %v974, %v1456
      %v1669 = vadd.f32 %v979, %v1461
      %v1670 = vadd.f32 %v982, %v1464
      %v1671 = vadd.f32 %v987, %v1469
      %v1672 = vadd.f32 %v990, %v1472
      %v1673 = vadd.f32 %v995, %v1477
      %v1674 = vadd.f32 %v998, %v1480
      %v1675 = vadd.f32 %v1003, %v1485
      %v1676 = vadd.f32 %v1006, %v1488
      %v1677 = vadd.f32 %v1011, %v1493
      %v1678 = vadd.f32 %v1014, %v1496
      %v1679 = vadd.f32 %v1019, %v1501
      %v1680 = vadd.f32 %v1022, %v1504
      %v1681 = vadd.f32 %v1027, %v1509
      %v1682 = vadd.f32 %v1030, %v1512
      %v1683 = vadd.f32 %v1035, %v1517
      %v1684 = vadd.f32 %v1038, %v1520
      %v1685 = vadd.f32 %v1043, %v1525
      %v1686 = vadd.f32 %v1046, %v1528
      %v1687 = vadd.f32 %v1051, %v1533
      %v1688 = vadd.f32 %v1054, %v1536
      %v1689 = vadd.f32 %v1059, %v1541
      %v1690 = vadd.f32 %v1062, %v1544
      %v1691 = vadd.f32 %v1067, %v1549
      %v1692 = vadd.f32 %v1070, %v1552
      %v1693 = vadd.f32 %v1075, %v1557
      %v1694 = vadd.f32 %v1078, %v1560
      %v1695 = vadd.f32 %v1083, %v1565
      %v1696 = vadd.f32 %v1086, %v1568
      %v1697 = vadd.f32 %v1091, %v1573
      %v1698 = vadd.f32 %v1094, %v1576
      %v1699 = vadd.f32 %v1099, %v1581
      %v1700 = vadd.f32 %v1102, %v1584
      %v1701 = vadd.f32 %v1107, %v1589
      %v1702 = vadd.f32 %v1110, %v1592
      %v1703 = vadd.f32 %v1115, %v1597
      %v1704 = vadd.f32 %v1118, %v1600
      %v1705 = vadd.f32 %v1123, %v1605
      %v1706 = vadd.f32 %v1126, %v1608
      %v1707 = vadd.f32 %v1131, %v1613
      %v1708 = vadd.f32 %v1134, %v1616
      %v1709 = vadd.f32 %v1139, %v1621
      %v1710 = vadd.f32 %v1142, %v1624
      %v1711 = vadd.f32 %v1147, %v1629
      %v1712 = vadd.f32 %v1150, %v1632
      %v1713 = vadd.f32 %v1155, %v1637
      %v1714 = vadd.f32 %v1158, %v1640
      %v1715 = vadd.f32 %v1163, %v1645
      %v1716 = vadd.f32 %v1166, %v1648
      %v1717 = vadd.f32 %v1171, %v1653
      %v1718 = vadd.f32 %v1174, %v1656
      %v1719 = vadd.f32 %v1179, %v1661
      %v1720 = vadd.f32 %v1182, %v1664
      %v1721 = vmax.f32 %v1667, 0.0
      %v1722 = vmax.f32 %v1668, 0.0
      %v1723 = vmax.f32 %v1669, 0.0
      %v1724 = vmax.f32 %v1670, 0.0
      %v1725 = vmax.f32 %v1671, 0.0
      %v1726 = vmax.f32 %v1672, 0.0
      %v1727 = vmax.f32 %v1673, 0.0
      %v1728 = vmax.f32 %v1674, 0.0
      %v1729 = vmax.f32 %v1675, 0.0
      %v1730 = vmax.f32 %v1676, 0.0
      %v1731 = vmax.f32 %v1677, 0.0
      %v1732 = vmax.f32 %v1678, 0.0
      %v1733 = vmax.f32 %v1679, 0.0
      %v1734 = vmax.f32 %v1680, 0.0
      %v1735 = vmax.f32 %v1681, 0.0
      %v1736 = vmax.f32 %v1682, 0.0
      %v1737 = vmax.f32 %v1683, 0.0
      %v1738 = vmax.f32 %v1684, 0.0
      %v1739 = vmax.f32 %v1685, 0.0
      %v1740 = vmax.f32 %v1686, 0.0
      %v1741 = vmax.f32 %v1687, 0.0
      %v1742 = vmax.f32 %v1688, 0.0
      %v1743 = vmax.f32 %v1689, 0.0
      %v1744 = vmax.f32 %v1690, 0.0
      %v1745 = vmax.f32 %v1691, 0.0
      %v1746 = vmax.f32 %v1692, 0.0
      %v1747 = vmax.f32 %v1693, 0.0
      %v1748 = vmax.f32 %v1694, 0.0
      %v1749 = vmax.f32 %v1695, 0.0
      %v1750 = vmax.f32 %v1696, 0.0
      %v1751 = vmax.f32 %v1697, 0.0
      %v1752 = vmax.f32 %v1698, 0.0
      %v1753 = vmax.f32 %v1699, 0.0
      %v1754 = vmax.f32 %v1700, 0.0
      %v1755 = vmax.f32 %v1701, 0.0
      %v1756 = vmax.f32 %v1702, 0.0
      %v1757 = vmax.f32 %v1703, 0.0
      %v1758 = vmax.f32 %v1704, 0.0
      %v1759 = vmax.f32 %v1705, 0.0
      %v1760 = vmax.f32 %v1706, 0.0
      %v1761 = vmax.f32 %v1707, 0.0
      %v1762 = vmax.f32 %v1708, 0.0
      %v1763 = vmax.f32 %v1709, 0.0
      %v1764 = vmax.f32 %v1710, 0.0
      %v1765 = vmax.f32 %v1711, 0.0
      %v1766 = vmax.f32 %v1712, 0.0
      %v1767 = vmax.f32 %v1713, 0.0
      %v1768 = vmax.f32 %v1714, 0.0
      %v1769 = vmax.f32 %v1715, 0.0
      %v1770 = vmax.f32 %v1716, 0.0
      %v1771 = vmax.f32 %v1717, 0.0
      %v1772 = vmax.f32 %v1718, 0.0
      %v1773 = vmax.f32 %v1719, 0.0
      %v1774 = vmax.f32 %v1720, 0.0
      %v1775 = vld [vmem:[%s11] sm:$0x1]
      %v1777 = vlaneseq
      %v1778 = vshrl.u32 %v1777, 7
      %v1779 = vsub.s32 0, %v1778
      %v1780 = vrot.slane %v1775, %v1779
      %v1782 = vmul.f32 %v1721, %v1780
      %v1783 = vmul.f32 %v1722, %v1780
      %v1784 = vmul.f32 %v1723, %v1780
      %v1785 = vmul.f32 %v1724, %v1780
      %v1786 = vmul.f32 %v1725, %v1780
      %v1787 = vmul.f32 %v1726, %v1780
      %v1788 = vmul.f32 %v1727, %v1780
      %v1789 = vmul.f32 %v1728, %v1780
      %v1790 = vmul.f32 %v1729, %v1780
      %v1791 = vmul.f32 %v1730, %v1780
      %v1792 = vmul.f32 %v1731, %v1780
      %v1793 = vmul.f32 %v1732, %v1780
      %v1794 = vmul.f32 %v1733, %v1780
      %v1795 = vmul.f32 %v1734, %v1780
      %v1796 = vmul.f32 %v1735, %v1780
      %v1797 = vmul.f32 %v1736, %v1780
      %v1798 = vmul.f32 %v1737, %v1780
      %v1799 = vmul.f32 %v1738, %v1780
      %v1800 = vmul.f32 %v1739, %v1780
      %v1801 = vmul.f32 %v1740, %v1780
      %v1802 = vmul.f32 %v1741, %v1780
      %v1803 = vmul.f32 %v1742, %v1780
      %v1804 = vmul.f32 %v1743, %v1780
      %v1805 = vmul.f32 %v1744, %v1780
      %v1806 = vmul.f32 %v1745, %v1780
      %v1807 = vmul.f32 %v1746, %v1780
      %v1808 = vmul.f32 %v1747, %v1780
      %v1809 = vmul.f32 %v1748, %v1780
      %v1810 = vmul.f32 %v1749, %v1780
      %v1811 = vmul.f32 %v1750, %v1780
      %v1812 = vmul.f32 %v1751, %v1780
      %v1813 = vmul.f32 %v1752, %v1780
      %v1814 = vmul.f32 %v1753, %v1780
      %v1815 = vmul.f32 %v1754, %v1780
      %v1816 = vmul.f32 %v1755, %v1780
      %v1817 = vmul.f32 %v1756, %v1780
      %v1818 = vmul.f32 %v1757, %v1780
      %v1819 = vmul.f32 %v1758, %v1780
      %v1820 = vmul.f32 %v1759, %v1780
      %v1821 = vmul.f32 %v1760, %v1780
      %v1822 = vmul.f32 %v1761, %v1780
      %v1823 = vmul.f32 %v1762, %v1780
      %v1824 = vmul.f32 %v1763, %v1780
      %v1825 = vmul.f32 %v1764, %v1780
      %v1826 = vmul.f32 %v1765, %v1780
      %v1827 = vmul.f32 %v1766, %v1780
      %v1828 = vmul.f32 %v1767, %v1780
      %v1829 = vmul.f32 %v1768, %v1780
      %v1830 = vmul.f32 %v1769, %v1780
      %v1831 = vmul.f32 %v1770, %v1780
      %v1832 = vmul.f32 %v1771, %v1780
      %v1833 = vmul.f32 %v1772, %v1780
      %v1834 = vmul.f32 %v1773, %v1780
      %v1835 = vmul.f32 %v1774, %v1780
      %1836 = vadd.xlane.f32.xlu0 %v1782
      %v1837 = vpop.xlane.xlu0 %1836
      %1838 = vadd.xlane.f32.xlu0 %v1783
      %v1839 = vpop.xlane.xlu0 %1838
      %1840 = vadd.xlane.f32.xlu0 %v1784
      %v1841 = vpop.xlane.xlu0 %1840
      %1842 = vadd.xlane.f32.xlu0 %v1785
      %v1843 = vpop.xlane.xlu0 %1842
      %1844 = vadd.xlane.f32.xlu0 %v1786
      %v1845 = vpop.xlane.xlu0 %1844
      %1846 = vadd.xlane.f32.xlu0 %v1787
      %v1847 = vpop.xlane.xlu0 %1846
      %1848 = vadd.xlane.f32.xlu0 %v1788
      %v1849 = vpop.xlane.xlu0 %1848
      %1850 = vadd.xlane.f32.xlu0 %v1789
      %v1851 = vpop.xlane.xlu0 %1850
      %1852 = vadd.xlane.f32.xlu0 %v1790
      %v1853 = vpop.xlane.xlu0 %1852
      %1854 = vadd.xlane.f32.xlu0 %v1791
      %v1855 = vpop.xlane.xlu0 %1854
      %1856 = vadd.xlane.f32.xlu0 %v1792
      %v1857 = vpop.xlane.xlu0 %1856
      %1858 = vadd.xlane.f32.xlu0 %v1793
      %v1859 = vpop.xlane.xlu0 %1858
      %1860 = vadd.xlane.f32.xlu0 %v1794
      %v1861 = vpop.xlane.xlu0 %1860
      %1862 = vadd.xlane.f32.xlu0 %v1795
      %v1863 = vpop.xlane.xlu0 %1862
      %1864 = vadd.xlane.f32.xlu0 %v1796
      %v1865 = vpop.xlane.xlu0 %1864
      %1866 = vadd.xlane.f32.xlu0 %v1797
      %v1867 = vpop.xlane.xlu0 %1866
      %1868 = vadd.xlane.f32.xlu0 %v1798
      %v1869 = vpop.xlane.xlu0 %1868
      %1870 = vadd.xlane.f32.xlu0 %v1799
      %v1871 = vpop.xlane.xlu0 %1870
      %1872 = vadd.xlane.f32.xlu0 %v1800
      %v1873 = vpop.xlane.xlu0 %1872
      %1874 = vadd.xlane.f32.xlu0 %v1801
      %v1875 = vpop.xlane.xlu0 %1874
      %1876 = vadd.xlane.f32.xlu0 %v1802
      %v1877 = vpop.xlane.xlu0 %1876
      %1878 = vadd.xlane.f32.xlu0 %v1803
      %v1879 = vpop.xlane.xlu0 %1878
      %1880 = vadd.xlane.f32.xlu0 %v1804
      %v1881 = vpop.xlane.xlu0 %1880
      %1882 = vadd.xlane.f32.xlu0 %v1805
      %v1883 = vpop.xlane.xlu0 %1882
      %1884 = vadd.xlane.f32.xlu0 %v1806
      %v1885 = vpop.xlane.xlu0 %1884
      %1886 = vadd.xlane.f32.xlu0 %v1807
      %v1887 = vpop.xlane.xlu0 %1886
      %1888 = vadd.xlane.f32.xlu0 %v1808
      %v1889 = vpop.xlane.xlu0 %1888
      %1890 = vadd.xlane.f32.xlu0 %v1809
      %v1891 = vpop.xlane.xlu0 %1890
      %1892 = vadd.xlane.f32.xlu0 %v1810
      %v1893 = vpop.xlane.xlu0 %1892
      %1894 = vadd.xlane.f32.xlu0 %v1811
      %v1895 = vpop.xlane.xlu0 %1894
      %1896 = vadd.xlane.f32.xlu0 %v1812
      %v1897 = vpop.xlane.xlu0 %1896
      %1898 = vadd.xlane.f32.xlu0 %v1813
      %v1899 = vpop.xlane.xlu0 %1898
      %1900 = vadd.xlane.f32.xlu0 %v1814
      %v1901 = vpop.xlane.xlu0 %1900
      %1902 = vadd.xlane.f32.xlu0 %v1815
      %v1903 = vpop.xlane.xlu0 %1902
      %1904 = vadd.xlane.f32.xlu0 %v1816
      %v1905 = vpop.xlane.xlu0 %1904
      %1906 = vadd.xlane.f32.xlu0 %v1817
      %v1907 = vpop.xlane.xlu0 %1906
      %1908 = vadd.xlane.f32.xlu0 %v1818
      %v1909 = vpop.xlane.xlu0 %1908
      %1910 = vadd.xlane.f32.xlu0 %v1819
      %v1911 = vpop.xlane.xlu0 %1910
      %1912 = vadd.xlane.f32.xlu0 %v1820
      %v1913 = vpop.xlane.xlu0 %1912
      %1914 = vadd.xlane.f32.xlu0 %v1821
      %v1915 = vpop.xlane.xlu0 %1914
      %1916 = vadd.xlane.f32.xlu0 %v1822
      %v1917 = vpop.xlane.xlu0 %1916
      %1918 = vadd.xlane.f32.xlu0 %v1823
      %v1919 = vpop.xlane.xlu0 %1918
      %1920 = vadd.xlane.f32.xlu0 %v1824
      %v1921 = vpop.xlane.xlu0 %1920
      %1922 = vadd.xlane.f32.xlu0 %v1825
      %v1923 = vpop.xlane.xlu0 %1922
      %1924 = vadd.xlane.f32.xlu0 %v1826
      %v1925 = vpop.xlane.xlu0 %1924
      %1926 = vadd.xlane.f32.xlu0 %v1827
      %v1927 = vpop.xlane.xlu0 %1926
      %1928 = vadd.xlane.f32.xlu0 %v1828
      %v1929 = vpop.xlane.xlu0 %1928
      %1930 = vadd.xlane.f32.xlu0 %v1829
      %v1931 = vpop.xlane.xlu0 %1930
      %1932 = vadd.xlane.f32.xlu0 %v1830
      %v1933 = vpop.xlane.xlu0 %1932
      %1934 = vadd.xlane.f32.xlu0 %v1831
      %v1935 = vpop.xlane.xlu0 %1934
      %1936 = vadd.xlane.f32.xlu0 %v1832
      %v1937 = vpop.xlane.xlu0 %1936
      %1938 = vadd.xlane.f32.xlu0 %v1833
      %v1939 = vpop.xlane.xlu0 %1938
      %1940 = vadd.xlane.f32.xlu0 %v1834
      %v1941 = vpop.xlane.xlu0 %1940
      %1942 = vadd.xlane.f32.xlu0 %v1835
      %v1943 = vpop.xlane.xlu0 %1942
      %v1944 = vld [vmem:[#allocation2] sm:$0x1]
      %v1946 = vlaneseq
      %v1947 = vshrl.u32 %v1946, 7
      %v1948 = vsub.s32 0, %v1947
      %v1949 = vrot.slane %v1944, %v1948
      %v1951 = vadd.f32 %v1837, %v1949
      %v1952 = vadd.f32 %v1839, %v1949
      %v1953 = vadd.f32 %v1841, %v1949
      %v1954 = vadd.f32 %v1843, %v1949
      %v1955 = vadd.f32 %v1845, %v1949
      %v1956 = vadd.f32 %v1847, %v1949
      %v1957 = vadd.f32 %v1849, %v1949
      %v1958 = vadd.f32 %v1851, %v1949
      %v1959 = vadd.f32 %v1853, %v1949
      %v1960 = vadd.f32 %v1855, %v1949
      %v1961 = vadd.f32 %v1857, %v1949
      %v1962 = vadd.f32 %v1859, %v1949
      %v1963 = vadd.f32 %v1861, %v1949
      %v1964 = vadd.f32 %v1863, %v1949
      %v1965 = vadd.f32 %v1865, %v1949
      %v1966 = vadd.f32 %v1867, %v1949
      %v1967 = vadd.f32 %v1869, %v1949
      %v1968 = vadd.f32 %v1871, %v1949
      %v1969 = vadd.f32 %v1873, %v1949
      %v1970 = vadd.f32 %v1875, %v1949
      %v1971 = vadd.f32 %v1877, %v1949
      %v1972 = vadd.f32 %v1879, %v1949
      %v1973 = vadd.f32 %v1881, %v1949
      %v1974 = vadd.f32 %v1883, %v1949
      %v1975 = vadd.f32 %v1885, %v1949
      %v1976 = vadd.f32 %v1887, %v1949
      %v1977 = vadd.f32 %v1889, %v1949
      %v1978 = vadd.f32 %v1891, %v1949
      %v1979 = vadd.f32 %v1893, %v1949
      %v1980 = vadd.f32 %v1895, %v1949
      %v1981 = vadd.f32 %v1897, %v1949
      %v1982 = vadd.f32 %v1899, %v1949
      %v1983 = vadd.f32 %v1901, %v1949
      %v1984 = vadd.f32 %v1903, %v1949
      %v1985 = vadd.f32 %v1905, %v1949
      %v1986 = vadd.f32 %v1907, %v1949
      %v1987 = vadd.f32 %v1909, %v1949
      %v1988 = vadd.f32 %v1911, %v1949
      %v1989 = vadd.f32 %v1913, %v1949
      %v1990 = vadd.f32 %v1915, %v1949
      %v1991 = vadd.f32 %v1917, %v1949
      %v1992 = vadd.f32 %v1919, %v1949
      %v1993 = vadd.f32 %v1921, %v1949
      %v1994 = vadd.f32 %v1923, %v1949
      %v1995 = vadd.f32 %v1925, %v1949
      %v1996 = vadd.f32 %v1927, %v1949
      %v1997 = vadd.f32 %v1929, %v1949
      %v1998 = vadd.f32 %v1931, %v1949
      %v1999 = vadd.f32 %v1933, %v1949
      %v2000 = vadd.f32 %v1935, %v1949
      %v2001 = vadd.f32 %v1937, %v1949
      %v2002 = vadd.f32 %v1939, %v1949
      %v2003 = vadd.f32 %v1941, %v1949
      %v2004 = vadd.f32 %v1943, %v1949
      %v2005 = vxor.u32 %v1951, 2147483648
      %v2006 = vxor.u32 %v1952, 2147483648
      %v2007 = vxor.u32 %v1953, 2147483648
      %v2008 = vxor.u32 %v1954, 2147483648
      %v2009 = vxor.u32 %v1955, 2147483648
      %v2010 = vxor.u32 %v1956, 2147483648
      %v2011 = vxor.u32 %v1957, 2147483648
      %v2012 = vxor.u32 %v1958, 2147483648
      %v2013 = vxor.u32 %v1959, 2147483648
      %v2014 = vxor.u32 %v1960, 2147483648
      %v2015 = vxor.u32 %v1961, 2147483648
      %v2016 = vxor.u32 %v1962, 2147483648
      %v2017 = vxor.u32 %v1963, 2147483648
      %v2018 = vxor.u32 %v1964, 2147483648
      %v2019 = vxor.u32 %v1965, 2147483648
      %v2020 = vxor.u32 %v1966, 2147483648
      %v2021 = vxor.u32 %v1967, 2147483648
      %v2022 = vxor.u32 %v1968, 2147483648
      %v2023 = vxor.u32 %v1969, 2147483648
      %v2024 = vxor.u32 %v1970, 2147483648
      %v2025 = vxor.u32 %v1971, 2147483648
      %v2026 = vxor.u32 %v1972, 2147483648
      %v2027 = vxor.u32 %v1973, 2147483648
      %v2028 = vxor.u32 %v1974, 2147483648
      %v2029 = vxor.u32 %v1975, 2147483648
      %v2030 = vxor.u32 %v1976, 2147483648
      %v2031 = vxor.u32 %v1977, 2147483648
      %v2032 = vxor.u32 %v1978, 2147483648
      %v2033 = vxor.u32 %v1979, 2147483648
      %v2034 = vxor.u32 %v1980, 2147483648
      %v2035 = vxor.u32 %v1981, 2147483648
      %v2036 = vxor.u32 %v1982, 2147483648
      %v2037 = vxor.u32 %v1983, 2147483648
      %v2038 = vxor.u32 %v1984, 2147483648
      %v2039 = vxor.u32 %v1985, 2147483648
      %v2040 = vxor.u32 %v1986, 2147483648
      %v2041 = vxor.u32 %v1987, 2147483648
      %v2042 = vxor.u32 %v1988, 2147483648
      %v2043 = vxor.u32 %v1989, 2147483648
      %v2044 = vxor.u32 %v1990, 2147483648
      %v2045 = vxor.u32 %v1991, 2147483648
      %v2046 = vxor.u32 %v1992, 2147483648
      %v2047 = vxor.u32 %v1993, 2147483648
      %v2048 = vxor.u32 %v1994, 2147483648
      %v2049 = vxor.u32 %v1995, 2147483648
      %v2050 = vxor.u32 %v1996, 2147483648
      %v2051 = vxor.u32 %v1997, 2147483648
      %v2052 = vxor.u32 %v1998, 2147483648
      %v2053 = vxor.u32 %v1999, 2147483648
      %v2054 = vxor.u32 %v2000, 2147483648
      %v2055 = vxor.u32 %v2001, 2147483648
      %v2056 = vxor.u32 %v2002, 2147483648
      %v2057 = vxor.u32 %v2003, 2147483648
      %v2058 = vxor.u32 %v2004, 2147483648
      %v2059 = vmul.f32 %v2005, 1.442695
      %v2060 = vpow.pop %v2059
      %v2061 = vmul.f32 %v2006, 1.442695
      %v2062 = vpow.pop %v2061
      %v2063 = vmul.f32 %v2007, 1.442695
      %v2064 = vpow.pop %v2063
      %v2065 = vmul.f32 %v2008, 1.442695
      %v2066 = vpow.pop %v2065
      %v2067 = vmul.f32 %v2009, 1.442695
      %v2068 = vpow.pop %v2067
      %v2069 = vmul.f32 %v2010, 1.442695
      %v2070 = vpow.pop %v2069
      %v2071 = vmul.f32 %v2011, 1.442695
      %v2072 = vpow.pop %v2071
      %v2073 = vmul.f32 %v2012, 1.442695
      %v2074 = vpow.pop %v2073
      %v2075 = vmul.f32 %v2013, 1.442695
      %v2076 = vpow.pop %v2075
      %v2077 = vmul.f32 %v2014, 1.442695
      %v2078 = vpow.pop %v2077
      %v2079 = vmul.f32 %v2015, 1.442695
      %v2080 = vpow.pop %v2079
      %v2081 = vmul.f32 %v2016, 1.442695
      %v2082 = vpow.pop %v2081
      %v2083 = vmul.f32 %v2017, 1.442695
      %v2084 = vpow.pop %v2083
      %v2085 = vmul.f32 %v2018, 1.442695
      %v2086 = vpow.pop %v2085
      %v2087 = vmul.f32 %v2019, 1.442695
      %v2088 = vpow.pop %v2087
      %v2089 = vmul.f32 %v2020, 1.442695
      %v2090 = vpow.pop %v2089
      %v2091 = vmul.f32 %v2021, 1.442695
      %v2092 = vpow.pop %v2091
      %v2093 = vmul.f32 %v2022, 1.442695
      %v2094 = vpow.pop %v2093
      %v2095 = vmul.f32 %v2023, 1.442695
      %v2096 = vpow.pop %v2095
      %v2097 = vmul.f32 %v2024, 1.442695
      %v2098 = vpow.pop %v2097
      %v2099 = vmul.f32 %v2025, 1.442695
      %v2100 = vpow.pop %v2099
      %v2101 = vmul.f32 %v2026, 1.442695
      %v2102 = vpow.pop %v2101
      %v2103 = vmul.f32 %v2027, 1.442695
      %v2104 = vpow.pop %v2103
      %v2105 = vmul.f32 %v2028, 1.442695
      %v2106 = vpow.pop %v2105
      %v2107 = vmul.f32 %v2029, 1.442695
      %v2108 = vpow.pop %v2107
      %v2109 = vmul.f32 %v2030, 1.442695
      %v2110 = vpow.pop %v2109
      %v2111 = vmul.f32 %v2031, 1.442695
      %v2112 = vpow.pop %v2111
      %v2113 = vmul.f32 %v2032, 1.442695
      %v2114 = vpow.pop %v2113
      %v2115 = vmul.f32 %v2033, 1.442695
      %v2116 = vpow.pop %v2115
      %v2117 = vmul.f32 %v2034, 1.442695
      %v2118 = vpow.pop %v2117
      %v2119 = vmul.f32 %v2035, 1.442695
      %v2120 = vpow.pop %v2119
      %v2121 = vmul.f32 %v2036, 1.442695
      %v2122 = vpow.pop %v2121
      %v2123 = vmul.f32 %v2037, 1.442695
      %v2124 = vpow.pop %v2123
      %v2125 = vmul.f32 %v2038, 1.442695
      %v2126 = vpow.pop %v2125
      %v2127 = vmul.f32 %v2039, 1.442695
      %v2128 = vpow.pop %v2127
      %v2129 = vmul.f32 %v2040, 1.442695
      %v2130 = vpow.pop %v2129
      %v2131 = vmul.f32 %v2041, 1.442695
      %v2132 = vpow.pop %v2131
      %v2133 = vmul.f32 %v2042, 1.442695
      %v2134 = vpow.pop %v2133
      %v2135 = vmul.f32 %v2043, 1.442695
      %v2136 = vpow.pop %v2135
      %v2137 = vmul.f32 %v2044, 1.442695
      %v2138 = vpow.pop %v2137
      %v2139 = vmul.f32 %v2045, 1.442695
      %v2140 = vpow.pop %v2139
      %v2141 = vmul.f32 %v2046, 1.442695
      %v2142 = vpow.pop %v2141
      %v2143 = vmul.f32 %v2047, 1.442695
      %v2144 = vpow.pop %v2143
      %v2145 = vmul.f32 %v2048, 1.442695
      %v2146 = vpow.pop %v2145
      %v2147 = vmul.f32 %v2049, 1.442695
      %v2148 = vpow.pop %v2147
      %v2149 = vmul.f32 %v2050, 1.442695
      %v2150 = vpow.pop %v2149
      %v2151 = vmul.f32 %v2051, 1.442695
      %v2152 = vpow.pop %v2151
      %v2153 = vmul.f32 %v2052, 1.442695
      %v2154 = vpow.pop %v2153
      %v2155 = vmul.f32 %v2053, 1.442695
      %v2156 = vpow.pop %v2155
      %v2157 = vmul.f32 %v2054, 1.442695
      %v2158 = vpow.pop %v2157
      %v2159 = vmul.f32 %v2055, 1.442695
      %v2160 = vpow.pop %v2159
      %v2161 = vmul.f32 %v2056, 1.442695
      %v2162 = vpow.pop %v2161
      %v2163 = vmul.f32 %v2057, 1.442695
      %v2164 = vpow.pop %v2163
      %v2165 = vmul.f32 %v2058, 1.442695
      %v2166 = vpow.pop %v2165
      %v2167 = vadd.f32 %v2060, 1.0
      %v2168 = vadd.f32 %v2062, 1.0
      %v2169 = vadd.f32 %v2064, 1.0
      %v2170 = vadd.f32 %v2066, 1.0
      %v2171 = vadd.f32 %v2068, 1.0
      %v2172 = vadd.f32 %v2070, 1.0
      %v2173 = vadd.f32 %v2072, 1.0
      %v2174 = vadd.f32 %v2074, 1.0
      %v2175 = vadd.f32 %v2076, 1.0
      %v2176 = vadd.f32 %v2078, 1.0
      %v2177 = vadd.f32 %v2080, 1.0
      %v2178 = vadd.f32 %v2082, 1.0
      %v2179 = vadd.f32 %v2084, 1.0
      %v2180 = vadd.f32 %v2086, 1.0
      %v2181 = vadd.f32 %v2088, 1.0
      %v2182 = vadd.f32 %v2090, 1.0
      %v2183 = vadd.f32 %v2092, 1.0
      %v2184 = vadd.f32 %v2094, 1.0
      %v2185 = vadd.f32 %v2096, 1.0
      %v2186 = vadd.f32 %v2098, 1.0
      %v2187 = vadd.f32 %v2100, 1.0
      %v2188 = vadd.f32 %v2102, 1.0
      %v2189 = vadd.f32 %v2104, 1.0
      %v2190 = vadd.f32 %v2106, 1.0
      %v2191 = vadd.f32 %v2108, 1.0
      %v2192 = vadd.f32 %v2110, 1.0
      %v2193 = vadd.f32 %v2112, 1.0
      %v2194 = vadd.f32 %v2114, 1.0
      %v2195 = vadd.f32 %v2116, 1.0
      %v2196 = vadd.f32 %v2118, 1.0
      %v2197 = vadd.f32 %v2120, 1.0
      %v2198 = vadd.f32 %v2122, 1.0
      %v2199 = vadd.f32 %v2124, 1.0
      %v2200 = vadd.f32 %v2126, 1.0
      %v2201 = vadd.f32 %v2128, 1.0
      %v2202 = vadd.f32 %v2130, 1.0
      %v2203 = vadd.f32 %v2132, 1.0
      %v2204 = vadd.f32 %v2134, 1.0
      %v2205 = vadd.f32 %v2136, 1.0
      %v2206 = vadd.f32 %v2138, 1.0
      %v2207 = vadd.f32 %v2140, 1.0
      %v2208 = vadd.f32 %v2142, 1.0
      %v2209 = vadd.f32 %v2144, 1.0
      %v2210 = vadd.f32 %v2146, 1.0
      %v2211 = vadd.f32 %v2148, 1.0
      %v2212 = vadd.f32 %v2150, 1.0
      %v2213 = vadd.f32 %v2152, 1.0
      %v2214 = vadd.f32 %v2154, 1.0
      %v2215 = vadd.f32 %v2156, 1.0
      %v2216 = vadd.f32 %v2158, 1.0
      %v2217 = vadd.f32 %v2160, 1.0
      %v2218 = vadd.f32 %v2162, 1.0
      %v2219 = vadd.f32 %v2164, 1.0
      %v2220 = vadd.f32 %v2166, 1.0
      %v2221 = vrcp.pop %v2167
      %v2222 = vmul.f32 1.0, %v2221
      %v2223 = vrcp.pop %v2168
      %v2224 = vmul.f32 1.0, %v2223
      %v2225 = vrcp.pop %v2169
      %v2226 = vmul.f32 1.0, %v2225
      %v2227 = vrcp.pop %v2170
      %v2228 = vmul.f32 1.0, %v2227
      %v2229 = vrcp.pop %v2171
      %v2230 = vmul.f32 1.0, %v2229
      %v2231 = vrcp.pop %v2172
      %v2232 = vmul.f32 1.0, %v2231
      %v2233 = vrcp.pop %v2173
      %v2234 = vmul.f32 1.0, %v2233
      %v2235 = vrcp.pop %v2174
      %v2236 = vmul.f32 1.0, %v2235
      %v2237 = vrcp.pop %v2175
      %v2238 = vmul.f32 1.0, %v2237
      %v2239 = vrcp.pop %v2176
      %v2240 = vmul.f32 1.0, %v2239
      %v2241 = vrcp.pop %v2177
      %v2242 = vmul.f32 1.0, %v2241
      %v2243 = vrcp.pop %v2178
      %v2244 = vmul.f32 1.0, %v2243
      %v2245 = vrcp.pop %v2179
      %v2246 = vmul.f32 1.0, %v2245
      %v2247 = vrcp.pop %v2180
      %v2248 = vmul.f32 1.0, %v2247
      %v2249 = vrcp.pop %v2181
      %v2250 = vmul.f32 1.0, %v2249
      %v2251 = vrcp.pop %v2182
      %v2252 = vmul.f32 1.0, %v2251
      %v2253 = vrcp.pop %v2183
      %v2254 = vmul.f32 1.0, %v2253
      %v2255 = vrcp.pop %v2184
      %v2256 = vmul.f32 1.0, %v2255
      %v2257 = vrcp.pop %v2185
      %v2258 = vmul.f32 1.0, %v2257
      %v2259 = vrcp.pop %v2186
      %v2260 = vmul.f32 1.0, %v2259
      %v2261 = vrcp.pop %v2187
      %v2262 = vmul.f32 1.0, %v2261
      %v2263 = vrcp.pop %v2188
      %v2264 = vmul.f32 1.0, %v2263
      %v2265 = vrcp.pop %v2189
      %v2266 = vmul.f32 1.0, %v2265
      %v2267 = vrcp.pop %v2190
      %v2268 = vmul.f32 1.0, %v2267
      %v2269 = vrcp.pop %v2191
      %v2270 = vmul.f32 1.0, %v2269
      %v2271 = vrcp.pop %v2192
      %v2272 = vmul.f32 1.0, %v2271
      %v2273 = vrcp.pop %v2193
      %v2274 = vmul.f32 1.0, %v2273
      %v2275 = vrcp.pop %v2194
      %v2276 = vmul.f32 1.0, %v2275
      %v2277 = vrcp.pop %v2195
      %v2278 = vmul.f32 1.0, %v2277
      %v2279 = vrcp.pop %v2196
      %v2280 = vmul.f32 1.0, %v2279
      %v2281 = vrcp.pop %v2197
      %v2282 = vmul.f32 1.0, %v2281
      %v2283 = vrcp.pop %v2198
      %v2284 = vmul.f32 1.0, %v2283
      %v2285 = vrcp.pop %v2199
      %v2286 = vmul.f32 1.0, %v2285
      %v2287 = vrcp.pop %v2200
      %v2288 = vmul.f32 1.0, %v2287
      %v2289 = vrcp.pop %v2201
      %v2290 = vmul.f32 1.0, %v2289
      %v2291 = vrcp.pop %v2202
      %v2292 = vmul.f32 1.0, %v2291
      %v2293 = vrcp.pop %v2203
      %v2294 = vmul.f32 1.0, %v2293
      %v2295 = vrcp.pop %v2204
      %v2296 = vmul.f32 1.0, %v2295
      %v2297 = vrcp.pop %v2205
      %v2298 = vmul.f32 1.0, %v2297
      %v2299 = vrcp.pop %v2206
      %v2300 = vmul.f32 1.0, %v2299
      %v2301 = vrcp.pop %v2207
      %v2302 = vmul.f32 1.0, %v2301
      %v2303 = vrcp.pop %v2208
      %v2304 = vmul.f32 1.0, %v2303
      %v2305 = vrcp.pop %v2209
      %v2306 = vmul.f32 1.0, %v2305
      %v2307 = vrcp.pop %v2210
      %v2308 = vmul.f32 1.0, %v2307
      %v2309 = vrcp.pop %v2211
      %v2310 = vmul.f32 1.0, %v2309
      %v2311 = vrcp.pop %v2212
      %v2312 = vmul.f32 1.0, %v2311
      %v2313 = vrcp.pop %v2213
      %v2314 = vmul.f32 1.0, %v2313
      %v2315 = vrcp.pop %v2214
      %v2316 = vmul.f32 1.0, %v2315
      %v2317 = vrcp.pop %v2215
      %v2318 = vmul.f32 1.0, %v2317
      %v2319 = vrcp.pop %v2216
      %v2320 = vmul.f32 1.0, %v2319
      %v2321 = vrcp.pop %v2217
      %v2322 = vmul.f32 1.0, %v2321
      %v2323 = vrcp.pop %v2218
      %v2324 = vmul.f32 1.0, %v2323
      %v2325 = vrcp.pop %v2219
      %v2326 = vmul.f32 1.0, %v2325
      %v2327 = vrcp.pop %v2220
      %v2328 = vmul.f32 1.0, %v2327
      %v2329 = vunpack.c.l.bf16 %v649
      %v2330 = vunpack.c.l.bf16 %v650
      %v2331 = vunpack.c.l.bf16 %v651
      %v2332 = vunpack.c.l.bf16 %v655
      %v2333 = vunpack.c.l.bf16 %v656
      %v2334 = vunpack.c.l.bf16 %v657
      %v2335 = vunpack.c.l.bf16 %v658
      %v2336 = vunpack.c.l.bf16 %v659
      %v2337 = vunpack.c.l.bf16 %v660
      %v2338 = vunpack.c.l.bf16 %v661
      %v2339 = vunpack.c.l.bf16 %v662
      %v2340 = vunpack.c.l.bf16 %v663
      %v2341 = vunpack.c.l.bf16 %v664
      %v2342 = vunpack.c.l.bf16 %v665
      %v2343 = vunpack.c.l.bf16 %v666
      %v2344 = vunpack.c.l.bf16 %v667
      %v2345 = vunpack.c.l.bf16 %v668
      %v2346 = vunpack.c.l.bf16 %v669
      %v2347 = vunpack.c.l.bf16 %v670
      %v2348 = vunpack.c.l.bf16 %v671
      %v2349 = vunpack.c.l.bf16 %v672
      %v2350 = vunpack.c.l.bf16 %v673
      %v2351 = vunpack.c.l.bf16 %v674
      %v2352 = vunpack.c.l.bf16 %v675
      %v2353 = vunpack.c.l.bf16 %v676
      %v2354 = vunpack.c.l.bf16 %v677
      %v2355 = vunpack.c.l.bf16 %v678
      %v2356 = vunpack.c.l.bf16 %v679
      %v2357 = vunpack.c.l.bf16 %v680
      %v2358 = vunpack.c.l.bf16 %v681
      %v2359 = vunpack.c.l.bf16 %v682
      %v2360 = vunpack.c.l.bf16 %v683
      %v2361 = vunpack.c.l.bf16 %v684
      %v2362 = vunpack.c.l.bf16 %v685
      %v2363 = vunpack.c.l.bf16 %v686
      %v2364 = vunpack.c.l.bf16 %v687
      %v2365 = vunpack.c.l.bf16 %v688
      %v2366 = vunpack.c.l.bf16 %v689
      %v2367 = vunpack.c.l.bf16 %v690
      %v2368 = vunpack.c.l.bf16 %v691
      %v2369 = vunpack.c.l.bf16 %v692
      %v2370 = vunpack.c.l.bf16 %v693
      %v2371 = vunpack.c.l.bf16 %v694
      %v2372 = vunpack.c.l.bf16 %v695
      %v2373 = vunpack.c.l.bf16 %v696
      %v2374 = vunpack.c.l.bf16 %v697
      %v2375 = vunpack.c.l.bf16 %v698
      %v2376 = vunpack.c.l.bf16 %v699
      %v2377 = vunpack.c.l.bf16 %v700
      %v2378 = vunpack.c.l.bf16 %v701
      %v2379 = vunpack.c.l.bf16 %v702
      %v2380 = vunpack.c.l.bf16 %v652
      %v2381 = vunpack.c.l.bf16 %v653
      %v2382 = vunpack.c.l.bf16 %v654
      %2384 = vset.pattern.permute.xlu0 0
      %2385 = vperm.xlu0 %2384, %v2222
      %v2386 = vpop.permute.xlu0 %2385
      %2389 = vset.pattern.permute.xlu0 0
      %2390 = vperm.xlu0 %2389, %v2224
      %v2391 = vpop.permute.xlu0 %2390
      %2394 = vset.pattern.permute.xlu0 0
      %2395 = vperm.xlu0 %2394, %v2226
      %v2396 = vpop.permute.xlu0 %2395
      %2399 = vset.pattern.permute.xlu0 0
      %2400 = vperm.xlu0 %2399, %v2228
      %v2401 = vpop.permute.xlu0 %2400
      %2404 = vset.pattern.permute.xlu0 0
      %2405 = vperm.xlu0 %2404, %v2230
      %v2406 = vpop.permute.xlu0 %2405
      %2409 = vset.pattern.permute.xlu0 0
      %2410 = vperm.xlu0 %2409, %v2232
      %v2411 = vpop.permute.xlu0 %2410
      %2414 = vset.pattern.permute.xlu0 0
      %2415 = vperm.xlu0 %2414, %v2234
      %v2416 = vpop.permute.xlu0 %2415
      %2419 = vset.pattern.permute.xlu0 0
      %2420 = vperm.xlu0 %2419, %v2236
      %v2421 = vpop.permute.xlu0 %2420
      %2424 = vset.pattern.permute.xlu0 0
      %2425 = vperm.xlu0 %2424, %v2238
      %v2426 = vpop.permute.xlu0 %2425
      %2429 = vset.pattern.permute.xlu0 0
      %2430 = vperm.xlu0 %2429, %v2240
      %v2431 = vpop.permute.xlu0 %2430
      %2434 = vset.pattern.permute.xlu0 0
      %2435 = vperm.xlu0 %2434, %v2242
      %v2436 = vpop.permute.xlu0 %2435
      %2439 = vset.pattern.permute.xlu0 0
      %2440 = vperm.xlu0 %2439, %v2244
      %v2441 = vpop.permute.xlu0 %2440
      %2444 = vset.pattern.permute.xlu0 0
      %2445 = vperm.xlu0 %2444, %v2246
      %v2446 = vpop.permute.xlu0 %2445
      %2449 = vset.pattern.permute.xlu0 0
      %2450 = vperm.xlu0 %2449, %v2248
      %v2451 = vpop.permute.xlu0 %2450
      %2454 = vset.pattern.permute.xlu0 0
      %2455 = vperm.xlu0 %2454, %v2250
      %v2456 = vpop.permute.xlu0 %2455
      %2459 = vset.pattern.permute.xlu0 0
      %2460 = vperm.xlu0 %2459, %v2252
      %v2461 = vpop.permute.xlu0 %2460
      %2464 = vset.pattern.permute.xlu0 0
      %2465 = vperm.xlu0 %2464, %v2254
      %v2466 = vpop.permute.xlu0 %2465
      %2469 = vset.pattern.permute.xlu0 0
      %2470 = vperm.xlu0 %2469, %v2256
      %v2471 = vpop.permute.xlu0 %2470
      %2474 = vset.pattern.permute.xlu0 0
      %2475 = vperm.xlu0 %2474, %v2258
      %v2476 = vpop.permute.xlu0 %2475
      %2479 = vset.pattern.permute.xlu0 0
      %2480 = vperm.xlu0 %2479, %v2260
      %v2481 = vpop.permute.xlu0 %2480
      %2484 = vset.pattern.permute.xlu0 0
      %2485 = vperm.xlu0 %2484, %v2262
      %v2486 = vpop.permute.xlu0 %2485
      %2489 = vset.pattern.permute.xlu0 0
      %2490 = vperm.xlu0 %2489, %v2264
      %v2491 = vpop.permute.xlu0 %2490
      %2494 = vset.pattern.permute.xlu0 0
      %2495 = vperm.xlu0 %2494, %v2266
      %v2496 = vpop.permute.xlu0 %2495
      %2499 = vset.pattern.permute.xlu0 0
      %2500 = vperm.xlu0 %2499, %v2268
      %v2501 = vpop.permute.xlu0 %2500
      %2504 = vset.pattern.permute.xlu0 0
      %2505 = vperm.xlu0 %2504, %v2270
      %v2506 = vpop.permute.xlu0 %2505
      %2509 = vset.pattern.permute.xlu0 0
      %2510 = vperm.xlu0 %2509, %v2272
      %v2511 = vpop.permute.xlu0 %2510
      %2514 = vset.pattern.permute.xlu0 0
      %2515 = vperm.xlu0 %2514, %v2274
      %v2516 = vpop.permute.xlu0 %2515
      %2519 = vset.pattern.permute.xlu0 0
      %2520 = vperm.xlu0 %2519, %v2276
      %v2521 = vpop.permute.xlu0 %2520
      %2524 = vset.pattern.permute.xlu0 0
      %2525 = vperm.xlu0 %2524, %v2278
      %v2526 = vpop.permute.xlu0 %2525
      %2529 = vset.pattern.permute.xlu0 0
      %2530 = vperm.xlu0 %2529, %v2280
      %v2531 = vpop.permute.xlu0 %2530
      %2534 = vset.pattern.permute.xlu0 0
      %2535 = vperm.xlu0 %2534, %v2282
      %v2536 = vpop.permute.xlu0 %2535
      %2539 = vset.pattern.permute.xlu0 0
      %2540 = vperm.xlu0 %2539, %v2284
      %v2541 = vpop.permute.xlu0 %2540
      %2544 = vset.pattern.permute.xlu0 0
      %2545 = vperm.xlu0 %2544, %v2286
      %v2546 = vpop.permute.xlu0 %2545
      %2549 = vset.pattern.permute.xlu0 0
      %2550 = vperm.xlu0 %2549, %v2288
      %v2551 = vpop.permute.xlu0 %2550
      %2554 = vset.pattern.permute.xlu0 0
      %2555 = vperm.xlu0 %2554, %v2290
      %v2556 = vpop.permute.xlu0 %2555
      %2559 = vset.pattern.permute.xlu0 0
      %2560 = vperm.xlu0 %2559, %v2292
      %v2561 = vpop.permute.xlu0 %2560
      %2564 = vset.pattern.permute.xlu0 0
      %2565 = vperm.xlu0 %2564, %v2294
      %v2566 = vpop.permute.xlu0 %2565
      %2569 = vset.pattern.permute.xlu0 0
      %2570 = vperm.xlu0 %2569, %v2296
      %v2571 = vpop.permute.xlu0 %2570
      %2574 = vset.pattern.permute.xlu0 0
      %2575 = vperm.xlu0 %2574, %v2298
      %v2576 = vpop.permute.xlu0 %2575
      %2579 = vset.pattern.permute.xlu0 0
      %2580 = vperm.xlu0 %2579, %v2300
      %v2581 = vpop.permute.xlu0 %2580
      %2584 = vset.pattern.permute.xlu0 0
      %2585 = vperm.xlu0 %2584, %v2302
      %v2586 = vpop.permute.xlu0 %2585
      %2589 = vset.pattern.permute.xlu0 0
      %2590 = vperm.xlu0 %2589, %v2304
      %v2591 = vpop.permute.xlu0 %2590
      %2594 = vset.pattern.permute.xlu0 0
      %2595 = vperm.xlu0 %2594, %v2306
      %v2596 = vpop.permute.xlu0 %2595
      %2599 = vset.pattern.permute.xlu0 0
      %2600 = vperm.xlu0 %2599, %v2308
      %v2601 = vpop.permute.xlu0 %2600
      %2604 = vset.pattern.permute.xlu0 0
      %2605 = vperm.xlu0 %2604, %v2310
      %v2606 = vpop.permute.xlu0 %2605
      %2609 = vset.pattern.permute.xlu0 0
      %2610 = vperm.xlu0 %2609, %v2312
      %v2611 = vpop.permute.xlu0 %2610
      %2614 = vset.pattern.permute.xlu0 0
      %2615 = vperm.xlu0 %2614, %v2314
      %v2616 = vpop.permute.xlu0 %2615
      %2619 = vset.pattern.permute.xlu0 0
      %2620 = vperm.xlu0 %2619, %v2316
      %v2621 = vpop.permute.xlu0 %2620
      %2624 = vset.pattern.permute.xlu0 0
      %2625 = vperm.xlu0 %2624, %v2318
      %v2626 = vpop.permute.xlu0 %2625
      %2629 = vset.pattern.permute.xlu0 0
      %2630 = vperm.xlu0 %2629, %v2320
      %v2631 = vpop.permute.xlu0 %2630
      %2634 = vset.pattern.permute.xlu0 0
      %2635 = vperm.xlu0 %2634, %v2322
      %v2636 = vpop.permute.xlu0 %2635
      %2639 = vset.pattern.permute.xlu0 0
      %2640 = vperm.xlu0 %2639, %v2324
      %v2641 = vpop.permute.xlu0 %2640
      %2644 = vset.pattern.permute.xlu0 0
      %2645 = vperm.xlu0 %2644, %v2326
      %v2646 = vpop.permute.xlu0 %2645
      %2649 = vset.pattern.permute.xlu0 0
      %2650 = vperm.xlu0 %2649, %v2328
      %v2651 = vpop.permute.xlu0 %2650
      %v2653 = vmul.f32 %v2329, %v2386
      %v2654 = vmul.f32 %v2330, %v2391
      %v2655 = vmul.f32 %v2331, %v2396
      %v2656 = vmul.f32 %v2332, %v2401
      %v2657 = vmul.f32 %v2333, %v2406
      %v2658 = vmul.f32 %v2334, %v2411
      %v2659 = vmul.f32 %v2335, %v2416
      %v2660 = vmul.f32 %v2336, %v2421
      %v2661 = vmul.f32 %v2337, %v2426
      %v2662 = vmul.f32 %v2338, %v2431
      %v2663 = vmul.f32 %v2339, %v2436
      %v2664 = vmul.f32 %v2340, %v2441
      %v2665 = vmul.f32 %v2341, %v2446
      %v2666 = vmul.f32 %v2342, %v2451
      %v2667 = vmul.f32 %v2343, %v2456
      %v2668 = vmul.f32 %v2344, %v2461
      %v2669 = vmul.f32 %v2345, %v2466
      %v2670 = vmul.f32 %v2346, %v2471
      %v2671 = vmul.f32 %v2347, %v2476
      %v2672 = vmul.f32 %v2348, %v2481
      %v2673 = vmul.f32 %v2349, %v2486
      %v2674 = vmul.f32 %v2350, %v2491
      %v2675 = vmul.f32 %v2351, %v2496
      %v2676 = vmul.f32 %v2352, %v2501
      %v2677 = vmul.f32 %v2353, %v2506
      %v2678 = vmul.f32 %v2354, %v2511
      %v2679 = vmul.f32 %v2355, %v2516
      %v2680 = vmul.f32 %v2356, %v2521
      %v2681 = vmul.f32 %v2357, %v2526
      %v2682 = vmul.f32 %v2358, %v2531
      %v2683 = vmul.f32 %v2359, %v2536
      %v2684 = vmul.f32 %v2360, %v2541
      %v2685 = vmul.f32 %v2361, %v2546
      %v2686 = vmul.f32 %v2362, %v2551
      %v2687 = vmul.f32 %v2363, %v2556
      %v2688 = vmul.f32 %v2364, %v2561
      %v2689 = vmul.f32 %v2365, %v2566
      %v2690 = vmul.f32 %v2366, %v2571
      %v2691 = vmul.f32 %v2367, %v2576
      %v2692 = vmul.f32 %v2368, %v2581
      %v2693 = vmul.f32 %v2369, %v2586
      %v2694 = vmul.f32 %v2370, %v2591
      %v2695 = vmul.f32 %v2371, %v2596
      %v2696 = vmul.f32 %v2372, %v2601
      %v2697 = vmul.f32 %v2373, %v2606
      %v2698 = vmul.f32 %v2374, %v2611
      %v2699 = vmul.f32 %v2375, %v2616
      %v2700 = vmul.f32 %v2376, %v2621
      %v2701 = vmul.f32 %v2377, %v2626
      %v2702 = vmul.f32 %v2378, %v2631
      %v2703 = vmul.f32 %v2379, %v2636
      %v2704 = vmul.f32 %v2380, %v2641
      %v2705 = vmul.f32 %v2381, %v2646
      %v2706 = vmul.f32 %v2382, %v2651
      %v2707 = vpack.c.bf16 %v2654, %v2653
      %v2708 = vpack.c.bf16 %v2656, %v2655
      %v2709 = vpack.c.bf16 %v2658, %v2657
      %v2710 = vpack.c.bf16 %v2660, %v2659
      %v2711 = vpack.c.bf16 %v2662, %v2661
      %v2712 = vpack.c.bf16 %v2664, %v2663
      %v2713 = vpack.c.bf16 %v2666, %v2665
      %v2714 = vpack.c.bf16 %v2668, %v2667
      %v2715 = vpack.c.bf16 %v2670, %v2669
      %v2716 = vpack.c.bf16 %v2672, %v2671
      %v2717 = vpack.c.bf16 %v2674, %v2673
      %v2718 = vpack.c.bf16 %v2676, %v2675
      %v2719 = vpack.c.bf16 %v2678, %v2677
      %v2720 = vpack.c.bf16 %v2680, %v2679
      %v2721 = vpack.c.bf16 %v2682, %v2681
      %v2722 = vpack.c.bf16 %v2684, %v2683
      %v2723 = vpack.c.bf16 %v2686, %v2685
      %v2724 = vpack.c.bf16 %v2688, %v2687
      %v2725 = vpack.c.bf16 %v2690, %v2689
      %v2726 = vpack.c.bf16 %v2692, %v2691
      %v2727 = vpack.c.bf16 %v2694, %v2693
      %v2728 = vpack.c.bf16 %v2696, %v2695
      %v2729 = vpack.c.bf16 %v2698, %v2697
      %v2730 = vpack.c.bf16 %v2700, %v2699
      %v2731 = vpack.c.bf16 %v2702, %v2701
      %v2732 = vpack.c.bf16 %v2704, %v2703
      %v2733 = vpack.c.bf16 %v2706, %v2705
      %v2761 = vunpack.c.l.b16 %v2707
      %v2762 = vunpack.c.h.b16 %v2707
      %v2763 = vunpack.c.l.b16 %v2708
      %v2764 = vunpack.c.h.b16 %v2708
      %v2765 = vunpack.c.l.b16 %v2709
      %v2766 = vunpack.c.h.b16 %v2709
      %v2767 = vunpack.c.l.b16 %v2710
      %v2768 = vunpack.c.h.b16 %v2710
      %v2769 = vunpack.c.l.b16 %v2711
      %v2770 = vunpack.c.h.b16 %v2711
      %v2771 = vunpack.c.l.b16 %v2712
      %v2772 = vunpack.c.h.b16 %v2712
      %v2773 = vunpack.c.l.b16 %v2713
      %v2774 = vunpack.c.h.b16 %v2713
      %v2775 = vunpack.c.l.b16 %v2714
      %v2776 = vunpack.c.h.b16 %v2714
      %v2777 = vunpack.c.l.b16 %v2715
      %v2778 = vunpack.c.h.b16 %v2715
      %v2779 = vunpack.c.l.b16 %v2716
      %v2780 = vunpack.c.h.b16 %v2716
      %v2781 = vunpack.c.l.b16 %v2717
      %v2782 = vunpack.c.h.b16 %v2717
      %v2783 = vunpack.c.l.b16 %v2718
      %v2784 = vunpack.c.h.b16 %v2718
      %v2785 = vunpack.c.l.b16 %v2719
      %v2786 = vunpack.c.h.b16 %v2719
      %v2787 = vunpack.c.l.b16 %v2720
      %v2788 = vunpack.c.h.b16 %v2720
      %v2789 = vunpack.c.l.b16 %v2721
      %v2790 = vunpack.c.h.b16 %v2721
      %v2791 = vunpack.c.l.b16 %v2722
      %v2792 = vunpack.c.h.b16 %v2722
      %v2793 = vunpack.c.l.b16 %v2723
      %v2794 = vunpack.c.h.b16 %v2723
      %v2795 = vunpack.c.l.b16 %v2724
      %v2796 = vunpack.c.h.b16 %v2724
      %v2797 = vunpack.c.l.b16 %v2725
      %v2798 = vunpack.c.h.b16 %v2725
      %v2799 = vunpack.c.l.b16 %v2726
      %v2800 = vunpack.c.h.b16 %v2726
      %v2801 = vunpack.c.l.b16 %v2727
      %v2802 = vunpack.c.h.b16 %v2727
      %v2803 = vunpack.c.l.b16 %v2728
      %v2804 = vunpack.c.h.b16 %v2728
      %v2805 = vunpack.c.l.b16 %v2729
      %v2806 = vunpack.c.h.b16 %v2729
      %v2807 = vunpack.c.l.b16 %v2730
      %v2808 = vunpack.c.h.b16 %v2730
      %v2809 = vunpack.c.l.b16 %v2731
      %v2810 = vunpack.c.h.b16 %v2731
      %v2811 = vunpack.c.l.b16 %v2732
      %v2812 = vunpack.c.h.b16 %v2732
      %v2813 = vunpack.c.l.b16 %v2733
      %v2814 = vunpack.c.h.b16 %v2733
      %v2815 = vld [vmem:[%s4] sm:$0xf]
      %v2816 = vld [vmem:[%s4 + $0x4] sm:$0xf]
      %v2817 = vld [vmem:[%s4 + $0x8] sm:$0xf]
      %v2818 = vld [vmem:[%s4 + $0xc] sm:$0xf]
      %v2819 = vld [vmem:[%s4 + $0x10] sm:$0xf]
      %v2820 = vld [vmem:[%s4 + $0x14] sm:$0xf]
      %v2821 = vld [vmem:[%s4 + $0x18] sm:$0xf]
      %v2822 = vld [vmem:[%s4 + $0x1c] sm:$0xf]
      %v2823 = vld [vmem:[%s4 + $0x20] sm:$0xf]
      %v2824 = vld [vmem:[%s4 + $0x24] sm:$0xf]
      %v2825 = vld [vmem:[%s4 + $0x28] sm:$0xf]
      %v2826 = vld [vmem:[%s4 + $0x2c] sm:$0xf]
      %v2827 = vld [vmem:[%s4 + $0x30] sm:$0xf]
      %v2828 = vld [vmem:[%s4 + $0x34] sm:$0xf]
      %v2829 = vld [vmem:[%s4 + $0x38] sm:$0xf]
      %v2830 = vld [vmem:[%s4 + $0x3c] sm:$0xf]
      %v2831 = vld [vmem:[%s4 + $0x40] sm:$0xf]
      %v2832 = vld [vmem:[%s4 + $0x44] sm:$0xf]
      %v2833 = vld [vmem:[%s4 + $0x48] sm:$0xf]
      %v2834 = vld [vmem:[%s4 + $0x4c] sm:$0xf]
      %v2835 = vld [vmem:[%s4 + $0x50] sm:$0xf]
      %v2836 = vld [vmem:[%s4 + $0x54] sm:$0xf]
      %v2837 = vld [vmem:[%s4 + $0x58] sm:$0xf]
      %v2838 = vld [vmem:[%s4 + $0x5c] sm:$0xf]
      %v2839 = vld [vmem:[%s4 + $0x60] sm:$0xf]
      %v2840 = vld [vmem:[%s4 + $0x64] sm:$0xf]
      %v2841 = vld [vmem:[%s4 + $0x68] sm:$0xf]
      %v2842 = vld [vmem:[%s4 + $0x6c] sm:$0xf]
      %v2843 = vld [vmem:[%s4 + $0x70] sm:$0xf]
      %v2844 = vld [vmem:[%s4 + $0x74] sm:$0xf]
      %v2845 = vld [vmem:[%s4 + $0x78] sm:$0xf]
      %v2846 = vld [vmem:[%s4 + $0x7c] sm:$0xf]
      %v2847 = vld [vmem:[%s4 + $0x80] sm:$0xf]
      %v2848 = vld [vmem:[%s4 + $0x84] sm:$0xf]
      %v2849 = vld [vmem:[%s4 + $0x88] sm:$0xf]
      %v2850 = vld [vmem:[%s4 + $0x8c] sm:$0xf]
      %v2851 = vld [vmem:[%s4 + $0x90] sm:$0xf]
      %v2852 = vld [vmem:[%s4 + $0x94] sm:$0xf]
      %v2853 = vld [vmem:[%s4 + $0x98] sm:$0xf]
      %v2854 = vld [vmem:[%s4 + $0x9c] sm:$0xf]
      %v2855 = vld [vmem:[%s4 + $0xa0] sm:$0xf]
      %v2856 = vld [vmem:[%s4 + $0xa4] sm:$0xf]
      %v2857 = vld [vmem:[%s4 + $0xa8] sm:$0xf]
      %v2858 = vld [vmem:[%s4 + $0xac] sm:$0xf]
      %v2859 = vld [vmem:[%s4 + $0xb0] sm:$0xf]
      %v2860 = vld [vmem:[%s4 + $0xb4] sm:$0xf]
      %v2861 = vld [vmem:[%s4 + $0xb8] sm:$0xf]
      %v2862 = vld [vmem:[%s4 + $0xbc] sm:$0xf]
      %v2863 = vld [vmem:[%s4 + $0xc0] sm:$0xf]
      %v2864 = vld [vmem:[%s4 + $0xc4] sm:$0xf]
      %v2865 = vld [vmem:[%s4 + $0xc8] sm:$0xf]
      %v2866 = vld [vmem:[%s4 + $0xcc] sm:$0xf]
      %v2867 = vld [vmem:[%s4 + $0xd0] sm:$0xf]
      %v2868 = vld [vmem:[%s4 + $0xd4] sm:$0xf]
      %v2869 = vld [vmem:[%s4 + $0xd8] sm:$0xf]
      %v2870 = vld [vmem:[%s4 + $0xdc] sm:$0xf]
      %v2871 = vld [vmem:[%s4 + $0xe0] sm:$0xf]
      %v2872 = vld [vmem:[%s4 + $0xe4] sm:$0xf]
      %v2873 = vld [vmem:[%s4 + $0xe8] sm:$0xf]
      %v2874 = vld [vmem:[%s4 + $0xec] sm:$0xf]
      %v2875 = vld [vmem:[%s4 + $0xf0] sm:$0xf]
      %v2876 = vld [vmem:[%s4 + $0xf4] sm:$0xf]
      %v2877 = vld [vmem:[%s4 + $0xf8] sm:$0xf]
      %v2878 = vld [vmem:[%s4 + $0xfc] sm:$0xf]
      %v2879 = vld [vmem:[%s4 + $0x100] sm:$0xf]
      %v2880 = vld [vmem:[%s4 + $0x104] sm:$0xf]
      %v2881 = vld [vmem:[%s4 + $0x108] sm:$0xf]
      %v2882 = vld [vmem:[%s4 + $0x10c] sm:$0xf]
      %v2883 = vld [vmem:[%s4 + $0x110] sm:$0xf]
      %v2884 = vld [vmem:[%s4 + $0x114] sm:$0xf]
      %v2885 = vld [vmem:[%s4 + $0x118] sm:$0xf]
      %v2886 = vld [vmem:[%s4 + $0x11c] sm:$0xf]
      %v2887 = vld [vmem:[%s4 + $0x120] sm:$0xf]
      %v2888 = vld [vmem:[%s4 + $0x124] sm:$0xf]
      %v2889 = vld [vmem:[%s4 + $0x128] sm:$0xf]
      %v2890 = vld [vmem:[%s4 + $0x12c] sm:$0xf]
      %v2891 = vld [vmem:[%s4 + $0x130] sm:$0xf]
      %v2892 = vld [vmem:[%s4 + $0x134] sm:$0xf]
      %v2893 = vld [vmem:[%s4 + $0x138] sm:$0xf]
      %v2894 = vld [vmem:[%s4 + $0x13c] sm:$0xf]
      %v2895 = vld [vmem:[%s4 + $0x140] sm:$0xf]
      %v2896 = vld [vmem:[%s4 + $0x144] sm:$0xf]
      %v2897 = vld [vmem:[%s4 + $0x148] sm:$0xf]
      %v2898 = vld [vmem:[%s4 + $0x14c] sm:$0xf]
      %v2899 = vld [vmem:[%s4 + $0x150] sm:$0xf]
      %v2900 = vld [vmem:[%s4 + $0x154] sm:$0xf]
      %v2901 = vld [vmem:[%s4 + $0x158] sm:$0xf]
      %v2902 = vld [vmem:[%s4 + $0x15c] sm:$0xf]
      %v2903 = vld [vmem:[%s4 + $0x160] sm:$0xf]
      %v2904 = vld [vmem:[%s4 + $0x164] sm:$0xf]
      %v2905 = vld [vmem:[%s4 + $0x168] sm:$0xf]
      %v2906 = vld [vmem:[%s4 + $0x16c] sm:$0xf]
      %v2907 = vld [vmem:[%s4 + $0x170] sm:$0xf]
      %v2908 = vld [vmem:[%s4 + $0x174] sm:$0xf]
      %v2909 = vld [vmem:[%s4 + $0x178] sm:$0xf]
      %v2910 = vld [vmem:[%s4 + $0x17c] sm:$0xf]
      %v2911 = vpack.c.b16 %v784, %v783
      %v2912 = vpack.c.b16 %v2762, %v2761
      %v2913 = vpack.c.b16 %v2765, %v2764
      %v2914 = vpack.c.b16 %v2768, %v2767
      %v2915 = vpack.c.b16 %v786, %v785
      %v2916 = vpack.c.b16 %v2764, %v2763
      %v2917 = vpack.c.b16 %v2767, %v2766
      %v2918 = vpack.c.b16 %v2770, %v2769
      %v2919 = vpack.c.b16 %v788, %v787
      %v2920 = vpack.c.b16 %v2766, %v2765
      %v2921 = vpack.c.b16 %v2769, %v2768
      %v2922 = vpack.c.b16 %v2772, %v2771
      %v2923 = vpack.c.b16 %v790, %v789
      %v2924 = vpack.c.b16 %v2771, %v2770
      %v2925 = vpack.c.b16 %v2774, %v2773
      %v2926 = vpack.c.b16 %v792, %v791
      %v2927 = vpack.c.b16 %v2773, %v2772
      %v2928 = vpack.c.b16 %v2776, %v2775
      %v2929 = vpack.c.b16 %v794, %v793
      %v2930 = vpack.c.b16 %v2775, %v2774
      %v2931 = vpack.c.b16 %v2778, %v2777
      %v2932 = vpack.c.b16 %v796, %v795
      %v2933 = vpack.c.b16 %v2777, %v2776
      %v2934 = vpack.c.b16 %v2780, %v2779
      %v2935 = vpack.c.b16 %v798, %v797
      %v2936 = vpack.c.b16 %v2779, %v2778
      %v2937 = vpack.c.b16 %v2782, %v2781
      %v2938 = vpack.c.b16 %v800, %v799
      %v2939 = vpack.c.b16 %v2781, %v2780
      %v2940 = vpack.c.b16 %v2784, %v2783
      %v2941 = vpack.c.b16 %v802, %v801
      %v2942 = vpack.c.b16 %v2783, %v2782
      %v2943 = vpack.c.b16 %v2786, %v2785
      %v2944 = vpack.c.b16 %v804, %v803
      %v2945 = vpack.c.b16 %v2785, %v2784
      %v2946 = vpack.c.b16 %v2788, %v2787
      %v2947 = vpack.c.b16 %v806, %v805
      %v2948 = vpack.c.b16 %v2787, %v2786
      %v2949 = vpack.c.b16 %v2790, %v2789
      %v2950 = vpack.c.b16 %v808, %v807
      %v2951 = vpack.c.b16 %v2789, %v2788
      %v2952 = vpack.c.b16 %v2792, %v2791
      %v2953 = vpack.c.b16 %v810, %v809
      %v2954 = vpack.c.b16 %v2791, %v2790
      %v2955 = vpack.c.b16 %v2794, %v2793
      %v2956 = vpack.c.b16 %v812, %v811
      %v2957 = vpack.c.b16 %v2793, %v2792
      %v2958 = vpack.c.b16 %v2796, %v2795
      %v2959 = vpack.c.b16 %v814, %v813
      %v2960 = vpack.c.b16 %v2795, %v2794
      %v2961 = vpack.c.b16 %v2798, %v2797
      %v2962 = vpack.c.b16 %v816, %v815
      %v2963 = vpack.c.b16 %v2797, %v2796
      %v2964 = vpack.c.b16 %v2800, %v2799
      %v2965 = vpack.c.b16 %v818, %v817
      %v2966 = vpack.c.b16 %v2799, %v2798
      %v2967 = vpack.c.b16 %v2802, %v2801
      %v2968 = vpack.c.b16 %v820, %v819
      %v2969 = vpack.c.b16 %v2801, %v2800
      %v2970 = vpack.c.b16 %v2804, %v2803
      %v2971 = vpack.c.b16 %v822, %v821
      %v2972 = vpack.c.b16 %v2803, %v2802
      %v2973 = vpack.c.b16 %v2806, %v2805
      %v2974 = vpack.c.b16 %v824, %v823
      %v2975 = vpack.c.b16 %v2805, %v2804
      %v2976 = vpack.c.b16 %v2808, %v2807
      %v2977 = vpack.c.b16 %v826, %v825
      %v2978 = vpack.c.b16 %v2807, %v2806
      %v2979 = vpack.c.b16 %v2810, %v2809
      %v2980 = vpack.c.b16 %v828, %v827
      %v2981 = vpack.c.b16 %v2809, %v2808
      %v2982 = vpack.c.b16 %v2812, %v2811
      %v2983 = vpack.c.b16 %v830, %v829
      %v2984 = vpack.c.b16 %v2811, %v2810
      %v2985 = vpack.c.b16 %v2814, %v2813
      %v3157 = vunpack.c.l.b16 %v2815
      %v3158 = vunpack.c.l.b16 %v2816
      %v3159 = vunpack.c.l.b16 %v2817
      %v3160 = vunpack.c.l.b16 %v2818
      %v3161 = vunpack.c.l.b16 %v2819
      %v3162 = vunpack.c.l.b16 %v2820
      %v3163 = vunpack.c.l.b16 %v2821
      %v3164 = vunpack.c.l.b16 %v2822
      %v3165 = vunpack.c.l.b16 %v2823
      %v3166 = vunpack.c.l.b16 %v2824
      %v3167 = vunpack.c.l.b16 %v2825
      %v3168 = vunpack.c.l.b16 %v2826
      %v3169 = vunpack.c.l.b16 %v2827
      %v3170 = vunpack.c.l.b16 %v2828
      %v3171 = vunpack.c.l.b16 %v2829
      %v3172 = vunpack.c.l.b16 %v2830
      %v3173 = vunpack.c.l.b16 %v2831
      %v3174 = vunpack.c.l.b16 %v2832
      %v3175 = vunpack.c.l.b16 %v2833
      %v3176 = vunpack.c.l.b16 %v2834
      %v3177 = vunpack.c.l.b16 %v2835
      %v3178 = vunpack.c.l.b16 %v2836
      %v3179 = vunpack.c.l.b16 %v2837
      %v3180 = vunpack.c.l.b16 %v2838
      %v3181 = vunpack.c.l.b16 %v2839
      %v3182 = vunpack.c.l.b16 %v2840
      %v3183 = vunpack.c.l.b16 %v2841
      %v3184 = vunpack.c.l.b16 %v2842
      %v3185 = vunpack.c.l.b16 %v2843
      %v3186 = vunpack.c.l.b16 %v2844
      %v3187 = vunpack.c.l.b16 %v2845
      %v3188 = vunpack.c.l.b16 %v2846
      %v3189 = vunpack.c.l.b16 %v2847
      %v3190 = vunpack.c.l.b16 %v2848
      %v3191 = vunpack.c.l.b16 %v2849
      %v3192 = vunpack.c.l.b16 %v2850
      %v3193 = vunpack.c.l.b16 %v2851
      %v3194 = vunpack.c.l.b16 %v2852
      %v3195 = vunpack.c.l.b16 %v2853
      %v3196 = vunpack.c.l.b16 %v2854
      %v3197 = vunpack.c.l.b16 %v2855
      %v3198 = vunpack.c.l.b16 %v2856
      %v3199 = vunpack.c.l.b16 %v2857
      %v3200 = vunpack.c.l.b16 %v2858
      %v3201 = vunpack.c.l.b16 %v2859
      %v3202 = vunpack.c.l.b16 %v2860
      %v3203 = vunpack.c.l.b16 %v2861
      %v3204 = vunpack.c.l.b16 %v2862
      %v3205 = vunpack.c.l.b16 %v2863
      %v3206 = vunpack.c.l.b16 %v2864
      %v3207 = vunpack.c.l.b16 %v2865
      %v3208 = vunpack.c.l.b16 %v2866
      %v3209 = vunpack.c.l.b16 %v2867
      %v3210 = vunpack.c.l.b16 %v2868
      %v3211 = vunpack.c.l.b16 %v2869
      %v3212 = vunpack.c.l.b16 %v2870
      %v3213 = vunpack.c.l.b16 %v2871
      %v3214 = vunpack.c.l.b16 %v2872
      %v3215 = vunpack.c.l.b16 %v2873
      %v3216 = vunpack.c.l.b16 %v2874
      %v3217 = vunpack.c.l.b16 %v2875
      %v3218 = vunpack.c.l.b16 %v2876
      %v3219 = vunpack.c.l.b16 %v2877
      %v3220 = vunpack.c.l.b16 %v2878
      %v3221 = vunpack.c.l.b16 %v2879
      %v3222 = vunpack.c.l.b16 %v2880
      %v3223 = vunpack.c.l.b16 %v2881
      %v3224 = vunpack.c.l.b16 %v2882
      %v3225 = vunpack.c.l.b16 %v2883
      %v3226 = vunpack.c.l.b16 %v2884
      %v3227 = vunpack.c.l.b16 %v2885
      %v3228 = vunpack.c.l.b16 %v2886
      %v3229 = vunpack.c.l.b16 %v2887
      %v3230 = vunpack.c.l.b16 %v2888
      %v3231 = vunpack.c.l.b16 %v2889
      %v3232 = vunpack.c.l.b16 %v2890
      %v3233 = vunpack.c.l.b16 %v2891
      %v3234 = vunpack.c.l.b16 %v2892
      %v3235 = vunpack.c.l.b16 %v2893
      %v3236 = vunpack.c.l.b16 %v2894
      %v3237 = vunpack.c.l.b16 %v2895
      %v3238 = vunpack.c.l.b16 %v2896
      %v3239 = vunpack.c.l.b16 %v2897
      %v3240 = vunpack.c.l.b16 %v2898
      %v3241 = vunpack.c.l.b16 %v2899
      %v3242 = vunpack.c.l.b16 %v2900
      %v3243 = vunpack.c.l.b16 %v2901
      %v3244 = vunpack.c.l.b16 %v2902
      %v3245 = vunpack.c.l.b16 %v2903
      %v3246 = vunpack.c.l.b16 %v2904
      %v3247 = vunpack.c.l.b16 %v2905
      %v3248 = vunpack.c.l.b16 %v2906
      %v3249 = vunpack.c.l.b16 %v2907
      %v3250 = vunpack.c.l.b16 %v2908
      %v3251 = vunpack.c.l.b16 %v2909
      %v3252 = vunpack.c.l.b16 %v2910
      %v3253 = vpack.c.b16 %v3158, %v3157
      %v3254 = vpack.c.b16 %v3160, %v3159
      %v3255 = vpack.c.b16 %v3162, %v3161
      %v3256 = vpack.c.b16 %v3164, %v3163
      %v3257 = vpack.c.b16 %v3166, %v3165
      %v3258 = vpack.c.b16 %v3168, %v3167
      %v3259 = vpack.c.b16 %v3170, %v3169
      %v3260 = vpack.c.b16 %v3172, %v3171
      %v3261 = vpack.c.b16 %v3174, %v3173
      %v3262 = vpack.c.b16 %v3176, %v3175
      %v3263 = vpack.c.b16 %v3178, %v3177
      %v3264 = vpack.c.b16 %v3180, %v3179
      %v3265 = vpack.c.b16 %v3182, %v3181
      %v3266 = vpack.c.b16 %v3184, %v3183
      %v3267 = vpack.c.b16 %v3186, %v3185
      %v3268 = vpack.c.b16 %v3188, %v3187
      %v3269 = vpack.c.b16 %v3190, %v3189
      %v3270 = vpack.c.b16 %v3192, %v3191
      %v3271 = vpack.c.b16 %v3194, %v3193
      %v3272 = vpack.c.b16 %v3196, %v3195
      %v3273 = vpack.c.b16 %v3198, %v3197
      %v3274 = vpack.c.b16 %v3200, %v3199
      %v3275 = vpack.c.b16 %v3202, %v3201
      %v3276 = vpack.c.b16 %v3204, %v3203
      %v3277 = vpack.c.b16 %v3206, %v3205
      %v3278 = vpack.c.b16 %v3208, %v3207
      %v3279 = vpack.c.b16 %v3210, %v3209
      %v3280 = vpack.c.b16 %v3212, %v3211
      %v3281 = vpack.c.b16 %v3214, %v3213
      %v3282 = vpack.c.b16 %v3216, %v3215
      %v3283 = vpack.c.b16 %v3218, %v3217
      %v3284 = vpack.c.b16 %v3220, %v3219
      %v3285 = vpack.c.b16 %v3222, %v3221
      %v3286 = vpack.c.b16 %v3224, %v3223
      %v3287 = vpack.c.b16 %v3226, %v3225
      %v3288 = vpack.c.b16 %v3228, %v3227
      %v3289 = vpack.c.b16 %v3230, %v3229
      %v3290 = vpack.c.b16 %v3232, %v3231
      %v3291 = vpack.c.b16 %v3234, %v3233
      %v3292 = vpack.c.b16 %v3236, %v3235
      %v3293 = vpack.c.b16 %v3238, %v3237
      %v3294 = vpack.c.b16 %v3240, %v3239
      %v3295 = vpack.c.b16 %v3242, %v3241
      %v3296 = vpack.c.b16 %v3244, %v3243
      %v3297 = vpack.c.b16 %v3246, %v3245
      %v3298 = vpack.c.b16 %v3248, %v3247
      %v3299 = vpack.c.b16 %v3250, %v3249
      %v3300 = vpack.c.b16 %v3252, %v3251
      %3349 = vmatprep.subr.bf16.mxu0 0
      %3350 = vmatpush1.bf16.msra.mxu0 %v3253
      %3351 = vmatprep.subr.bf16.mxu0 0
      %3352 = vmatpush1.bf16.msra.mxu0 %v3254
      %3353 = vmatprep.subr.bf16.mxu0 0
      %3354 = vmatpush1.bf16.msra.mxu0 %v3255
      %3355 = vmatprep.subr.bf16.mxu0 0
      %3356 = vmatpush1.bf16.msra.mxu0 %v3256
      %3357 = vmatprep.subr.bf16.mxu0 0
      %3358 = vmatpush1.bf16.msra.mxu0 %v3257
      %3359 = vmatprep.subr.bf16.mxu0 0
      %3360 = vmatpush1.bf16.msra.mxu0 %v3258
      %3361 = vmatprep.subr.bf16.mxu0 0
      %3362 = vmatpush1.bf16.msra.mxu0 %v3259
      %3363 = vmatprep.subr.bf16.mxu0 0
      %3364 = vmatpush1.bf16.msra.mxu0 %v3260
      %3365 = vmatprep.subr.bf16.mxu0 0
      %3366 = vmatpush1.bf16.msra.mxu0 %v3261
      %3367 = vmatprep.subr.bf16.mxu0 0
      %3368 = vmatpush1.bf16.msra.mxu0 %v3262
      %3369 = vmatprep.subr.bf16.mxu0 0
      %3370 = vmatpush1.bf16.msra.mxu0 %v3263
      %3371 = vmatprep.subr.bf16.mxu0 0
      %3372 = vmatpush1.bf16.msra.mxu0 %v3264
      %3373 = vmatprep.subr.bf16.mxu0 0
      %3374 = vmatpush1.bf16.msra.mxu0 %v3265
      %3375 = vmatprep.subr.bf16.mxu0 0
      %3376 = vmatpush1.bf16.msra.mxu0 %v3266
      %3377 = vmatprep.subr.bf16.mxu0 0
      %3378 = vmatpush1.bf16.msra.mxu0 %v3267
      %3379 = vmatprep.subr.bf16.mxu0 0
      %3380 = vmatpush1.bf16.msra.mxu0 %v3268
      %3381 = vmatprep.mubr.bf16.mxu0 %v2911
      %3382 = vmatmul.mubr.bf16.gmra.mrb[0].mxu0 %v834
      %v3383 = vpop.f32.mrb[0].mxu0
      %v3384 = vadd.f32 0.0, %v3383
      %v3385 = vpop.f32.mrb[0].mxu0
      %v3386 = vpop.f32.mrb[0].mxu0
      %v3387 = vadd.f32 0.0, %v3386
      %v3388 = vpop.f32.mrb[0].mxu0
      %3389 = vmatprep.mubr.bf16.mxu0 %v2915
      %3390 = vmatmul.mubr.bf16.gmra.mrb[0].mxu0 %v835
      %v3391 = vpop.f32.mrb[0].mxu0
      %v3392 = vadd.f32 0.0, %v3391
      %v3393 = vpop.f32.mrb[0].mxu0
      %v3394 = vpop.f32.mrb[0].mxu0
      %v3395 = vadd.f32 0.0, %v3394
      %v3396 = vpop.f32.mrb[0].mxu0
      %3397 = vmatprep.mubr.bf16.mxu0 %v2919
      %3398 = vmatmul.mubr.bf16.gmra.mrb[0].mxu0 %v836
      %v3399 = vpop.f32.mrb[0].mxu0
      %v3400 = vadd.f32 0.0, %v3399
      %v3401 = vpop.f32.mrb[0].mxu0
      %v3402 = vpop.f32.mrb[0].mxu0
      %v3403 = vadd.f32 0.0, %v3402
      %v3404 = vpop.f32.mrb[0].mxu0
      %3405 = vmatprep.mubr.bf16.mxu0 %v2923
      %3406 = vmatmul.mubr.bf16.gmra.mrb[0].mxu0 %v837
      %v3407 = vpop.f32.mrb[0].mxu0
      %v3408 = vadd.f32 0.0, %v3407
      %v3409 = vpop.f32.mrb[0].mxu0
      %v3410 = vpop.f32.mrb[0].mxu0
      %v3411 = vadd.f32 0.0, %v3410
      %v3412 = vpop.f32.mrb[0].mxu0
      %3413 = vmatprep.mubr.bf16.mxu0 %v2926
      %3414 = vmatmul.mubr.bf16.gmra.mrb[0].mxu0 %v838
      %v3415 = vpop.f32.mrb[0].mxu0
      %v3416 = vadd.f32 0.0, %v3415
      %v3417 = vpop.f32.mrb[0].mxu0
      %v3418 = vpop.f32.mrb[0].mxu0
      %v3419 = vadd.f32 0.0, %v3418
      %v3420 = vpop.f32.mrb[0].mxu0
      %3421 = vmatprep.mubr.bf16.mxu0 %v2929
      %3422 = vmatmul.mubr.bf16.gmra.mrb[0].mxu0 %v839
      %v3423 = vpop.f32.mrb[0].mxu0
      %v3424 = vadd.f32 0.0, %v3423
      %v3425 = vpop.f32.mrb[0].mxu0
      %v3426 = vpop.f32.mrb[0].mxu0
      %v3427 = vadd.f32 0.0, %v3426
      %v3428 = vpop.f32.mrb[0].mxu0
      %3429 = vmatprep.mubr.bf16.mxu0 %v2932
      %3430 = vmatmul.mubr.bf16.gmra.mrb[0].mxu0 %v840
      %v3431 = vpop.f32.mrb[0].mxu0
      %v3432 = vadd.f32 0.0, %v3431
      %v3433 = vpop.f32.mrb[0].mxu0
      %v3434 = vpop.f32.mrb[0].mxu0
      %v3435 = vadd.f32 0.0, %v3434
      %v3436 = vpop.f32.mrb[0].mxu0
      %3437 = vmatprep.mubr.bf16.mxu0 %v2935
      %3438 = vmatmul.mubr.bf16.gmra.mrb[0].mxu0 %v841
      %v3439 = vpop.f32.mrb[0].mxu0
      %v3440 = vadd.f32 0.0, %v3439
      %v3441 = vpop.f32.mrb[0].mxu0
      %v3442 = vpop.f32.mrb[0].mxu0
      %v3443 = vadd.f32 0.0, %v3442
      %v3444 = vpop.f32.mrb[0].mxu0
      %3445 = vmatprep.mubr.bf16.mxu0 %v2938
      %3446 = vmatmul.mubr.bf16.gmra.mrb[0].mxu0 %v842
      %v3447 = vpop.f32.mrb[0].mxu0
      %v3448 = vadd.f32 0.0, %v3447
      %v3449 = vpop.f32.mrb[0].mxu0
      %v3450 = vpop.f32.mrb[0].mxu0
      %v3451 = vadd.f32 0.0, %v3450
      %v3452 = vpop.f32.mrb[0].mxu0
      %3453 = vmatprep.mubr.bf16.mxu0 %v2941
      %3454 = vmatmul.mubr.bf16.gmra.mrb[0].mxu0 %v843
      %v3455 = vpop.f32.mrb[0].mxu0
      %v3456 = vadd.f32 0.0, %v3455
      %v3457 = vpop.f32.mrb[0].mxu0
      %v3458 = vpop.f32.mrb[0].mxu0
      %v3459 = vadd.f32 0.0, %v3458
      %v3460 = vpop.f32.mrb[0].mxu0
      %3461 = vmatprep.mubr.bf16.mxu0 %v2944
      %3462 = vmatmul.mubr.bf16.gmra.mrb[0].mxu0 %v844
      %v3463 = vpop.f32.mrb[0].mxu0
      %v3464 = vadd.f32 0.0, %v3463
      %v3465 = vpop.f32.mrb[0].mxu0
      %v3466 = vpop.f32.mrb[0].mxu0
      %v3467 = vadd.f32 0.0, %v3466
      %v3468 = vpop.f32.mrb[0].mxu0
      %3469 = vmatprep.mubr.bf16.mxu0 %v2947
      %3470 = vmatmul.mubr.bf16.gmra.mrb[0].mxu0 %v845
      %v3471 = vpop.f32.mrb[0].mxu0
      %v3472 = vadd.f32 0.0, %v3471
      %v3473 = vpop.f32.mrb[0].mxu0
      %v3474 = vpop.f32.mrb[0].mxu0
      %v3475 = vadd.f32 0.0, %v3474
      %v3476 = vpop.f32.mrb[0].mxu0
      %3477 = vmatprep.mubr.bf16.mxu0 %v2950
      %3478 = vmatmul.mubr.bf16.gmra.mrb[0].mxu0 %v846
      %v3479 = vpop.f32.mrb[0].mxu0
      %v3480 = vadd.f32 0.0, %v3479
      %v3481 = vpop.f32.mrb[0].mxu0
      %v3482 = vpop.f32.mrb[0].mxu0
      %v3483 = vadd.f32 0.0, %v3482
      %v3484 = vpop.f32.mrb[0].mxu0
      %3485 = vmatprep.mubr.bf16.mxu0 %v2953
      %3486 = vmatmul.mubr.bf16.gmra.mrb[0].mxu0 %v847
      %v3487 = vpop.f32.mrb[0].mxu0
      %v3488 = vadd.f32 0.0, %v3487
      %v3489 = vpop.f32.mrb[0].mxu0
      %v3490 = vpop.f32.mrb[0].mxu0
      %v3491 = vadd.f32 0.0, %v3490
      %v3492 = vpop.f32.mrb[0].mxu0
      %3493 = vmatprep.mubr.bf16.mxu0 %v2956
      %3494 = vmatmul.mubr.bf16.gmra.mrb[0].mxu0 %v848
      %v3495 = vpop.f32.mrb[0].mxu0
      %v3496 = vadd.f32 0.0, %v3495
      %v3497 = vpop.f32.mrb[0].mxu0
      %v3498 = vpop.f32.mrb[0].mxu0
      %v3499 = vadd.f32 0.0, %v3498
      %v3500 = vpop.f32.mrb[0].mxu0
      %3501 = vmatprep.mubr.bf16.mxu0 %v2959
      %3502 = vmatmul.mubr.bf16.gmra.mrb[0].mxu0 %v849
      %v3503 = vpop.f32.mrb[0].mxu0
      %v3504 = vadd.f32 0.0, %v3503
      %v3505 = vpop.f32.mrb[0].mxu0
      %v3506 = vpop.f32.mrb[0].mxu0
      %v3507 = vadd.f32 0.0, %v3506
      %v3508 = vpop.f32.mrb[0].mxu0
      %3509 = vmatprep.mubr.bf16.mxu0 %v2962
      %3510 = vmatmul.mubr.bf16.gmra.mrb[0].mxu0 %v850
      %v3511 = vpop.f32.mrb[0].mxu0
      %v3512 = vadd.f32 0.0, %v3511
      %v3513 = vpop.f32.mrb[0].mxu0
      %v3514 = vpop.f32.mrb[0].mxu0
      %v3515 = vadd.f32 0.0, %v3514
      %v3516 = vpop.f32.mrb[0].mxu0
      %3517 = vmatprep.mubr.bf16.mxu0 %v2965
      %3518 = vmatmul.mubr.bf16.gmra.mrb[0].mxu0 %v851
      %v3519 = vpop.f32.mrb[0].mxu0
      %v3520 = vadd.f32 0.0, %v3519
      %v3521 = vpop.f32.mrb[0].mxu0
      %v3522 = vpop.f32.mrb[0].mxu0
      %v3523 = vadd.f32 0.0, %v3522
      %v3524 = vpop.f32.mrb[0].mxu0
      %3525 = vmatprep.mubr.bf16.mxu0 %v2968
      %3526 = vmatmul.mubr.bf16.gmra.mrb[0].mxu0 %v852
      %v3527 = vpop.f32.mrb[0].mxu0
      %v3528 = vadd.f32 0.0, %v3527
      %v3529 = vpop.f32.mrb[0].mxu0
      %v3530 = vpop.f32.mrb[0].mxu0
      %v3531 = vadd.f32 0.0, %v3530
      %v3532 = vpop.f32.mrb[0].mxu0
      %3533 = vmatprep.mubr.bf16.mxu0 %v2971
      %3534 = vmatmul.mubr.bf16.gmra.mrb[0].mxu0 %v853
      %v3535 = vpop.f32.mrb[0].mxu0
      %v3536 = vadd.f32 0.0, %v3535
      %v3537 = vpop.f32.mrb[0].mxu0
      %v3538 = vpop.f32.mrb[0].mxu0
      %v3539 = vadd.f32 0.0, %v3538
      %v3540 = vpop.f32.mrb[0].mxu0
      %3541 = vmatprep.mubr.bf16.mxu0 %v2974
      %3542 = vmatmul.mubr.bf16.gmra.mrb[0].mxu0 %v854
      %v3543 = vpop.f32.mrb[0].mxu0
      %v3544 = vadd.f32 0.0, %v3543
      %v3545 = vpop.f32.mrb[0].mxu0
      %v3546 = vpop.f32.mrb[0].mxu0
      %v3547 = vadd.f32 0.0, %v3546
      %v3548 = vpop.f32.mrb[0].mxu0
      %3549 = vmatprep.mubr.bf16.mxu0 %v2977
      %3550 = vmatmul.mubr.bf16.gmra.mrb[0].mxu0 %v855
      %v3551 = vpop.f32.mrb[0].mxu0
      %v3552 = vadd.f32 0.0, %v3551
      %v3553 = vpop.f32.mrb[0].mxu0
      %v3554 = vpop.f32.mrb[0].mxu0
      %v3555 = vadd.f32 0.0, %v3554
      %v3556 = vpop.f32.mrb[0].mxu0
      %3557 = vmatprep.mubr.bf16.mxu0 %v2980
      %3558 = vmatmul.mubr.bf16.gmra.mrb[0].mxu0 %v856
      %v3559 = vpop.f32.mrb[0].mxu0
      %v3560 = vadd.f32 0.0, %v3559
      %v3561 = vpop.f32.mrb[0].mxu0
      %v3562 = vpop.f32.mrb[0].mxu0
      %v3563 = vadd.f32 0.0, %v3562
      %v3564 = vpop.f32.mrb[0].mxu0
      %3565 = vmatprep.mubr.bf16.mxu0 %v2983
      %3566 = vmatmul.mubr.bf16.gmra.mrb[0].mxu0 %v857
      %v3567 = vpop.f32.mrb[0].mxu0
      %v3568 = vadd.f32 0.0, %v3567
      %v3569 = vpop.f32.mrb[0].mxu0
      %v3570 = vpop.f32.mrb[0].mxu0
      %v3571 = vadd.f32 0.0, %v3570
      %v3572 = vpop.f32.mrb[0].mxu0
      %3573 = vdwg.mxu0
      %3574 = vmatprep.subr.bf16.mxu0 0
      %3575 = vmatpush1.bf16.msra.mxu0 %v3269
      %3576 = vmatprep.subr.bf16.mxu0 0
      %3577 = vmatpush1.bf16.msra.mxu0 %v3270
      %3578 = vmatprep.subr.bf16.mxu0 0
      %3579 = vmatpush1.bf16.msra.mxu0 %v3271
      %3580 = vmatprep.subr.bf16.mxu0 0
      %3581 = vmatpush1.bf16.msra.mxu0 %v3272
      %3582 = vmatprep.subr.bf16.mxu0 0
      %3583 = vmatpush1.bf16.msra.mxu0 %v3273
      %3584 = vmatprep.subr.bf16.mxu0 0
      %3585 = vmatpush1.bf16.msra.mxu0 %v3274
      %3586 = vmatprep.subr.bf16.mxu0 0
      %3587 = vmatpush1.bf16.msra.mxu0 %v3275
      %3588 = vmatprep.subr.bf16.mxu0 0
      %3589 = vmatpush1.bf16.msra.mxu0 %v3276
      %3590 = vmatprep.subr.bf16.mxu0 0
      %3591 = vmatpush1.bf16.msra.mxu0 %v3277
      %3592 = vmatprep.subr.bf16.mxu0 0
      %3593 = vmatpush1.bf16.msra.mxu0 %v3278
      %3594 = vmatprep.subr.bf16.mxu0 0
      %3595 = vmatpush1.bf16.msra.mxu0 %v3279
      %3596 = vmatprep.subr.bf16.mxu0 0
      %3597 = vmatpush1.bf16.msra.mxu0 %v3280
      %3598 = vmatprep.subr.bf16.mxu0 0
      %3599 = vmatpush1.bf16.msra.mxu0 %v3281
      %3600 = vmatprep.subr.bf16.mxu0 0
      %3601 = vmatpush1.bf16.msra.mxu0 %v3282
      %3602 = vmatprep.subr.bf16.mxu0 0
      %3603 = vmatpush1.bf16.msra.mxu0 %v3283
      %3604 = vmatprep.subr.bf16.mxu0 0
      %3605 = vmatpush1.bf16.msra.mxu0 %v3284
      %3606 = vmatprep.mubr.bf16.mxu0 %v2912
      %3607 = vmatmul.mubr.bf16.gmra.mrb[0].mxu0 %v837
      %v3608 = vpop.f32.mrb[0].mxu0
      %v3609 = vadd.f32 %v3384, %v3608
      %v3610 = vpop.f32.mrb[0].mxu0
      %v3611 = vpop.f32.mrb[0].mxu0
      %v3612 = vadd.f32 %v3387, %v3611
      %v3613 = vpop.f32.mrb[0].mxu0
      %3614 = vmatprep.mubr.bf16.mxu0 %v2916
      %3615 = vmatmul.mubr.bf16.gmra.mrb[0].mxu0 %v838
      %v3616 = vpop.f32.mrb[0].mxu0
      %v3617 = vadd.f32 %v3392, %v3616
      %v3618 = vpop.f32.mrb[0].mxu0
      %v3619 = vpop.f32.mrb[0].mxu0
      %v3620 = vadd.f32 %v3395, %v3619
      %v3621 = vpop.f32.mrb[0].mxu0
      %3622 = vmatprep.mubr.bf16.mxu0 %v2920
      %3623 = vmatmul.mubr.bf16.gmra.mrb[0].mxu0 %v839
      %v3624 = vpop.f32.mrb[0].mxu0
      %v3625 = vadd.f32 %v3400, %v3624
      %v3626 = vpop.f32.mrb[0].mxu0
      %v3627 = vpop.f32.mrb[0].mxu0
      %v3628 = vadd.f32 %v3403, %v3627
      %v3629 = vpop.f32.mrb[0].mxu0
      %3630 = vmatprep.mubr.bf16.mxu0 %v2914
      %3631 = vmatmul.mubr.bf16.gmra.mrb[0].mxu0 %v840
      %v3632 = vpop.f32.mrb[0].mxu0
      %v3633 = vadd.f32 %v3408, %v3632
      %v3634 = vpop.f32.mrb[0].mxu0
      %v3635 = vpop.f32.mrb[0].mxu0
      %v3636 = vadd.f32 %v3411, %v3635
      %v3637 = vpop.f32.mrb[0].mxu0
      %3638 = vmatprep.mubr.bf16.mxu0 %v2918
      %3639 = vmatmul.mubr.bf16.gmra.mrb[0].mxu0 %v841
      %v3640 = vpop.f32.mrb[0].mxu0
      %v3641 = vadd.f32 %v3416, %v3640
      %v3642 = vpop.f32.mrb[0].mxu0
      %v3643 = vpop.f32.mrb[0].mxu0
      %v3644 = vadd.f32 %v3419, %v3643
      %v3645 = vpop.f32.mrb[0].mxu0
      %3646 = vmatprep.mubr.bf16.mxu0 %v2922
      %3647 = vmatmul.mubr.bf16.gmra.mrb[0].mxu0 %v842
      %v3648 = vpop.f32.mrb[0].mxu0
      %v3649 = vadd.f32 %v3424, %v3648
      %v3650 = vpop.f32.mrb[0].mxu0
      %v3651 = vpop.f32.mrb[0].mxu0
      %v3652 = vadd.f32 %v3427, %v3651
      %v3653 = vpop.f32.mrb[0].mxu0
      %3654 = vmatprep.mubr.bf16.mxu0 %v2925
      %3655 = vmatmul.mubr.bf16.gmra.mrb[0].mxu0 %v843
      %v3656 = vpop.f32.mrb[0].mxu0
      %v3657 = vadd.f32 %v3432, %v3656
      %v3658 = vpop.f32.mrb[0].mxu0
      %v3659 = vpop.f32.mrb[0].mxu0
      %v3660 = vadd.f32 %v3435, %v3659
      %v3661 = vpop.f32.mrb[0].mxu0
      %3662 = vmatprep.mubr.bf16.mxu0 %v2928
      %3663 = vmatmul.mubr.bf16.gmra.mrb[0].mxu0 %v844
      %v3664 = vpop.f32.mrb[0].mxu0
      %v3665 = vadd.f32 %v3440, %v3664
      %v3666 = vpop.f32.mrb[0].mxu0
      %v3667 = vpop.f32.mrb[0].mxu0
      %v3668 = vadd.f32 %v3443, %v3667
      %v3669 = vpop.f32.mrb[0].mxu0
      %3670 = vmatprep.mubr.bf16.mxu0 %v2931
      %3671 = vmatmul.mubr.bf16.gmra.mrb[0].mxu0 %v845
      %v3672 = vpop.f32.mrb[0].mxu0
      %v3673 = vadd.f32 %v3448, %v3672
      %v3674 = vpop.f32.mrb[0].mxu0
      %v3675 = vpop.f32.mrb[0].mxu0
      %v3676 = vadd.f32 %v3451, %v3675
      %v3677 = vpop.f32.mrb[0].mxu0
      %3678 = vmatprep.mubr.bf16.mxu0 %v2934
      %3679 = vmatmul.mubr.bf16.gmra.mrb[0].mxu0 %v846
      %v3680 = vpop.f32.mrb[0].mxu0
      %v3681 = vadd.f32 %v3456, %v3680
      %v3682 = vpop.f32.mrb[0].mxu0
      %v3683 = vpop.f32.mrb[0].mxu0
      %v3684 = vadd.f32 %v3459, %v3683
      %v3685 = vpop.f32.mrb[0].mxu0
      %3686 = vmatprep.mubr.bf16.mxu0 %v2937
      %3687 = vmatmul.mubr.bf16.gmra.mrb[0].mxu0 %v847
      %v3688 = vpop.f32.mrb[0].mxu0
      %v3689 = vadd.f32 %v3464, %v3688
      %v3690 = vpop.f32.mrb[0].mxu0
      %v3691 = vpop.f32.mrb[0].mxu0
      %v3692 = vadd.f32 %v3467, %v3691
      %v3693 = vpop.f32.mrb[0].mxu0
      %3694 = vmatprep.mubr.bf16.mxu0 %v2940
      %3695 = vmatmul.mubr.bf16.gmra.mrb[0].mxu0 %v848
      %v3696 = vpop.f32.mrb[0].mxu0
      %v3697 = vadd.f32 %v3472, %v3696
      %v3698 = vpop.f32.mrb[0].mxu0
      %v3699 = vpop.f32.mrb[0].mxu0
      %v3700 = vadd.f32 %v3475, %v3699
      %v3701 = vpop.f32.mrb[0].mxu0
      %3702 = vmatprep.mubr.bf16.mxu0 %v2943
      %3703 = vmatmul.mubr.bf16.gmra.mrb[0].mxu0 %v849
      %v3704 = vpop.f32.mrb[0].mxu0
      %v3705 = vadd.f32 %v3480, %v3704
      %v3706 = vpop.f32.mrb[0].mxu0
      %v3707 = vpop.f32.mrb[0].mxu0
      %v3708 = vadd.f32 %v3483, %v3707
      %v3709 = vpop.f32.mrb[0].mxu0
      %3710 = vmatprep.mubr.bf16.mxu0 %v2946
      %3711 = vmatmul.mubr.bf16.gmra.mrb[0].mxu0 %v850
      %v3712 = vpop.f32.mrb[0].mxu0
      %v3713 = vadd.f32 %v3488, %v3712
      %v3714 = vpop.f32.mrb[0].mxu0
      %v3715 = vpop.f32.mrb[0].mxu0
      %v3716 = vadd.f32 %v3491, %v3715
      %v3717 = vpop.f32.mrb[0].mxu0
      %3718 = vmatprep.mubr.bf16.mxu0 %v2949
      %3719 = vmatmul.mubr.bf16.gmra.mrb[0].mxu0 %v851
      %v3720 = vpop.f32.mrb[0].mxu0
      %v3721 = vadd.f32 %v3496, %v3720
      %v3722 = vpop.f32.mrb[0].mxu0
      %v3723 = vpop.f32.mrb[0].mxu0
      %v3724 = vadd.f32 %v3499, %v3723
      %v3725 = vpop.f32.mrb[0].mxu0
      %3726 = vmatprep.mubr.bf16.mxu0 %v2952
      %3727 = vmatmul.mubr.bf16.gmra.mrb[0].mxu0 %v852
      %v3728 = vpop.f32.mrb[0].mxu0
      %v3729 = vadd.f32 %v3504, %v3728
      %v3730 = vpop.f32.mrb[0].mxu0
      %v3731 = vpop.f32.mrb[0].mxu0
      %v3732 = vadd.f32 %v3507, %v3731
      %v3733 = vpop.f32.mrb[0].mxu0
      %3734 = vmatprep.mubr.bf16.mxu0 %v2955
      %3735 = vmatmul.mubr.bf16.gmra.mrb[0].mxu0 %v853
      %v3736 = vpop.f32.mrb[0].mxu0
      %v3737 = vadd.f32 %v3512, %v3736
      %v3738 = vpop.f32.mrb[0].mxu0
      %v3739 = vpop.f32.mrb[0].mxu0
      %v3740 = vadd.f32 %v3515, %v3739
      %v3741 = vpop.f32.mrb[0].mxu0
      %3742 = vmatprep.mubr.bf16.mxu0 %v2958
      %3743 = vmatmul.mubr.bf16.gmra.mrb[0].mxu0 %v854
      %v3744 = vpop.f32.mrb[0].mxu0
      %v3745 = vadd.f32 %v3520, %v3744
      %v3746 = vpop.f32.mrb[0].mxu0
      %v3747 = vpop.f32.mrb[0].mxu0
      %v3748 = vadd.f32 %v3523, %v3747
      %v3749 = vpop.f32.mrb[0].mxu0
      %3750 = vmatprep.mubr.bf16.mxu0 %v2961
      %3751 = vmatmul.mubr.bf16.gmra.mrb[0].mxu0 %v855
      %v3752 = vpop.f32.mrb[0].mxu0
      %v3753 = vadd.f32 %v3528, %v3752
      %v3754 = vpop.f32.mrb[0].mxu0
      %v3755 = vpop.f32.mrb[0].mxu0
      %v3756 = vadd.f32 %v3531, %v3755
      %v3757 = vpop.f32.mrb[0].mxu0
      %3758 = vmatprep.mubr.bf16.mxu0 %v2964
      %3759 = vmatmul.mubr.bf16.gmra.mrb[0].mxu0 %v856
      %v3760 = vpop.f32.mrb[0].mxu0
      %v3761 = vadd.f32 %v3536, %v3760
      %v3762 = vpop.f32.mrb[0].mxu0
      %v3763 = vpop.f32.mrb[0].mxu0
      %v3764 = vadd.f32 %v3539, %v3763
      %v3765 = vpop.f32.mrb[0].mxu0
      %3766 = vmatprep.mubr.bf16.mxu0 %v2967
      %3767 = vmatmul.mubr.bf16.gmra.mrb[0].mxu0 %v857
      %v3768 = vpop.f32.mrb[0].mxu0
      %v3769 = vadd.f32 %v3544, %v3768
      %v3770 = vpop.f32.mrb[0].mxu0
      %v3771 = vpop.f32.mrb[0].mxu0
      %v3772 = vadd.f32 %v3547, %v3771
      %v3773 = vpop.f32.mrb[0].mxu0
      %3774 = vmatprep.mubr.bf16.mxu0 %v2970
      %3775 = vmatmul.mubr.bf16.gmra.mrb[0].mxu0 %v858
      %v3776 = vpop.f32.mrb[0].mxu0
      %v3777 = vadd.f32 %v3552, %v3776
      %v3778 = vpop.f32.mrb[0].mxu0
      %v3779 = vpop.f32.mrb[0].mxu0
      %v3780 = vadd.f32 %v3555, %v3779
      %v3781 = vpop.f32.mrb[0].mxu0
      %3782 = vmatprep.mubr.bf16.mxu0 %v2973
      %3783 = vmatmul.mubr.bf16.gmra.mrb[0].mxu0 %v859
      %v3784 = vpop.f32.mrb[0].mxu0
      %v3785 = vadd.f32 %v3560, %v3784
      %v3786 = vpop.f32.mrb[0].mxu0
      %v3787 = vpop.f32.mrb[0].mxu0
      %v3788 = vadd.f32 %v3563, %v3787
      %v3789 = vpop.f32.mrb[0].mxu0
      %3790 = vmatprep.mubr.bf16.mxu0 %v2976
      %3791 = vmatmul.mubr.bf16.gmra.mrb[0].mxu0 %v860
      %v3792 = vpop.f32.mrb[0].mxu0
      %v3793 = vadd.f32 %v3568, %v3792
      %v3794 = vpop.f32.mrb[0].mxu0
      %v3795 = vpop.f32.mrb[0].mxu0
      %v3796 = vadd.f32 %v3571, %v3795
      %v3797 = vpop.f32.mrb[0].mxu0
      %3798 = vdwg.mxu0
      %3799 = vmatprep.subr.bf16.mxu0 0
      %3800 = vmatpush1.bf16.msra.mxu0 %v3285
      %3801 = vmatprep.subr.bf16.mxu0 0
      %3802 = vmatpush1.bf16.msra.mxu0 %v3286
      %3803 = vmatprep.subr.bf16.mxu0 0
      %3804 = vmatpush1.bf16.msra.mxu0 %v3287
      %3805 = vmatprep.subr.bf16.mxu0 0
      %3806 = vmatpush1.bf16.msra.mxu0 %v3288
      %3807 = vmatprep.subr.bf16.mxu0 0
      %3808 = vmatpush1.bf16.msra.mxu0 %v3289
      %3809 = vmatprep.subr.bf16.mxu0 0
      %3810 = vmatpush1.bf16.msra.mxu0 %v3290
      %3811 = vmatprep.subr.bf16.mxu0 0
      %3812 = vmatpush1.bf16.msra.mxu0 %v3291
      %3813 = vmatprep.subr.bf16.mxu0 0
      %3814 = vmatpush1.bf16.msra.mxu0 %v3292
      %3815 = vmatprep.subr.bf16.mxu0 0
      %3816 = vmatpush1.bf16.msra.mxu0 %v3293
      %3817 = vmatprep.subr.bf16.mxu0 0
      %3818 = vmatpush1.bf16.msra.mxu0 %v3294
      %3819 = vmatprep.subr.bf16.mxu0 0
      %3820 = vmatpush1.bf16.msra.mxu0 %v3295
      %3821 = vmatprep.subr.bf16.mxu0 0
      %3822 = vmatpush1.bf16.msra.mxu0 %v3296
      %3823 = vmatprep.subr.bf16.mxu0 0
      %3824 = vmatpush1.bf16.msra.mxu0 %v3297
      %3825 = vmatprep.subr.bf16.mxu0 0
      %3826 = vmatpush1.bf16.msra.mxu0 %v3298
      %3827 = vmatprep.subr.bf16.mxu0 0
      %3828 = vmatpush1.bf16.msra.mxu0 %v3299
      %3829 = vmatprep.subr.bf16.mxu0 0
      %3830 = vmatpush1.bf16.msra.mxu0 %v3300
      %3831 = vmatprep.mubr.bf16.mxu0 %v2914
      %3832 = vmatmul.mubr.bf16.gmra.mrb[0].mxu0 %v2913
      %v3833 = vpop.f32.mrb[0].mxu0
      %v3834 = vadd.f32 %v3609, %v3833
      %v3835 = vpop.f32.mrb[0].mxu0
      %v3836 = vpop.f32.mrb[0].mxu0
      %v3837 = vadd.f32 %v3612, %v3836
      %v3838 = vpop.f32.mrb[0].mxu0
      %3839 = vmatprep.mubr.bf16.mxu0 %v2918
      %3840 = vmatmul.mubr.bf16.gmra.mrb[0].mxu0 %v2917
      %v3841 = vpop.f32.mrb[0].mxu0
      %v3842 = vadd.f32 %v3617, %v3841
      %v3843 = vpop.f32.mrb[0].mxu0
      %v3844 = vpop.f32.mrb[0].mxu0
      %v3845 = vadd.f32 %v3620, %v3844
      %v3846 = vpop.f32.mrb[0].mxu0
      %3847 = vmatprep.mubr.bf16.mxu0 %v2922
      %3848 = vmatmul.mubr.bf16.gmra.mrb[0].mxu0 %v2921
      %v3849 = vpop.f32.mrb[0].mxu0
      %v3850 = vadd.f32 %v3625, %v3849
      %v3851 = vpop.f32.mrb[0].mxu0
      %v3852 = vpop.f32.mrb[0].mxu0
      %v3853 = vadd.f32 %v3628, %v3852
      %v3854 = vpop.f32.mrb[0].mxu0
      %3855 = vmatprep.mubr.bf16.mxu0 %v2925
      %3856 = vmatmul.mubr.bf16.gmra.mrb[0].mxu0 %v2924
      %v3857 = vpop.f32.mrb[0].mxu0
      %v3858 = vadd.f32 %v3633, %v3857
      %v3859 = vpop.f32.mrb[0].mxu0
      %v3860 = vpop.f32.mrb[0].mxu0
      %v3861 = vadd.f32 %v3636, %v3860
      %v3862 = vpop.f32.mrb[0].mxu0
      %3863 = vmatprep.mubr.bf16.mxu0 %v2928
      %3864 = vmatmul.mubr.bf16.gmra.mrb[0].mxu0 %v2927
      %v3865 = vpop.f32.mrb[0].mxu0
      %v3866 = vadd.f32 %v3641, %v3865
      %v3867 = vpop.f32.mrb[0].mxu0
      %v3868 = vpop.f32.mrb[0].mxu0
      %v3869 = vadd.f32 %v3644, %v3868
      %v3870 = vpop.f32.mrb[0].mxu0
      %3871 = vmatprep.mubr.bf16.mxu0 %v2931
      %3872 = vmatmul.mubr.bf16.gmra.mrb[0].mxu0 %v2930
      %v3873 = vpop.f32.mrb[0].mxu0
      %v3874 = vadd.f32 %v3649, %v3873
      %v3875 = vpop.f32.mrb[0].mxu0
      %v3876 = vpop.f32.mrb[0].mxu0
      %v3877 = vadd.f32 %v3652, %v3876
      %v3878 = vpop.f32.mrb[0].mxu0
      %3879 = vmatprep.mubr.bf16.mxu0 %v2934
      %3880 = vmatmul.mubr.bf16.gmra.mrb[0].mxu0 %v2933
      %v3881 = vpop.f32.mrb[0].mxu0
      %v3882 = vadd.f32 %v3657, %v3881
      %v3883 = vpop.f32.mrb[0].mxu0
      %v3884 = vpop.f32.mrb[0].mxu0
      %v3885 = vadd.f32 %v3660, %v3884
      %v3886 = vpop.f32.mrb[0].mxu0
      %3887 = vmatprep.mubr.bf16.mxu0 %v2937
      %3888 = vmatmul.mubr.bf16.gmra.mrb[0].mxu0 %v2936
      %v3889 = vpop.f32.mrb[0].mxu0
      %v3890 = vadd.f32 %v3665, %v3889
      %v3891 = vpop.f32.mrb[0].mxu0
      %v3892 = vpop.f32.mrb[0].mxu0
      %v3893 = vadd.f32 %v3668, %v3892
      %v3894 = vpop.f32.mrb[0].mxu0
      %3895 = vmatprep.mubr.bf16.mxu0 %v2940
      %3896 = vmatmul.mubr.bf16.gmra.mrb[0].mxu0 %v2939
      %v3897 = vpop.f32.mrb[0].mxu0
      %v3898 = vadd.f32 %v3673, %v3897
      %v3899 = vpop.f32.mrb[0].mxu0
      %v3900 = vpop.f32.mrb[0].mxu0
      %v3901 = vadd.f32 %v3676, %v3900
      %v3902 = vpop.f32.mrb[0].mxu0
      %3903 = vmatprep.mubr.bf16.mxu0 %v2943
      %3904 = vmatmul.mubr.bf16.gmra.mrb[0].mxu0 %v2942
      %v3905 = vpop.f32.mrb[0].mxu0
      %v3906 = vadd.f32 %v3681, %v3905
      %v3907 = vpop.f32.mrb[0].mxu0
      %v3908 = vpop.f32.mrb[0].mxu0
      %v3909 = vadd.f32 %v3684, %v3908
      %v3910 = vpop.f32.mrb[0].mxu0
      %3911 = vmatprep.mubr.bf16.mxu0 %v2946
      %3912 = vmatmul.mubr.bf16.gmra.mrb[0].mxu0 %v2945
      %v3913 = vpop.f32.mrb[0].mxu0
      %v3914 = vadd.f32 %v3689, %v3913
      %v3915 = vpop.f32.mrb[0].mxu0
      %v3916 = vpop.f32.mrb[0].mxu0
      %v3917 = vadd.f32 %v3692, %v3916
      %v3918 = vpop.f32.mrb[0].mxu0
      %3919 = vmatprep.mubr.bf16.mxu0 %v2949
      %3920 = vmatmul.mubr.bf16.gmra.mrb[0].mxu0 %v2948
      %v3921 = vpop.f32.mrb[0].mxu0
      %v3922 = vadd.f32 %v3697, %v3921
      %v3923 = vpop.f32.mrb[0].mxu0
      %v3924 = vpop.f32.mrb[0].mxu0
      %v3925 = vadd.f32 %v3700, %v3924
      %v3926 = vpop.f32.mrb[0].mxu0
      %3927 = vmatprep.mubr.bf16.mxu0 %v2952
      %3928 = vmatmul.mubr.bf16.gmra.mrb[0].mxu0 %v2951
      %v3929 = vpop.f32.mrb[0].mxu0
      %v3930 = vadd.f32 %v3705, %v3929
      %v3931 = vpop.f32.mrb[0].mxu0
      %v3932 = vpop.f32.mrb[0].mxu0
      %v3933 = vadd.f32 %v3708, %v3932
      %v3934 = vpop.f32.mrb[0].mxu0
      %3935 = vmatprep.mubr.bf16.mxu0 %v2955
      %3936 = vmatmul.mubr.bf16.gmra.mrb[0].mxu0 %v2954
      %v3937 = vpop.f32.mrb[0].mxu0
      %v3938 = vadd.f32 %v3713, %v3937
      %v3939 = vpop.f32.mrb[0].mxu0
      %v3940 = vpop.f32.mrb[0].mxu0
      %v3941 = vadd.f32 %v3716, %v3940
      %v3942 = vpop.f32.mrb[0].mxu0
      %3943 = vmatprep.mubr.bf16.mxu0 %v2958
      %3944 = vmatmul.mubr.bf16.gmra.mrb[0].mxu0 %v2957
      %v3945 = vpop.f32.mrb[0].mxu0
      %v3946 = vadd.f32 %v3721, %v3945
      %v3947 = vpop.f32.mrb[0].mxu0
      %v3948 = vpop.f32.mrb[0].mxu0
      %v3949 = vadd.f32 %v3724, %v3948
      %v3950 = vpop.f32.mrb[0].mxu0
      %3951 = vmatprep.mubr.bf16.mxu0 %v2961
      %3952 = vmatmul.mubr.bf16.gmra.mrb[0].mxu0 %v2960
      %v3953 = vpop.f32.mrb[0].mxu0
      %v3954 = vadd.f32 %v3729, %v3953
      %v3955 = vpop.f32.mrb[0].mxu0
      %v3956 = vpop.f32.mrb[0].mxu0
      %v3957 = vadd.f32 %v3732, %v3956
      %v3958 = vpop.f32.mrb[0].mxu0
      %3959 = vmatprep.mubr.bf16.mxu0 %v2964
      %3960 = vmatmul.mubr.bf16.gmra.mrb[0].mxu0 %v2963
      %v3961 = vpop.f32.mrb[0].mxu0
      %v3962 = vadd.f32 %v3737, %v3961
      %v3963 = vpop.f32.mrb[0].mxu0
      %v3964 = vpop.f32.mrb[0].mxu0
      %v3965 = vadd.f32 %v3740, %v3964
      %v3966 = vpop.f32.mrb[0].mxu0
      %3967 = vmatprep.mubr.bf16.mxu0 %v2967
      %3968 = vmatmul.mubr.bf16.gmra.mrb[0].mxu0 %v2966
      %v3969 = vpop.f32.mrb[0].mxu0
      %v3970 = vadd.f32 %v3745, %v3969
      %v3971 = vpop.f32.mrb[0].mxu0
      %v3972 = vpop.f32.mrb[0].mxu0
      %v3973 = vadd.f32 %v3748, %v3972
      %v3974 = vpop.f32.mrb[0].mxu0
      %3975 = vmatprep.mubr.bf16.mxu0 %v2970
      %3976 = vmatmul.mubr.bf16.gmra.mrb[0].mxu0 %v2969
      %v3977 = vpop.f32.mrb[0].mxu0
      %v3978 = vadd.f32 %v3753, %v3977
      %v3979 = vpop.f32.mrb[0].mxu0
      %v3980 = vpop.f32.mrb[0].mxu0
      %v3981 = vadd.f32 %v3756, %v3980
      %v3982 = vpop.f32.mrb[0].mxu0
      %3983 = vmatprep.mubr.bf16.mxu0 %v2973
      %3984 = vmatmul.mubr.bf16.gmra.mrb[0].mxu0 %v2972
      %v3985 = vpop.f32.mrb[0].mxu0
      %v3986 = vadd.f32 %v3761, %v3985
      %v3987 = vpop.f32.mrb[0].mxu0
      %v3988 = vpop.f32.mrb[0].mxu0
      %v3989 = vadd.f32 %v3764, %v3988
      %v3990 = vpop.f32.mrb[0].mxu0
      %3991 = vmatprep.mubr.bf16.mxu0 %v2976
      %3992 = vmatmul.mubr.bf16.gmra.mrb[0].mxu0 %v2975
      %v3993 = vpop.f32.mrb[0].mxu0
      %v3994 = vadd.f32 %v3769, %v3993
      %v3995 = vpop.f32.mrb[0].mxu0
      %v3996 = vpop.f32.mrb[0].mxu0
      %v3997 = vadd.f32 %v3772, %v3996
      %v3998 = vpop.f32.mrb[0].mxu0
      %3999 = vmatprep.mubr.bf16.mxu0 %v2979
      %4000 = vmatmul.mubr.bf16.gmra.mrb[0].mxu0 %v2978
      %v4001 = vpop.f32.mrb[0].mxu0
      %v4002 = vadd.f32 %v3777, %v4001
      %v4003 = vpop.f32.mrb[0].mxu0
      %v4004 = vpop.f32.mrb[0].mxu0
      %v4005 = vadd.f32 %v3780, %v4004
      %v4006 = vpop.f32.mrb[0].mxu0
      %4007 = vmatprep.mubr.bf16.mxu0 %v2982
      %4008 = vmatmul.mubr.bf16.gmra.mrb[0].mxu0 %v2981
      %v4009 = vpop.f32.mrb[0].mxu0
      %v4010 = vadd.f32 %v3785, %v4009
      %v4011 = vpop.f32.mrb[0].mxu0
      %v4012 = vpop.f32.mrb[0].mxu0
      %v4013 = vadd.f32 %v3788, %v4012
      %v4014 = vpop.f32.mrb[0].mxu0
      %4015 = vmatprep.mubr.bf16.mxu0 %v2985
      %4016 = vmatmul.mubr.bf16.gmra.mrb[0].mxu0 %v2984
      %v4017 = vpop.f32.mrb[0].mxu0
      %v4018 = vadd.f32 %v3793, %v4017
      %v4019 = vpop.f32.mrb[0].mxu0
      %v4020 = vpop.f32.mrb[0].mxu0
      %v4021 = vadd.f32 %v3796, %v4020
      %v4022 = vpop.f32.mrb[0].mxu0
      %4023 = vdwg.mxu0
      %v4024 = vrot.slane %v3834, 7
      %v4025 = vrot.slane %v3837, 7
      %v4026 = vrot.slane %v3842, 7
      %v4027 = vrot.slane %v3845, 7
      %v4028 = vrot.slane %v3850, 7
      %v4029 = vrot.slane %v3853, 7
      %v4030 = vrot.slane %v3858, 7
      %v4031 = vrot.slane %v3861, 7
      %v4032 = vrot.slane %v3866, 7
      %v4033 = vrot.slane %v3869, 7
      %v4034 = vrot.slane %v3874, 7
      %v4035 = vrot.slane %v3877, 7
      %v4036 = vrot.slane %v3882, 7
      %v4037 = vrot.slane %v3885, 7
      %v4038 = vrot.slane %v3890, 7
      %v4039 = vrot.slane %v3893, 7
      %v4040 = vrot.slane %v3898, 7
      %v4041 = vrot.slane %v3901, 7
      %v4042 = vrot.slane %v3906, 7
      %v4043 = vrot.slane %v3909, 7
      %v4044 = vrot.slane %v3914, 7
      %v4045 = vrot.slane %v3917, 7
      %v4046 = vrot.slane %v3922, 7
      %v4047 = vrot.slane %v3925, 7
      %v4048 = vrot.slane %v3930, 7
      %v4049 = vrot.slane %v3933, 7
      %v4050 = vrot.slane %v3938, 7
      %v4051 = vrot.slane %v3941, 7
      %v4052 = vrot.slane %v3946, 7
      %v4053 = vrot.slane %v3949, 7
      %v4054 = vrot.slane %v3954, 7
      %v4055 = vrot.slane %v3957, 7
      %v4056 = vrot.slane %v3962, 7
      %v4057 = vrot.slane %v3965, 7
      %v4058 = vrot.slane %v3970, 7
      %v4059 = vrot.slane %v3973, 7
      %v4060 = vrot.slane %v3978, 7
      %v4061 = vrot.slane %v3981, 7
      %v4062 = vrot.slane %v3986, 7
      %v4063 = vrot.slane %v3989, 7
      %v4064 = vrot.slane %v3994, 7
      %v4065 = vrot.slane %v3997, 7
      %v4066 = vrot.slane %v4002, 7
      %v4067 = vrot.slane %v4005, 7
      %v4068 = vrot.slane %v4010, 7
      %v4069 = vrot.slane %v4013, 7
      %v4070 = vrot.slane %v4018, 7
      %v4071 = vrot.slane %v4021, 7
      %v4072 = vlaneseq
      %v4073 = vshrl.u32 %v4072, 7
      %vm4074 = vcmp.lt.s32.totalorder %v4073, 1
      %v4075 = vsel %vm4074, %v4070, %v4071
      %v4076 = vsel %vm4074, %v4069, %v4070
      %v4077 = vsel %vm4074, %v4068, %v4069
      %v4078 = vsel %vm4074, %v4067, %v4068
      %v4079 = vsel %vm4074, %v4066, %v4067
      %v4080 = vsel %vm4074, %v4065, %v4066
      %v4081 = vsel %vm4074, %v4064, %v4065
      %v4082 = vsel %vm4074, %v4063, %v4064
      %v4083 = vsel %vm4074, %v4062, %v4063
      %v4084 = vsel %vm4074, %v4061, %v4062
      %v4085 = vsel %vm4074, %v4060, %v4061
      %v4086 = vsel %vm4074, %v4059, %v4060
      %v4087 = vsel %vm4074, %v4058, %v4059
      %v4088 = vsel %vm4074, %v4057, %v4058
      %v4089 = vsel %vm4074, %v4056, %v4057
      %v4090 = vsel %vm4074, %v4055, %v4056
      %v4091 = vsel %vm4074, %v4054, %v4055
      %v4092 = vsel %vm4074, %v4053, %v4054
      %v4093 = vsel %vm4074, %v4052, %v4053
      %v4094 = vsel %vm4074, %v4051, %v4052
      %v4095 = vsel %vm4074, %v4050, %v4051
      %v4096 = vsel %vm4074, %v4049, %v4050
      %v4097 = vsel %vm4074, %v4048, %v4049
      %v4098 = vsel %vm4074, %v4047, %v4048
      %v4099 = vsel %vm4074, %v4046, %v4047
      %v4100 = vsel %vm4074, %v4045, %v4046
      %v4101 = vsel %vm4074, %v4044, %v4045
      %v4102 = vsel %vm4074, %v4043, %v4044
      %v4103 = vsel %vm4074, %v4042, %v4043
      %v4104 = vsel %vm4074, %v4041, %v4042
      %v4105 = vsel %vm4074, %v4040, %v4041
      %v4106 = vsel %vm4074, %v4039, %v4040
      %v4107 = vsel %vm4074, %v4038, %v4039
      %v4108 = vsel %vm4074, %v4037, %v4038
      %v4109 = vsel %vm4074, %v4036, %v4037
      %v4110 = vsel %vm4074, %v4035, %v4036
      %v4111 = vsel %vm4074, %v4034, %v4035
      %v4112 = vsel %vm4074, %v4033, %v4034
      %v4113 = vsel %vm4074, %v4032, %v4033
      %v4114 = vsel %vm4074, %v4031, %v4032
      %v4115 = vsel %vm4074, %v4030, %v4031
      %v4116 = vsel %vm4074, %v4029, %v4030
      %v4117 = vsel %vm4074, %v4028, %v4029
      %v4118 = vsel %vm4074, %v4027, %v4028
      %v4119 = vsel %vm4074, %v4026, %v4027
      %v4120 = vsel %vm4074, %v4025, %v4026
      %v4121 = vsel %vm4074, %v4024, %v4025
      %v4122 = vsel %vm4074, %v4071, %v4024
      %v4123 = vld [vmem:[%s4 + $0x180] sm:$0xf]
      %v4124 = vld [vmem:[%s4 + $0x184] sm:$0xf]
      %v4125 = vld [vmem:[%s4 + $0x188] sm:$0xf]
      %v4126 = vld [vmem:[%s4 + $0x18c] sm:$0xf]
      %v4127 = vld [vmem:[%s4 + $0x190] sm:$0xf]
      %v4128 = vld [vmem:[%s4 + $0x194] sm:$0xf]
      %v4129 = vld [vmem:[%s4 + $0x198] sm:$0xf]
      %v4130 = vld [vmem:[%s4 + $0x19c] sm:$0xf]
      %v4131 = vld [vmem:[%s4 + $0x1a0] sm:$0xf]
      %v4132 = vld [vmem:[%s4 + $0x1a4] sm:$0xf]
      %v4133 = vld [vmem:[%s4 + $0x1a8] sm:$0xf]
      %v4134 = vld [vmem:[%s4 + $0x1ac] sm:$0xf]
      %v4135 = vld [vmem:[%s4 + $0x1b0] sm:$0xf]
      %v4136 = vld [vmem:[%s4 + $0x1b4] sm:$0xf]
      %v4137 = vld [vmem:[%s4 + $0x1b8] sm:$0xf]
      %v4138 = vld [vmem:[%s4 + $0x1bc] sm:$0xf]
      %v4139 = vld [vmem:[%s4 + $0x1c0] sm:$0xf]
      %v4140 = vld [vmem:[%s4 + $0x1c4] sm:$0xf]
      %v4141 = vld [vmem:[%s4 + $0x1c8] sm:$0xf]
      %v4142 = vld [vmem:[%s4 + $0x1cc] sm:$0xf]
      %v4143 = vld [vmem:[%s4 + $0x1d0] sm:$0xf]
      %v4144 = vld [vmem:[%s4 + $0x1d4] sm:$0xf]
      %v4145 = vld [vmem:[%s4 + $0x1d8] sm:$0xf]
      %v4146 = vld [vmem:[%s4 + $0x1dc] sm:$0xf]
      %v4147 = vld [vmem:[%s4 + $0x1e0] sm:$0xf]
      %v4148 = vld [vmem:[%s4 + $0x1e4] sm:$0xf]
      %v4149 = vld [vmem:[%s4 + $0x1e8] sm:$0xf]
      %v4150 = vld [vmem:[%s4 + $0x1ec] sm:$0xf]
      %v4151 = vld [vmem:[%s4 + $0x1f0] sm:$0xf]
      %v4152 = vld [vmem:[%s4 + $0x1f4] sm:$0xf]
      %v4153 = vld [vmem:[%s4 + $0x1f8] sm:$0xf]
      %v4154 = vld [vmem:[%s4 + $0x1fc] sm:$0xf]
      %v4155 = vld [vmem:[%s4 + $0x200] sm:$0xf]
      %v4156 = vld [vmem:[%s4 + $0x204] sm:$0xf]
      %v4157 = vld [vmem:[%s4 + $0x208] sm:$0xf]
      %v4158 = vld [vmem:[%s4 + $0x20c] sm:$0xf]
      %v4159 = vld [vmem:[%s4 + $0x210] sm:$0xf]
      %v4160 = vld [vmem:[%s4 + $0x214] sm:$0xf]
      %v4161 = vld [vmem:[%s4 + $0x218] sm:$0xf]
      %v4162 = vld [vmem:[%s4 + $0x21c] sm:$0xf]
      %v4163 = vld [vmem:[%s4 + $0x220] sm:$0xf]
      %v4164 = vld [vmem:[%s4 + $0x224] sm:$0xf]
      %v4165 = vld [vmem:[%s4 + $0x228] sm:$0xf]
      %v4166 = vld [vmem:[%s4 + $0x22c] sm:$0xf]
      %v4167 = vld [vmem:[%s4 + $0x230] sm:$0xf]
      %v4168 = vld [vmem:[%s4 + $0x234] sm:$0xf]
      %v4169 = vld [vmem:[%s4 + $0x238] sm:$0xf]
      %v4170 = vld [vmem:[%s4 + $0x23c] sm:$0xf]
      %v4171 = vld [vmem:[%s4 + $0x240] sm:$0xf]
      %v4172 = vld [vmem:[%s4 + $0x244] sm:$0xf]
      %v4173 = vld [vmem:[%s4 + $0x248] sm:$0xf]
      %v4174 = vld [vmem:[%s4 + $0x24c] sm:$0xf]
      %v4175 = vld [vmem:[%s4 + $0x250] sm:$0xf]
      %v4176 = vld [vmem:[%s4 + $0x254] sm:$0xf]
      %v4177 = vld [vmem:[%s4 + $0x258] sm:$0xf]
      %v4178 = vld [vmem:[%s4 + $0x25c] sm:$0xf]
      %v4179 = vld [vmem:[%s4 + $0x260] sm:$0xf]
      %v4180 = vld [vmem:[%s4 + $0x264] sm:$0xf]
      %v4181 = vld [vmem:[%s4 + $0x268] sm:$0xf]
      %v4182 = vld [vmem:[%s4 + $0x26c] sm:$0xf]
      %v4183 = vld [vmem:[%s4 + $0x270] sm:$0xf]
      %v4184 = vld [vmem:[%s4 + $0x274] sm:$0xf]
      %v4185 = vld [vmem:[%s4 + $0x278] sm:$0xf]
      %v4186 = vld [vmem:[%s4 + $0x27c] sm:$0xf]
      %v4187 = vld [vmem:[%s4 + $0x280] sm:$0xf]
      %v4188 = vld [vmem:[%s4 + $0x284] sm:$0xf]
      %v4189 = vld [vmem:[%s4 + $0x288] sm:$0xf]
      %v4190 = vld [vmem:[%s4 + $0x28c] sm:$0xf]
      %v4191 = vld [vmem:[%s4 + $0x290] sm:$0xf]
      %v4192 = vld [vmem:[%s4 + $0x294] sm:$0xf]
      %v4193 = vld [vmem:[%s4 + $0x298] sm:$0xf]
      %v4194 = vld [vmem:[%s4 + $0x29c] sm:$0xf]
      %v4195 = vld [vmem:[%s4 + $0x2a0] sm:$0xf]
      %v4196 = vld [vmem:[%s4 + $0x2a4] sm:$0xf]
      %v4197 = vld [vmem:[%s4 + $0x2a8] sm:$0xf]
      %v4198 = vld [vmem:[%s4 + $0x2ac] sm:$0xf]
      %v4199 = vld [vmem:[%s4 + $0x2b0] sm:$0xf]
      %v4200 = vld [vmem:[%s4 + $0x2b4] sm:$0xf]
      %v4201 = vld [vmem:[%s4 + $0x2b8] sm:$0xf]
      %v4202 = vld [vmem:[%s4 + $0x2bc] sm:$0xf]
      %v4203 = vld [vmem:[%s4 + $0x2c0] sm:$0xf]
      %v4204 = vld [vmem:[%s4 + $0x2c4] sm:$0xf]
      %v4205 = vld [vmem:[%s4 + $0x2c8] sm:$0xf]
      %v4206 = vld [vmem:[%s4 + $0x2cc] sm:$0xf]
      %v4207 = vld [vmem:[%s4 + $0x2d0] sm:$0xf]
      %v4208 = vld [vmem:[%s4 + $0x2d4] sm:$0xf]
      %v4209 = vld [vmem:[%s4 + $0x2d8] sm:$0xf]
      %v4210 = vld [vmem:[%s4 + $0x2dc] sm:$0xf]
      %v4211 = vld [vmem:[%s4 + $0x2e0] sm:$0xf]
      %v4212 = vld [vmem:[%s4 + $0x2e4] sm:$0xf]
      %v4213 = vld [vmem:[%s4 + $0x2e8] sm:$0xf]
      %v4214 = vld [vmem:[%s4 + $0x2ec] sm:$0xf]
      %v4215 = vld [vmem:[%s4 + $0x2f0] sm:$0xf]
      %v4216 = vld [vmem:[%s4 + $0x2f4] sm:$0xf]
      %v4217 = vld [vmem:[%s4 + $0x2f8] sm:$0xf]
      %v4218 = vld [vmem:[%s4 + $0x2fc] sm:$0xf]
      %v4315 = vunpack.c.l.b16 %v4123
      %v4316 = vunpack.c.l.b16 %v4124
      %v4317 = vunpack.c.l.b16 %v4125
      %v4318 = vunpack.c.l.b16 %v4126
      %v4319 = vunpack.c.l.b16 %v4127
      %v4320 = vunpack.c.l.b16 %v4128
      %v4321 = vunpack.c.l.b16 %v4129
      %v4322 = vunpack.c.l.b16 %v4130
      %v4323 = vunpack.c.l.b16 %v4131
      %v4324 = vunpack.c.l.b16 %v4132
      %v4325 = vunpack.c.l.b16 %v4133
      %v4326 = vunpack.c.l.b16 %v4134
      %v4327 = vunpack.c.l.b16 %v4135
      %v4328 = vunpack.c.l.b16 %v4136
      %v4329 = vunpack.c.l.b16 %v4137
      %v4330 = vunpack.c.l.b16 %v4138
      %v4331 = vunpack.c.l.b16 %v4139
      %v4332 = vunpack.c.l.b16 %v4140
      %v4333 = vunpack.c.l.b16 %v4141
      %v4334 = vunpack.c.l.b16 %v4142
      %v4335 = vunpack.c.l.b16 %v4143
      %v4336 = vunpack.c.l.b16 %v4144
      %v4337 = vunpack.c.l.b16 %v4145
      %v4338 = vunpack.c.l.b16 %v4146
      %v4339 = vunpack.c.l.b16 %v4147
      %v4340 = vunpack.c.l.b16 %v4148
      %v4341 = vunpack.c.l.b16 %v4149
      %v4342 = vunpack.c.l.b16 %v4150
      %v4343 = vunpack.c.l.b16 %v4151
      %v4344 = vunpack.c.l.b16 %v4152
      %v4345 = vunpack.c.l.b16 %v4153
      %v4346 = vunpack.c.l.b16 %v4154
      %v4347 = vunpack.c.l.b16 %v4155
      %v4348 = vunpack.c.l.b16 %v4156
      %v4349 = vunpack.c.l.b16 %v4157
      %v4350 = vunpack.c.l.b16 %v4158
      %v4351 = vunpack.c.l.b16 %v4159
      %v4352 = vunpack.c.l.b16 %v4160
      %v4353 = vunpack.c.l.b16 %v4161
      %v4354 = vunpack.c.l.b16 %v4162
      %v4355 = vunpack.c.l.b16 %v4163
      %v4356 = vunpack.c.l.b16 %v4164
      %v4357 = vunpack.c.l.b16 %v4165
      %v4358 = vunpack.c.l.b16 %v4166
      %v4359 = vunpack.c.l.b16 %v4167
      %v4360 = vunpack.c.l.b16 %v4168
      %v4361 = vunpack.c.l.b16 %v4169
      %v4362 = vunpack.c.l.b16 %v4170
      %v4363 = vunpack.c.l.b16 %v4171
      %v4364 = vunpack.c.l.b16 %v4172
      %v4365 = vunpack.c.l.b16 %v4173
      %v4366 = vunpack.c.l.b16 %v4174
      %v4367 = vunpack.c.l.b16 %v4175
      %v4368 = vunpack.c.l.b16 %v4176
      %v4369 = vunpack.c.l.b16 %v4177
      %v4370 = vunpack.c.l.b16 %v4178
      %v4371 = vunpack.c.l.b16 %v4179
      %v4372 = vunpack.c.l.b16 %v4180
      %v4373 = vunpack.c.l.b16 %v4181
      %v4374 = vunpack.c.l.b16 %v4182
      %v4375 = vunpack.c.l.b16 %v4183
      %v4376 = vunpack.c.l.b16 %v4184
      %v4377 = vunpack.c.l.b16 %v4185
      %v4378 = vunpack.c.l.b16 %v4186
      %v4379 = vunpack.c.l.b16 %v4187
      %v4380 = vunpack.c.l.b16 %v4188
      %v4381 = vunpack.c.l.b16 %v4189
      %v4382 = vunpack.c.l.b16 %v4190
      %v4383 = vunpack.c.l.b16 %v4191
      %v4384 = vunpack.c.l.b16 %v4192
      %v4385 = vunpack.c.l.b16 %v4193
      %v4386 = vunpack.c.l.b16 %v4194
      %v4387 = vunpack.c.l.b16 %v4195
      %v4388 = vunpack.c.l.b16 %v4196
      %v4389 = vunpack.c.l.b16 %v4197
      %v4390 = vunpack.c.l.b16 %v4198
      %v4391 = vunpack.c.l.b16 %v4199
      %v4392 = vunpack.c.l.b16 %v4200
      %v4393 = vunpack.c.l.b16 %v4201
      %v4394 = vunpack.c.l.b16 %v4202
      %v4395 = vunpack.c.l.b16 %v4203
      %v4396 = vunpack.c.l.b16 %v4204
      %v4397 = vunpack.c.l.b16 %v4205
      %v4398 = vunpack.c.l.b16 %v4206
      %v4399 = vunpack.c.l.b16 %v4207
      %v4400 = vunpack.c.l.b16 %v4208
      %v4401 = vunpack.c.l.b16 %v4209
      %v4402 = vunpack.c.l.b16 %v4210
      %v4403 = vunpack.c.l.b16 %v4211
      %v4404 = vunpack.c.l.b16 %v4212
      %v4405 = vunpack.c.l.b16 %v4213
      %v4406 = vunpack.c.l.b16 %v4214
      %v4407 = vunpack.c.l.b16 %v4215
      %v4408 = vunpack.c.l.b16 %v4216
      %v4409 = vunpack.c.l.b16 %v4217
      %v4410 = vunpack.c.l.b16 %v4218
      %v4411 = vpack.c.b16 %v4316, %v4315
      %v4412 = vpack.c.b16 %v4318, %v4317
      %v4413 = vpack.c.b16 %v4320, %v4319
      %v4414 = vpack.c.b16 %v4322, %v4321
      %v4415 = vpack.c.b16 %v4324, %v4323
      %v4416 = vpack.c.b16 %v4326, %v4325
      %v4417 = vpack.c.b16 %v4328, %v4327
      %v4418 = vpack.c.b16 %v4330, %v4329
      %v4419 = vpack.c.b16 %v4332, %v4331
      %v4420 = vpack.c.b16 %v4334, %v4333
      %v4421 = vpack.c.b16 %v4336, %v4335
      %v4422 = vpack.c.b16 %v4338, %v4337
      %v4423 = vpack.c.b16 %v4340, %v4339
      %v4424 = vpack.c.b16 %v4342, %v4341
      %v4425 = vpack.c.b16 %v4344, %v4343
      %v4426 = vpack.c.b16 %v4346, %v4345
      %v4427 = vpack.c.b16 %v4348, %v4347
      %v4428 = vpack.c.b16 %v4350, %v4349
      %v4429 = vpack.c.b16 %v4352, %v4351
      %v4430 = vpack.c.b16 %v4354, %v4353
      %v4431 = vpack.c.b16 %v4356, %v4355
      %v4432 = vpack.c.b16 %v4358, %v4357
      %v4433 = vpack.c.b16 %v4360, %v4359
      %v4434 = vpack.c.b16 %v4362, %v4361
      %v4435 = vpack.c.b16 %v4364, %v4363
      %v4436 = vpack.c.b16 %v4366, %v4365
      %v4437 = vpack.c.b16 %v4368, %v4367
      %v4438 = vpack.c.b16 %v4370, %v4369
      %v4439 = vpack.c.b16 %v4372, %v4371
      %v4440 = vpack.c.b16 %v4374, %v4373
      %v4441 = vpack.c.b16 %v4376, %v4375
      %v4442 = vpack.c.b16 %v4378, %v4377
      %v4443 = vpack.c.b16 %v4380, %v4379
      %v4444 = vpack.c.b16 %v4382, %v4381
      %v4445 = vpack.c.b16 %v4384, %v4383
      %v4446 = vpack.c.b16 %v4386, %v4385
      %v4447 = vpack.c.b16 %v4388, %v4387
      %v4448 = vpack.c.b16 %v4390, %v4389
      %v4449 = vpack.c.b16 %v4392, %v4391
      %v4450 = vpack.c.b16 %v4394, %v4393
      %v4451 = vpack.c.b16 %v4396, %v4395
      %v4452 = vpack.c.b16 %v4398, %v4397
      %v4453 = vpack.c.b16 %v4400, %v4399
      %v4454 = vpack.c.b16 %v4402, %v4401
      %v4455 = vpack.c.b16 %v4404, %v4403
      %v4456 = vpack.c.b16 %v4406, %v4405
      %v4457 = vpack.c.b16 %v4408, %v4407
      %v4458 = vpack.c.b16 %v4410, %v4409
      %4507 = vmatprep.subr.bf16.mxu0 0
      %4508 = vmatpush1.bf16.msra.mxu0 %v4411
      %4509 = vmatprep.subr.bf16.mxu0 0
      %4510 = vmatpush1.bf16.msra.mxu0 %v4412
      %4511 = vmatprep.subr.bf16.mxu0 0
      %4512 = vmatpush1.bf16.msra.mxu0 %v4413
      %4513 = vmatprep.subr.bf16.mxu0 0
      %4514 = vmatpush1.bf16.msra.mxu0 %v4414
      %4515 = vmatprep.subr.bf16.mxu0 0
      %4516 = vmatpush1.bf16.msra.mxu0 %v4415
      %4517 = vmatprep.subr.bf16.mxu0 0
      %4518 = vmatpush1.bf16.msra.mxu0 %v4416
      %4519 = vmatprep.subr.bf16.mxu0 0
      %4520 = vmatpush1.bf16.msra.mxu0 %v4417
      %4521 = vmatprep.subr.bf16.mxu0 0
      %4522 = vmatpush1.bf16.msra.mxu0 %v4418
      %4523 = vmatprep.subr.bf16.mxu0 0
      %4524 = vmatpush1.bf16.msra.mxu0 %v4419
      %4525 = vmatprep.subr.bf16.mxu0 0
      %4526 = vmatpush1.bf16.msra.mxu0 %v4420
      %4527 = vmatprep.subr.bf16.mxu0 0
      %4528 = vmatpush1.bf16.msra.mxu0 %v4421
      %4529 = vmatprep.subr.bf16.mxu0 0
      %4530 = vmatpush1.bf16.msra.mxu0 %v4422
      %4531 = vmatprep.subr.bf16.mxu0 0
      %4532 = vmatpush1.bf16.msra.mxu0 %v4423
      %4533 = vmatprep.subr.bf16.mxu0 0
      %4534 = vmatpush1.bf16.msra.mxu0 %v4424
      %4535 = vmatprep.subr.bf16.mxu0 0
      %4536 = vmatpush1.bf16.msra.mxu0 %v4425
      %4537 = vmatprep.subr.bf16.mxu0 0
      %4538 = vmatpush1.bf16.msra.mxu0 %v4426
      %4539 = vmatprep.mubr.bf16.mxu0 %v2911
      %4540 = vmatmul.mubr.bf16.gmra.mrb[0].mxu0 %v834
      %v4541 = vpop.f32.mrb[0].mxu0
      %v4542 = vadd.f32 0.0, %v4541
      %v4543 = vpop.f32.mrb[0].mxu0
      %v4544 = vpop.f32.mrb[0].mxu0
      %v4545 = vadd.f32 0.0, %v4544
      %v4546 = vpop.f32.mrb[0].mxu0
      %4547 = vmatprep.mubr.bf16.mxu0 %v2915
      %4548 = vmatmul.mubr.bf16.gmra.mrb[0].mxu0 %v835
      %v4549 = vpop.f32.mrb[0].mxu0
      %v4550 = vadd.f32 0.0, %v4549
      %v4551 = vpop.f32.mrb[0].mxu0
      %v4552 = vpop.f32.mrb[0].mxu0
      %v4553 = vadd.f32 0.0, %v4552
      %v4554 = vpop.f32.mrb[0].mxu0
      %4555 = vmatprep.mubr.bf16.mxu0 %v2919
      %4556 = vmatmul.mubr.bf16.gmra.mrb[0].mxu0 %v836
      %v4557 = vpop.f32.mrb[0].mxu0
      %v4558 = vadd.f32 0.0, %v4557
      %v4559 = vpop.f32.mrb[0].mxu0
      %v4560 = vpop.f32.mrb[0].mxu0
      %v4561 = vadd.f32 0.0, %v4560
      %v4562 = vpop.f32.mrb[0].mxu0
      %4563 = vmatprep.mubr.bf16.mxu0 %v2923
      %4564 = vmatmul.mubr.bf16.gmra.mrb[0].mxu0 %v837
      %v4565 = vpop.f32.mrb[0].mxu0
      %v4566 = vadd.f32 0.0, %v4565
      %v4567 = vpop.f32.mrb[0].mxu0
      %v4568 = vpop.f32.mrb[0].mxu0
      %v4569 = vadd.f32 0.0, %v4568
      %v4570 = vpop.f32.mrb[0].mxu0
      %4571 = vmatprep.mubr.bf16.mxu0 %v2926
      %4572 = vmatmul.mubr.bf16.gmra.mrb[0].mxu0 %v838
      %v4573 = vpop.f32.mrb[0].mxu0
      %v4574 = vadd.f32 0.0, %v4573
      %v4575 = vpop.f32.mrb[0].mxu0
      %v4576 = vpop.f32.mrb[0].mxu0
      %v4577 = vadd.f32 0.0, %v4576
      %v4578 = vpop.f32.mrb[0].mxu0
      %4579 = vmatprep.mubr.bf16.mxu0 %v2929
      %4580 = vmatmul.mubr.bf16.gmra.mrb[0].mxu0 %v839
      %v4581 = vpop.f32.mrb[0].mxu0
      %v4582 = vadd.f32 0.0, %v4581
      %v4583 = vpop.f32.mrb[0].mxu0
      %v4584 = vpop.f32.mrb[0].mxu0
      %v4585 = vadd.f32 0.0, %v4584
      %v4586 = vpop.f32.mrb[0].mxu0
      %4587 = vmatprep.mubr.bf16.mxu0 %v2932
      %4588 = vmatmul.mubr.bf16.gmra.mrb[0].mxu0 %v840
      %v4589 = vpop.f32.mrb[0].mxu0
      %v4590 = vadd.f32 0.0, %v4589
      %v4591 = vpop.f32.mrb[0].mxu0
      %v4592 = vpop.f32.mrb[0].mxu0
      %v4593 = vadd.f32 0.0, %v4592
      %v4594 = vpop.f32.mrb[0].mxu0
      %4595 = vmatprep.mubr.bf16.mxu0 %v2935
      %4596 = vmatmul.mubr.bf16.gmra.mrb[0].mxu0 %v841
      %v4597 = vpop.f32.mrb[0].mxu0
      %v4598 = vadd.f32 0.0, %v4597
      %v4599 = vpop.f32.mrb[0].mxu0
      %v4600 = vpop.f32.mrb[0].mxu0
      %v4601 = vadd.f32 0.0, %v4600
      %v4602 = vpop.f32.mrb[0].mxu0
      %4603 = vmatprep.mubr.bf16.mxu0 %v2938
      %4604 = vmatmul.mubr.bf16.gmra.mrb[0].mxu0 %v842
      %v4605 = vpop.f32.mrb[0].mxu0
      %v4606 = vadd.f32 0.0, %v4605
      %v4607 = vpop.f32.mrb[0].mxu0
      %v4608 = vpop.f32.mrb[0].mxu0
      %v4609 = vadd.f32 0.0, %v4608
      %v4610 = vpop.f32.mrb[0].mxu0
      %4611 = vmatprep.mubr.bf16.mxu0 %v2941
      %4612 = vmatmul.mubr.bf16.gmra.mrb[0].mxu0 %v843
      %v4613 = vpop.f32.mrb[0].mxu0
      %v4614 = vadd.f32 0.0, %v4613
      %v4615 = vpop.f32.mrb[0].mxu0
      %v4616 = vpop.f32.mrb[0].mxu0
      %v4617 = vadd.f32 0.0, %v4616
      %v4618 = vpop.f32.mrb[0].mxu0
      %4619 = vmatprep.mubr.bf16.mxu0 %v2944
      %4620 = vmatmul.mubr.bf16.gmra.mrb[0].mxu0 %v844
      %v4621 = vpop.f32.mrb[0].mxu0
      %v4622 = vadd.f32 0.0, %v4621
      %v4623 = vpop.f32.mrb[0].mxu0
      %v4624 = vpop.f32.mrb[0].mxu0
      %v4625 = vadd.f32 0.0, %v4624
      %v4626 = vpop.f32.mrb[0].mxu0
      %4627 = vmatprep.mubr.bf16.mxu0 %v2947
      %4628 = vmatmul.mubr.bf16.gmra.mrb[0].mxu0 %v845
      %v4629 = vpop.f32.mrb[0].mxu0
      %v4630 = vadd.f32 0.0, %v4629
      %v4631 = vpop.f32.mrb[0].mxu0
      %v4632 = vpop.f32.mrb[0].mxu0
      %v4633 = vadd.f32 0.0, %v4632
      %v4634 = vpop.f32.mrb[0].mxu0
      %4635 = vmatprep.mubr.bf16.mxu0 %v2950
      %4636 = vmatmul.mubr.bf16.gmra.mrb[0].mxu0 %v846
      %v4637 = vpop.f32.mrb[0].mxu0
      %v4638 = vadd.f32 0.0, %v4637
      %v4639 = vpop.f32.mrb[0].mxu0
      %v4640 = vpop.f32.mrb[0].mxu0
      %v4641 = vadd.f32 0.0, %v4640
      %v4642 = vpop.f32.mrb[0].mxu0
      %4643 = vmatprep.mubr.bf16.mxu0 %v2953
      %4644 = vmatmul.mubr.bf16.gmra.mrb[0].mxu0 %v847
      %v4645 = vpop.f32.mrb[0].mxu0
      %v4646 = vadd.f32 0.0, %v4645
      %v4647 = vpop.f32.mrb[0].mxu0
      %v4648 = vpop.f32.mrb[0].mxu0
      %v4649 = vadd.f32 0.0, %v4648
      %v4650 = vpop.f32.mrb[0].mxu0
      %4651 = vmatprep.mubr.bf16.mxu0 %v2956
      %4652 = vmatmul.mubr.bf16.gmra.mrb[0].mxu0 %v848
      %v4653 = vpop.f32.mrb[0].mxu0
      %v4654 = vadd.f32 0.0, %v4653
      %v4655 = vpop.f32.mrb[0].mxu0
      %v4656 = vpop.f32.mrb[0].mxu0
      %v4657 = vadd.f32 0.0, %v4656
      %v4658 = vpop.f32.mrb[0].mxu0
      %4659 = vmatprep.mubr.bf16.mxu0 %v2959
      %4660 = vmatmul.mubr.bf16.gmra.mrb[0].mxu0 %v849
      %v4661 = vpop.f32.mrb[0].mxu0
      %v4662 = vadd.f32 0.0, %v4661
      %v4663 = vpop.f32.mrb[0].mxu0
      %v4664 = vpop.f32.mrb[0].mxu0
      %v4665 = vadd.f32 0.0, %v4664
      %v4666 = vpop.f32.mrb[0].mxu0
      %4667 = vmatprep.mubr.bf16.mxu0 %v2962
      %4668 = vmatmul.mubr.bf16.gmra.mrb[0].mxu0 %v850
      %v4669 = vpop.f32.mrb[0].mxu0
      %v4670 = vadd.f32 0.0, %v4669
      %v4671 = vpop.f32.mrb[0].mxu0
      %v4672 = vpop.f32.mrb[0].mxu0
      %v4673 = vadd.f32 0.0, %v4672
      %v4674 = vpop.f32.mrb[0].mxu0
      %4675 = vmatprep.mubr.bf16.mxu0 %v2965
      %4676 = vmatmul.mubr.bf16.gmra.mrb[0].mxu0 %v851
      %v4677 = vpop.f32.mrb[0].mxu0
      %v4678 = vadd.f32 0.0, %v4677
      %v4679 = vpop.f32.mrb[0].mxu0
      %v4680 = vpop.f32.mrb[0].mxu0
      %v4681 = vadd.f32 0.0, %v4680
      %v4682 = vpop.f32.mrb[0].mxu0
      %4683 = vmatprep.mubr.bf16.mxu0 %v2968
      %4684 = vmatmul.mubr.bf16.gmra.mrb[0].mxu0 %v852
      %v4685 = vpop.f32.mrb[0].mxu0
      %v4686 = vadd.f32 0.0, %v4685
      %v4687 = vpop.f32.mrb[0].mxu0
      %v4688 = vpop.f32.mrb[0].mxu0
      %v4689 = vadd.f32 0.0, %v4688
      %v4690 = vpop.f32.mrb[0].mxu0
      %4691 = vmatprep.mubr.bf16.mxu0 %v2971
      %4692 = vmatmul.mubr.bf16.gmra.mrb[0].mxu0 %v853
      %v4693 = vpop.f32.mrb[0].mxu0
      %v4694 = vadd.f32 0.0, %v4693
      %v4695 = vpop.f32.mrb[0].mxu0
      %v4696 = vpop.f32.mrb[0].mxu0
      %v4697 = vadd.f32 0.0, %v4696
      %v4698 = vpop.f32.mrb[0].mxu0
      %4699 = vmatprep.mubr.bf16.mxu0 %v2974
      %4700 = vmatmul.mubr.bf16.gmra.mrb[0].mxu0 %v854
      %v4701 = vpop.f32.mrb[0].mxu0
      %v4702 = vadd.f32 0.0, %v4701
      %v4703 = vpop.f32.mrb[0].mxu0
      %v4704 = vpop.f32.mrb[0].mxu0
      %v4705 = vadd.f32 0.0, %v4704
      %v4706 = vpop.f32.mrb[0].mxu0
      %4707 = vmatprep.mubr.bf16.mxu0 %v2977
      %4708 = vmatmul.mubr.bf16.gmra.mrb[0].mxu0 %v855
      %v4709 = vpop.f32.mrb[0].mxu0
      %v4710 = vadd.f32 0.0, %v4709
      %v4711 = vpop.f32.mrb[0].mxu0
      %v4712 = vpop.f32.mrb[0].mxu0
      %v4713 = vadd.f32 0.0, %v4712
      %v4714 = vpop.f32.mrb[0].mxu0
      %4715 = vmatprep.mubr.bf16.mxu0 %v2980
      %4716 = vmatmul.mubr.bf16.gmra.mrb[0].mxu0 %v856
      %v4717 = vpop.f32.mrb[0].mxu0
      %v4718 = vadd.f32 0.0, %v4717
      %v4719 = vpop.f32.mrb[0].mxu0
      %v4720 = vpop.f32.mrb[0].mxu0
      %v4721 = vadd.f32 0.0, %v4720
      %v4722 = vpop.f32.mrb[0].mxu0
      %4723 = vmatprep.mubr.bf16.mxu0 %v2983
      %4724 = vmatmul.mubr.bf16.gmra.mrb[0].mxu0 %v857
      %v4725 = vpop.f32.mrb[0].mxu0
      %v4726 = vadd.f32 0.0, %v4725
      %v4727 = vpop.f32.mrb[0].mxu0
      %v4728 = vpop.f32.mrb[0].mxu0
      %v4729 = vadd.f32 0.0, %v4728
      %v4730 = vpop.f32.mrb[0].mxu0
      %4731 = vdwg.mxu0
      %4732 = vmatprep.subr.bf16.mxu0 0
      %4733 = vmatpush1.bf16.msra.mxu0 %v4427
      %4734 = vmatprep.subr.bf16.mxu0 0
      %4735 = vmatpush1.bf16.msra.mxu0 %v4428
      %4736 = vmatprep.subr.bf16.mxu0 0
      %4737 = vmatpush1.bf16.msra.mxu0 %v4429
      %4738 = vmatprep.subr.bf16.mxu0 0
      %4739 = vmatpush1.bf16.msra.mxu0 %v4430
      %4740 = vmatprep.subr.bf16.mxu0 0
      %4741 = vmatpush1.bf16.msra.mxu0 %v4431
      %4742 = vmatprep.subr.bf16.mxu0 0
      %4743 = vmatpush1.bf16.msra.mxu0 %v4432
      %4744 = vmatprep.subr.bf16.mxu0 0
      %4745 = vmatpush1.bf16.msra.mxu0 %v4433
      %4746 = vmatprep.subr.bf16.mxu0 0
      %4747 = vmatpush1.bf16.msra.mxu0 %v4434
      %4748 = vmatprep.subr.bf16.mxu0 0
      %4749 = vmatpush1.bf16.msra.mxu0 %v4435
      %4750 = vmatprep.subr.bf16.mxu0 0
      %4751 = vmatpush1.bf16.msra.mxu0 %v4436
      %4752 = vmatprep.subr.bf16.mxu0 0
      %4753 = vmatpush1.bf16.msra.mxu0 %v4437
      %4754 = vmatprep.subr.bf16.mxu0 0
      %4755 = vmatpush1.bf16.msra.mxu0 %v4438
      %4756 = vmatprep.subr.bf16.mxu0 0
      %4757 = vmatpush1.bf16.msra.mxu0 %v4439
      %4758 = vmatprep.subr.bf16.mxu0 0
      %4759 = vmatpush1.bf16.msra.mxu0 %v4440
      %4760 = vmatprep.subr.bf16.mxu0 0
      %4761 = vmatpush1.bf16.msra.mxu0 %v4441
      %4762 = vmatprep.subr.bf16.mxu0 0
      %4763 = vmatpush1.bf16.msra.mxu0 %v4442
      %4764 = vmatprep.mubr.bf16.mxu0 %v2912
      %4765 = vmatmul.mubr.bf16.gmra.mrb[0].mxu0 %v837
      %v4766 = vpop.f32.mrb[0].mxu0
      %v4767 = vadd.f32 %v4542, %v4766
      %v4768 = vpop.f32.mrb[0].mxu0
      %v4769 = vpop.f32.mrb[0].mxu0
      %v4770 = vadd.f32 %v4545, %v4769
      %v4771 = vpop.f32.mrb[0].mxu0
      %4772 = vmatprep.mubr.bf16.mxu0 %v2916
      %4773 = vmatmul.mubr.bf16.gmra.mrb[0].mxu0 %v838
      %v4774 = vpop.f32.mrb[0].mxu0
      %v4775 = vadd.f32 %v4550, %v4774
      %v4776 = vpop.f32.mrb[0].mxu0
      %v4777 = vpop.f32.mrb[0].mxu0
      %v4778 = vadd.f32 %v4553, %v4777
      %v4779 = vpop.f32.mrb[0].mxu0
      %4780 = vmatprep.mubr.bf16.mxu0 %v2920
      %4781 = vmatmul.mubr.bf16.gmra.mrb[0].mxu0 %v839
      %v4782 = vpop.f32.mrb[0].mxu0
      %v4783 = vadd.f32 %v4558, %v4782
      %v4784 = vpop.f32.mrb[0].mxu0
      %v4785 = vpop.f32.mrb[0].mxu0
      %v4786 = vadd.f32 %v4561, %v4785
      %v4787 = vpop.f32.mrb[0].mxu0
      %4788 = vmatprep.mubr.bf16.mxu0 %v2914
      %4789 = vmatmul.mubr.bf16.gmra.mrb[0].mxu0 %v840
      %v4790 = vpop.f32.mrb[0].mxu0
      %v4791 = vadd.f32 %v4566, %v4790
      %v4792 = vpop.f32.mrb[0].mxu0
      %v4793 = vpop.f32.mrb[0].mxu0
      %v4794 = vadd.f32 %v4569, %v4793
      %v4795 = vpop.f32.mrb[0].mxu0
      %4796 = vmatprep.mubr.bf16.mxu0 %v2918
      %4797 = vmatmul.mubr.bf16.gmra.mrb[0].mxu0 %v841
      %v4798 = vpop.f32.mrb[0].mxu0
      %v4799 = vadd.f32 %v4574, %v4798
      %v4800 = vpop.f32.mrb[0].mxu0
      %v4801 = vpop.f32.mrb[0].mxu0
      %v4802 = vadd.f32 %v4577, %v4801
      %v4803 = vpop.f32.mrb[0].mxu0
      %4804 = vmatprep.mubr.bf16.mxu0 %v2922
      %4805 = vmatmul.mubr.bf16.gmra.mrb[0].mxu0 %v842
      %v4806 = vpop.f32.mrb[0].mxu0
      %v4807 = vadd.f32 %v4582, %v4806
      %v4808 = vpop.f32.mrb[0].mxu0
      %v4809 = vpop.f32.mrb[0].mxu0
      %v4810 = vadd.f32 %v4585, %v4809
      %v4811 = vpop.f32.mrb[0].mxu0
      %4812 = vmatprep.mubr.bf16.mxu0 %v2925
      %4813 = vmatmul.mubr.bf16.gmra.mrb[0].mxu0 %v843
      %v4814 = vpop.f32.mrb[0].mxu0
      %v4815 = vadd.f32 %v4590, %v4814
      %v4816 = vpop.f32.mrb[0].mxu0
      %v4817 = vpop.f32.mrb[0].mxu0
      %v4818 = vadd.f32 %v4593, %v4817
      %v4819 = vpop.f32.mrb[0].mxu0
      %4820 = vmatprep.mubr.bf16.mxu0 %v2928
      %4821 = vmatmul.mubr.bf16.gmra.mrb[0].mxu0 %v844
      %v4822 = vpop.f32.mrb[0].mxu0
      %v4823 = vadd.f32 %v4598, %v4822
      %v4824 = vpop.f32.mrb[0].mxu0
      %v4825 = vpop.f32.mrb[0].mxu0
      %v4826 = vadd.f32 %v4601, %v4825
      %v4827 = vpop.f32.mrb[0].mxu0
      %4828 = vmatprep.mubr.bf16.mxu0 %v2931
      %4829 = vmatmul.mubr.bf16.gmra.mrb[0].mxu0 %v845
      %v4830 = vpop.f32.mrb[0].mxu0
      %v4831 = vadd.f32 %v4606, %v4830
      %v4832 = vpop.f32.mrb[0].mxu0
      %v4833 = vpop.f32.mrb[0].mxu0
      %v4834 = vadd.f32 %v4609, %v4833
      %v4835 = vpop.f32.mrb[0].mxu0
      %4836 = vmatprep.mubr.bf16.mxu0 %v2934
      %4837 = vmatmul.mubr.bf16.gmra.mrb[0].mxu0 %v846
      %v4838 = vpop.f32.mrb[0].mxu0
      %v4839 = vadd.f32 %v4614, %v4838
      %v4840 = vpop.f32.mrb[0].mxu0
      %v4841 = vpop.f32.mrb[0].mxu0
      %v4842 = vadd.f32 %v4617, %v4841
      %v4843 = vpop.f32.mrb[0].mxu0
      %4844 = vmatprep.mubr.bf16.mxu0 %v2937
      %4845 = vmatmul.mubr.bf16.gmra.mrb[0].mxu0 %v847
      %v4846 = vpop.f32.mrb[0].mxu0
      %v4847 = vadd.f32 %v4622, %v4846
      %v4848 = vpop.f32.mrb[0].mxu0
      %v4849 = vpop.f32.mrb[0].mxu0
      %v4850 = vadd.f32 %v4625, %v4849
      %v4851 = vpop.f32.mrb[0].mxu0
      %4852 = vmatprep.mubr.bf16.mxu0 %v2940
      %4853 = vmatmul.mubr.bf16.gmra.mrb[0].mxu0 %v848
      %v4854 = vpop.f32.mrb[0].mxu0
      %v4855 = vadd.f32 %v4630, %v4854
      %v4856 = vpop.f32.mrb[0].mxu0
      %v4857 = vpop.f32.mrb[0].mxu0
      %v4858 = vadd.f32 %v4633, %v4857
      %v4859 = vpop.f32.mrb[0].mxu0
      %4860 = vmatprep.mubr.bf16.mxu0 %v2943
      %4861 = vmatmul.mubr.bf16.gmra.mrb[0].mxu0 %v849
      %v4862 = vpop.f32.mrb[0].mxu0
      %v4863 = vadd.f32 %v4638, %v4862
      %v4864 = vpop.f32.mrb[0].mxu0
      %v4865 = vpop.f32.mrb[0].mxu0
      %v4866 = vadd.f32 %v4641, %v4865
      %v4867 = vpop.f32.mrb[0].mxu0
      %4868 = vmatprep.mubr.bf16.mxu0 %v2946
      %4869 = vmatmul.mubr.bf16.gmra.mrb[0].mxu0 %v850
      %v4870 = vpop.f32.mrb[0].mxu0
      %v4871 = vadd.f32 %v4646, %v4870
      %v4872 = vpop.f32.mrb[0].mxu0
      %v4873 = vpop.f32.mrb[0].mxu0
      %v4874 = vadd.f32 %v4649, %v4873
      %v4875 = vpop.f32.mrb[0].mxu0
      %4876 = vmatprep.mubr.bf16.mxu0 %v2949
      %4877 = vmatmul.mubr.bf16.gmra.mrb[0].mxu0 %v851
      %v4878 = vpop.f32.mrb[0].mxu0
      %v4879 = vadd.f32 %v4654, %v4878
      %v4880 = vpop.f32.mrb[0].mxu0
      %v4881 = vpop.f32.mrb[0].mxu0
      %v4882 = vadd.f32 %v4657, %v4881
      %v4883 = vpop.f32.mrb[0].mxu0
      %4884 = vmatprep.mubr.bf16.mxu0 %v2952
      %4885 = vmatmul.mubr.bf16.gmra.mrb[0].mxu0 %v852
      %v4886 = vpop.f32.mrb[0].mxu0
      %v4887 = vadd.f32 %v4662, %v4886
      %v4888 = vpop.f32.mrb[0].mxu0
      %v4889 = vpop.f32.mrb[0].mxu0
      %v4890 = vadd.f32 %v4665, %v4889
      %v4891 = vpop.f32.mrb[0].mxu0
      %4892 = vmatprep.mubr.bf16.mxu0 %v2955
      %4893 = vmatmul.mubr.bf16.gmra.mrb[0].mxu0 %v853
      %v4894 = vpop.f32.mrb[0].mxu0
      %v4895 = vadd.f32 %v4670, %v4894
      %v4896 = vpop.f32.mrb[0].mxu0
      %v4897 = vpop.f32.mrb[0].mxu0
      %v4898 = vadd.f32 %v4673, %v4897
      %v4899 = vpop.f32.mrb[0].mxu0
      %4900 = vmatprep.mubr.bf16.mxu0 %v2958
      %4901 = vmatmul.mubr.bf16.gmra.mrb[0].mxu0 %v854
      %v4902 = vpop.f32.mrb[0].mxu0
      %v4903 = vadd.f32 %v4678, %v4902
      %v4904 = vpop.f32.mrb[0].mxu0
      %v4905 = vpop.f32.mrb[0].mxu0
      %v4906 = vadd.f32 %v4681, %v4905
      %v4907 = vpop.f32.mrb[0].mxu0
      %4908 = vmatprep.mubr.bf16.mxu0 %v2961
      %4909 = vmatmul.mubr.bf16.gmra.mrb[0].mxu0 %v855
      %v4910 = vpop.f32.mrb[0].mxu0
      %v4911 = vadd.f32 %v4686, %v4910
      %v4912 = vpop.f32.mrb[0].mxu0
      %v4913 = vpop.f32.mrb[0].mxu0
      %v4914 = vadd.f32 %v4689, %v4913
      %v4915 = vpop.f32.mrb[0].mxu0
      %4916 = vmatprep.mubr.bf16.mxu0 %v2964
      %4917 = vmatmul.mubr.bf16.gmra.mrb[0].mxu0 %v856
      %v4918 = vpop.f32.mrb[0].mxu0
      %v4919 = vadd.f32 %v4694, %v4918
      %v4920 = vpop.f32.mrb[0].mxu0
      %v4921 = vpop.f32.mrb[0].mxu0
      %v4922 = vadd.f32 %v4697, %v4921
      %v4923 = vpop.f32.mrb[0].mxu0
      %4924 = vmatprep.mubr.bf16.mxu0 %v2967
      %4925 = vmatmul.mubr.bf16.gmra.mrb[0].mxu0 %v857
      %v4926 = vpop.f32.mrb[0].mxu0
      %v4927 = vadd.f32 %v4702, %v4926
      %v4928 = vpop.f32.mrb[0].mxu0
      %v4929 = vpop.f32.mrb[0].mxu0
      %v4930 = vadd.f32 %v4705, %v4929
      %v4931 = vpop.f32.mrb[0].mxu0
      %4932 = vmatprep.mubr.bf16.mxu0 %v2970
      %4933 = vmatmul.mubr.bf16.gmra.mrb[0].mxu0 %v858
      %v4934 = vpop.f32.mrb[0].mxu0
      %v4935 = vadd.f32 %v4710, %v4934
      %v4936 = vpop.f32.mrb[0].mxu0
      %v4937 = vpop.f32.mrb[0].mxu0
      %v4938 = vadd.f32 %v4713, %v4937
      %v4939 = vpop.f32.mrb[0].mxu0
      %4940 = vmatprep.mubr.bf16.mxu0 %v2973
      %4941 = vmatmul.mubr.bf16.gmra.mrb[0].mxu0 %v859
      %v4942 = vpop.f32.mrb[0].mxu0
      %v4943 = vadd.f32 %v4718, %v4942
      %v4944 = vpop.f32.mrb[0].mxu0
      %v4945 = vpop.f32.mrb[0].mxu0
      %v4946 = vadd.f32 %v4721, %v4945
      %v4947 = vpop.f32.mrb[0].mxu0
      %4948 = vmatprep.mubr.bf16.mxu0 %v2976
      %4949 = vmatmul.mubr.bf16.gmra.mrb[0].mxu0 %v860
      %v4950 = vpop.f32.mrb[0].mxu0
      %v4951 = vadd.f32 %v4726, %v4950
      %v4952 = vpop.f32.mrb[0].mxu0
      %v4953 = vpop.f32.mrb[0].mxu0
      %v4954 = vadd.f32 %v4729, %v4953
      %v4955 = vpop.f32.mrb[0].mxu0
      %4956 = vdwg.mxu0
      %4957 = vmatprep.subr.bf16.mxu0 0
      %4958 = vmatpush1.bf16.msra.mxu0 %v4443
      %4959 = vmatprep.subr.bf16.mxu0 0
      %4960 = vmatpush1.bf16.msra.mxu0 %v4444
      %4961 = vmatprep.subr.bf16.mxu0 0
      %4962 = vmatpush1.bf16.msra.mxu0 %v4445
      %4963 = vmatprep.subr.bf16.mxu0 0
      %4964 = vmatpush1.bf16.msra.mxu0 %v4446
      %4965 = vmatprep.subr.bf16.mxu0 0
      %4966 = vmatpush1.bf16.msra.mxu0 %v4447
      %4967 = vmatprep.subr.bf16.mxu0 0
      %4968 = vmatpush1.bf16.msra.mxu0 %v4448
      %4969 = vmatprep.subr.bf16.mxu0 0
      %4970 = vmatpush1.bf16.msra.mxu0 %v4449
      %4971 = vmatprep.subr.bf16.mxu0 0
      %4972 = vmatpush1.bf16.msra.mxu0 %v4450
      %4973 = vmatprep.subr.bf16.mxu0 0
      %4974 = vmatpush1.bf16.msra.mxu0 %v4451
      %4975 = vmatprep.subr.bf16.mxu0 0
      %4976 = vmatpush1.bf16.msra.mxu0 %v4452
      %4977 = vmatprep.subr.bf16.mxu0 0
      %4978 = vmatpush1.bf16.msra.mxu0 %v4453
      %4979 = vmatprep.subr.bf16.mxu0 0
      %4980 = vmatpush1.bf16.msra.mxu0 %v4454
      %4981 = vmatprep.subr.bf16.mxu0 0
      %4982 = vmatpush1.bf16.msra.mxu0 %v4455
      %4983 = vmatprep.subr.bf16.mxu0 0
      %4984 = vmatpush1.bf16.msra.mxu0 %v4456
      %4985 = vmatprep.subr.bf16.mxu0 0
      %4986 = vmatpush1.bf16.msra.mxu0 %v4457
      %4987 = vmatprep.subr.bf16.mxu0 0
      %4988 = vmatpush1.bf16.msra.mxu0 %v4458
      %4989 = vmatprep.mubr.bf16.mxu0 %v2914
      %4990 = vmatmul.mubr.bf16.gmra.mrb[0].mxu0 %v2913
      %v4991 = vpop.f32.mrb[0].mxu0
      %v4992 = vadd.f32 %v4767, %v4991
      %v4993 = vpop.f32.mrb[0].mxu0
      %v4994 = vpop.f32.mrb[0].mxu0
      %v4995 = vadd.f32 %v4770, %v4994
      %v4996 = vpop.f32.mrb[0].mxu0
      %4997 = vmatprep.mubr.bf16.mxu0 %v2918
      %4998 = vmatmul.mubr.bf16.gmra.mrb[0].mxu0 %v2917
      %v4999 = vpop.f32.mrb[0].mxu0
      %v5000 = vadd.f32 %v4775, %v4999
      %v5001 = vpop.f32.mrb[0].mxu0
      %v5002 = vpop.f32.mrb[0].mxu0
      %v5003 = vadd.f32 %v4778, %v5002
      %v5004 = vpop.f32.mrb[0].mxu0
      %5005 = vmatprep.mubr.bf16.mxu0 %v2922
      %5006 = vmatmul.mubr.bf16.gmra.mrb[0].mxu0 %v2921
      %v5007 = vpop.f32.mrb[0].mxu0
      %v5008 = vadd.f32 %v4783, %v5007
      %v5009 = vpop.f32.mrb[0].mxu0
      %v5010 = vpop.f32.mrb[0].mxu0
      %v5011 = vadd.f32 %v4786, %v5010
      %v5012 = vpop.f32.mrb[0].mxu0
      %5013 = vmatprep.mubr.bf16.mxu0 %v2925
      %5014 = vmatmul.mubr.bf16.gmra.mrb[0].mxu0 %v2924
      %v5015 = vpop.f32.mrb[0].mxu0
      %v5016 = vadd.f32 %v4791, %v5015
      %v5017 = vpop.f32.mrb[0].mxu0
      %v5018 = vpop.f32.mrb[0].mxu0
      %v5019 = vadd.f32 %v4794, %v5018
      %v5020 = vpop.f32.mrb[0].mxu0
      %5021 = vmatprep.mubr.bf16.mxu0 %v2928
      %5022 = vmatmul.mubr.bf16.gmra.mrb[0].mxu0 %v2927
      %v5023 = vpop.f32.mrb[0].mxu0
      %v5024 = vadd.f32 %v4799, %v5023
      %v5025 = vpop.f32.mrb[0].mxu0
      %v5026 = vpop.f32.mrb[0].mxu0
      %v5027 = vadd.f32 %v4802, %v5026
      %v5028 = vpop.f32.mrb[0].mxu0
      %5029 = vmatprep.mubr.bf16.mxu0 %v2931
      %5030 = vmatmul.mubr.bf16.gmra.mrb[0].mxu0 %v2930
      %v5031 = vpop.f32.mrb[0].mxu0
      %v5032 = vadd.f32 %v4807, %v5031
      %v5033 = vpop.f32.mrb[0].mxu0
      %v5034 = vpop.f32.mrb[0].mxu0
      %v5035 = vadd.f32 %v4810, %v5034
      %v5036 = vpop.f32.mrb[0].mxu0
      %5037 = vmatprep.mubr.bf16.mxu0 %v2934
      %5038 = vmatmul.mubr.bf16.gmra.mrb[0].mxu0 %v2933
      %v5039 = vpop.f32.mrb[0].mxu0
      %v5040 = vadd.f32 %v4815, %v5039
      %v5041 = vpop.f32.mrb[0].mxu0
      %v5042 = vpop.f32.mrb[0].mxu0
      %v5043 = vadd.f32 %v4818, %v5042
      %v5044 = vpop.f32.mrb[0].mxu0
      %5045 = vmatprep.mubr.bf16.mxu0 %v2937
      %5046 = vmatmul.mubr.bf16.gmra.mrb[0].mxu0 %v2936
      %v5047 = vpop.f32.mrb[0].mxu0
      %v5048 = vadd.f32 %v4823, %v5047
      %v5049 = vpop.f32.mrb[0].mxu0
      %v5050 = vpop.f32.mrb[0].mxu0
      %v5051 = vadd.f32 %v4826, %v5050
      %v5052 = vpop.f32.mrb[0].mxu0
      %5053 = vmatprep.mubr.bf16.mxu0 %v2940
      %5054 = vmatmul.mubr.bf16.gmra.mrb[0].mxu0 %v2939
      %v5055 = vpop.f32.mrb[0].mxu0
      %v5056 = vadd.f32 %v4831, %v5055
      %v5057 = vpop.f32.mrb[0].mxu0
      %v5058 = vpop.f32.mrb[0].mxu0
      %v5059 = vadd.f32 %v4834, %v5058
      %v5060 = vpop.f32.mrb[0].mxu0
      %5061 = vmatprep.mubr.bf16.mxu0 %v2943
      %5062 = vmatmul.mubr.bf16.gmra.mrb[0].mxu0 %v2942
      %v5063 = vpop.f32.mrb[0].mxu0
      %v5064 = vadd.f32 %v4839, %v5063
      %v5065 = vpop.f32.mrb[0].mxu0
      %v5066 = vpop.f32.mrb[0].mxu0
      %v5067 = vadd.f32 %v4842, %v5066
      %v5068 = vpop.f32.mrb[0].mxu0
      %5069 = vmatprep.mubr.bf16.mxu0 %v2946
      %5070 = vmatmul.mubr.bf16.gmra.mrb[0].mxu0 %v2945
      %v5071 = vpop.f32.mrb[0].mxu0
      %v5072 = vadd.f32 %v4847, %v5071
      %v5073 = vpop.f32.mrb[0].mxu0
      %v5074 = vpop.f32.mrb[0].mxu0
      %v5075 = vadd.f32 %v4850, %v5074
      %v5076 = vpop.f32.mrb[0].mxu0
      %5077 = vmatprep.mubr.bf16.mxu0 %v2949
      %5078 = vmatmul.mubr.bf16.gmra.mrb[0].mxu0 %v2948
      %v5079 = vpop.f32.mrb[0].mxu0
      %v5080 = vadd.f32 %v4855, %v5079
      %v5081 = vpop.f32.mrb[0].mxu0
      %v5082 = vpop.f32.mrb[0].mxu0
      %v5083 = vadd.f32 %v4858, %v5082
      %v5084 = vpop.f32.mrb[0].mxu0
      %5085 = vmatprep.mubr.bf16.mxu0 %v2952
      %5086 = vmatmul.mubr.bf16.gmra.mrb[0].mxu0 %v2951
      %v5087 = vpop.f32.mrb[0].mxu0
      %v5088 = vadd.f32 %v4863, %v5087
      %v5089 = vpop.f32.mrb[0].mxu0
      %v5090 = vpop.f32.mrb[0].mxu0
      %v5091 = vadd.f32 %v4866, %v5090
      %v5092 = vpop.f32.mrb[0].mxu0
      %5093 = vmatprep.mubr.bf16.mxu0 %v2955
      %5094 = vmatmul.mubr.bf16.gmra.mrb[0].mxu0 %v2954
      %v5095 = vpop.f32.mrb[0].mxu0
      %v5096 = vadd.f32 %v4871, %v5095
      %v5097 = vpop.f32.mrb[0].mxu0
      %v5098 = vpop.f32.mrb[0].mxu0
      %v5099 = vadd.f32 %v4874, %v5098
      %v5100 = vpop.f32.mrb[0].mxu0
      %5101 = vmatprep.mubr.bf16.mxu0 %v2958
      %5102 = vmatmul.mubr.bf16.gmra.mrb[0].mxu0 %v2957
      %v5103 = vpop.f32.mrb[0].mxu0
      %v5104 = vadd.f32 %v4879, %v5103
      %v5105 = vpop.f32.mrb[0].mxu0
      %v5106 = vpop.f32.mrb[0].mxu0
      %v5107 = vadd.f32 %v4882, %v5106
      %v5108 = vpop.f32.mrb[0].mxu0
      %5109 = vmatprep.mubr.bf16.mxu0 %v2961
      %5110 = vmatmul.mubr.bf16.gmra.mrb[0].mxu0 %v2960
      %v5111 = vpop.f32.mrb[0].mxu0
      %v5112 = vadd.f32 %v4887, %v5111
      %v5113 = vpop.f32.mrb[0].mxu0
      %v5114 = vpop.f32.mrb[0].mxu0
      %v5115 = vadd.f32 %v4890, %v5114
      %v5116 = vpop.f32.mrb[0].mxu0
      %5117 = vmatprep.mubr.bf16.mxu0 %v2964
      %5118 = vmatmul.mubr.bf16.gmra.mrb[0].mxu0 %v2963
      %v5119 = vpop.f32.mrb[0].mxu0
      %v5120 = vadd.f32 %v4895, %v5119
      %v5121 = vpop.f32.mrb[0].mxu0
      %v5122 = vpop.f32.mrb[0].mxu0
      %v5123 = vadd.f32 %v4898, %v5122
      %v5124 = vpop.f32.mrb[0].mxu0
      %5125 = vmatprep.mubr.bf16.mxu0 %v2967
      %5126 = vmatmul.mubr.bf16.gmra.mrb[0].mxu0 %v2966
      %v5127 = vpop.f32.mrb[0].mxu0
      %v5128 = vadd.f32 %v4903, %v5127
      %v5129 = vpop.f32.mrb[0].mxu0
      %v5130 = vpop.f32.mrb[0].mxu0
      %v5131 = vadd.f32 %v4906, %v5130
      %v5132 = vpop.f32.mrb[0].mxu0
      %5133 = vmatprep.mubr.bf16.mxu0 %v2970
      %5134 = vmatmul.mubr.bf16.gmra.mrb[0].mxu0 %v2969
      %v5135 = vpop.f32.mrb[0].mxu0
      %v5136 = vadd.f32 %v4911, %v5135
      %v5137 = vpop.f32.mrb[0].mxu0
      %v5138 = vpop.f32.mrb[0].mxu0
      %v5139 = vadd.f32 %v4914, %v5138
      %v5140 = vpop.f32.mrb[0].mxu0
      %5141 = vmatprep.mubr.bf16.mxu0 %v2973
      %5142 = vmatmul.mubr.bf16.gmra.mrb[0].mxu0 %v2972
      %v5143 = vpop.f32.mrb[0].mxu0
      %v5144 = vadd.f32 %v4919, %v5143
      %v5145 = vpop.f32.mrb[0].mxu0
      %v5146 = vpop.f32.mrb[0].mxu0
      %v5147 = vadd.f32 %v4922, %v5146
      %v5148 = vpop.f32.mrb[0].mxu0
      %5149 = vmatprep.mubr.bf16.mxu0 %v2976
      %5150 = vmatmul.mubr.bf16.gmra.mrb[0].mxu0 %v2975
      %v5151 = vpop.f32.mrb[0].mxu0
      %v5152 = vadd.f32 %v4927, %v5151
      %v5153 = vpop.f32.mrb[0].mxu0
      %v5154 = vpop.f32.mrb[0].mxu0
      %v5155 = vadd.f32 %v4930, %v5154
      %v5156 = vpop.f32.mrb[0].mxu0
      %5157 = vmatprep.mubr.bf16.mxu0 %v2979
      %5158 = vmatmul.mubr.bf16.gmra.mrb[0].mxu0 %v2978
      %v5159 = vpop.f32.mrb[0].mxu0
      %v5160 = vadd.f32 %v4935, %v5159
      %v5161 = vpop.f32.mrb[0].mxu0
      %v5162 = vpop.f32.mrb[0].mxu0
      %v5163 = vadd.f32 %v4938, %v5162
      %v5164 = vpop.f32.mrb[0].mxu0
      %5165 = vmatprep.mubr.bf16.mxu0 %v2982
      %5166 = vmatmul.mubr.bf16.gmra.mrb[0].mxu0 %v2981
      %v5167 = vpop.f32.mrb[0].mxu0
      %v5168 = vadd.f32 %v4943, %v5167
      %v5169 = vpop.f32.mrb[0].mxu0
      %v5170 = vpop.f32.mrb[0].mxu0
      %v5171 = vadd.f32 %v4946, %v5170
      %v5172 = vpop.f32.mrb[0].mxu0
      %5173 = vmatprep.mubr.bf16.mxu0 %v2985
      %5174 = vmatmul.mubr.bf16.gmra.mrb[0].mxu0 %v2984
      %v5175 = vpop.f32.mrb[0].mxu0
      %v5176 = vadd.f32 %v4951, %v5175
      %v5177 = vpop.f32.mrb[0].mxu0
      %v5178 = vpop.f32.mrb[0].mxu0
      %v5179 = vadd.f32 %v4954, %v5178
      %v5180 = vpop.f32.mrb[0].mxu0
      %5181 = vdwg.mxu0
      %v5182 = vadd.f32 %v4122, %v4992
      %v5183 = vadd.f32 %v4121, %v4995
      %v5184 = vadd.f32 %v4120, %v5000
      %v5185 = vadd.f32 %v4119, %v5003
      %v5186 = vadd.f32 %v4118, %v5008
      %v5187 = vadd.f32 %v4117, %v5011
      %v5188 = vadd.f32 %v4116, %v5016
      %v5189 = vadd.f32 %v4115, %v5019
      %v5190 = vadd.f32 %v4114, %v5024
      %v5191 = vadd.f32 %v4113, %v5027
      %v5192 = vadd.f32 %v4112, %v5032
      %v5193 = vadd.f32 %v4111, %v5035
      %v5194 = vadd.f32 %v4110, %v5040
      %v5195 = vadd.f32 %v4109, %v5043
      %v5196 = vadd.f32 %v4108, %v5048
      %v5197 = vadd.f32 %v4107, %v5051
      %v5198 = vadd.f32 %v4106, %v5056
      %v5199 = vadd.f32 %v4105, %v5059
      %v5200 = vadd.f32 %v4104, %v5064
      %v5201 = vadd.f32 %v4103, %v5067
      %v5202 = vadd.f32 %v4102, %v5072
      %v5203 = vadd.f32 %v4101, %v5075
      %v5204 = vadd.f32 %v4100, %v5080
      %v5205 = vadd.f32 %v4099, %v5083
      %v5206 = vadd.f32 %v4098, %v5088
      %v5207 = vadd.f32 %v4097, %v5091
      %v5208 = vadd.f32 %v4096, %v5096
      %v5209 = vadd.f32 %v4095, %v5099
      %v5210 = vadd.f32 %v4094, %v5104
      %v5211 = vadd.f32 %v4093, %v5107
      %v5212 = vadd.f32 %v4092, %v5112
      %v5213 = vadd.f32 %v4091, %v5115
      %v5214 = vadd.f32 %v4090, %v5120
      %v5215 = vadd.f32 %v4089, %v5123
      %v5216 = vadd.f32 %v4088, %v5128
      %v5217 = vadd.f32 %v4087, %v5131
      %v5218 = vadd.f32 %v4086, %v5136
      %v5219 = vadd.f32 %v4085, %v5139
      %v5220 = vadd.f32 %v4084, %v5144
      %v5221 = vadd.f32 %v4083, %v5147
      %v5222 = vadd.f32 %v4082, %v5152
      %v5223 = vadd.f32 %v4081, %v5155
      %v5224 = vadd.f32 %v4080, %v5160
      %v5225 = vadd.f32 %v4079, %v5163
      %v5226 = vadd.f32 %v4078, %v5168
      %v5227 = vadd.f32 %v4077, %v5171
      %v5228 = vadd.f32 %v4076, %v5176
      %v5229 = vadd.f32 %v4075, %v5179
      %v5230 = vld [vmem:[%s4 + $0x300] sm:$0xf]
      %v5231 = vld [vmem:[%s4 + $0x304] sm:$0xf]
      %v5232 = vld [vmem:[%s4 + $0x308] sm:$0xf]
      %v5233 = vld [vmem:[%s4 + $0x30c] sm:$0xf]
      %v5234 = vld [vmem:[%s4 + $0x310] sm:$0xf]
      %v5235 = vld [vmem:[%s4 + $0x314] sm:$0xf]
      %v5236 = vld [vmem:[%s4 + $0x318] sm:$0xf]
      %v5237 = vld [vmem:[%s4 + $0x31c] sm:$0xf]
      %v5238 = vld [vmem:[%s4 + $0x320] sm:$0xf]
      %v5239 = vld [vmem:[%s4 + $0x324] sm:$0xf]
      %v5240 = vld [vmem:[%s4 + $0x328] sm:$0xf]
      %v5241 = vld [vmem:[%s4 + $0x32c] sm:$0xf]
      %v5242 = vld [vmem:[%s4 + $0x330] sm:$0xf]
      %v5243 = vld [vmem:[%s4 + $0x334] sm:$0xf]
      %v5244 = vld [vmem:[%s4 + $0x338] sm:$0xf]
      %v5245 = vld [vmem:[%s4 + $0x33c] sm:$0xf]
      %v5246 = vld [vmem:[%s4 + $0x340] sm:$0xf]
      %v5247 = vld [vmem:[%s4 + $0x344] sm:$0xf]
      %v5248 = vld [vmem:[%s4 + $0x348] sm:$0xf]
      %v5249 = vld [vmem:[%s4 + $0x34c] sm:$0xf]
      %v5250 = vld [vmem:[%s4 + $0x350] sm:$0xf]
      %v5251 = vld [vmem:[%s4 + $0x354] sm:$0xf]
      %v5252 = vld [vmem:[%s4 + $0x358] sm:$0xf]
      %v5253 = vld [vmem:[%s4 + $0x35c] sm:$0xf]
      %v5254 = vld [vmem:[%s4 + $0x360] sm:$0xf]
      %v5255 = vld [vmem:[%s4 + $0x364] sm:$0xf]
      %v5256 = vld [vmem:[%s4 + $0x368] sm:$0xf]
      %v5257 = vld [vmem:[%s4 + $0x36c] sm:$0xf]
      %v5258 = vld [vmem:[%s4 + $0x370] sm:$0xf]
      %v5259 = vld [vmem:[%s4 + $0x374] sm:$0xf]
      %v5260 = vld [vmem:[%s4 + $0x378] sm:$0xf]
      %v5261 = vld [vmem:[%s4 + $0x37c] sm:$0xf]
      %v5262 = vld [vmem:[%s4 + $0x380] sm:$0xf]
      %v5263 = vld [vmem:[%s4 + $0x384] sm:$0xf]
      %v5264 = vld [vmem:[%s4 + $0x388] sm:$0xf]
      %v5265 = vld [vmem:[%s4 + $0x38c] sm:$0xf]
      %v5266 = vld [vmem:[%s4 + $0x390] sm:$0xf]
      %v5267 = vld [vmem:[%s4 + $0x394] sm:$0xf]
      %v5268 = vld [vmem:[%s4 + $0x398] sm:$0xf]
      %v5269 = vld [vmem:[%s4 + $0x39c] sm:$0xf]
      %v5270 = vld [vmem:[%s4 + $0x3a0] sm:$0xf]
      %v5271 = vld [vmem:[%s4 + $0x3a4] sm:$0xf]
      %v5272 = vld [vmem:[%s4 + $0x3a8] sm:$0xf]
      %v5273 = vld [vmem:[%s4 + $0x3ac] sm:$0xf]
      %v5274 = vld [vmem:[%s4 + $0x3b0] sm:$0xf]
      %v5275 = vld [vmem:[%s4 + $0x3b4] sm:$0xf]
      %v5276 = vld [vmem:[%s4 + $0x3b8] sm:$0xf]
      %v5277 = vld [vmem:[%s4 + $0x3bc] sm:$0xf]
      %v5278 = vld [vmem:[%s4 + $0x3c0] sm:$0xf]
      %v5279 = vld [vmem:[%s4 + $0x3c4] sm:$0xf]
      %v5280 = vld [vmem:[%s4 + $0x3c8] sm:$0xf]
      %v5281 = vld [vmem:[%s4 + $0x3cc] sm:$0xf]
      %v5282 = vld [vmem:[%s4 + $0x3d0] sm:$0xf]
      %v5283 = vld [vmem:[%s4 + $0x3d4] sm:$0xf]
      %v5284 = vld [vmem:[%s4 + $0x3d8] sm:$0xf]
      %v5285 = vld [vmem:[%s4 + $0x3dc] sm:$0xf]
      %v5286 = vld [vmem:[%s4 + $0x3e0] sm:$0xf]
      %v5287 = vld [vmem:[%s4 + $0x3e4] sm:$0xf]
      %v5288 = vld [vmem:[%s4 + $0x3e8] sm:$0xf]
      %v5289 = vld [vmem:[%s4 + $0x3ec] sm:$0xf]
      %v5290 = vld [vmem:[%s4 + $0x3f0] sm:$0xf]
      %v5291 = vld [vmem:[%s4 + $0x3f4] sm:$0xf]
      %v5292 = vld [vmem:[%s4 + $0x3f8] sm:$0xf]
      %v5293 = vld [vmem:[%s4 + $0x3fc] sm:$0xf]
      %v5294 = vld [vmem:[%s4 + $0x400] sm:$0xf]
      %v5295 = vld [vmem:[%s4 + $0x404] sm:$0xf]
      %v5296 = vld [vmem:[%s4 + $0x408] sm:$0xf]
      %v5297 = vld [vmem:[%s4 + $0x40c] sm:$0xf]
      %v5298 = vld [vmem:[%s4 + $0x410] sm:$0xf]
      %v5299 = vld [vmem:[%s4 + $0x414] sm:$0xf]
      %v5300 = vld [vmem:[%s4 + $0x418] sm:$0xf]
      %v5301 = vld [vmem:[%s4 + $0x41c] sm:$0xf]
      %v5302 = vld [vmem:[%s4 + $0x420] sm:$0xf]
      %v5303 = vld [vmem:[%s4 + $0x424] sm:$0xf]
      %v5304 = vld [vmem:[%s4 + $0x428] sm:$0xf]
      %v5305 = vld [vmem:[%s4 + $0x42c] sm:$0xf]
      %v5306 = vld [vmem:[%s4 + $0x430] sm:$0xf]
      %v5307 = vld [vmem:[%s4 + $0x434] sm:$0xf]
      %v5308 = vld [vmem:[%s4 + $0x438] sm:$0xf]
      %v5309 = vld [vmem:[%s4 + $0x43c] sm:$0xf]
      %v5310 = vld [vmem:[%s4 + $0x440] sm:$0xf]
      %v5311 = vld [vmem:[%s4 + $0x444] sm:$0xf]
      %v5312 = vld [vmem:[%s4 + $0x448] sm:$0xf]
      %v5313 = vld [vmem:[%s4 + $0x44c] sm:$0xf]
      %v5314 = vld [vmem:[%s4 + $0x450] sm:$0xf]
      %v5315 = vld [vmem:[%s4 + $0x454] sm:$0xf]
      %v5316 = vld [vmem:[%s4 + $0x458] sm:$0xf]
      %v5317 = vld [vmem:[%s4 + $0x45c] sm:$0xf]
      %v5318 = vld [vmem:[%s4 + $0x460] sm:$0xf]
      %v5319 = vld [vmem:[%s4 + $0x464] sm:$0xf]
      %v5320 = vld [vmem:[%s4 + $0x468] sm:$0xf]
      %v5321 = vld [vmem:[%s4 + $0x46c] sm:$0xf]
      %v5322 = vld [vmem:[%s4 + $0x470] sm:$0xf]
      %v5323 = vld [vmem:[%s4 + $0x474] sm:$0xf]
      %v5324 = vld [vmem:[%s4 + $0x478] sm:$0xf]
      %v5325 = vld [vmem:[%s4 + $0x47c] sm:$0xf]
      %v5422 = vunpack.c.l.b16 %v5230
      %v5423 = vunpack.c.l.b16 %v5231
      %v5424 = vunpack.c.l.b16 %v5232
      %v5425 = vunpack.c.l.b16 %v5233
      %v5426 = vunpack.c.l.b16 %v5234
      %v5427 = vunpack.c.l.b16 %v5235
      %v5428 = vunpack.c.l.b16 %v5236
      %v5429 = vunpack.c.l.b16 %v5237
      %v5430 = vunpack.c.l.b16 %v5238
      %v5431 = vunpack.c.l.b16 %v5239
      %v5432 = vunpack.c.l.b16 %v5240
      %v5433 = vunpack.c.l.b16 %v5241
      %v5434 = vunpack.c.l.b16 %v5242
      %v5435 = vunpack.c.l.b16 %v5243
      %v5436 = vunpack.c.l.b16 %v5244
      %v5437 = vunpack.c.l.b16 %v5245
      %v5438 = vunpack.c.l.b16 %v5246
      %v5439 = vunpack.c.l.b16 %v5247
      %v5440 = vunpack.c.l.b16 %v5248
      %v5441 = vunpack.c.l.b16 %v5249
      %v5442 = vunpack.c.l.b16 %v5250
      %v5443 = vunpack.c.l.b16 %v5251
      %v5444 = vunpack.c.l.b16 %v5252
      %v5445 = vunpack.c.l.b16 %v5253
      %v5446 = vunpack.c.l.b16 %v5254
      %v5447 = vunpack.c.l.b16 %v5255
      %v5448 = vunpack.c.l.b16 %v5256
      %v5449 = vunpack.c.l.b16 %v5257
      %v5450 = vunpack.c.l.b16 %v5258
      %v5451 = vunpack.c.l.b16 %v5259
      %v5452 = vunpack.c.l.b16 %v5260
      %v5453 = vunpack.c.l.b16 %v5261
      %v5454 = vunpack.c.l.b16 %v5262
      %v5455 = vunpack.c.l.b16 %v5263
      %v5456 = vunpack.c.l.b16 %v5264
      %v5457 = vunpack.c.l.b16 %v5265
      %v5458 = vunpack.c.l.b16 %v5266
      %v5459 = vunpack.c.l.b16 %v5267
      %v5460 = vunpack.c.l.b16 %v5268
      %v5461 = vunpack.c.l.b16 %v5269
      %v5462 = vunpack.c.l.b16 %v5270
      %v5463 = vunpack.c.l.b16 %v5271
      %v5464 = vunpack.c.l.b16 %v5272
      %v5465 = vunpack.c.l.b16 %v5273
      %v5466 = vunpack.c.l.b16 %v5274
      %v5467 = vunpack.c.l.b16 %v5275
      %v5468 = vunpack.c.l.b16 %v5276
      %v5469 = vunpack.c.l.b16 %v5277
      %v5470 = vunpack.c.l.b16 %v5278
      %v5471 = vunpack.c.l.b16 %v5279
      %v5472 = vunpack.c.l.b16 %v5280
      %v5473 = vunpack.c.l.b16 %v5281
      %v5474 = vunpack.c.l.b16 %v5282
      %v5475 = vunpack.c.l.b16 %v5283
      %v5476 = vunpack.c.l.b16 %v5284
      %v5477 = vunpack.c.l.b16 %v5285
      %v5478 = vunpack.c.l.b16 %v5286
      %v5479 = vunpack.c.l.b16 %v5287
      %v5480 = vunpack.c.l.b16 %v5288
      %v5481 = vunpack.c.l.b16 %v5289
      %v5482 = vunpack.c.l.b16 %v5290
      %v5483 = vunpack.c.l.b16 %v5291
      %v5484 = vunpack.c.l.b16 %v5292
      %v5485 = vunpack.c.l.b16 %v5293
      %v5486 = vunpack.c.l.b16 %v5294
      %v5487 = vunpack.c.l.b16 %v5295
      %v5488 = vunpack.c.l.b16 %v5296
      %v5489 = vunpack.c.l.b16 %v5297
      %v5490 = vunpack.c.l.b16 %v5298
      %v5491 = vunpack.c.l.b16 %v5299
      %v5492 = vunpack.c.l.b16 %v5300
      %v5493 = vunpack.c.l.b16 %v5301
      %v5494 = vunpack.c.l.b16 %v5302
      %v5495 = vunpack.c.l.b16 %v5303
      %v5496 = vunpack.c.l.b16 %v5304
      %v5497 = vunpack.c.l.b16 %v5305
      %v5498 = vunpack.c.l.b16 %v5306
      %v5499 = vunpack.c.l.b16 %v5307
      %v5500 = vunpack.c.l.b16 %v5308
      %v5501 = vunpack.c.l.b16 %v5309
      %v5502 = vunpack.c.l.b16 %v5310
      %v5503 = vunpack.c.l.b16 %v5311
      %v5504 = vunpack.c.l.b16 %v5312
      %v5505 = vunpack.c.l.b16 %v5313
      %v5506 = vunpack.c.l.b16 %v5314
      %v5507 = vunpack.c.l.b16 %v5315
      %v5508 = vunpack.c.l.b16 %v5316
      %v5509 = vunpack.c.l.b16 %v5317
      %v5510 = vunpack.c.l.b16 %v5318
      %v5511 = vunpack.c.l.b16 %v5319
      %v5512 = vunpack.c.l.b16 %v5320
      %v5513 = vunpack.c.l.b16 %v5321
      %v5514 = vunpack.c.l.b16 %v5322
      %v5515 = vunpack.c.l.b16 %v5323
      %v5516 = vunpack.c.l.b16 %v5324
      %v5517 = vunpack.c.l.b16 %v5325
      %v5518 = vpack.c.b16 %v5423, %v5422
      %v5519 = vpack.c.b16 %v5425, %v5424
      %v5520 = vpack.c.b16 %v5427, %v5426
      %v5521 = vpack.c.b16 %v5429, %v5428
      %v5522 = vpack.c.b16 %v5431, %v5430
      %v5523 = vpack.c.b16 %v5433, %v5432
      %v5524 = vpack.c.b16 %v5435, %v5434
      %v5525 = vpack.c.b16 %v5437, %v5436
      %v5526 = vpack.c.b16 %v5439, %v5438
      %v5527 = vpack.c.b16 %v5441, %v5440
      %v5528 = vpack.c.b16 %v5443, %v5442
      %v5529 = vpack.c.b16 %v5445, %v5444
      %v5530 = vpack.c.b16 %v5447, %v5446
      %v5531 = vpack.c.b16 %v5449, %v5448
      %v5532 = vpack.c.b16 %v5451, %v5450
      %v5533 = vpack.c.b16 %v5453, %v5452
      %v5534 = vpack.c.b16 %v5455, %v5454
      %v5535 = vpack.c.b16 %v5457, %v5456
      %v5536 = vpack.c.b16 %v5459, %v5458
      %v5537 = vpack.c.b16 %v5461, %v5460
      %v5538 = vpack.c.b16 %v5463, %v5462
      %v5539 = vpack.c.b16 %v5465, %v5464
      %v5540 = vpack.c.b16 %v5467, %v5466
      %v5541 = vpack.c.b16 %v5469, %v5468
      %v5542 = vpack.c.b16 %v5471, %v5470
      %v5543 = vpack.c.b16 %v5473, %v5472
      %v5544 = vpack.c.b16 %v5475, %v5474
      %v5545 = vpack.c.b16 %v5477, %v5476
      %v5546 = vpack.c.b16 %v5479, %v5478
      %v5547 = vpack.c.b16 %v5481, %v5480
      %v5548 = vpack.c.b16 %v5483, %v5482
      %v5549 = vpack.c.b16 %v5485, %v5484
      %v5550 = vpack.c.b16 %v5487, %v5486
      %v5551 = vpack.c.b16 %v5489, %v5488
      %v5552 = vpack.c.b16 %v5491, %v5490
      %v5553 = vpack.c.b16 %v5493, %v5492
      %v5554 = vpack.c.b16 %v5495, %v5494
      %v5555 = vpack.c.b16 %v5497, %v5496
      %v5556 = vpack.c.b16 %v5499, %v5498
      %v5557 = vpack.c.b16 %v5501, %v5500
      %v5558 = vpack.c.b16 %v5503, %v5502
      %v5559 = vpack.c.b16 %v5505, %v5504
      %v5560 = vpack.c.b16 %v5507, %v5506
      %v5561 = vpack.c.b16 %v5509, %v5508
      %v5562 = vpack.c.b16 %v5511, %v5510
      %v5563 = vpack.c.b16 %v5513, %v5512
      %v5564 = vpack.c.b16 %v5515, %v5514
      %v5565 = vpack.c.b16 %v5517, %v5516
      %5614 = vmatprep.subr.bf16.mxu0 0
      %5615 = vmatpush1.bf16.msra.mxu0 %v5518
      %5616 = vmatprep.subr.bf16.mxu0 0
      %5617 = vmatpush1.bf16.msra.mxu0 %v5519
      %5618 = vmatprep.subr.bf16.mxu0 0
      %5619 = vmatpush1.bf16.msra.mxu0 %v5520
      %5620 = vmatprep.subr.bf16.mxu0 0
      %5621 = vmatpush1.bf16.msra.mxu0 %v5521
      %5622 = vmatprep.subr.bf16.mxu0 0
      %5623 = vmatpush1.bf16.msra.mxu0 %v5522
      %5624 = vmatprep.subr.bf16.mxu0 0
      %5625 = vmatpush1.bf16.msra.mxu0 %v5523
      %5626 = vmatprep.subr.bf16.mxu0 0
      %5627 = vmatpush1.bf16.msra.mxu0 %v5524
      %5628 = vmatprep.subr.bf16.mxu0 0
      %5629 = vmatpush1.bf16.msra.mxu0 %v5525
      %5630 = vmatprep.subr.bf16.mxu0 0
      %5631 = vmatpush1.bf16.msra.mxu0 %v5526
      %5632 = vmatprep.subr.bf16.mxu0 0
      %5633 = vmatpush1.bf16.msra.mxu0 %v5527
      %5634 = vmatprep.subr.bf16.mxu0 0
      %5635 = vmatpush1.bf16.msra.mxu0 %v5528
      %5636 = vmatprep.subr.bf16.mxu0 0
      %5637 = vmatpush1.bf16.msra.mxu0 %v5529
      %5638 = vmatprep.subr.bf16.mxu0 0
      %5639 = vmatpush1.bf16.msra.mxu0 %v5530
      %5640 = vmatprep.subr.bf16.mxu0 0
      %5641 = vmatpush1.bf16.msra.mxu0 %v5531
      %5642 = vmatprep.subr.bf16.mxu0 0
      %5643 = vmatpush1.bf16.msra.mxu0 %v5532
      %5644 = vmatprep.subr.bf16.mxu0 0
      %5645 = vmatpush1.bf16.msra.mxu0 %v5533
      %5646 = vmatprep.mubr.bf16.mxu0 %v2911
      %5647 = vmatmul.mubr.bf16.gmra.mrb[0].mxu0 %v834
      %v5648 = vpop.f32.mrb[0].mxu0
      %v5649 = vadd.f32 0.0, %v5648
      %v5650 = vpop.f32.mrb[0].mxu0
      %v5651 = vpop.f32.mrb[0].mxu0
      %v5652 = vadd.f32 0.0, %v5651
      %v5653 = vpop.f32.mrb[0].mxu0
      %5654 = vmatprep.mubr.bf16.mxu0 %v2915
      %5655 = vmatmul.mubr.bf16.gmra.mrb[0].mxu0 %v835
      %v5656 = vpop.f32.mrb[0].mxu0
      %v5657 = vadd.f32 0.0, %v5656
      %v5658 = vpop.f32.mrb[0].mxu0
      %v5659 = vpop.f32.mrb[0].mxu0
      %v5660 = vadd.f32 0.0, %v5659
      %v5661 = vpop.f32.mrb[0].mxu0
      %5662 = vmatprep.mubr.bf16.mxu0 %v2919
      %5663 = vmatmul.mubr.bf16.gmra.mrb[0].mxu0 %v836
      %v5664 = vpop.f32.mrb[0].mxu0
      %v5665 = vadd.f32 0.0, %v5664
      %v5666 = vpop.f32.mrb[0].mxu0
      %v5667 = vpop.f32.mrb[0].mxu0
      %v5668 = vadd.f32 0.0, %v5667
      %v5669 = vpop.f32.mrb[0].mxu0
      %5670 = vmatprep.mubr.bf16.mxu0 %v2923
      %5671 = vmatmul.mubr.bf16.gmra.mrb[0].mxu0 %v837
      %v5672 = vpop.f32.mrb[0].mxu0
      %v5673 = vadd.f32 0.0, %v5672
      %v5674 = vpop.f32.mrb[0].mxu0
      %v5675 = vpop.f32.mrb[0].mxu0
      %v5676 = vadd.f32 0.0, %v5675
      %v5677 = vpop.f32.mrb[0].mxu0
      %5678 = vmatprep.mubr.bf16.mxu0 %v2926
      %5679 = vmatmul.mubr.bf16.gmra.mrb[0].mxu0 %v838
      %v5680 = vpop.f32.mrb[0].mxu0
      %v5681 = vadd.f32 0.0, %v5680
      %v5682 = vpop.f32.mrb[0].mxu0
      %v5683 = vpop.f32.mrb[0].mxu0
      %v5684 = vadd.f32 0.0, %v5683
      %v5685 = vpop.f32.mrb[0].mxu0
      %5686 = vmatprep.mubr.bf16.mxu0 %v2929
      %5687 = vmatmul.mubr.bf16.gmra.mrb[0].mxu0 %v839
      %v5688 = vpop.f32.mrb[0].mxu0
      %v5689 = vadd.f32 0.0, %v5688
      %v5690 = vpop.f32.mrb[0].mxu0
      %v5691 = vpop.f32.mrb[0].mxu0
      %v5692 = vadd.f32 0.0, %v5691
      %v5693 = vpop.f32.mrb[0].mxu0
      %5694 = vmatprep.mubr.bf16.mxu0 %v2932
      %5695 = vmatmul.mubr.bf16.gmra.mrb[0].mxu0 %v840
      %v5696 = vpop.f32.mrb[0].mxu0
      %v5697 = vadd.f32 0.0, %v5696
      %v5698 = vpop.f32.mrb[0].mxu0
      %v5699 = vpop.f32.mrb[0].mxu0
      %v5700 = vadd.f32 0.0, %v5699
      %v5701 = vpop.f32.mrb[0].mxu0
      %5702 = vmatprep.mubr.bf16.mxu0 %v2935
      %5703 = vmatmul.mubr.bf16.gmra.mrb[0].mxu0 %v841
      %v5704 = vpop.f32.mrb[0].mxu0
      %v5705 = vadd.f32 0.0, %v5704
      %v5706 = vpop.f32.mrb[0].mxu0
      %v5707 = vpop.f32.mrb[0].mxu0
      %v5708 = vadd.f32 0.0, %v5707
      %v5709 = vpop.f32.mrb[0].mxu0
      %5710 = vmatprep.mubr.bf16.mxu0 %v2938
      %5711 = vmatmul.mubr.bf16.gmra.mrb[0].mxu0 %v842
      %v5712 = vpop.f32.mrb[0].mxu0
      %v5713 = vadd.f32 0.0, %v5712
      %v5714 = vpop.f32.mrb[0].mxu0
      %v5715 = vpop.f32.mrb[0].mxu0
      %v5716 = vadd.f32 0.0, %v5715
      %v5717 = vpop.f32.mrb[0].mxu0
      %5718 = vmatprep.mubr.bf16.mxu0 %v2941
      %5719 = vmatmul.mubr.bf16.gmra.mrb[0].mxu0 %v843
      %v5720 = vpop.f32.mrb[0].mxu0
      %v5721 = vadd.f32 0.0, %v5720
      %v5722 = vpop.f32.mrb[0].mxu0
      %v5723 = vpop.f32.mrb[0].mxu0
      %v5724 = vadd.f32 0.0, %v5723
      %v5725 = vpop.f32.mrb[0].mxu0
      %5726 = vmatprep.mubr.bf16.mxu0 %v2944
      %5727 = vmatmul.mubr.bf16.gmra.mrb[0].mxu0 %v844
      %v5728 = vpop.f32.mrb[0].mxu0
      %v5729 = vadd.f32 0.0, %v5728
      %v5730 = vpop.f32.mrb[0].mxu0
      %v5731 = vpop.f32.mrb[0].mxu0
      %v5732 = vadd.f32 0.0, %v5731
      %v5733 = vpop.f32.mrb[0].mxu0
      %5734 = vmatprep.mubr.bf16.mxu0 %v2947
      %5735 = vmatmul.mubr.bf16.gmra.mrb[0].mxu0 %v845
      %v5736 = vpop.f32.mrb[0].mxu0
      %v5737 = vadd.f32 0.0, %v5736
      %v5738 = vpop.f32.mrb[0].mxu0
      %v5739 = vpop.f32.mrb[0].mxu0
      %v5740 = vadd.f32 0.0, %v5739
      %v5741 = vpop.f32.mrb[0].mxu0
      %5742 = vmatprep.mubr.bf16.mxu0 %v2950
      %5743 = vmatmul.mubr.bf16.gmra.mrb[0].mxu0 %v846
      %v5744 = vpop.f32.mrb[0].mxu0
      %v5745 = vadd.f32 0.0, %v5744
      %v5746 = vpop.f32.mrb[0].mxu0
      %v5747 = vpop.f32.mrb[0].mxu0
      %v5748 = vadd.f32 0.0, %v5747
      %v5749 = vpop.f32.mrb[0].mxu0
      %5750 = vmatprep.mubr.bf16.mxu0 %v2953
      %5751 = vmatmul.mubr.bf16.gmra.mrb[0].mxu0 %v847
      %v5752 = vpop.f32.mrb[0].mxu0
      %v5753 = vadd.f32 0.0, %v5752
      %v5754 = vpop.f32.mrb[0].mxu0
      %v5755 = vpop.f32.mrb[0].mxu0
      %v5756 = vadd.f32 0.0, %v5755
      %v5757 = vpop.f32.mrb[0].mxu0
      %5758 = vmatprep.mubr.bf16.mxu0 %v2956
      %5759 = vmatmul.mubr.bf16.gmra.mrb[0].mxu0 %v848
      %v5760 = vpop.f32.mrb[0].mxu0
      %v5761 = vadd.f32 0.0, %v5760
      %v5762 = vpop.f32.mrb[0].mxu0
      %v5763 = vpop.f32.mrb[0].mxu0
      %v5764 = vadd.f32 0.0, %v5763
      %v5765 = vpop.f32.mrb[0].mxu0
      %5766 = vmatprep.mubr.bf16.mxu0 %v2959
      %5767 = vmatmul.mubr.bf16.gmra.mrb[0].mxu0 %v849
      %v5768 = vpop.f32.mrb[0].mxu0
      %v5769 = vadd.f32 0.0, %v5768
      %v5770 = vpop.f32.mrb[0].mxu0
      %v5771 = vpop.f32.mrb[0].mxu0
      %v5772 = vadd.f32 0.0, %v5771
      %v5773 = vpop.f32.mrb[0].mxu0
      %5774 = vmatprep.mubr.bf16.mxu0 %v2962
      %5775 = vmatmul.mubr.bf16.gmra.mrb[0].mxu0 %v850
      %v5776 = vpop.f32.mrb[0].mxu0
      %v5777 = vadd.f32 0.0, %v5776
      %v5778 = vpop.f32.mrb[0].mxu0
      %v5779 = vpop.f32.mrb[0].mxu0
      %v5780 = vadd.f32 0.0, %v5779
      %v5781 = vpop.f32.mrb[0].mxu0
      %5782 = vmatprep.mubr.bf16.mxu0 %v2965
      %5783 = vmatmul.mubr.bf16.gmra.mrb[0].mxu0 %v851
      %v5784 = vpop.f32.mrb[0].mxu0
      %v5785 = vadd.f32 0.0, %v5784
      %v5786 = vpop.f32.mrb[0].mxu0
      %v5787 = vpop.f32.mrb[0].mxu0
      %v5788 = vadd.f32 0.0, %v5787
      %v5789 = vpop.f32.mrb[0].mxu0
      %5790 = vmatprep.mubr.bf16.mxu0 %v2968
      %5791 = vmatmul.mubr.bf16.gmra.mrb[0].mxu0 %v852
      %v5792 = vpop.f32.mrb[0].mxu0
      %v5793 = vadd.f32 0.0, %v5792
      %v5794 = vpop.f32.mrb[0].mxu0
      %v5795 = vpop.f32.mrb[0].mxu0
      %v5796 = vadd.f32 0.0, %v5795
      %v5797 = vpop.f32.mrb[0].mxu0
      %5798 = vmatprep.mubr.bf16.mxu0 %v2971
      %5799 = vmatmul.mubr.bf16.gmra.mrb[0].mxu0 %v853
      %v5800 = vpop.f32.mrb[0].mxu0
      %v5801 = vadd.f32 0.0, %v5800
      %v5802 = vpop.f32.mrb[0].mxu0
      %v5803 = vpop.f32.mrb[0].mxu0
      %v5804 = vadd.f32 0.0, %v5803
      %v5805 = vpop.f32.mrb[0].mxu0
      %5806 = vmatprep.mubr.bf16.mxu0 %v2974
      %5807 = vmatmul.mubr.bf16.gmra.mrb[0].mxu0 %v854
      %v5808 = vpop.f32.mrb[0].mxu0
      %v5809 = vadd.f32 0.0, %v5808
      %v5810 = vpop.f32.mrb[0].mxu0
      %v5811 = vpop.f32.mrb[0].mxu0
      %v5812 = vadd.f32 0.0, %v5811
      %v5813 = vpop.f32.mrb[0].mxu0
      %5814 = vmatprep.mubr.bf16.mxu0 %v2977
      %5815 = vmatmul.mubr.bf16.gmra.mrb[0].mxu0 %v855
      %v5816 = vpop.f32.mrb[0].mxu0
      %v5817 = vadd.f32 0.0, %v5816
      %v5818 = vpop.f32.mrb[0].mxu0
      %v5819 = vpop.f32.mrb[0].mxu0
      %v5820 = vadd.f32 0.0, %v5819
      %v5821 = vpop.f32.mrb[0].mxu0
      %5822 = vmatprep.mubr.bf16.mxu0 %v2980
      %5823 = vmatmul.mubr.bf16.gmra.mrb[0].mxu0 %v856
      %v5824 = vpop.f32.mrb[0].mxu0
      %v5825 = vadd.f32 0.0, %v5824
      %v5826 = vpop.f32.mrb[0].mxu0
      %v5827 = vpop.f32.mrb[0].mxu0
      %v5828 = vadd.f32 0.0, %v5827
      %v5829 = vpop.f32.mrb[0].mxu0
      %5830 = vmatprep.mubr.bf16.mxu0 %v2983
      %5831 = vmatmul.mubr.bf16.gmra.mrb[0].mxu0 %v857
      %v5832 = vpop.f32.mrb[0].mxu0
      %v5833 = vadd.f32 0.0, %v5832
      %v5834 = vpop.f32.mrb[0].mxu0
      %v5835 = vpop.f32.mrb[0].mxu0
      %v5836 = vadd.f32 0.0, %v5835
      %v5837 = vpop.f32.mrb[0].mxu0
      %5838 = vdwg.mxu0
      %5839 = vmatprep.subr.bf16.mxu0 0
      %5840 = vmatpush1.bf16.msra.mxu0 %v5534
      %5841 = vmatprep.subr.bf16.mxu0 0
      %5842 = vmatpush1.bf16.msra.mxu0 %v5535
      %5843 = vmatprep.subr.bf16.mxu0 0
      %5844 = vmatpush1.bf16.msra.mxu0 %v5536
      %5845 = vmatprep.subr.bf16.mxu0 0
      %5846 = vmatpush1.bf16.msra.mxu0 %v5537
      %5847 = vmatprep.subr.bf16.mxu0 0
      %5848 = vmatpush1.bf16.msra.mxu0 %v5538
      %5849 = vmatprep.subr.bf16.mxu0 0
      %5850 = vmatpush1.bf16.msra.mxu0 %v5539
      %5851 = vmatprep.subr.bf16.mxu0 0
      %5852 = vmatpush1.bf16.msra.mxu0 %v5540
      %5853 = vmatprep.subr.bf16.mxu0 0
      %5854 = vmatpush1.bf16.msra.mxu0 %v5541
      %5855 = vmatprep.subr.bf16.mxu0 0
      %5856 = vmatpush1.bf16.msra.mxu0 %v5542
      %5857 = vmatprep.subr.bf16.mxu0 0
      %5858 = vmatpush1.bf16.msra.mxu0 %v5543
      %5859 = vmatprep.subr.bf16.mxu0 0
      %5860 = vmatpush1.bf16.msra.mxu0 %v5544
      %5861 = vmatprep.subr.bf16.mxu0 0
      %5862 = vmatpush1.bf16.msra.mxu0 %v5545
      %5863 = vmatprep.subr.bf16.mxu0 0
      %5864 = vmatpush1.bf16.msra.mxu0 %v5546
      %5865 = vmatprep.subr.bf16.mxu0 0
      %5866 = vmatpush1.bf16.msra.mxu0 %v5547
      %5867 = vmatprep.subr.bf16.mxu0 0
      %5868 = vmatpush1.bf16.msra.mxu0 %v5548
      %5869 = vmatprep.subr.bf16.mxu0 0
      %5870 = vmatpush1.bf16.msra.mxu0 %v5549
      %5871 = vmatprep.mubr.bf16.mxu0 %v2912
      %5872 = vmatmul.mubr.bf16.gmra.mrb[0].mxu0 %v837
      %v5873 = vpop.f32.mrb[0].mxu0
      %v5874 = vadd.f32 %v5649, %v5873
      %v5875 = vpop.f32.mrb[0].mxu0
      %v5876 = vpop.f32.mrb[0].mxu0
      %v5877 = vadd.f32 %v5652, %v5876
      %v5878 = vpop.f32.mrb[0].mxu0
      %5879 = vmatprep.mubr.bf16.mxu0 %v2916
      %5880 = vmatmul.mubr.bf16.gmra.mrb[0].mxu0 %v838
      %v5881 = vpop.f32.mrb[0].mxu0
      %v5882 = vadd.f32 %v5657, %v5881
      %v5883 = vpop.f32.mrb[0].mxu0
      %v5884 = vpop.f32.mrb[0].mxu0
      %v5885 = vadd.f32 %v5660, %v5884
      %v5886 = vpop.f32.mrb[0].mxu0
      %5887 = vmatprep.mubr.bf16.mxu0 %v2920
      %5888 = vmatmul.mubr.bf16.gmra.mrb[0].mxu0 %v839
      %v5889 = vpop.f32.mrb[0].mxu0
      %v5890 = vadd.f32 %v5665, %v5889
      %v5891 = vpop.f32.mrb[0].mxu0
      %v5892 = vpop.f32.mrb[0].mxu0
      %v5893 = vadd.f32 %v5668, %v5892
      %v5894 = vpop.f32.mrb[0].mxu0
      %5895 = vmatprep.mubr.bf16.mxu0 %v2914
      %5896 = vmatmul.mubr.bf16.gmra.mrb[0].mxu0 %v840
      %v5897 = vpop.f32.mrb[0].mxu0
      %v5898 = vadd.f32 %v5673, %v5897
      %v5899 = vpop.f32.mrb[0].mxu0
      %v5900 = vpop.f32.mrb[0].mxu0
      %v5901 = vadd.f32 %v5676, %v5900
      %v5902 = vpop.f32.mrb[0].mxu0
      %5903 = vmatprep.mubr.bf16.mxu0 %v2918
      %5904 = vmatmul.mubr.bf16.gmra.mrb[0].mxu0 %v841
      %v5905 = vpop.f32.mrb[0].mxu0
      %v5906 = vadd.f32 %v5681, %v5905
      %v5907 = vpop.f32.mrb[0].mxu0
      %v5908 = vpop.f32.mrb[0].mxu0
      %v5909 = vadd.f32 %v5684, %v5908
      %v5910 = vpop.f32.mrb[0].mxu0
      %5911 = vmatprep.mubr.bf16.mxu0 %v2922
      %5912 = vmatmul.mubr.bf16.gmra.mrb[0].mxu0 %v842
      %v5913 = vpop.f32.mrb[0].mxu0
      %v5914 = vadd.f32 %v5689, %v5913
      %v5915 = vpop.f32.mrb[0].mxu0
      %v5916 = vpop.f32.mrb[0].mxu0
      %v5917 = vadd.f32 %v5692, %v5916
      %v5918 = vpop.f32.mrb[0].mxu0
      %5919 = vmatprep.mubr.bf16.mxu0 %v2925
      %5920 = vmatmul.mubr.bf16.gmra.mrb[0].mxu0 %v843
      %v5921 = vpop.f32.mrb[0].mxu0
      %v5922 = vadd.f32 %v5697, %v5921
      %v5923 = vpop.f32.mrb[0].mxu0
      %v5924 = vpop.f32.mrb[0].mxu0
      %v5925 = vadd.f32 %v5700, %v5924
      %v5926 = vpop.f32.mrb[0].mxu0
      %5927 = vmatprep.mubr.bf16.mxu0 %v2928
      %5928 = vmatmul.mubr.bf16.gmra.mrb[0].mxu0 %v844
      %v5929 = vpop.f32.mrb[0].mxu0
      %v5930 = vadd.f32 %v5705, %v5929
      %v5931 = vpop.f32.mrb[0].mxu0
      %v5932 = vpop.f32.mrb[0].mxu0
      %v5933 = vadd.f32 %v5708, %v5932
      %v5934 = vpop.f32.mrb[0].mxu0
      %5935 = vmatprep.mubr.bf16.mxu0 %v2931
      %5936 = vmatmul.mubr.bf16.gmra.mrb[0].mxu0 %v845
      %v5937 = vpop.f32.mrb[0].mxu0
      %v5938 = vadd.f32 %v5713, %v5937
      %v5939 = vpop.f32.mrb[0].mxu0
      %v5940 = vpop.f32.mrb[0].mxu0
      %v5941 = vadd.f32 %v5716, %v5940
      %v5942 = vpop.f32.mrb[0].mxu0
      %5943 = vmatprep.mubr.bf16.mxu0 %v2934
      %5944 = vmatmul.mubr.bf16.gmra.mrb[0].mxu0 %v846
      %v5945 = vpop.f32.mrb[0].mxu0
      %v5946 = vadd.f32 %v5721, %v5945
      %v5947 = vpop.f32.mrb[0].mxu0
      %v5948 = vpop.f32.mrb[0].mxu0
      %v5949 = vadd.f32 %v5724, %v5948
      %v5950 = vpop.f32.mrb[0].mxu0
      %5951 = vmatprep.mubr.bf16.mxu0 %v2937
      %5952 = vmatmul.mubr.bf16.gmra.mrb[0].mxu0 %v847
      %v5953 = vpop.f32.mrb[0].mxu0
      %v5954 = vadd.f32 %v5729, %v5953
      %v5955 = vpop.f32.mrb[0].mxu0
      %v5956 = vpop.f32.mrb[0].mxu0
      %v5957 = vadd.f32 %v5732, %v5956
      %v5958 = vpop.f32.mrb[0].mxu0
      %5959 = vmatprep.mubr.bf16.mxu0 %v2940
      %5960 = vmatmul.mubr.bf16.gmra.mrb[0].mxu0 %v848
      %v5961 = vpop.f32.mrb[0].mxu0
      %v5962 = vadd.f32 %v5737, %v5961
      %v5963 = vpop.f32.mrb[0].mxu0
      %v5964 = vpop.f32.mrb[0].mxu0
      %v5965 = vadd.f32 %v5740, %v5964
      %v5966 = vpop.f32.mrb[0].mxu0
      %5967 = vmatprep.mubr.bf16.mxu0 %v2943
      %5968 = vmatmul.mubr.bf16.gmra.mrb[0].mxu0 %v849
      %v5969 = vpop.f32.mrb[0].mxu0
      %v5970 = vadd.f32 %v5745, %v5969
      %v5971 = vpop.f32.mrb[0].mxu0
      %v5972 = vpop.f32.mrb[0].mxu0
      %v5973 = vadd.f32 %v5748, %v5972
      %v5974 = vpop.f32.mrb[0].mxu0
      %5975 = vmatprep.mubr.bf16.mxu0 %v2946
      %5976 = vmatmul.mubr.bf16.gmra.mrb[0].mxu0 %v850
      %v5977 = vpop.f32.mrb[0].mxu0
      %v5978 = vadd.f32 %v5753, %v5977
      %v5979 = vpop.f32.mrb[0].mxu0
      %v5980 = vpop.f32.mrb[0].mxu0
      %v5981 = vadd.f32 %v5756, %v5980
      %v5982 = vpop.f32.mrb[0].mxu0
      %5983 = vmatprep.mubr.bf16.mxu0 %v2949
      %5984 = vmatmul.mubr.bf16.gmra.mrb[0].mxu0 %v851
      %v5985 = vpop.f32.mrb[0].mxu0
      %v5986 = vadd.f32 %v5761, %v5985
      %v5987 = vpop.f32.mrb[0].mxu0
      %v5988 = vpop.f32.mrb[0].mxu0
      %v5989 = vadd.f32 %v5764, %v5988
      %v5990 = vpop.f32.mrb[0].mxu0
      %5991 = vmatprep.mubr.bf16.mxu0 %v2952
      %5992 = vmatmul.mubr.bf16.gmra.mrb[0].mxu0 %v852
      %v5993 = vpop.f32.mrb[0].mxu0
      %v5994 = vadd.f32 %v5769, %v5993
      %v5995 = vpop.f32.mrb[0].mxu0
      %v5996 = vpop.f32.mrb[0].mxu0
      %v5997 = vadd.f32 %v5772, %v5996
      %v5998 = vpop.f32.mrb[0].mxu0
      %5999 = vmatprep.mubr.bf16.mxu0 %v2955
      %6000 = vmatmul.mubr.bf16.gmra.mrb[0].mxu0 %v853
      %v6001 = vpop.f32.mrb[0].mxu0
      %v6002 = vadd.f32 %v5777, %v6001
      %v6003 = vpop.f32.mrb[0].mxu0
      %v6004 = vpop.f32.mrb[0].mxu0
      %v6005 = vadd.f32 %v5780, %v6004
      %v6006 = vpop.f32.mrb[0].mxu0
      %6007 = vmatprep.mubr.bf16.mxu0 %v2958
      %6008 = vmatmul.mubr.bf16.gmra.mrb[0].mxu0 %v854
      %v6009 = vpop.f32.mrb[0].mxu0
      %v6010 = vadd.f32 %v5785, %v6009
      %v6011 = vpop.f32.mrb[0].mxu0
      %v6012 = vpop.f32.mrb[0].mxu0
      %v6013 = vadd.f32 %v5788, %v6012
      %v6014 = vpop.f32.mrb[0].mxu0
      %6015 = vmatprep.mubr.bf16.mxu0 %v2961
      %6016 = vmatmul.mubr.bf16.gmra.mrb[0].mxu0 %v855
      %v6017 = vpop.f32.mrb[0].mxu0
      %v6018 = vadd.f32 %v5793, %v6017
      %v6019 = vpop.f32.mrb[0].mxu0
      %v6020 = vpop.f32.mrb[0].mxu0
      %v6021 = vadd.f32 %v5796, %v6020
      %v6022 = vpop.f32.mrb[0].mxu0
      %6023 = vmatprep.mubr.bf16.mxu0 %v2964
      %6024 = vmatmul.mubr.bf16.gmra.mrb[0].mxu0 %v856
      %v6025 = vpop.f32.mrb[0].mxu0
      %v6026 = vadd.f32 %v5801, %v6025
      %v6027 = vpop.f32.mrb[0].mxu0
      %v6028 = vpop.f32.mrb[0].mxu0
      %v6029 = vadd.f32 %v5804, %v6028
      %v6030 = vpop.f32.mrb[0].mxu0
      %6031 = vmatprep.mubr.bf16.mxu0 %v2967
      %6032 = vmatmul.mubr.bf16.gmra.mrb[0].mxu0 %v857
      %v6033 = vpop.f32.mrb[0].mxu0
      %v6034 = vadd.f32 %v5809, %v6033
      %v6035 = vpop.f32.mrb[0].mxu0
      %v6036 = vpop.f32.mrb[0].mxu0
      %v6037 = vadd.f32 %v5812, %v6036
      %v6038 = vpop.f32.mrb[0].mxu0
      %6039 = vmatprep.mubr.bf16.mxu0 %v2970
      %6040 = vmatmul.mubr.bf16.gmra.mrb[0].mxu0 %v858
      %v6041 = vpop.f32.mrb[0].mxu0
      %v6042 = vadd.f32 %v5817, %v6041
      %v6043 = vpop.f32.mrb[0].mxu0
      %v6044 = vpop.f32.mrb[0].mxu0
      %v6045 = vadd.f32 %v5820, %v6044
      %v6046 = vpop.f32.mrb[0].mxu0
      %6047 = vmatprep.mubr.bf16.mxu0 %v2973
      %6048 = vmatmul.mubr.bf16.gmra.mrb[0].mxu0 %v859
      %v6049 = vpop.f32.mrb[0].mxu0
      %v6050 = vadd.f32 %v5825, %v6049
      %v6051 = vpop.f32.mrb[0].mxu0
      %v6052 = vpop.f32.mrb[0].mxu0
      %v6053 = vadd.f32 %v5828, %v6052
      %v6054 = vpop.f32.mrb[0].mxu0
      %6055 = vmatprep.mubr.bf16.mxu0 %v2976
      %6056 = vmatmul.mubr.bf16.gmra.mrb[0].mxu0 %v860
      %v6057 = vpop.f32.mrb[0].mxu0
      %v6058 = vadd.f32 %v5833, %v6057
      %v6059 = vpop.f32.mrb[0].mxu0
      %v6060 = vpop.f32.mrb[0].mxu0
      %v6061 = vadd.f32 %v5836, %v6060
      %v6062 = vpop.f32.mrb[0].mxu0
      %6063 = vdwg.mxu0
      %6064 = vmatprep.subr.bf16.mxu0 0
      %6065 = vmatpush1.bf16.msra.mxu0 %v5550
      %6066 = vmatprep.subr.bf16.mxu0 0
      %6067 = vmatpush1.bf16.msra.mxu0 %v5551
      %6068 = vmatprep.subr.bf16.mxu0 0
      %6069 = vmatpush1.bf16.msra.mxu0 %v5552
      %6070 = vmatprep.subr.bf16.mxu0 0
      %6071 = vmatpush1.bf16.msra.mxu0 %v5553
      %6072 = vmatprep.subr.bf16.mxu0 0
      %6073 = vmatpush1.bf16.msra.mxu0 %v5554
      %6074 = vmatprep.subr.bf16.mxu0 0
      %6075 = vmatpush1.bf16.msra.mxu0 %v5555
      %6076 = vmatprep.subr.bf16.mxu0 0
      %6077 = vmatpush1.bf16.msra.mxu0 %v5556
      %6078 = vmatprep.subr.bf16.mxu0 0
      %6079 = vmatpush1.bf16.msra.mxu0 %v5557
      %6080 = vmatprep.subr.bf16.mxu0 0
      %6081 = vmatpush1.bf16.msra.mxu0 %v5558
      %6082 = vmatprep.subr.bf16.mxu0 0
      %6083 = vmatpush1.bf16.msra.mxu0 %v5559
      %6084 = vmatprep.subr.bf16.mxu0 0
      %6085 = vmatpush1.bf16.msra.mxu0 %v5560
      %6086 = vmatprep.subr.bf16.mxu0 0
      %6087 = vmatpush1.bf16.msra.mxu0 %v5561
      %6088 = vmatprep.subr.bf16.mxu0 0
      %6089 = vmatpush1.bf16.msra.mxu0 %v5562
      %6090 = vmatprep.subr.bf16.mxu0 0
      %6091 = vmatpush1.bf16.msra.mxu0 %v5563
      %6092 = vmatprep.subr.bf16.mxu0 0
      %6093 = vmatpush1.bf16.msra.mxu0 %v5564
      %6094 = vmatprep.subr.bf16.mxu0 0
      %6095 = vmatpush1.bf16.msra.mxu0 %v5565
      %6096 = vmatprep.mubr.bf16.mxu0 %v2914
      %6097 = vmatmul.mubr.bf16.gmra.mrb[0].mxu0 %v2913
      %v6098 = vpop.f32.mrb[0].mxu0
      %v6099 = vadd.f32 %v5874, %v6098
      %v6100 = vpop.f32.mrb[0].mxu0
      %v6101 = vpop.f32.mrb[0].mxu0
      %v6102 = vadd.f32 %v5877, %v6101
      %v6103 = vpop.f32.mrb[0].mxu0
      %6104 = vmatprep.mubr.bf16.mxu0 %v2918
      %6105 = vmatmul.mubr.bf16.gmra.mrb[0].mxu0 %v2917
      %v6106 = vpop.f32.mrb[0].mxu0
      %v6107 = vadd.f32 %v5882, %v6106
      %v6108 = vpop.f32.mrb[0].mxu0
      %v6109 = vpop.f32.mrb[0].mxu0
      %v6110 = vadd.f32 %v5885, %v6109
      %v6111 = vpop.f32.mrb[0].mxu0
      %6112 = vmatprep.mubr.bf16.mxu0 %v2922
      %6113 = vmatmul.mubr.bf16.gmra.mrb[0].mxu0 %v2921
      %v6114 = vpop.f32.mrb[0].mxu0
      %v6115 = vadd.f32 %v5890, %v6114
      %v6116 = vpop.f32.mrb[0].mxu0
      %v6117 = vpop.f32.mrb[0].mxu0
      %v6118 = vadd.f32 %v5893, %v6117
      %v6119 = vpop.f32.mrb[0].mxu0
      %6120 = vmatprep.mubr.bf16.mxu0 %v2925
      %6121 = vmatmul.mubr.bf16.gmra.mrb[0].mxu0 %v2924
      %v6122 = vpop.f32.mrb[0].mxu0
      %v6123 = vadd.f32 %v5898, %v6122
      %v6124 = vpop.f32.mrb[0].mxu0
      %v6125 = vpop.f32.mrb[0].mxu0
      %v6126 = vadd.f32 %v5901, %v6125
      %v6127 = vpop.f32.mrb[0].mxu0
      %6128 = vmatprep.mubr.bf16.mxu0 %v2928
      %6129 = vmatmul.mubr.bf16.gmra.mrb[0].mxu0 %v2927
      %v6130 = vpop.f32.mrb[0].mxu0
      %v6131 = vadd.f32 %v5906, %v6130
      %v6132 = vpop.f32.mrb[0].mxu0
      %v6133 = vpop.f32.mrb[0].mxu0
      %v6134 = vadd.f32 %v5909, %v6133
      %v6135 = vpop.f32.mrb[0].mxu0
      %6136 = vmatprep.mubr.bf16.mxu0 %v2931
      %6137 = vmatmul.mubr.bf16.gmra.mrb[0].mxu0 %v2930
      %v6138 = vpop.f32.mrb[0].mxu0
      %v6139 = vadd.f32 %v5914, %v6138
      %v6140 = vpop.f32.mrb[0].mxu0
      %v6141 = vpop.f32.mrb[0].mxu0
      %v6142 = vadd.f32 %v5917, %v6141
      %v6143 = vpop.f32.mrb[0].mxu0
      %6144 = vmatprep.mubr.bf16.mxu0 %v2934
      %6145 = vmatmul.mubr.bf16.gmra.mrb[0].mxu0 %v2933
      %v6146 = vpop.f32.mrb[0].mxu0
      %v6147 = vadd.f32 %v5922, %v6146
      %v6148 = vpop.f32.mrb[0].mxu0
      %v6149 = vpop.f32.mrb[0].mxu0
      %v6150 = vadd.f32 %v5925, %v6149
      %v6151 = vpop.f32.mrb[0].mxu0
      %6152 = vmatprep.mubr.bf16.mxu0 %v2937
      %6153 = vmatmul.mubr.bf16.gmra.mrb[0].mxu0 %v2936
      %v6154 = vpop.f32.mrb[0].mxu0
      %v6155 = vadd.f32 %v5930, %v6154
      %v6156 = vpop.f32.mrb[0].mxu0
      %v6157 = vpop.f32.mrb[0].mxu0
      %v6158 = vadd.f32 %v5933, %v6157
      %v6159 = vpop.f32.mrb[0].mxu0
      %6160 = vmatprep.mubr.bf16.mxu0 %v2940
      %6161 = vmatmul.mubr.bf16.gmra.mrb[0].mxu0 %v2939
      %v6162 = vpop.f32.mrb[0].mxu0
      %v6163 = vadd.f32 %v5938, %v6162
      %v6164 = vpop.f32.mrb[0].mxu0
      %v6165 = vpop.f32.mrb[0].mxu0
      %v6166 = vadd.f32 %v5941, %v6165
      %v6167 = vpop.f32.mrb[0].mxu0
      %6168 = vmatprep.mubr.bf16.mxu0 %v2943
      %6169 = vmatmul.mubr.bf16.gmra.mrb[0].mxu0 %v2942
      %v6170 = vpop.f32.mrb[0].mxu0
      %v6171 = vadd.f32 %v5946, %v6170
      %v6172 = vpop.f32.mrb[0].mxu0
      %v6173 = vpop.f32.mrb[0].mxu0
      %v6174 = vadd.f32 %v5949, %v6173
      %v6175 = vpop.f32.mrb[0].mxu0
      %6176 = vmatprep.mubr.bf16.mxu0 %v2946
      %6177 = vmatmul.mubr.bf16.gmra.mrb[0].mxu0 %v2945
      %v6178 = vpop.f32.mrb[0].mxu0
      %v6179 = vadd.f32 %v5954, %v6178
      %v6180 = vpop.f32.mrb[0].mxu0
      %v6181 = vpop.f32.mrb[0].mxu0
      %v6182 = vadd.f32 %v5957, %v6181
      %v6183 = vpop.f32.mrb[0].mxu0
      %6184 = vmatprep.mubr.bf16.mxu0 %v2949
      %6185 = vmatmul.mubr.bf16.gmra.mrb[0].mxu0 %v2948
      %v6186 = vpop.f32.mrb[0].mxu0
      %v6187 = vadd.f32 %v5962, %v6186
      %v6188 = vpop.f32.mrb[0].mxu0
      %v6189 = vpop.f32.mrb[0].mxu0
      %v6190 = vadd.f32 %v5965, %v6189
      %v6191 = vpop.f32.mrb[0].mxu0
      %6192 = vmatprep.mubr.bf16.mxu0 %v2952
      %6193 = vmatmul.mubr.bf16.gmra.mrb[0].mxu0 %v2951
      %v6194 = vpop.f32.mrb[0].mxu0
      %v6195 = vadd.f32 %v5970, %v6194
      %v6196 = vpop.f32.mrb[0].mxu0
      %v6197 = vpop.f32.mrb[0].mxu0
      %v6198 = vadd.f32 %v5973, %v6197
      %v6199 = vpop.f32.mrb[0].mxu0
      %6200 = vmatprep.mubr.bf16.mxu0 %v2955
      %6201 = vmatmul.mubr.bf16.gmra.mrb[0].mxu0 %v2954
      %v6202 = vpop.f32.mrb[0].mxu0
      %v6203 = vadd.f32 %v5978, %v6202
      %v6204 = vpop.f32.mrb[0].mxu0
      %v6205 = vpop.f32.mrb[0].mxu0
      %v6206 = vadd.f32 %v5981, %v6205
      %v6207 = vpop.f32.mrb[0].mxu0
      %6208 = vmatprep.mubr.bf16.mxu0 %v2958
      %6209 = vmatmul.mubr.bf16.gmra.mrb[0].mxu0 %v2957
      %v6210 = vpop.f32.mrb[0].mxu0
      %v6211 = vadd.f32 %v5986, %v6210
      %v6212 = vpop.f32.mrb[0].mxu0
      %v6213 = vpop.f32.mrb[0].mxu0
      %v6214 = vadd.f32 %v5989, %v6213
      %v6215 = vpop.f32.mrb[0].mxu0
      %6216 = vmatprep.mubr.bf16.mxu0 %v2961
      %6217 = vmatmul.mubr.bf16.gmra.mrb[0].mxu0 %v2960
      %v6218 = vpop.f32.mrb[0].mxu0
      %v6219 = vadd.f32 %v5994, %v6218
      %v6220 = vpop.f32.mrb[0].mxu0
      %v6221 = vpop.f32.mrb[0].mxu0
      %v6222 = vadd.f32 %v5997, %v6221
      %v6223 = vpop.f32.mrb[0].mxu0
      %6224 = vmatprep.mubr.bf16.mxu0 %v2964
      %6225 = vmatmul.mubr.bf16.gmra.mrb[0].mxu0 %v2963
      %v6226 = vpop.f32.mrb[0].mxu0
      %v6227 = vadd.f32 %v6002, %v6226
      %v6228 = vpop.f32.mrb[0].mxu0
      %v6229 = vpop.f32.mrb[0].mxu0
      %v6230 = vadd.f32 %v6005, %v6229
      %v6231 = vpop.f32.mrb[0].mxu0
      %6232 = vmatprep.mubr.bf16.mxu0 %v2967
      %6233 = vmatmul.mubr.bf16.gmra.mrb[0].mxu0 %v2966
      %v6234 = vpop.f32.mrb[0].mxu0
      %v6235 = vadd.f32 %v6010, %v6234
      %v6236 = vpop.f32.mrb[0].mxu0
      %v6237 = vpop.f32.mrb[0].mxu0
      %v6238 = vadd.f32 %v6013, %v6237
      %v6239 = vpop.f32.mrb[0].mxu0
      %6240 = vmatprep.mubr.bf16.mxu0 %v2970
      %6241 = vmatmul.mubr.bf16.gmra.mrb[0].mxu0 %v2969
      %v6242 = vpop.f32.mrb[0].mxu0
      %v6243 = vadd.f32 %v6018, %v6242
      %v6244 = vpop.f32.mrb[0].mxu0
      %v6245 = vpop.f32.mrb[0].mxu0
      %v6246 = vadd.f32 %v6021, %v6245
      %v6247 = vpop.f32.mrb[0].mxu0
      %6248 = vmatprep.mubr.bf16.mxu0 %v2973
      %6249 = vmatmul.mubr.bf16.gmra.mrb[0].mxu0 %v2972
      %v6250 = vpop.f32.mrb[0].mxu0
      %v6251 = vadd.f32 %v6026, %v6250
      %v6252 = vpop.f32.mrb[0].mxu0
      %v6253 = vpop.f32.mrb[0].mxu0
      %v6254 = vadd.f32 %v6029, %v6253
      %v6255 = vpop.f32.mrb[0].mxu0
      %6256 = vmatprep.mubr.bf16.mxu0 %v2976
      %6257 = vmatmul.mubr.bf16.gmra.mrb[0].mxu0 %v2975
      %v6258 = vpop.f32.mrb[0].mxu0
      %v6259 = vadd.f32 %v6034, %v6258
      %v6260 = vpop.f32.mrb[0].mxu0
      %v6261 = vpop.f32.mrb[0].mxu0
      %v6262 = vadd.f32 %v6037, %v6261
      %v6263 = vpop.f32.mrb[0].mxu0
      %6264 = vmatprep.mubr.bf16.mxu0 %v2979
      %6265 = vmatmul.mubr.bf16.gmra.mrb[0].mxu0 %v2978
      %v6266 = vpop.f32.mrb[0].mxu0
      %v6267 = vadd.f32 %v6042, %v6266
      %v6268 = vpop.f32.mrb[0].mxu0
      %v6269 = vpop.f32.mrb[0].mxu0
      %v6270 = vadd.f32 %v6045, %v6269
      %v6271 = vpop.f32.mrb[0].mxu0
      %6272 = vmatprep.mubr.bf16.mxu0 %v2982
      %6273 = vmatmul.mubr.bf16.gmra.mrb[0].mxu0 %v2981
      %v6274 = vpop.f32.mrb[0].mxu0
      %v6275 = vadd.f32 %v6050, %v6274
      %v6276 = vpop.f32.mrb[0].mxu0
      %v6277 = vpop.f32.mrb[0].mxu0
      %v6278 = vadd.f32 %v6053, %v6277
      %v6279 = vpop.f32.mrb[0].mxu0
      %6280 = vmatprep.mubr.bf16.mxu0 %v2985
      %6281 = vmatmul.mubr.bf16.gmra.mrb[0].mxu0 %v2984
      %v6282 = vpop.f32.mrb[0].mxu0
      %v6283 = vadd.f32 %v6058, %v6282
      %v6284 = vpop.f32.mrb[0].mxu0
      %v6285 = vpop.f32.mrb[0].mxu0
      %v6286 = vadd.f32 %v6061, %v6285
      %v6287 = vpop.f32.mrb[0].mxu0
      %6288 = vdwg.mxu0
      %v6289 = vrot.slane %v6099, 1
      %v6290 = vrot.slane %v6102, 1
      %v6291 = vrot.slane %v6107, 1
      %v6292 = vrot.slane %v6110, 1
      %v6293 = vrot.slane %v6115, 1
      %v6294 = vrot.slane %v6118, 1
      %v6295 = vrot.slane %v6123, 1
      %v6296 = vrot.slane %v6126, 1
      %v6297 = vrot.slane %v6131, 1
      %v6298 = vrot.slane %v6134, 1
      %v6299 = vrot.slane %v6139, 1
      %v6300 = vrot.slane %v6142, 1
      %v6301 = vrot.slane %v6147, 1
      %v6302 = vrot.slane %v6150, 1
      %v6303 = vrot.slane %v6155, 1
      %v6304 = vrot.slane %v6158, 1
      %v6305 = vrot.slane %v6163, 1
      %v6306 = vrot.slane %v6166, 1
      %v6307 = vrot.slane %v6171, 1
      %v6308 = vrot.slane %v6174, 1
      %v6309 = vrot.slane %v6179, 1
      %v6310 = vrot.slane %v6182, 1
      %v6311 = vrot.slane %v6187, 1
      %v6312 = vrot.slane %v6190, 1
      %v6313 = vrot.slane %v6195, 1
      %v6314 = vrot.slane %v6198, 1
      %v6315 = vrot.slane %v6203, 1
      %v6316 = vrot.slane %v6206, 1
      %v6317 = vrot.slane %v6211, 1
      %v6318 = vrot.slane %v6214, 1
      %v6319 = vrot.slane %v6219, 1
      %v6320 = vrot.slane %v6222, 1
      %v6321 = vrot.slane %v6227, 1
      %v6322 = vrot.slane %v6230, 1
      %v6323 = vrot.slane %v6235, 1
      %v6324 = vrot.slane %v6238, 1
      %v6325 = vrot.slane %v6243, 1
      %v6326 = vrot.slane %v6246, 1
      %v6327 = vrot.slane %v6251, 1
      %v6328 = vrot.slane %v6254, 1
      %v6329 = vrot.slane %v6259, 1
      %v6330 = vrot.slane %v6262, 1
      %v6331 = vrot.slane %v6267, 1
      %v6332 = vrot.slane %v6270, 1
      %v6333 = vrot.slane %v6275, 1
      %v6334 = vrot.slane %v6278, 1
      %v6335 = vrot.slane %v6283, 1
      %v6336 = vrot.slane %v6286, 1
      %vm6337 = vcmp.lt.s32.totalorder %v4073, 7
      %v6338 = vsel %vm6337, %v6335, %v6336
      %v6339 = vsel %vm6337, %v6334, %v6335
      %v6340 = vsel %vm6337, %v6333, %v6334
      %v6341 = vsel %vm6337, %v6332, %v6333
      %v6342 = vsel %vm6337, %v6331, %v6332
      %v6343 = vsel %vm6337, %v6330, %v6331
      %v6344 = vsel %vm6337, %v6329, %v6330
      %v6345 = vsel %vm6337, %v6328, %v6329
      %v6346 = vsel %vm6337, %v6327, %v6328
      %v6347 = vsel %vm6337, %v6326, %v6327
      %v6348 = vsel %vm6337, %v6325, %v6326
      %v6349 = vsel %vm6337, %v6324, %v6325
      %v6350 = vsel %vm6337, %v6323, %v6324
      %v6351 = vsel %vm6337, %v6322, %v6323
      %v6352 = vsel %vm6337, %v6321, %v6322
      %v6353 = vsel %vm6337, %v6320, %v6321
      %v6354 = vsel %vm6337, %v6319, %v6320
      %v6355 = vsel %vm6337, %v6318, %v6319
      %v6356 = vsel %vm6337, %v6317, %v6318
      %v6357 = vsel %vm6337, %v6316, %v6317
      %v6358 = vsel %vm6337, %v6315, %v6316
      %v6359 = vsel %vm6337, %v6314, %v6315
      %v6360 = vsel %vm6337, %v6313, %v6314
      %v6361 = vsel %vm6337, %v6312, %v6313
      %v6362 = vsel %vm6337, %v6311, %v6312
      %v6363 = vsel %vm6337, %v6310, %v6311
      %v6364 = vsel %vm6337, %v6309, %v6310
      %v6365 = vsel %vm6337, %v6308, %v6309
      %v6366 = vsel %vm6337, %v6307, %v6308
      %v6367 = vsel %vm6337, %v6306, %v6307
      %v6368 = vsel %vm6337, %v6305, %v6306
      %v6369 = vsel %vm6337, %v6304, %v6305
      %v6370 = vsel %vm6337, %v6303, %v6304
      %v6371 = vsel %vm6337, %v6302, %v6303
      %v6372 = vsel %vm6337, %v6301, %v6302
      %v6373 = vsel %vm6337, %v6300, %v6301
      %v6374 = vsel %vm6337, %v6299, %v6300
      %v6375 = vsel %vm6337, %v6298, %v6299
      %v6376 = vsel %vm6337, %v6297, %v6298
      %v6377 = vsel %vm6337, %v6296, %v6297
      %v6378 = vsel %vm6337, %v6295, %v6296
      %v6379 = vsel %vm6337, %v6294, %v6295
      %v6380 = vsel %vm6337, %v6293, %v6294
      %v6381 = vsel %vm6337, %v6292, %v6293
      %v6382 = vsel %vm6337, %v6291, %v6292
      %v6383 = vsel %vm6337, %v6290, %v6291
      %v6384 = vsel %vm6337, %v6289, %v6290
      %v6385 = vsel %vm6337, %v6336, %v6289
      %v6386 = vadd.f32 %v5182, %v6384
      %v6387 = vadd.f32 %v5183, %v6383
      %v6388 = vadd.f32 %v5184, %v6382
      %v6389 = vadd.f32 %v5185, %v6381
      %v6390 = vadd.f32 %v5186, %v6380
      %v6391 = vadd.f32 %v5187, %v6379
      %v6392 = vadd.f32 %v5188, %v6378
      %v6393 = vadd.f32 %v5189, %v6377
      %v6394 = vadd.f32 %v5190, %v6376
      %v6395 = vadd.f32 %v5191, %v6375
      %v6396 = vadd.f32 %v5192, %v6374
      %v6397 = vadd.f32 %v5193, %v6373
      %v6398 = vadd.f32 %v5194, %v6372
      %v6399 = vadd.f32 %v5195, %v6371
      %v6400 = vadd.f32 %v5196, %v6370
      %v6401 = vadd.f32 %v5197, %v6369
      %v6402 = vadd.f32 %v5198, %v6368
      %v6403 = vadd.f32 %v5199, %v6367
      %v6404 = vadd.f32 %v5200, %v6366
      %v6405 = vadd.f32 %v5201, %v6365
      %v6406 = vadd.f32 %v5202, %v6364
      %v6407 = vadd.f32 %v5203, %v6363
      %v6408 = vadd.f32 %v5204, %v6362
      %v6409 = vadd.f32 %v5205, %v6361
      %v6410 = vadd.f32 %v5206, %v6360
      %v6411 = vadd.f32 %v5207, %v6359
      %v6412 = vadd.f32 %v5208, %v6358
      %v6413 = vadd.f32 %v5209, %v6357
      %v6414 = vadd.f32 %v5210, %v6356
      %v6415 = vadd.f32 %v5211, %v6355
      %v6416 = vadd.f32 %v5212, %v6354
      %v6417 = vadd.f32 %v5213, %v6353
      %v6418 = vadd.f32 %v5214, %v6352
      %v6419 = vadd.f32 %v5215, %v6351
      %v6420 = vadd.f32 %v5216, %v6350
      %v6421 = vadd.f32 %v5217, %v6349
      %v6422 = vadd.f32 %v5218, %v6348
      %v6423 = vadd.f32 %v5219, %v6347
      %v6424 = vadd.f32 %v5220, %v6346
      %v6425 = vadd.f32 %v5221, %v6345
      %v6426 = vadd.f32 %v5222, %v6344
      %v6427 = vadd.f32 %v5223, %v6343
      %v6428 = vadd.f32 %v5224, %v6342
      %v6429 = vadd.f32 %v5225, %v6341
      %v6430 = vadd.f32 %v5226, %v6340
      %v6431 = vadd.f32 %v5227, %v6339
      %v6432 = vadd.f32 %v5228, %v6338
      %v6433 = vadd.f32 %v5229, %v6385
      %v6434 = vld [vmem:[%s5] sm:$0x1]
      %v6436 = vlaneseq
      %v6437 = vshrl.u32 %v6436, 7
      %v6438 = vsub.s32 0, %v6437
      %v6439 = vrot.slane %v6434, %v6438
      %v6441 = vmul.f32 %v6386, %v6439
      %v6442 = vmul.f32 %v6387, %v6439
      %v6443 = vmul.f32 %v6388, %v6439
      %v6444 = vmul.f32 %v6389, %v6439
      %v6445 = vmul.f32 %v6390, %v6439
      %v6446 = vmul.f32 %v6391, %v6439
      %v6447 = vmul.f32 %v6392, %v6439
      %v6448 = vmul.f32 %v6393, %v6439
      %v6449 = vmul.f32 %v6394, %v6439
      %v6450 = vmul.f32 %v6395, %v6439
      %v6451 = vmul.f32 %v6396, %v6439
      %v6452 = vmul.f32 %v6397, %v6439
      %v6453 = vmul.f32 %v6398, %v6439
      %v6454 = vmul.f32 %v6399, %v6439
      %v6455 = vmul.f32 %v6400, %v6439
      %v6456 = vmul.f32 %v6401, %v6439
      %v6457 = vmul.f32 %v6402, %v6439
      %v6458 = vmul.f32 %v6403, %v6439
      %v6459 = vmul.f32 %v6404, %v6439
      %v6460 = vmul.f32 %v6405, %v6439
      %v6461 = vmul.f32 %v6406, %v6439
      %v6462 = vmul.f32 %v6407, %v6439
      %v6463 = vmul.f32 %v6408, %v6439
      %v6464 = vmul.f32 %v6409, %v6439
      %v6465 = vmul.f32 %v6410, %v6439
      %v6466 = vmul.f32 %v6411, %v6439
      %v6467 = vmul.f32 %v6412, %v6439
      %v6468 = vmul.f32 %v6413, %v6439
      %v6469 = vmul.f32 %v6414, %v6439
      %v6470 = vmul.f32 %v6415, %v6439
      %v6471 = vmul.f32 %v6416, %v6439
      %v6472 = vmul.f32 %v6417, %v6439
      %v6473 = vmul.f32 %v6418, %v6439
      %v6474 = vmul.f32 %v6419, %v6439
      %v6475 = vmul.f32 %v6420, %v6439
      %v6476 = vmul.f32 %v6421, %v6439
      %v6477 = vmul.f32 %v6422, %v6439
      %v6478 = vmul.f32 %v6423, %v6439
      %v6479 = vmul.f32 %v6424, %v6439
      %v6480 = vmul.f32 %v6425, %v6439
      %v6481 = vmul.f32 %v6426, %v6439
      %v6482 = vmul.f32 %v6427, %v6439
      %v6483 = vmul.f32 %v6428, %v6439
      %v6484 = vmul.f32 %v6429, %v6439
      %v6485 = vmul.f32 %v6430, %v6439
      %v6486 = vmul.f32 %v6431, %v6439
      %v6487 = vmul.f32 %v6432, %v6439
      %v6488 = vmul.f32 %v6433, %v6439
      %v6489 = vld [vmem:[%s6] sm:$0x1]
      %v6491 = vlaneseq
      %v6492 = vshrl.u32 %v6491, 7
      %v6493 = vsub.s32 0, %v6492
      %v6494 = vrot.slane %v6489, %v6493
      %v6496 = vadd.f32 %v6441, %v6494
      %v6497 = vadd.f32 %v6442, %v6494
      %v6498 = vadd.f32 %v6443, %v6494
      %v6499 = vadd.f32 %v6444, %v6494
      %v6500 = vadd.f32 %v6445, %v6494
      %v6501 = vadd.f32 %v6446, %v6494
      %v6502 = vadd.f32 %v6447, %v6494
      %v6503 = vadd.f32 %v6448, %v6494
      %v6504 = vadd.f32 %v6449, %v6494
      %v6505 = vadd.f32 %v6450, %v6494
      %v6506 = vadd.f32 %v6451, %v6494
      %v6507 = vadd.f32 %v6452, %v6494
      %v6508 = vadd.f32 %v6453, %v6494
      %v6509 = vadd.f32 %v6454, %v6494
      %v6510 = vadd.f32 %v6455, %v6494
      %v6511 = vadd.f32 %v6456, %v6494
      %v6512 = vadd.f32 %v6457, %v6494
      %v6513 = vadd.f32 %v6458, %v6494
      %v6514 = vadd.f32 %v6459, %v6494
      %v6515 = vadd.f32 %v6460, %v6494
      %v6516 = vadd.f32 %v6461, %v6494
      %v6517 = vadd.f32 %v6462, %v6494
      %v6518 = vadd.f32 %v6463, %v6494
      %v6519 = vadd.f32 %v6464, %v6494
      %v6520 = vadd.f32 %v6465, %v6494
      %v6521 = vadd.f32 %v6466, %v6494
      %v6522 = vadd.f32 %v6467, %v6494
      %v6523 = vadd.f32 %v6468, %v6494
      %v6524 = vadd.f32 %v6469, %v6494
      %v6525 = vadd.f32 %v6470, %v6494
      %v6526 = vadd.f32 %v6471, %v6494
      %v6527 = vadd.f32 %v6472, %v6494
      %v6528 = vadd.f32 %v6473, %v6494
      %v6529 = vadd.f32 %v6474, %v6494
      %v6530 = vadd.f32 %v6475, %v6494
      %v6531 = vadd.f32 %v6476, %v6494
      %v6532 = vadd.f32 %v6477, %v6494
      %v6533 = vadd.f32 %v6478, %v6494
      %v6534 = vadd.f32 %v6479, %v6494
      %v6535 = vadd.f32 %v6480, %v6494
      %v6536 = vadd.f32 %v6481, %v6494
      %v6537 = vadd.f32 %v6482, %v6494
      %v6538 = vadd.f32 %v6483, %v6494
      %v6539 = vadd.f32 %v6484, %v6494
      %v6540 = vadd.f32 %v6485, %v6494
      %v6541 = vadd.f32 %v6486, %v6494
      %v6542 = vadd.f32 %v6487, %v6494
      %v6543 = vadd.f32 %v6488, %v6494
      %v6544 = vmax.f32 %v6496, 0.0
      %v6545 = vmax.f32 %v6497, 0.0
      %v6546 = vmax.f32 %v6498, 0.0
      %v6547 = vmax.f32 %v6499, 0.0
      %v6548 = vmax.f32 %v6500, 0.0
      %v6549 = vmax.f32 %v6501, 0.0
      %v6550 = vmax.f32 %v6502, 0.0
      %v6551 = vmax.f32 %v6503, 0.0
      %v6552 = vmax.f32 %v6504, 0.0
      %v6553 = vmax.f32 %v6505, 0.0
      %v6554 = vmax.f32 %v6506, 0.0
      %v6555 = vmax.f32 %v6507, 0.0
      %v6556 = vmax.f32 %v6508, 0.0
      %v6557 = vmax.f32 %v6509, 0.0
      %v6558 = vmax.f32 %v6510, 0.0
      %v6559 = vmax.f32 %v6511, 0.0
      %v6560 = vmax.f32 %v6512, 0.0
      %v6561 = vmax.f32 %v6513, 0.0
      %v6562 = vmax.f32 %v6514, 0.0
      %v6563 = vmax.f32 %v6515, 0.0
      %v6564 = vmax.f32 %v6516, 0.0
      %v6565 = vmax.f32 %v6517, 0.0
      %v6566 = vmax.f32 %v6518, 0.0
      %v6567 = vmax.f32 %v6519, 0.0
      %v6568 = vmax.f32 %v6520, 0.0
      %v6569 = vmax.f32 %v6521, 0.0
      %v6570 = vmax.f32 %v6522, 0.0
      %v6571 = vmax.f32 %v6523, 0.0
      %v6572 = vmax.f32 %v6524, 0.0
      %v6573 = vmax.f32 %v6525, 0.0
      %v6574 = vmax.f32 %v6526, 0.0
      %v6575 = vmax.f32 %v6527, 0.0
      %v6576 = vmax.f32 %v6528, 0.0
      %v6577 = vmax.f32 %v6529, 0.0
      %v6578 = vmax.f32 %v6530, 0.0
      %v6579 = vmax.f32 %v6531, 0.0
      %v6580 = vmax.f32 %v6532, 0.0
      %v6581 = vmax.f32 %v6533, 0.0
      %v6582 = vmax.f32 %v6534, 0.0
      %v6583 = vmax.f32 %v6535, 0.0
      %v6584 = vmax.f32 %v6536, 0.0
      %v6585 = vmax.f32 %v6537, 0.0
      %v6586 = vmax.f32 %v6538, 0.0
      %v6587 = vmax.f32 %v6539, 0.0
      %v6588 = vmax.f32 %v6540, 0.0
      %v6589 = vmax.f32 %v6541, 0.0
      %v6590 = vmax.f32 %v6542, 0.0
      %v6591 = vmax.f32 %v6543, 0.0
      %v6592 = vadd.s32 %v4073, 8
      %v6593 = vadd.s32 %v4073, 16
      %vm6594 = vcmp.ge.s32.totalorder %v4073, 1
      %vm6595 = vcmp.ge.s32.totalorder %v6592, 1
      %vm6596 = vcmp.ge.s32.totalorder %v6593, 1
      %vm6597 = vcmp.le.s32.totalorder %v4073, 16
      %vm6598 = vcmp.le.s32.totalorder %v6592, 16
      %vm6599 = vcmp.le.s32.totalorder %v6593, 16
      %vm6600 = vmand %vm6594, %vm6597
      %vm6601 = vmand %vm6595, %vm6598
      %vm6602 = vmand %vm6596, %vm6599
      %v6603 = vsel %vm6600, 1, 0
      %v6604 = vsel %vm6601, 1, 0
      %v6605 = vsel %vm6602, 1, 0
      %vm6606 = vcmp.eq.s32.totalorder %v6603, 1
      %vm6607 = vcmp.eq.s32.totalorder %v6604, 1
      %vm6608 = vcmp.eq.s32.totalorder %v6605, 1
      %v6609 = vsel %vm6606, %v6544, 0.0
      %v6610 = vsel %vm6607, %v6545, 0.0
      %v6611 = vsel %vm6608, %v6546, 0.0
      %v6612 = vsel %vm6606, %v6547, 0.0
      %v6613 = vsel %vm6607, %v6548, 0.0
      %v6614 = vsel %vm6608, %v6549, 0.0
      %v6615 = vsel %vm6606, %v6550, 0.0
      %v6616 = vsel %vm6607, %v6551, 0.0
      %v6617 = vsel %vm6608, %v6552, 0.0
      %v6618 = vsel %vm6606, %v6553, 0.0
      %v6619 = vsel %vm6607, %v6554, 0.0
      %v6620 = vsel %vm6608, %v6555, 0.0
      %v6621 = vsel %vm6606, %v6556, 0.0
      %v6622 = vsel %vm6607, %v6557, 0.0
      %v6623 = vsel %vm6608, %v6558, 0.0
      %v6624 = vsel %vm6606, %v6559, 0.0
      %v6625 = vsel %vm6607, %v6560, 0.0
      %v6626 = vsel %vm6608, %v6561, 0.0
      %v6627 = vsel %vm6606, %v6562, 0.0
      %v6628 = vsel %vm6607, %v6563, 0.0
      %v6629 = vsel %vm6608, %v6564, 0.0
      %v6630 = vsel %vm6606, %v6565, 0.0
      %v6631 = vsel %vm6607, %v6566, 0.0
      %v6632 = vsel %vm6608, %v6567, 0.0
      %v6633 = vsel %vm6606, %v6568, 0.0
      %v6634 = vsel %vm6607, %v6569, 0.0
      %v6635 = vsel %vm6608, %v6570, 0.0
      %v6636 = vsel %vm6606, %v6571, 0.0
      %v6637 = vsel %vm6607, %v6572, 0.0
      %v6638 = vsel %vm6608, %v6573, 0.0
      %v6639 = vsel %vm6606, %v6574, 0.0
      %v6640 = vsel %vm6607, %v6575, 0.0
      %v6641 = vsel %vm6608, %v6576, 0.0
      %v6642 = vsel %vm6606, %v6577, 0.0
      %v6643 = vsel %vm6607, %v6578, 0.0
      %v6644 = vsel %vm6608, %v6579, 0.0
      %v6645 = vsel %vm6606, %v6580, 0.0
      %v6646 = vsel %vm6607, %v6581, 0.0
      %v6647 = vsel %vm6608, %v6582, 0.0
      %v6648 = vsel %vm6606, %v6583, 0.0
      %v6649 = vsel %vm6607, %v6584, 0.0
      %v6650 = vsel %vm6608, %v6585, 0.0
      %v6651 = vsel %vm6606, %v6586, 0.0
      %v6652 = vsel %vm6607, %v6587, 0.0
      %v6653 = vsel %vm6608, %v6588, 0.0
      %v6654 = vsel %vm6606, %v6589, 0.0
      %v6655 = vsel %vm6607, %v6590, 0.0
      %v6656 = vsel %vm6608, %v6591, 0.0
      %v6657 = vpack.c.bf16 %v6610, %v6609
      %v6658 = vpack.c.bf16 %v6611, %v6611
      %v6659 = vpack.c.bf16 %v6613, %v6612
      %v6660 = vpack.c.bf16 %v6614, %v6614
      %v6661 = vpack.c.bf16 %v6616, %v6615
      %v6662 = vpack.c.bf16 %v6617, %v6617
      %v6663 = vpack.c.bf16 %v6619, %v6618
      %v6664 = vpack.c.bf16 %v6620, %v6620
      %v6665 = vpack.c.bf16 %v6622, %v6621
      %v6666 = vpack.c.bf16 %v6623, %v6623
      %v6667 = vpack.c.bf16 %v6625, %v6624
      %v6668 = vpack.c.bf16 %v6626, %v6626
      %v6669 = vpack.c.bf16 %v6628, %v6627
      %v6670 = vpack.c.bf16 %v6629, %v6629
      %v6671 = vpack.c.bf16 %v6631, %v6630
      %v6672 = vpack.c.bf16 %v6632, %v6632
      %v6673 = vpack.c.bf16 %v6634, %v6633
      %v6674 = vpack.c.bf16 %v6635, %v6635
      %v6675 = vpack.c.bf16 %v6637, %v6636
      %v6676 = vpack.c.bf16 %v6638, %v6638
      %v6677 = vpack.c.bf16 %v6640, %v6639
      %v6678 = vpack.c.bf16 %v6641, %v6641
      %v6679 = vpack.c.bf16 %v6643, %v6642
      %v6680 = vpack.c.bf16 %v6644, %v6644
      %v6681 = vpack.c.bf16 %v6646, %v6645
      %v6682 = vpack.c.bf16 %v6647, %v6647
      %v6683 = vpack.c.bf16 %v6649, %v6648
      %v6684 = vpack.c.bf16 %v6650, %v6650
      %v6685 = vpack.c.bf16 %v6652, %v6651
      %v6686 = vpack.c.bf16 %v6653, %v6653
      %v6687 = vpack.c.bf16 %v6655, %v6654
      %v6688 = vpack.c.bf16 %v6656, %v6656
      %v6721 = vunpack.c.l.b16 %v6657
      %v6722 = vunpack.c.h.b16 %v6657
      %v6723 = vunpack.c.l.b16 %v6658
      %v6724 = vunpack.c.l.b16 %v6659
      %v6725 = vunpack.c.h.b16 %v6659
      %v6726 = vunpack.c.l.b16 %v6660
      %v6727 = vunpack.c.l.b16 %v6661
      %v6728 = vunpack.c.h.b16 %v6661
      %v6729 = vunpack.c.l.b16 %v6662
      %v6730 = vunpack.c.l.b16 %v6663
      %v6731 = vunpack.c.h.b16 %v6663
      %v6732 = vunpack.c.l.b16 %v6664
      %v6733 = vunpack.c.l.b16 %v6665
      %v6734 = vunpack.c.h.b16 %v6665
      %v6735 = vunpack.c.l.b16 %v6666
      %v6736 = vunpack.c.l.b16 %v6667
      %v6737 = vunpack.c.h.b16 %v6667
      %v6738 = vunpack.c.l.b16 %v6668
      %v6739 = vunpack.c.l.b16 %v6669
      %v6740 = vunpack.c.h.b16 %v6669
      %v6741 = vunpack.c.l.b16 %v6670
      %v6742 = vunpack.c.l.b16 %v6671
      %v6743 = vunpack.c.h.b16 %v6671
      %v6744 = vunpack.c.l.b16 %v6672
      %v6745 = vunpack.c.l.b16 %v6673
      %v6746 = vunpack.c.h.b16 %v6673
      %v6747 = vunpack.c.l.b16 %v6674
      %v6748 = vunpack.c.l.b16 %v6675
      %v6749 = vunpack.c.h.b16 %v6675
      %v6750 = vunpack.c.l.b16 %v6676
      %v6751 = vunpack.c.l.b16 %v6677
      %v6752 = vunpack.c.h.b16 %v6677
      %v6753 = vunpack.c.l.b16 %v6678
      %v6754 = vunpack.c.l.b16 %v6679
      %v6755 = vunpack.c.h.b16 %v6679
      %v6756 = vunpack.c.l.b16 %v6680
      %v6757 = vunpack.c.l.b16 %v6681
      %v6758 = vunpack.c.h.b16 %v6681
      %v6759 = vunpack.c.l.b16 %v6682
      %v6760 = vunpack.c.l.b16 %v6683
      %v6761 = vunpack.c.h.b16 %v6683
      %v6762 = vunpack.c.l.b16 %v6684
      %v6763 = vunpack.c.l.b16 %v6685
      %v6764 = vunpack.c.h.b16 %v6685
      %v6765 = vunpack.c.l.b16 %v6686
      %v6766 = vunpack.c.l.b16 %v6687
      %v6767 = vunpack.c.h.b16 %v6687
      %v6768 = vunpack.c.l.b16 %v6688
      %v6769 = vpack.c.b16 %v6721, %v6721
      %v6770 = vpack.c.b16 %v6722, %v6722
      %v6771 = vpack.c.b16 %v6723, %v6723
      %v6772 = vpack.c.b16 %v6724, %v6724
      %v6773 = vpack.c.b16 %v6725, %v6725
      %v6774 = vpack.c.b16 %v6726, %v6726
      %v6775 = vpack.c.b16 %v6727, %v6727
      %v6776 = vpack.c.b16 %v6728, %v6728
      %v6777 = vpack.c.b16 %v6729, %v6729
      %v6778 = vpack.c.b16 %v6730, %v6730
      %v6779 = vpack.c.b16 %v6731, %v6731
      %v6780 = vpack.c.b16 %v6732, %v6732
      %v6781 = vpack.c.b16 %v6733, %v6733
      %v6782 = vpack.c.b16 %v6734, %v6734
      %v6783 = vpack.c.b16 %v6735, %v6735
      %v6784 = vpack.c.b16 %v6736, %v6736
      %v6785 = vpack.c.b16 %v6737, %v6737
      %v6786 = vpack.c.b16 %v6738, %v6738
      %v6787 = vpack.c.b16 %v6739, %v6739
      %v6788 = vpack.c.b16 %v6740, %v6740
      %v6789 = vpack.c.b16 %v6741, %v6741
      %v6790 = vpack.c.b16 %v6742, %v6742
      %v6791 = vpack.c.b16 %v6743, %v6743
      %v6792 = vpack.c.b16 %v6744, %v6744
      %v6793 = vpack.c.b16 %v6745, %v6745
      %v6794 = vpack.c.b16 %v6746, %v6746
      %v6795 = vpack.c.b16 %v6747, %v6747
      %v6796 = vpack.c.b16 %v6748, %v6748
      %v6797 = vpack.c.b16 %v6749, %v6749
      %v6798 = vpack.c.b16 %v6750, %v6750
      %v6799 = vpack.c.b16 %v6751, %v6751
      %v6800 = vpack.c.b16 %v6752, %v6752
      %v6801 = vpack.c.b16 %v6753, %v6753
      %v6802 = vpack.c.b16 %v6754, %v6754
      %v6803 = vpack.c.b16 %v6755, %v6755
      %v6804 = vpack.c.b16 %v6756, %v6756
      %v6805 = vpack.c.b16 %v6757, %v6757
      %v6806 = vpack.c.b16 %v6758, %v6758
      %v6807 = vpack.c.b16 %v6759, %v6759
      %v6808 = vpack.c.b16 %v6760, %v6760
      %v6809 = vpack.c.b16 %v6761, %v6761
      %v6810 = vpack.c.b16 %v6762, %v6762
      %v6811 = vpack.c.b16 %v6763, %v6763
      %v6812 = vpack.c.b16 %v6764, %v6764
      %v6813 = vpack.c.b16 %v6765, %v6765
      %v6814 = vpack.c.b16 %v6766, %v6766
      %v6815 = vpack.c.b16 %v6767, %v6767
      %v6816 = vpack.c.b16 %v6768, %v6768
      %6865 = vst [vmem:[%s592] sm:$0xf] %v6769
      %6866 = vst [vmem:[%s592 + $0x4] sm:$0xf] %v6770
      %6867 = vst [vmem:[%s592 + $0x8] sm:$0xf] %v6771
      %6868 = vst [vmem:[%s592 + $0xc] sm:$0xf] %v6772
      %6869 = vst [vmem:[%s592 + $0x10] sm:$0xf] %v6773
      %6870 = vst [vmem:[%s592 + $0x14] sm:$0xf] %v6774
      %6871 = vst [vmem:[%s592 + $0x18] sm:$0xf] %v6775
      %6872 = vst [vmem:[%s592 + $0x1c] sm:$0xf] %v6776
      %6873 = vst [vmem:[%s592 + $0x20] sm:$0xf] %v6777
      %6874 = vst [vmem:[%s592 + $0x24] sm:$0xf] %v6778
      %6875 = vst [vmem:[%s592 + $0x28] sm:$0xf] %v6779
      %6876 = vst [vmem:[%s592 + $0x2c] sm:$0xf] %v6780
      %6877 = vst [vmem:[%s592 + $0x30] sm:$0xf] %v6781
      %6878 = vst [vmem:[%s592 + $0x34] sm:$0xf] %v6782
      %6879 = vst [vmem:[%s592 + $0x38] sm:$0xf] %v6783
      %6880 = vst [vmem:[%s592 + $0x3c] sm:$0xf] %v6784
      %6881 = vst [vmem:[%s592 + $0x40] sm:$0xf] %v6785
      %6882 = vst [vmem:[%s592 + $0x44] sm:$0xf] %v6786
      %6883 = vst [vmem:[%s592 + $0x48] sm:$0xf] %v6787
      %6884 = vst [vmem:[%s592 + $0x4c] sm:$0xf] %v6788
      %6885 = vst [vmem:[%s592 + $0x50] sm:$0xf] %v6789
      %6886 = vst [vmem:[%s592 + $0x54] sm:$0xf] %v6790
      %6887 = vst [vmem:[%s592 + $0x58] sm:$0xf] %v6791
      %6888 = vst [vmem:[%s592 + $0x5c] sm:$0xf] %v6792
      %6889 = vst [vmem:[%s592 + $0x60] sm:$0xf] %v6793
      %6890 = vst [vmem:[%s592 + $0x64] sm:$0xf] %v6794
      %6891 = vst [vmem:[%s592 + $0x68] sm:$0xf] %v6795
      %6892 = vst [vmem:[%s592 + $0x6c] sm:$0xf] %v6796
      %6893 = vst [vmem:[%s592 + $0x70] sm:$0xf] %v6797
      %6894 = vst [vmem:[%s592 + $0x74] sm:$0xf] %v6798
      %6895 = vst [vmem:[%s592 + $0x78] sm:$0xf] %v6799
      %6896 = vst [vmem:[%s592 + $0x7c] sm:$0xf] %v6800
      %6897 = vst [vmem:[%s592 + $0x80] sm:$0xf] %v6801
      %6898 = vst [vmem:[%s592 + $0x84] sm:$0xf] %v6802
      %6899 = vst [vmem:[%s592 + $0x88] sm:$0xf] %v6803
      %6900 = vst [vmem:[%s592 + $0x8c] sm:$0xf] %v6804
      %6901 = vst [vmem:[%s592 + $0x90] sm:$0xf] %v6805
      %6902 = vst [vmem:[%s592 + $0x94] sm:$0xf] %v6806
      %6903 = vst [vmem:[%s592 + $0x98] sm:$0xf] %v6807
      %6904 = vst [vmem:[%s592 + $0x9c] sm:$0xf] %v6808
      %6905 = vst [vmem:[%s592 + $0xa0] sm:$0xf] %v6809
      %6906 = vst [vmem:[%s592 + $0xa4] sm:$0xf] %v6810
      %6907 = vst [vmem:[%s592 + $0xa8] sm:$0xf] %v6811
      %6908 = vst [vmem:[%s592 + $0xac] sm:$0xf] %v6812
      %6909 = vst [vmem:[%s592 + $0xb0] sm:$0xf] %v6813
      %6910 = vst [vmem:[%s592 + $0xb4] sm:$0xf] %v6814
      %6911 = vst [vmem:[%s592 + $0xb8] sm:$0xf] %v6815
      %6912 = vst [vmem:[%s592 + $0xbc] sm:$0xf] %v6816
      %s6913 = smul.u32 16, %s31
      %p6914 = scmp.lt.s32.totalorder %s30, 1
      %s6915 = scalar_select %p6914, %s30, 1
      %p6916 = scmp.lt.s32.totalorder %s6913, 15
      %s6917 = scalar_select %p6916, %s6913, 15
      %s6918 = smul.addr %s6917, 3
      %s6919 = smul.addr %s6915, 48
      %s6920 = sadd.s32 %s6918, %s6919
      %s6921 = smul.addr %s6920, 4
      %s6922 = scalar_lea.vmem %s13, %s6921
      // Predicated region
      $region73: #{_lambda_.4} parent=71 // pred_check
        %p6923 = pneg %p359
      $region74: #{_lambda_.4} parent=71 // pred_check_branch
        %6925 = sbr.rel (%p6923) target = $region76
      $region75: #{_lambda_.4} parent=71 // pred_region
        %s6926 = smul.u32 16, %s31
      $region76: #{_lambda_.4} parent=71 // pred_fallthru
        _
    $region72: #{_lambda_.4} parent=5 // pred_fallthru
      _
    %p6927 = scmp.le.s32.totalorder 2, %s21
    // Predicated region
    $region77: #{_lambda_.4} parent=5 // pred_check
      %p6928 = pneg %p6927
    $region78: #{_lambda_.4} parent=5 // pred_check_branch
      %6930 = sbr.rel (%p6928) target = $region80
    $region79: #{_lambda_.4} parent=5 // pred_region
      %s6931 = ssub.s32 %s21, 2
      // Predicated region
      $region81: #{_lambda_.4} parent=79 // pred_check
        %p6932 = pneg %p365
      $region82: #{_lambda_.4} parent=79 // pred_check_branch
        %6934 = sbr.rel (%p6932) target = $region84
      $region83: #{_lambda_.4} parent=79 // pred_region
        %s6935 = smul.u32 16, %s33
        %p6936 = scmp.lt.s32.totalorder %s32, 1
        %s6937 = scalar_select %p6936, %s32, 1
        %p6938 = scmp.lt.s32.totalorder %s6935, 15
        %s6939 = scalar_select %p6938, %s6935, 15
        %s6940 = smul.addr %s6939, 3
        %s6941 = smul.addr %s6937, 48
        %s6942 = sadd.s32 %s6940, %s6941
        %s6943 = smul.addr %s6942, 4
        %s6944 = scalar_lea.vmem %s13, %s6943
      $region84: #{_lambda_.4} parent=79 // pred_fallthru
        _
    $region80: #{_lambda_.4} parent=5 // pred_fallthru
      _
  $region6: #{_lambda_.4} parent=0 // loop_footer
    %s25 = sadd.s32 1, %s21
  $region7: #{_lambda_.4} parent=0 // loop_footer_branch
    %20 = sbr.rel target = $region3
  $region8: #{_lambda_.4} parent=0 // loop_exit
    _

</llo_original>
